<compile_context>
chip_gen: v7x
topology: tpu7x:2x2x1
jax: 0.10.0
libtpu: 0.0.40
codegen_flags: <defaults>
</compile_context>

<pallas_src>
import jax
import jax.numpy as jnp
from jax.experimental import pallas as pl
from jax.experimental.pallas import tpu as pltpu


def _round_up(x, m):
    return ((x + m - 1) // m) * m


def _make_lstm_kernel(T, B_pad, lane_pad):
    """lane_pad = per-gate lane block (>= 128, multiple of 128)."""
    GW = 4 * lane_pad  # width of the packed gate vector [i | f | o | g]

    def kernel(x_ref, w_ih_ref, w_hh_ref, b_ref, w_out_ref, b_out_ref,
               y_ref, pre_scr):
        # ---- Hoisted input projection for ALL time steps at once ----
        #   (T*B_pad, E) @ (E, GW) + b  ->  (T*B_pad, GW)   (one MXU pass)
        pre_scr[...] = (
            jnp.dot(x_ref[...], w_ih_ref[...],
                    preferred_element_type=jnp.float32)
            + b_ref[...])

        w_hh = w_hh_ref[...]            # (HP, GW); rows >= H are zero

        def step(t, carry):
            h, c = carry                # (B_pad, HP); real state in lanes [0,H)
            row = pl.multiple_of(t * B_pad, B_pad)
            # Only the recurrent matmul stays on the serial critical path.
            gates = pre_scr[pl.ds(row, B_pad), :] + jnp.dot(
                h, w_hh, preferred_element_type=jnp.float32)  # (B_pad, GW)
            # Gate blocks are 128-lane aligned: [i | f | o | g], so all slices
            # below land on vreg boundaries (no masked sub-vreg extraction).
            sig = jax.nn.sigmoid(gates[:, :3 * lane_pad])      # full-tile EUP
            i_t = sig[:, 0 * lane_pad:1 * lane_pad]
            f_t = sig[:, 1 * lane_pad:2 * lane_pad]
            o_t = sig[:, 2 * lane_pad:3 * lane_pad]
            g_t = jnp.tanh(gates[:, 3 * lane_pad:4 * lane_pad])  # full-tile EUP
            c_new = f_t * c + i_t * g_t
            h_new = o_t * jnp.tanh(c_new)
            # Padding lanes [H, HP) stay exactly 0: their gate columns/bias are
            # zero => sigmoid=0.5 / tanh=0 => 0.5*0 + 0.5*0 = 0 forever.
            return h_new, c_new

        h0 = jnp.zeros((B_pad, lane_pad), jnp.float32)
        c0 = jnp.zeros((B_pad, lane_pad), jnp.float32)
        h_last, _ = jax.lax.fori_loop(0, T, step, (h0, c0), unroll=True)

        # hidden2label on the last hidden state. Rows >= H of w_out are zero,
        # so the padded lanes of h_last contribute nothing.
        y_ref[...] = (jnp.dot(h_last, w_out_ref[...],
                              preferred_element_type=jnp.float32)
                      + b_out_ref[...])

    return kernel


def text_lstmc_forward(sentence, params, *, seq_len, batch_size):
    """sentence: flat buffer, reshaped (like torch .view) to (T, B, E)."""
    w_ih, w_hh, b_ih, b_hh, w_out, b_out = [
        p.astype(jnp.float32) for p in params]
    H = w_hh.shape[1]
    L = w_out.shape[0]

    x = sentence.reshape(seq_len, batch_size, -1).astype(jnp.float32)
    T, B, E = x.shape

    B_pad = _round_up(B, 8)                 # sublane packing
    HP = max(128, _round_up(H, 128))        # 128-lane-aligned per-gate block
    GW = 4 * HP

    if B_pad != B:                          # zero-pad independent batch rows
        x = jnp.pad(x, ((0, 0), (0, B_pad - B), (0, 0)))
    x2d = x.reshape(T * B_pad, E)

    # Repack PyTorch's [i; f; g; o]-stacked weights into lane-aligned per-gate
    # blocks laid out as [i | f | o | g] (the three sigmoid gates contiguous).
    b_comb = b_ih + b_hh
    order = (0, 1, 3, 2)                    # torch gate index for slots i,f,o,g
    w_ih_big = jnp.zeros((E, GW), jnp.float32)
    w_hh_big = jnp.zeros((HP, GW), jnp.float32)
    b_big = jnp.zeros((GW,), jnp.float32)
    for slot, g in enumerate(order):
        rows = slice(g * H, (g + 1) * H)
        cols = slice(slot * HP, slot * HP + H)
        w_ih_big = w_ih_big.at[:, cols].set(w_ih[rows, :].T)
        w_hh_big = w_hh_big.at[:H, cols].set(w_hh[rows, :].T)
        b_big = b_big.at[cols].set(b_comb[rows])
    b_big = b_big.reshape(1, GW)

    w_out_big = jnp.zeros((HP, L), jnp.float32).at[:H, :].set(w_out.T)
    b_out2 = b_out.reshape(1, L)

    def vmem():
        return pl.BlockSpec(memory_space=pltpu.MemorySpace.VMEM)

    y_pad = pl.pallas_call(
        _make_lstm_kernel(T, B_pad, HP),
        out_shape=jax.ShapeDtypeStruct((B_pad, L), jnp.float32),
        in_specs=[vmem() for _ in range(6)],
        out_specs=vmem(),
        scratch_shapes=[pltpu.VMEM((T * B_pad, GW), jnp.float32)],  # pre-gates
    )(x2d, w_ih_big, w_hh_big, b_big, w_out_big, b_out2)
    return y_pad[:B]


def init_params(key, embedding_dim, hidden_dim, label_size):
    """Deterministic parameter init mirroring nn.LSTM / nn.Linear shapes."""
    ks = jax.random.split(key, 6)
    H, E, L = hidden_dim, embedding_dim, label_size
    s = 1.0 / jnp.sqrt(H)
    w_ih = jax.random.uniform(ks[0], (4 * H, E), jnp.float32, -s, s)
    w_hh = jax.random.uniform(ks[1], (4 * H, H), jnp.float32, -s, s)
    b_ih = jax.random.uniform(ks[2], (4 * H,), jnp.float32, -s, s)
    b_hh = jax.random.uniform(ks[3], (4 * H,), jnp.float32, -s, s)
    w_out = jax.random.uniform(ks[4], (L, H), jnp.float32, -s, s)
    b_out = jax.random.uniform(ks[5], (L,), jnp.float32, -s, s)
    return (w_ih, w_hh, b_ih, b_hh, w_out, b_out)


def _reference_forward(sentence, params, *, seq_len, batch_size):
    """Pure-JAX reference (PyTorch LSTM semantics) for sanity checking."""
    w_ih, w_hh, b_ih, b_hh, w_out, b_out = params
    H = w_hh.shape[1]
    x = sentence.reshape(seq_len, batch_size, -1).astype(jnp.float32)
    B = x.shape[1]
    h = jnp.zeros((B, H), jnp.float32)
    c = jnp.zeros((B, H), jnp.float32)

    def step(carry, x_t):
        h, c = carry
        gates = x_t @ w_ih.T + h @ w_hh.T + b_ih + b_hh
        i = jax.nn.sigmoid(gates[:, 0 * H:1 * H])
        f = jax.nn.sigmoid(gates[:, 1 * H:2 * H])
        g = jnp.tanh(gates[:, 2 * H:3 * H])
        o = jax.nn.sigmoid(gates[:, 3 * H:4 * H])
        c = f * c + i * g
        h = o * jnp.tanh(c)
        return (h, c), None

    (h, c), _ = jax.lax.scan(step, (h, c), x)
    return h @ w_out.T + b_out


if __name__ == "__main__":
    # Small shapes consistent with the module: seq_len is hard-coded to 40 by
    # the forward's .view(40, batch, -1).
    SEQ_LEN = 40
    BATCH = 2
    EMB = 8
    HIDDEN = 32
    LABELS = 4

    key = jax.random.PRNGKey(0)
    k_param, k_data = jax.random.split(key)

    params = init_params(k_param, EMB, HIDDEN, LABELS)

    # "sentence" as a flat buffer, reshaped time-major inside the wrapper
    # exactly like torch's .view(40, batch_size, -1).
    sentence = jax.random.normal(k_data, (SEQ_LEN * BATCH * EMB,), jnp.float32)

    y = text_lstmc_forward(sentence, params, seq_len=SEQ_LEN, batch_size=BATCH)
    y = jax.block_until_ready(y)

    y_ref = _reference_forward(sentence, params, seq_len=SEQ_LEN,
                               batch_size=BATCH)
    assert y.shape == (BATCH, LABELS)
    assert jnp.allclose(y, y_ref, atol=1e-4, rtol=1e-4), "mismatch vs reference"

    print("KERNEL_OK")
</pallas_src>

<mosaic_0001>
module attributes {stable_mosaic.version = 11 : i64} {
  func.func @kernel(%arg0: memref<320x8xf32, #tpu.memory_space<vmem>>, %arg1: memref<8x512xf32, #tpu.memory_space<vmem>>, %arg2: memref<128x512xf32, #tpu.memory_space<vmem>>, %arg3: memref<1x512xf32, #tpu.memory_space<vmem>>, %arg4: memref<128x4xf32, #tpu.memory_space<vmem>>, %arg5: memref<1x4xf32, #tpu.memory_space<vmem>>, %arg6: memref<8x4xf32, #tpu.memory_space<vmem>>, %arg7: memref<320x512xf32, #tpu.memory_space<vmem>>) attributes {dimension_semantics = [], scalar_prefetch = 0 : i64, scratch_operands = 1 : i64, tpu.core_type = #tpu.core_type<tc>} {
    %c0 = arith.constant 0 : index
    %c0_0 = arith.constant 0 : index
    %0 = vector.load %arg0[%c0, %c0_0] : memref<320x8xf32, #tpu.memory_space<vmem>>, vector<320x8xf32>
    %c0_1 = arith.constant 0 : index
    %c0_2 = arith.constant 0 : index
    %1 = vector.load %arg1[%c0_1, %c0_2] : memref<8x512xf32, #tpu.memory_space<vmem>>, vector<8x512xf32>
    %cst = arith.constant dense<0.000000e+00> : vector<320x512xf32>
    %2 = tpu.matmul %0, %1, %cst {dimension_numbers = #tpu.dot_dimension_numbers<[1], [0], [0], [1], [0, 0, 1, 1], [], []>} : vector<320x8xf32>, vector<8x512xf32>, vector<320x512xf32> -> vector<320x512xf32>
    %c0_3 = arith.constant 0 : index
    %c0_4 = arith.constant 0 : index
    %3 = vector.load %arg3[%c0_3, %c0_4] : memref<1x512xf32, #tpu.memory_space<vmem>>, vector<1x512xf32>
    %4 = vector.broadcast %3 : vector<1x512xf32> to vector<320x512xf32>
    %5 = arith.addf %2, %4 : vector<320x512xf32>
    %c0_5 = arith.constant 0 : index
    %c0_6 = arith.constant 0 : index
    %6 = vector.load %arg7[%c0_5, %c0_6] : memref<320x512xf32, #tpu.memory_space<vmem>>, vector<320x512xf32>
    tpu.vector_store %arg7[%c0_5, %c0_6], %5 {strides = array<i32>} : memref<320x512xf32, #tpu.memory_space<vmem>>, vector<320x512xf32>,
    %c0_7 = arith.constant 0 : index
    %c0_8 = arith.constant 0 : index
    %7 = vector.load %arg2[%c0_7, %c0_8] : memref<128x512xf32, #tpu.memory_space<vmem>>, vector<128x512xf32>
    %cst_9 = arith.constant 0.000000e+00 : f32
    %8 = vector.broadcast %cst_9 : f32 to vector<8x128xf32>
    %cst_10 = arith.constant 0.000000e+00 : f32
    %9 = vector.broadcast %cst_10 : f32 to vector<8x128xf32>
    %c0_i32 = arith.constant 0 : i32
    %c8_i32 = arith.constant 8 : i32
    %10 = arith.muli %c0_i32, %c8_i32 : i32
    %11 = tpu.assume_multiple %10, 8 : i32
    %12 = arith.index_cast %11 : i32 to index
    %c0_11 = arith.constant 0 : index
    %13 = vector.load %arg7[%12, %c0_11] : memref<320x512xf32, #tpu.memory_space<vmem>>, vector<8x512xf32>
    %cst_12 = arith.constant dense<0.000000e+00> : vector<8x512xf32>
    %14 = tpu.matmul %8, %7, %cst_12 {dimension_numbers = #tpu.dot_dimension_numbers<[1], [0], [0], [1], [0, 0, 1, 1], [], []>} : vector<8x128xf32>, vector<128x512xf32>, vector<8x512xf32> -> vector<8x512xf32>
    %15 = arith.addf %13, %14 : vector<8x512xf32>
    %16 = vector.extract_strided_slice %15 {offsets = [0, 0], sizes = [8, 384], strides = [1, 1]} : vector<8x512xf32> to vector<8x384xf32>
    %17 = arith.negf %16 : vector<8x384xf32>
    %18 = math.exp %17 : vector<8x384xf32>
    %cst_13 = arith.constant 1.000000e+00 : f32
    %19 = vector.broadcast %cst_13 : f32 to vector<8x384xf32>
    %20 = arith.addf %19, %18 : vector<8x384xf32>
    %21 = arith.divf %19, %20 : vector<8x384xf32>
    %22 = vector.extract_strided_slice %21 {offsets = [0, 0], sizes = [8, 128], strides = [1, 1]} : vector<8x384xf32> to vector<8x128xf32>
    %23 = vector.extract_strided_slice %21 {offsets = [0, 128], sizes = [8, 128], strides = [1, 1]} : vector<8x384xf32> to vector<8x128xf32>
    %24 = vector.extract_strided_slice %21 {offsets = [0, 256], sizes = [8, 128], strides = [1, 1]} : vector<8x384xf32> to vector<8x128xf32>
    %25 = vector.extract_strided_slice %15 {offsets = [0, 384], sizes = [8, 128], strides = [1, 1]} : vector<8x512xf32> to vector<8x128xf32>
    %26 = math.tanh %25 : vector<8x128xf32>
    %27 = arith.mulf %23, %9 : vector<8x128xf32>
    %28 = arith.mulf %22, %26 : vector<8x128xf32>
    %29 = arith.addf %27, %28 : vector<8x128xf32>
    %30 = math.tanh %29 : vector<8x128xf32>
    %31 = arith.mulf %24, %30 : vector<8x128xf32>
    %c1_i32 = arith.constant 1 : i32
    %c8_i32_14 = arith.constant 8 : i32
    %32 = arith.muli %c1_i32, %c8_i32_14 : i32
    %33 = tpu.assume_multiple %32, 8 : i32
    %34 = arith.index_cast %33 : i32 to index
    %c0_15 = arith.constant 0 : index
    %35 = vector.load %arg7[%34, %c0_15] : memref<320x512xf32, #tpu.memory_space<vmem>>, vector<8x512xf32>
    %cst_16 = arith.constant dense<0.000000e+00> : vector<8x512xf32>
    %36 = tpu.matmul %31, %7, %cst_16 {dimension_numbers = #tpu.dot_dimension_numbers<[1], [0], [0], [1], [0, 0, 1, 1], [], []>} : vector<8x128xf32>, vector<128x512xf32>, vector<8x512xf32> -> vector<8x512xf32>
    %37 = arith.addf %35, %36 : vector<8x512xf32>
    %38 = vector.extract_strided_slice %37 {offsets = [0, 0], sizes = [8, 384], strides = [1, 1]} : vector<8x512xf32> to vector<8x384xf32>
    %39 = arith.negf %38 : vector<8x384xf32>
    %40 = math.exp %39 : vector<8x384xf32>
    %cst_17 = arith.constant 1.000000e+00 : f32
    %41 = vector.broadcast %cst_17 : f32 to vector<8x384xf32>
    %42 = arith.addf %41, %40 : vector<8x384xf32>
    %43 = arith.divf %41, %42 : vector<8x384xf32>
    %44 = vector.extract_strided_slice %43 {offsets = [0, 0], sizes = [8, 128], strides = [1, 1]} : vector<8x384xf32> to vector<8x128xf32>
    %45 = vector.extract_strided_slice %43 {offsets = [0, 128], sizes = [8, 128], strides = [1, 1]} : vector<8x384xf32> to vector<8x128xf32>
    %46 = vector.extract_strided_slice %43 {offsets = [0, 256], sizes = [8, 128], strides = [1, 1]} : vector<8x384xf32> to vector<8x128xf32>
    %47 = vector.extract_strided_slice %37 {offsets = [0, 384], sizes = [8, 128], strides = [1, 1]} : vector<8x512xf32> to vector<8x128xf32>
    %48 = math.tanh %47 : vector<8x128xf32>
    %49 = arith.mulf %45, %29 : vector<8x128xf32>
    %50 = arith.mulf %44, %48 : vector<8x128xf32>
    %51 = arith.addf %49, %50 : vector<8x128xf32>
    %52 = math.tanh %51 : vector<8x128xf32>
    %53 = arith.mulf %46, %52 : vector<8x128xf32>
    %c2_i32 = arith.constant 2 : i32
    %c8_i32_18 = arith.constant 8 : i32
    %54 = arith.muli %c2_i32, %c8_i32_18 : i32
    %55 = tpu.assume_multiple %54, 8 : i32
    %56 = arith.index_cast %55 : i32 to index
    %c0_19 = arith.constant 0 : index
    %57 = vector.load %arg7[%56, %c0_19] : memref<320x512xf32, #tpu.memory_space<vmem>>, vector<8x512xf32>
    %cst_20 = arith.constant dense<0.000000e+00> : vector<8x512xf32>
    %58 = tpu.matmul %53, %7, %cst_20 {dimension_numbers = #tpu.dot_dimension_numbers<[1], [0], [0], [1], [0, 0, 1, 1], [], []>} : vector<8x128xf32>, vector<128x512xf32>, vector<8x512xf32> -> vector<8x512xf32>
    %59 = arith.addf %57, %58 : vector<8x512xf32>
    %60 = vector.extract_strided_slice %59 {offsets = [0, 0], sizes = [8, 384], strides = [1, 1]} : vector<8x512xf32> to vector<8x384xf32>
    %61 = arith.negf %60 : vector<8x384xf32>
    %62 = math.exp %61 : vector<8x384xf32>
    %cst_21 = arith.constant 1.000000e+00 : f32
    %63 = vector.broadcast %cst_21 : f32 to vector<8x384xf32>
    %64 = arith.addf %63, %62 : vector<8x384xf32>
    %65 = arith.divf %63, %64 : vector<8x384xf32>
    %66 = vector.extract_strided_slice %65 {offsets = [0, 0], sizes = [8, 128], strides = [1, 1]} : vector<8x384xf32> to vector<8x128xf32>
    %67 = vector.extract_strided_slice %65 {offsets = [0, 128], sizes = [8, 128], strides = [1, 1]} : vector<8x384xf32> to vector<8x128xf32>
    %68 = vector.extract_strided_slice %65 {offsets = [0, 256], sizes = [8, 128], strides = [1, 1]} : vector<8x384xf32> to vector<8x128xf32>
    %69 = vector.extract_strided_slice %59 {offsets = [0, 384], sizes = [8, 128], strides = [1, 1]} : vector<8x512xf32> to vector<8x128xf32>
    %70 = math.tanh %69 : vector<8x128xf32>
    %71 = arith.mulf %67, %51 : vector<8x128xf32>
    %72 = arith.mulf %66, %70 : vector<8x128xf32>
    %73 = arith.addf %71, %72 : vector<8x128xf32>
    %74 = math.tanh %73 : vector<8x128xf32>
    %75 = arith.mulf %68, %74 : vector<8x128xf32>
    %c3_i32 = arith.constant 3 : i32
    %c8_i32_22 = arith.constant 8 : i32
    %76 = arith.muli %c3_i32, %c8_i32_22 : i32
    %77 = tpu.assume_multiple %76, 8 : i32
    %78 = arith.index_cast %77 : i32 to index
    %c0_23 = arith.constant 0 : index
    %79 = vector.load %arg7[%78, %c0_23] : memref<320x512xf32, #tpu.memory_space<vmem>>, vector<8x512xf32>
    %cst_24 = arith.constant dense<0.000000e+00> : vector<8x512xf32>
    %80 = tpu.matmul %75, %7, %cst_24 {dimension_numbers = #tpu.dot_dimension_numbers<[1], [0], [0], [1], [0, 0, 1, 1], [], []>} : vector<8x128xf32>, vector<128x512xf32>, vector<8x512xf32> -> vector<8x512xf32>
    %81 = arith.addf %79, %80 : vector<8x512xf32>
    %82 = vector.extract_strided_slice %81 {offsets = [0, 0], sizes = [8, 384], strides = [1, 1]} : vector<8x512xf32> to vector<8x384xf32>
    %83 = arith.negf %82 : vector<8x384xf32>
    %84 = math.exp %83 : vector<8x384xf32>
    %cst_25 = arith.constant 1.000000e+00 : f32
    %85 = vector.broadcast %cst_25 : f32 to vector<8x384xf32>
    %86 = arith.addf %85, %84 : vector<8x384xf32>
    %87 = arith.divf %85, %86 : vector<8x384xf32>
    %88 = vector.extract_strided_slice %87 {offsets = [0, 0], sizes = [8, 128], strides = [1, 1]} : vector<8x384xf32> to vector<8x128xf32>
    %89 = vector.extract_strided_slice %87 {offsets = [0, 128], sizes = [8, 128], strides = [1, 1]} : vector<8x384xf32> to vector<8x128xf32>
    %90 = vector.extract_strided_slice %87 {offsets = [0, 256], sizes = [8, 128], strides = [1, 1]} : vector<8x384xf32> to vector<8x128xf32>
    %91 = vector.extract_strided_slice %81 {offsets = [0, 384], sizes = [8, 128], strides = [1, 1]} : vector<8x512xf32> to vector<8x128xf32>
    %92 = math.tanh %91 : vector<8x128xf32>
    %93 = arith.mulf %89, %73 : vector<8x128xf32>
    %94 = arith.mulf %88, %92 : vector<8x128xf32>
    %95 = arith.addf %93, %94 : vector<8x128xf32>
    %96 = math.tanh %95 : vector<8x128xf32>
    %97 = arith.mulf %90, %96 : vector<8x128xf32>
    %c4_i32 = arith.constant 4 : i32
    %c8_i32_26 = arith.constant 8 : i32
    %98 = arith.muli %c4_i32, %c8_i32_26 : i32
    %99 = tpu.assume_multiple %98, 8 : i32
    %100 = arith.index_cast %99 : i32 to index
    %c0_27 = arith.constant 0 : index
    %101 = vector.load %arg7[%100, %c0_27] : memref<320x512xf32, #tpu.memory_space<vmem>>, vector<8x512xf32>
    %cst_28 = arith.constant dense<0.000000e+00> : vector<8x512xf32>
    %102 = tpu.matmul %97, %7, %cst_28 {dimension_numbers = #tpu.dot_dimension_numbers<[1], [0], [0], [1], [0, 0, 1, 1], [], []>} : vector<8x128xf32>, vector<128x512xf32>, vector<8x512xf32> -> vector<8x512xf32>
    %103 = arith.addf %101, %102 : vector<8x512xf32>
    %104 = vector.extract_strided_slice %103 {offsets = [0, 0], sizes = [8, 384], strides = [1, 1]} : vector<8x512xf32> to vector<8x384xf32>
    %105 = arith.negf %104 : vector<8x384xf32>
    %106 = math.exp %105 : vector<8x384xf32>
    %cst_29 = arith.constant 1.000000e+00 : f32
    %107 = vector.broadcast %cst_29 : f32 to vector<8x384xf32>
    %108 = arith.addf %107, %106 : vector<8x384xf32>
    %109 = arith.divf %107, %108 : vector<8x384xf32>
    %110 = vector.extract_strided_slice %109 {offsets = [0, 0], sizes = [8, 128], strides = [1, 1]} : vector<8x384xf32> to vector<8x128xf32>
    %111 = vector.extract_strided_slice %109 {offsets = [0, 128], sizes = [8, 128], strides = [1, 1]} : vector<8x384xf32> to vector<8x128xf32>
    %112 = vector.extract_strided_slice %109 {offsets = [0, 256], sizes = [8, 128], strides = [1, 1]} : vector<8x384xf32> to vector<8x128xf32>
    %113 = vector.extract_strided_slice %103 {offsets = [0, 384], sizes = [8, 128], strides = [1, 1]} : vector<8x512xf32> to vector<8x128xf32>
    %114 = math.tanh %113 : vector<8x128xf32>
    %115 = arith.mulf %111, %95 : vector<8x128xf32>
    %116 = arith.mulf %110, %114 : vector<8x128xf32>
    %117 = arith.addf %115, %116 : vector<8x128xf32>
    %118 = math.tanh %117 : vector<8x128xf32>
    %119 = arith.mulf %112, %118 : vector<8x128xf32>
    %c5_i32 = arith.constant 5 : i32
    %c8_i32_30 = arith.constant 8 : i32
    %120 = arith.muli %c5_i32, %c8_i32_30 : i32
    %121 = tpu.assume_multiple %120, 8 : i32
    %122 = arith.index_cast %121 : i32 to index
    %c0_31 = arith.constant 0 : index
    %123 = vector.load %arg7[%122, %c0_31] : memref<320x512xf32, #tpu.memory_space<vmem>>, vector<8x512xf32>
    %cst_32 = arith.constant dense<0.000000e+00> : vector<8x512xf32>
    %124 = tpu.matmul %119, %7, %cst_32 {dimension_numbers = #tpu.dot_dimension_numbers<[1], [0], [0], [1], [0, 0, 1, 1], [], []>} : vector<8x128xf32>, vector<128x512xf32>, vector<8x512xf32> -> vector<8x512xf32>
    %125 = arith.addf %123, %124 : vector<8x512xf32>
    %126 = vector.extract_strided_slice %125 {offsets = [0, 0], sizes = [8, 384], strides = [1, 1]} : vector<8x512xf32> to vector<8x384xf32>
    %127 = arith.negf %126 : vector<8x384xf32>
    %128 = math.exp %127 : vector<8x384xf32>
    %cst_33 = arith.constant 1.000000e+00 : f32
    %129 = vector.broadcast %cst_33 : f32 to vector<8x384xf32>
    %130 = arith.addf %129, %128 : vector<8x384xf32>
    %131 = arith.divf %129, %130 : vector<8x384xf32>
    %132 = vector.extract_strided_slice %131 {offsets = [0, 0], sizes = [8, 128], strides = [1, 1]} : vector<8x384xf32> to vector<8x128xf32>
    %133 = vector.extract_strided_slice %131 {offsets = [0, 128], sizes = [8, 128], strides = [1, 1]} : vector<8x384xf32> to vector<8x128xf32>
    %134 = vector.extract_strided_slice %131 {offsets = [0, 256], sizes = [8, 128], strides = [1, 1]} : vector<8x384xf32> to vector<8x128xf32>
    %135 = vector.extract_strided_slice %125 {offsets = [0, 384], sizes = [8, 128], strides = [1, 1]} : vector<8x512xf32> to vector<8x128xf32>
    %136 = math.tanh %135 : vector<8x128xf32>
    %137 = arith.mulf %133, %117 : vector<8x128xf32>
    %138 = arith.mulf %132, %136 : vector<8x128xf32>
    %139 = arith.addf %137, %138 : vector<8x128xf32>
    %140 = math.tanh %139 : vector<8x128xf32>
    %141 = arith.mulf %134, %140 : vector<8x128xf32>
    %c6_i32 = arith.constant 6 : i32
    %c8_i32_34 = arith.constant 8 : i32
    %142 = arith.muli %c6_i32, %c8_i32_34 : i32
    %143 = tpu.assume_multiple %142, 8 : i32
    %144 = arith.index_cast %143 : i32 to index
    %c0_35 = arith.constant 0 : index
    %145 = vector.load %arg7[%144, %c0_35] : memref<320x512xf32, #tpu.memory_space<vmem>>, vector<8x512xf32>
    %cst_36 = arith.constant dense<0.000000e+00> : vector<8x512xf32>
    %146 = tpu.matmul %141, %7, %cst_36 {dimension_numbers = #tpu.dot_dimension_numbers<[1], [0], [0], [1], [0, 0, 1, 1], [], []>} : vector<8x128xf32>, vector<128x512xf32>, vector<8x512xf32> -> vector<8x512xf32>
    %147 = arith.addf %145, %146 : vector<8x512xf32>
    %148 = vector.extract_strided_slice %147 {offsets = [0, 0], sizes = [8, 384], strides = [1, 1]} : vector<8x512xf32> to vector<8x384xf32>
    %149 = arith.negf %148 : vector<8x384xf32>
    %150 = math.exp %149 : vector<8x384xf32>
    %cst_37 = arith.constant 1.000000e+00 : f32
    %151 = vector.broadcast %cst_37 : f32 to vector<8x384xf32>
    %152 = arith.addf %151, %150 : vector<8x384xf32>
    %153 = arith.divf %151, %152 : vector<8x384xf32>
    %154 = vector.extract_strided_slice %153 {offsets = [0, 0], sizes = [8, 128], strides = [1, 1]} : vector<8x384xf32> to vector<8x128xf32>
    %155 = vector.extract_strided_slice %153 {offsets = [0, 128], sizes = [8, 128], strides = [1, 1]} : vector<8x384xf32> to vector<8x128xf32>
    %156 = vector.extract_strided_slice %153 {offsets = [0, 256], sizes = [8, 128], strides = [1, 1]} : vector<8x384xf32> to vector<8x128xf32>
    %157 = vector.extract_strided_slice %147 {offsets = [0, 384], sizes = [8, 128], strides = [1, 1]} : vector<8x512xf32> to vector<8x128xf32>
    %158 = math.tanh %157 : vector<8x128xf32>
    %159 = arith.mulf %155, %139 : vector<8x128xf32>
    %160 = arith.mulf %154, %158 : vector<8x128xf32>
    %161 = arith.addf %159, %160 : vector<8x128xf32>
    %162 = math.tanh %161 : vector<8x128xf32>
    %163 = arith.mulf %156, %162 : vector<8x128xf32>
    %c7_i32 = arith.constant 7 : i32
    %c8_i32_38 = arith.constant 8 : i32
    %164 = arith.muli %c7_i32, %c8_i32_38 : i32
    %165 = tpu.assume_multiple %164, 8 : i32
    %166 = arith.index_cast %165 : i32 to index
    %c0_39 = arith.constant 0 : index
    %167 = vector.load %arg7[%166, %c0_39] : memref<320x512xf32, #tpu.memory_space<vmem>>, vector<8x512xf32>
    %cst_40 = arith.constant dense<0.000000e+00> : vector<8x512xf32>
    %168 = tpu.matmul %163, %7, %cst_40 {dimension_numbers = #tpu.dot_dimension_numbers<[1], [0], [0], [1], [0, 0, 1, 1], [], []>} : vector<8x128xf32>, vector<128x512xf32>, vector<8x512xf32> -> vector<8x512xf32>
    %169 = arith.addf %167, %168 : vector<8x512xf32>
    %170 = vector.extract_strided_slice %169 {offsets = [0, 0], sizes = [8, 384], strides = [1, 1]} : vector<8x512xf32> to vector<8x384xf32>
    %171 = arith.negf %170 : vector<8x384xf32>
    %172 = math.exp %171 : vector<8x384xf32>
    %cst_41 = arith.constant 1.000000e+00 : f32
    %173 = vector.broadcast %cst_41 : f32 to vector<8x384xf32>
    %174 = arith.addf %173, %172 : vector<8x384xf32>
    %175 = arith.divf %173, %174 : vector<8x384xf32>
    %176 = vector.extract_strided_slice %175 {offsets = [0, 0], sizes = [8, 128], strides = [1, 1]} : vector<8x384xf32> to vector<8x128xf32>
    %177 = vector.extract_strided_slice %175 {offsets = [0, 128], sizes = [8, 128], strides = [1, 1]} : vector<8x384xf32> to vector<8x128xf32>
    %178 = vector.extract_strided_slice %175 {offsets = [0, 256], sizes = [8, 128], strides = [1, 1]} : vector<8x384xf32> to vector<8x128xf32>
    %179 = vector.extract_strided_slice %169 {offsets = [0, 384], sizes = [8, 128], strides = [1, 1]} : vector<8x512xf32> to vector<8x128xf32>
    %180 = math.tanh %179 : vector<8x128xf32>
    %181 = arith.mulf %177, %161 : vector<8x128xf32>
    %182 = arith.mulf %176, %180 : vector<8x128xf32>
    %183 = arith.addf %181, %182 : vector<8x128xf32>
    %184 = math.tanh %183 : vector<8x128xf32>
    %185 = arith.mulf %178, %184 : vector<8x128xf32>
    %c8_i32_42 = arith.constant 8 : i32
    %c8_i32_43 = arith.constant 8 : i32
    %186 = arith.muli %c8_i32_42, %c8_i32_43 : i32
    %187 = tpu.assume_multiple %186, 8 : i32
    %188 = arith.index_cast %187 : i32 to index
    %c0_44 = arith.constant 0 : index
    %189 = vector.load %arg7[%188, %c0_44] : memref<320x512xf32, #tpu.memory_space<vmem>>, vector<8x512xf32>
    %cst_45 = arith.constant dense<0.000000e+00> : vector<8x512xf32>
    %190 = tpu.matmul %185, %7, %cst_45 {dimension_numbers = #tpu.dot_dimension_numbers<[1], [0], [0], [1], [0, 0, 1, 1], [], []>} : vector<8x128xf32>, vector<128x512xf32>, vector<8x512xf32> -> vector<8x512xf32>
    %191 = arith.addf %189, %190 : vector<8x512xf32>
    %192 = vector.extract_strided_slice %191 {offsets = [0, 0], sizes = [8, 384], strides = [1, 1]} : vector<8x512xf32> to vector<8x384xf32>
    %193 = arith.negf %192 : vector<8x384xf32>
    %194 = math.exp %193 : vector<8x384xf32>
    %cst_46 = arith.constant 1.000000e+00 : f32
    %195 = vector.broadcast %cst_46 : f32 to vector<8x384xf32>
    %196 = arith.addf %195, %194 : vector<8x384xf32>
    %197 = arith.divf %195, %196 : vector<8x384xf32>
    %198 = vector.extract_strided_slice %197 {offsets = [0, 0], sizes = [8, 128], strides = [1, 1]} : vector<8x384xf32> to vector<8x128xf32>
    %199 = vector.extract_strided_slice %197 {offsets = [0, 128], sizes = [8, 128], strides = [1, 1]} : vector<8x384xf32> to vector<8x128xf32>
    %200 = vector.extract_strided_slice %197 {offsets = [0, 256], sizes = [8, 128], strides = [1, 1]} : vector<8x384xf32> to vector<8x128xf32>
    %201 = vector.extract_strided_slice %191 {offsets = [0, 384], sizes = [8, 128], strides = [1, 1]} : vector<8x512xf32> to vector<8x128xf32>
    %202 = math.tanh %201 : vector<8x128xf32>
    %203 = arith.mulf %199, %183 : vector<8x128xf32>
    %204 = arith.mulf %198, %202 : vector<8x128xf32>
    %205 = arith.addf %203, %204 : vector<8x128xf32>
    %206 = math.tanh %205 : vector<8x128xf32>
    %207 = arith.mulf %200, %206 : vector<8x128xf32>
    %c9_i32 = arith.constant 9 : i32
    %c8_i32_47 = arith.constant 8 : i32
    %208 = arith.muli %c9_i32, %c8_i32_47 : i32
    %209 = tpu.assume_multiple %208, 8 : i32
    %210 = arith.index_cast %209 : i32 to index
    %c0_48 = arith.constant 0 : index
    %211 = vector.load %arg7[%210, %c0_48] : memref<320x512xf32, #tpu.memory_space<vmem>>, vector<8x512xf32>
    %cst_49 = arith.constant dense<0.000000e+00> : vector<8x512xf32>
    %212 = tpu.matmul %207, %7, %cst_49 {dimension_numbers = #tpu.dot_dimension_numbers<[1], [0], [0], [1], [0, 0, 1, 1], [], []>} : vector<8x128xf32>, vector<128x512xf32>, vector<8x512xf32> -> vector<8x512xf32>
    %213 = arith.addf %211, %212 : vector<8x512xf32>
    %214 = vector.extract_strided_slice %213 {offsets = [0, 0], sizes = [8, 384], strides = [1, 1]} : vector<8x512xf32> to vector<8x384xf32>
    %215 = arith.negf %214 : vector<8x384xf32>
    %216 = math.exp %215 : vector<8x384xf32>
    %cst_50 = arith.constant 1.000000e+00 : f32
    %217 = vector.broadcast %cst_50 : f32 to vector<8x384xf32>
    %218 = arith.addf %217, %216 : vector<8x384xf32>
    %219 = arith.divf %217, %218 : vector<8x384xf32>
    %220 = vector.extract_strided_slice %219 {offsets = [0, 0], sizes = [8, 128], strides = [1, 1]} : vector<8x384xf32> to vector<8x128xf32>
    %221 = vector.extract_strided_slice %219 {offsets = [0, 128], sizes = [8, 128], strides = [1, 1]} : vector<8x384xf32> to vector<8x128xf32>
    %222 = vector.extract_strided_slice %219 {offsets = [0, 256], sizes = [8, 128], strides = [1, 1]} : vector<8x384xf32> to vector<8x128xf32>
    %223 = vector.extract_strided_slice %213 {offsets = [0, 384], sizes = [8, 128], strides = [1, 1]} : vector<8x512xf32> to vector<8x128xf32>
    %224 = math.tanh %223 : vector<8x128xf32>
    %225 = arith.mulf %221, %205 : vector<8x128xf32>
    %226 = arith.mulf %220, %224 : vector<8x128xf32>
    %227 = arith.addf %225, %226 : vector<8x128xf32>
    %228 = math.tanh %227 : vector<8x128xf32>
    %229 = arith.mulf %222, %228 : vector<8x128xf32>
    %c10_i32 = arith.constant 10 : i32
    %c8_i32_51 = arith.constant 8 : i32
    %230 = arith.muli %c10_i32, %c8_i32_51 : i32
    %231 = tpu.assume_multiple %230, 8 : i32
    %232 = arith.index_cast %231 : i32 to index
    %c0_52 = arith.constant 0 : index
    %233 = vector.load %arg7[%232, %c0_52] : memref<320x512xf32, #tpu.memory_space<vmem>>, vector<8x512xf32>
    %cst_53 = arith.constant dense<0.000000e+00> : vector<8x512xf32>
    %234 = tpu.matmul %229, %7, %cst_53 {dimension_numbers = #tpu.dot_dimension_numbers<[1], [0], [0], [1], [0, 0, 1, 1], [], []>} : vector<8x128xf32>, vector<128x512xf32>, vector<8x512xf32> -> vector<8x512xf32>
    %235 = arith.addf %233, %234 : vector<8x512xf32>
    %236 = vector.extract_strided_slice %235 {offsets = [0, 0], sizes = [8, 384], strides = [1, 1]} : vector<8x512xf32> to vector<8x384xf32>
    %237 = arith.negf %236 : vector<8x384xf32>
    %238 = math.exp %237 : vector<8x384xf32>
    %cst_54 = arith.constant 1.000000e+00 : f32
    %239 = vector.broadcast %cst_54 : f32 to vector<8x384xf32>
    %240 = arith.addf %239, %238 : vector<8x384xf32>
    %241 = arith.divf %239, %240 : vector<8x384xf32>
    %242 = vector.extract_strided_slice %241 {offsets = [0, 0], sizes = [8, 128], strides = [1, 1]} : vector<8x384xf32> to vector<8x128xf32>
    %243 = vector.extract_strided_slice %241 {offsets = [0, 128], sizes = [8, 128], strides = [1, 1]} : vector<8x384xf32> to vector<8x128xf32>
    %244 = vector.extract_strided_slice %241 {offsets = [0, 256], sizes = [8, 128], strides = [1, 1]} : vector<8x384xf32> to vector<8x128xf32>
    %245 = vector.extract_strided_slice %235 {offsets = [0, 384], sizes = [8, 128], strides = [1, 1]} : vector<8x512xf32> to vector<8x128xf32>
    %246 = math.tanh %245 : vector<8x128xf32>
    %247 = arith.mulf %243, %227 : vector<8x128xf32>
    %248 = arith.mulf %242, %246 : vector<8x128xf32>
    %249 = arith.addf %247, %248 : vector<8x128xf32>
    %250 = math.tanh %249 : vector<8x128xf32>
    %251 = arith.mulf %244, %250 : vector<8x128xf32>
    %c11_i32 = arith.constant 11 : i32
    %c8_i32_55 = arith.constant 8 : i32
    %252 = arith.muli %c11_i32, %c8_i32_55 : i32
    %253 = tpu.assume_multiple %252, 8 : i32
    %254 = arith.index_cast %253 : i32 to index
    %c0_56 = arith.constant 0 : index
    %255 = vector.load %arg7[%254, %c0_56] : memref<320x512xf32, #tpu.memory_space<vmem>>, vector<8x512xf32>
    %cst_57 = arith.constant dense<0.000000e+00> : vector<8x512xf32>
    %256 = tpu.matmul %251, %7, %cst_57 {dimension_numbers = #tpu.dot_dimension_numbers<[1], [0], [0], [1], [0, 0, 1, 1], [], []>} : vector<8x128xf32>, vector<128x512xf32>, vector<8x512xf32> -> vector<8x512xf32>
    %257 = arith.addf %255, %256 : vector<8x512xf32>
    %258 = vector.extract_strided_slice %257 {offsets = [0, 0], sizes = [8, 384], strides = [1, 1]} : vector<8x512xf32> to vector<8x384xf32>
    %259 = arith.negf %258 : vector<8x384xf32>
    %260 = math.exp %259 : vector<8x384xf32>
    %cst_58 = arith.constant 1.000000e+00 : f32
    %261 = vector.broadcast %cst_58 : f32 to vector<8x384xf32>
    %262 = arith.addf %261, %260 : vector<8x384xf32>
    %263 = arith.divf %261, %262 : vector<8x384xf32>
    %264 = vector.extract_strided_slice %263 {offsets = [0, 0], sizes = [8, 128], strides = [1, 1]} : vector<8x384xf32> to vector<8x128xf32>
    %265 = vector.extract_strided_slice %263 {offsets = [0, 128], sizes = [8, 128], strides = [1, 1]} : vector<8x384xf32> to vector<8x128xf32>
    %266 = vector.extract_strided_slice %263 {offsets = [0, 256], sizes = [8, 128], strides = [1, 1]} : vector<8x384xf32> to vector<8x128xf32>
    %267 = vector.extract_strided_slice %257 {offsets = [0, 384], sizes = [8, 128], strides = [1, 1]} : vector<8x512xf32> to vector<8x128xf32>
    %268 = math.tanh %267 : vector<8x128xf32>
    %269 = arith.mulf %265, %249 : vector<8x128xf32>
    %270 = arith.mulf %264, %268 : vector<8x128xf32>
    %271 = arith.addf %269, %270 : vector<8x128xf32>
    %272 = math.tanh %271 : vector<8x128xf32>
    %273 = arith.mulf %266, %272 : vector<8x128xf32>
    %c12_i32 = arith.constant 12 : i32
    %c8_i32_59 = arith.constant 8 : i32
    %274 = arith.muli %c12_i32, %c8_i32_59 : i32
    %275 = tpu.assume_multiple %274, 8 : i32
    %276 = arith.index_cast %275 : i32 to index
    %c0_60 = arith.constant 0 : index
    %277 = vector.load %arg7[%276, %c0_60] : memref<320x512xf32, #tpu.memory_space<vmem>>, vector<8x512xf32>
    %cst_61 = arith.constant dense<0.000000e+00> : vector<8x512xf32>
    %278 = tpu.matmul %273, %7, %cst_61 {dimension_numbers = #tpu.dot_dimension_numbers<[1], [0], [0], [1], [0, 0, 1, 1], [], []>} : vector<8x128xf32>, vector<128x512xf32>, vector<8x512xf32> -> vector<8x512xf32>
    %279 = arith.addf %277, %278 : vector<8x512xf32>
    %280 = vector.extract_strided_slice %279 {offsets = [0, 0], sizes = [8, 384], strides = [1, 1]} : vector<8x512xf32> to vector<8x384xf32>
    %281 = arith.negf %280 : vector<8x384xf32>
    %282 = math.exp %281 : vector<8x384xf32>
    %cst_62 = arith.constant 1.000000e+00 : f32
    %283 = vector.broadcast %cst_62 : f32 to vector<8x384xf32>
    %284 = arith.addf %283, %282 : vector<8x384xf32>
    %285 = arith.divf %283, %284 : vector<8x384xf32>
    %286 = vector.extract_strided_slice %285 {offsets = [0, 0], sizes = [8, 128], strides = [1, 1]} : vector<8x384xf32> to vector<8x128xf32>
    %287 = vector.extract_strided_slice %285 {offsets = [0, 128], sizes = [8, 128], strides = [1, 1]} : vector<8x384xf32> to vector<8x128xf32>
    %288 = vector.extract_strided_slice %285 {offsets = [0, 256], sizes = [8, 128], strides = [1, 1]} : vector<8x384xf32> to vector<8x128xf32>
    %289 = vector.extract_strided_slice %279 {offsets = [0, 384], sizes = [8, 128], strides = [1, 1]} : vector<8x512xf32> to vector<8x128xf32>
    %290 = math.tanh %289 : vector<8x128xf32>
    %291 = arith.mulf %287, %271 : vector<8x128xf32>
    %292 = arith.mulf %286, %290 : vector<8x128xf32>
    %293 = arith.addf %291, %292 : vector<8x128xf32>
    %294 = math.tanh %293 : vector<8x128xf32>
    %295 = arith.mulf %288, %294 : vector<8x128xf32>
    %c13_i32 = arith.constant 13 : i32
    %c8_i32_63 = arith.constant 8 : i32
    %296 = arith.muli %c13_i32, %c8_i32_63 : i32
    %297 = tpu.assume_multiple %296, 8 : i32
    %298 = arith.index_cast %297 : i32 to index
    %c0_64 = arith.constant 0 : index
    %299 = vector.load %arg7[%298, %c0_64] : memref<320x512xf32, #tpu.memory_space<vmem>>, vector<8x512xf32>
    %cst_65 = arith.constant dense<0.000000e+00> : vector<8x512xf32>
    %300 = tpu.matmul %295, %7, %cst_65 {dimension_numbers = #tpu.dot_dimension_numbers<[1], [0], [0], [1], [0, 0, 1, 1], [], []>} : vector<8x128xf32>, vector<128x512xf32>, vector<8x512xf32> -> vector<8x512xf32>
    %301 = arith.addf %299, %300 : vector<8x512xf32>
    %302 = vector.extract_strided_slice %301 {offsets = [0, 0], sizes = [8, 384], strides = [1, 1]} : vector<8x512xf32> to vector<8x384xf32>
    %303 = arith.negf %302 : vector<8x384xf32>
    %304 = math.exp %303 : vector<8x384xf32>
    %cst_66 = arith.constant 1.000000e+00 : f32
    %305 = vector.broadcast %cst_66 : f32 to vector<8x384xf32>
    %306 = arith.addf %305, %304 : vector<8x384xf32>
    %307 = arith.divf %305, %306 : vector<8x384xf32>
    %308 = vector.extract_strided_slice %307 {offsets = [0, 0], sizes = [8, 128], strides = [1, 1]} : vector<8x384xf32> to vector<8x128xf32>
    %309 = vector.extract_strided_slice %307 {offsets = [0, 128], sizes = [8, 128], strides = [1, 1]} : vector<8x384xf32> to vector<8x128xf32>
    %310 = vector.extract_strided_slice %307 {offsets = [0, 256], sizes = [8, 128], strides = [1, 1]} : vector<8x384xf32> to vector<8x128xf32>
    %311 = vector.extract_strided_slice %301 {offsets = [0, 384], sizes = [8, 128], strides = [1, 1]} : vector<8x512xf32> to vector<8x128xf32>
    %312 = math.tanh %311 : vector<8x128xf32>
    %313 = arith.mulf %309, %293 : vector<8x128xf32>
    %314 = arith.mulf %308, %312 : vector<8x128xf32>
    %315 = arith.addf %313, %314 : vector<8x128xf32>
    %316 = math.tanh %315 : vector<8x128xf32>
    %317 = arith.mulf %310, %316 : vector<8x128xf32>
    %c14_i32 = arith.constant 14 : i32
    %c8_i32_67 = arith.constant 8 : i32
    %318 = arith.muli %c14_i32, %c8_i32_67 : i32
    %319 = tpu.assume_multiple %318, 8 : i32
    %320 = arith.index_cast %319 : i32 to index
    %c0_68 = arith.constant 0 : index
    %321 = vector.load %arg7[%320, %c0_68] : memref<320x512xf32, #tpu.memory_space<vmem>>, vector<8x512xf32>
    %cst_69 = arith.constant dense<0.000000e+00> : vector<8x512xf32>
    %322 = tpu.matmul %317, %7, %cst_69 {dimension_numbers = #tpu.dot_dimension_numbers<[1], [0], [0], [1], [0, 0, 1, 1], [], []>} : vector<8x128xf32>, vector<128x512xf32>, vector<8x512xf32> -> vector<8x512xf32>
    %323 = arith.addf %321, %322 : vector<8x512xf32>
    %324 = vector.extract_strided_slice %323 {offsets = [0, 0], sizes = [8, 384], strides = [1, 1]} : vector<8x512xf32> to vector<8x384xf32>
    %325 = arith.negf %324 : vector<8x384xf32>
    %326 = math.exp %325 : vector<8x384xf32>
    %cst_70 = arith.constant 1.000000e+00 : f32
    %327 = vector.broadcast %cst_70 : f32 to vector<8x384xf32>
    %328 = arith.addf %327, %326 : vector<8x384xf32>
    %329 = arith.divf %327, %328 : vector<8x384xf32>
    %330 = vector.extract_strided_slice %329 {offsets = [0, 0], sizes = [8, 128], strides = [1, 1]} : vector<8x384xf32> to vector<8x128xf32>
    %331 = vector.extract_strided_slice %329 {offsets = [0, 128], sizes = [8, 128], strides = [1, 1]} : vector<8x384xf32> to vector<8x128xf32>
    %332 = vector.extract_strided_slice %329 {offsets = [0, 256], sizes = [8, 128], strides = [1, 1]} : vector<8x384xf32> to vector<8x128xf32>
    %333 = vector.extract_strided_slice %323 {offsets = [0, 384], sizes = [8, 128], strides = [1, 1]} : vector<8x512xf32> to vector<8x128xf32>
    %334 = math.tanh %333 : vector<8x128xf32>
    %335 = arith.mulf %331, %315 : vector<8x128xf32>
    %336 = arith.mulf %330, %334 : vector<8x128xf32>
    %337 = arith.addf %335, %336 : vector<8x128xf32>
    %338 = math.tanh %337 : vector<8x128xf32>
    %339 = arith.mulf %332, %338 : vector<8x128xf32>
    %c15_i32 = arith.constant 15 : i32
    %c8_i32_71 = arith.constant 8 : i32
    %340 = arith.muli %c15_i32, %c8_i32_71 : i32
    %341 = tpu.assume_multiple %340, 8 : i32
    %342 = arith.index_cast %341 : i32 to index
    %c0_72 = arith.constant 0 : index
    %343 = vector.load %arg7[%342, %c0_72] : memref<320x512xf32, #tpu.memory_space<vmem>>, vector<8x512xf32>
    %cst_73 = arith.constant dense<0.000000e+00> : vector<8x512xf32>
    %344 = tpu.matmul %339, %7, %cst_73 {dimension_numbers = #tpu.dot_dimension_numbers<[1], [0], [0], [1], [0, 0, 1, 1], [], []>} : vector<8x128xf32>, vector<128x512xf32>, vector<8x512xf32> -> vector<8x512xf32>
    %345 = arith.addf %343, %344 : vector<8x512xf32>
    %346 = vector.extract_strided_slice %345 {offsets = [0, 0], sizes = [8, 384], strides = [1, 1]} : vector<8x512xf32> to vector<8x384xf32>
    %347 = arith.negf %346 : vector<8x384xf32>
    %348 = math.exp %347 : vector<8x384xf32>
    %cst_74 = arith.constant 1.000000e+00 : f32
    %349 = vector.broadcast %cst_74 : f32 to vector<8x384xf32>
    %350 = arith.addf %349, %348 : vector<8x384xf32>
    %351 = arith.divf %349, %350 : vector<8x384xf32>
    %352 = vector.extract_strided_slice %351 {offsets = [0, 0], sizes = [8, 128], strides = [1, 1]} : vector<8x384xf32> to vector<8x128xf32>
    %353 = vector.extract_strided_slice %351 {offsets = [0, 128], sizes = [8, 128], strides = [1, 1]} : vector<8x384xf32> to vector<8x128xf32>
    %354 = vector.extract_strided_slice %351 {offsets = [0, 256], sizes = [8, 128], strides = [1, 1]} : vector<8x384xf32> to vector<8x128xf32>
    %355 = vector.extract_strided_slice %345 {offsets = [0, 384], sizes = [8, 128], strides = [1, 1]} : vector<8x512xf32> to vector<8x128xf32>
    %356 = math.tanh %355 : vector<8x128xf32>
    %357 = arith.mulf %353, %337 : vector<8x128xf32>
    %358 = arith.mulf %352, %356 : vector<8x128xf32>
    %359 = arith.addf %357, %358 : vector<8x128xf32>
    %360 = math.tanh %359 : vector<8x128xf32>
    %361 = arith.mulf %354, %360 : vector<8x128xf32>
    %c16_i32 = arith.constant 16 : i32
    %c8_i32_75 = arith.constant 8 : i32
    %362 = arith.muli %c16_i32, %c8_i32_75 : i32
    %363 = tpu.assume_multiple %362, 8 : i32
    %364 = arith.index_cast %363 : i32 to index
    %c0_76 = arith.constant 0 : index
    %365 = vector.load %arg7[%364, %c0_76] : memref<320x512xf32, #tpu.memory_space<vmem>>, vector<8x512xf32>
    %cst_77 = arith.constant dense<0.000000e+00> : vector<8x512xf32>
    %366 = tpu.matmul %361, %7, %cst_77 {dimension_numbers = #tpu.dot_dimension_numbers<[1], [0], [0], [1], [0, 0, 1, 1], [], []>} : vector<8x128xf32>, vector<128x512xf32>, vector<8x512xf32> -> vector<8x512xf32>
    %367 = arith.addf %365, %366 : vector<8x512xf32>
    %368 = vector.extract_strided_slice %367 {offsets = [0, 0], sizes = [8, 384], strides = [1, 1]} : vector<8x512xf32> to vector<8x384xf32>
    %369 = arith.negf %368 : vector<8x384xf32>
    %370 = math.exp %369 : vector<8x384xf32>
    %cst_78 = arith.constant 1.000000e+00 : f32
    %371 = vector.broadcast %cst_78 : f32 to vector<8x384xf32>
    %372 = arith.addf %371, %370 : vector<8x384xf32>
    %373 = arith.divf %371, %372 : vector<8x384xf32>
    %374 = vector.extract_strided_slice %373 {offsets = [0, 0], sizes = [8, 128], strides = [1, 1]} : vector<8x384xf32> to vector<8x128xf32>
    %375 = vector.extract_strided_slice %373 {offsets = [0, 128], sizes = [8, 128], strides = [1, 1]} : vector<8x384xf32> to vector<8x128xf32>
    %376 = vector.extract_strided_slice %373 {offsets = [0, 256], sizes = [8, 128], strides = [1, 1]} : vector<8x384xf32> to vector<8x128xf32>
    %377 = vector.extract_strided_slice %367 {offsets = [0, 384], sizes = [8, 128], strides = [1, 1]} : vector<8x512xf32> to vector<8x128xf32>
    %378 = math.tanh %377 : vector<8x128xf32>
    %379 = arith.mulf %375, %359 : vector<8x128xf32>
    %380 = arith.mulf %374, %378 : vector<8x128xf32>
    %381 = arith.addf %379, %380 : vector<8x128xf32>
    %382 = math.tanh %381 : vector<8x128xf32>
    %383 = arith.mulf %376, %382 : vector<8x128xf32>
    %c17_i32 = arith.constant 17 : i32
    %c8_i32_79 = arith.constant 8 : i32
    %384 = arith.muli %c17_i32, %c8_i32_79 : i32
    %385 = tpu.assume_multiple %384, 8 : i32
    %386 = arith.index_cast %385 : i32 to index
    %c0_80 = arith.constant 0 : index
    %387 = vector.load %arg7[%386, %c0_80] : memref<320x512xf32, #tpu.memory_space<vmem>>, vector<8x512xf32>
    %cst_81 = arith.constant dense<0.000000e+00> : vector<8x512xf32>
    %388 = tpu.matmul %383, %7, %cst_81 {dimension_numbers = #tpu.dot_dimension_numbers<[1], [0], [0], [1], [0, 0, 1, 1], [], []>} : vector<8x128xf32>, vector<128x512xf32>, vector<8x512xf32> -> vector<8x512xf32>
    %389 = arith.addf %387, %388 : vector<8x512xf32>
    %390 = vector.extract_strided_slice %389 {offsets = [0, 0], sizes = [8, 384], strides = [1, 1]} : vector<8x512xf32> to vector<8x384xf32>
    %391 = arith.negf %390 : vector<8x384xf32>
    %392 = math.exp %391 : vector<8x384xf32>
    %cst_82 = arith.constant 1.000000e+00 : f32
    %393 = vector.broadcast %cst_82 : f32 to vector<8x384xf32>
    %394 = arith.addf %393, %392 : vector<8x384xf32>
    %395 = arith.divf %393, %394 : vector<8x384xf32>
    %396 = vector.extract_strided_slice %395 {offsets = [0, 0], sizes = [8, 128], strides = [1, 1]} : vector<8x384xf32> to vector<8x128xf32>
    %397 = vector.extract_strided_slice %395 {offsets = [0, 128], sizes = [8, 128], strides = [1, 1]} : vector<8x384xf32> to vector<8x128xf32>
    %398 = vector.extract_strided_slice %395 {offsets = [0, 256], sizes = [8, 128], strides = [1, 1]} : vector<8x384xf32> to vector<8x128xf32>
    %399 = vector.extract_strided_slice %389 {offsets = [0, 384], sizes = [8, 128], strides = [1, 1]} : vector<8x512xf32> to vector<8x128xf32>
    %400 = math.tanh %399 : vector<8x128xf32>
    %401 = arith.mulf %397, %381 : vector<8x128xf32>
    %402 = arith.mulf %396, %400 : vector<8x128xf32>
    %403 = arith.addf %401, %402 : vector<8x128xf32>
    %404 = math.tanh %403 : vector<8x128xf32>
    %405 = arith.mulf %398, %404 : vector<8x128xf32>
    %c18_i32 = arith.constant 18 : i32
    %c8_i32_83 = arith.constant 8 : i32
    %406 = arith.muli %c18_i32, %c8_i32_83 : i32
    %407 = tpu.assume_multiple %406, 8 : i32
    %408 = arith.index_cast %407 : i32 to index
    %c0_84 = arith.constant 0 : index
    %409 = vector.load %arg7[%408, %c0_84] : memref<320x512xf32, #tpu.memory_space<vmem>>, vector<8x512xf32>
    %cst_85 = arith.constant dense<0.000000e+00> : vector<8x512xf32>
    %410 = tpu.matmul %405, %7, %cst_85 {dimension_numbers = #tpu.dot_dimension_numbers<[1], [0], [0], [1], [0, 0, 1, 1], [], []>} : vector<8x128xf32>, vector<128x512xf32>, vector<8x512xf32> -> vector<8x512xf32>
    %411 = arith.addf %409, %410 : vector<8x512xf32>
    %412 = vector.extract_strided_slice %411 {offsets = [0, 0], sizes = [8, 384], strides = [1, 1]} : vector<8x512xf32> to vector<8x384xf32>
    %413 = arith.negf %412 : vector<8x384xf32>
    %414 = math.exp %413 : vector<8x384xf32>
    %cst_86 = arith.constant 1.000000e+00 : f32
    %415 = vector.broadcast %cst_86 : f32 to vector<8x384xf32>
    %416 = arith.addf %415, %414 : vector<8x384xf32>
    %417 = arith.divf %415, %416 : vector<8x384xf32>
    %418 = vector.extract_strided_slice %417 {offsets = [0, 0], sizes = [8, 128], strides = [1, 1]} : vector<8x384xf32> to vector<8x128xf32>
    %419 = vector.extract_strided_slice %417 {offsets = [0, 128], sizes = [8, 128], strides = [1, 1]} : vector<8x384xf32> to vector<8x128xf32>
    %420 = vector.extract_strided_slice %417 {offsets = [0, 256], sizes = [8, 128], strides = [1, 1]} : vector<8x384xf32> to vector<8x128xf32>
    %421 = vector.extract_strided_slice %411 {offsets = [0, 384], sizes = [8, 128], strides = [1, 1]} : vector<8x512xf32> to vector<8x128xf32>
    %422 = math.tanh %421 : vector<8x128xf32>
    %423 = arith.mulf %419, %403 : vector<8x128xf32>
    %424 = arith.mulf %418, %422 : vector<8x128xf32>
    %425 = arith.addf %423, %424 : vector<8x128xf32>
    %426 = math.tanh %425 : vector<8x128xf32>
    %427 = arith.mulf %420, %426 : vector<8x128xf32>
    %c19_i32 = arith.constant 19 : i32
    %c8_i32_87 = arith.constant 8 : i32
    %428 = arith.muli %c19_i32, %c8_i32_87 : i32
    %429 = tpu.assume_multiple %428, 8 : i32
    %430 = arith.index_cast %429 : i32 to index
    %c0_88 = arith.constant 0 : index
    %431 = vector.load %arg7[%430, %c0_88] : memref<320x512xf32, #tpu.memory_space<vmem>>, vector<8x512xf32>
    %cst_89 = arith.constant dense<0.000000e+00> : vector<8x512xf32>
    %432 = tpu.matmul %427, %7, %cst_89 {dimension_numbers = #tpu.dot_dimension_numbers<[1], [0], [0], [1], [0, 0, 1, 1], [], []>} : vector<8x128xf32>, vector<128x512xf32>, vector<8x512xf32> -> vector<8x512xf32>
    %433 = arith.addf %431, %432 : vector<8x512xf32>
    %434 = vector.extract_strided_slice %433 {offsets = [0, 0], sizes = [8, 384], strides = [1, 1]} : vector<8x512xf32> to vector<8x384xf32>
    %435 = arith.negf %434 : vector<8x384xf32>
    %436 = math.exp %435 : vector<8x384xf32>
    %cst_90 = arith.constant 1.000000e+00 : f32
    %437 = vector.broadcast %cst_90 : f32 to vector<8x384xf32>
    %438 = arith.addf %437, %436 : vector<8x384xf32>
    %439 = arith.divf %437, %438 : vector<8x384xf32>
    %440 = vector.extract_strided_slice %439 {offsets = [0, 0], sizes = [8, 128], strides = [1, 1]} : vector<8x384xf32> to vector<8x128xf32>
    %441 = vector.extract_strided_slice %439 {offsets = [0, 128], sizes = [8, 128], strides = [1, 1]} : vector<8x384xf32> to vector<8x128xf32>
    %442 = vector.extract_strided_slice %439 {offsets = [0, 256], sizes = [8, 128], strides = [1, 1]} : vector<8x384xf32> to vector<8x128xf32>
    %443 = vector.extract_strided_slice %433 {offsets = [0, 384], sizes = [8, 128], strides = [1, 1]} : vector<8x512xf32> to vector<8x128xf32>
    %444 = math.tanh %443 : vector<8x128xf32>
    %445 = arith.mulf %441, %425 : vector<8x128xf32>
    %446 = arith.mulf %440, %444 : vector<8x128xf32>
    %447 = arith.addf %445, %446 : vector<8x128xf32>
    %448 = math.tanh %447 : vector<8x128xf32>
    %449 = arith.mulf %442, %448 : vector<8x128xf32>
    %c20_i32 = arith.constant 20 : i32
    %c8_i32_91 = arith.constant 8 : i32
    %450 = arith.muli %c20_i32, %c8_i32_91 : i32
    %451 = tpu.assume_multiple %450, 8 : i32
    %452 = arith.index_cast %451 : i32 to index
    %c0_92 = arith.constant 0 : index
    %453 = vector.load %arg7[%452, %c0_92] : memref<320x512xf32, #tpu.memory_space<vmem>>, vector<8x512xf32>
    %cst_93 = arith.constant dense<0.000000e+00> : vector<8x512xf32>
    %454 = tpu.matmul %449, %7, %cst_93 {dimension_numbers = #tpu.dot_dimension_numbers<[1], [0], [0], [1], [0, 0, 1, 1], [], []>} : vector<8x128xf32>, vector<128x512xf32>, vector<8x512xf32> -> vector<8x512xf32>
    %455 = arith.addf %453, %454 : vector<8x512xf32>
    %456 = vector.extract_strided_slice %455 {offsets = [0, 0], sizes = [8, 384], strides = [1, 1]} : vector<8x512xf32> to vector<8x384xf32>
    %457 = arith.negf %456 : vector<8x384xf32>
    %458 = math.exp %457 : vector<8x384xf32>
    %cst_94 = arith.constant 1.000000e+00 : f32
    %459 = vector.broadcast %cst_94 : f32 to vector<8x384xf32>
    %460 = arith.addf %459, %458 : vector<8x384xf32>
    %461 = arith.divf %459, %460 : vector<8x384xf32>
    %462 = vector.extract_strided_slice %461 {offsets = [0, 0], sizes = [8, 128], strides = [1, 1]} : vector<8x384xf32> to vector<8x128xf32>
    %463 = vector.extract_strided_slice %461 {offsets = [0, 128], sizes = [8, 128], strides = [1, 1]} : vector<8x384xf32> to vector<8x128xf32>
    %464 = vector.extract_strided_slice %461 {offsets = [0, 256], sizes = [8, 128], strides = [1, 1]} : vector<8x384xf32> to vector<8x128xf32>
    %465 = vector.extract_strided_slice %455 {offsets = [0, 384], sizes = [8, 128], strides = [1, 1]} : vector<8x512xf32> to vector<8x128xf32>
    %466 = math.tanh %465 : vector<8x128xf32>
    %467 = arith.mulf %463, %447 : vector<8x128xf32>
    %468 = arith.mulf %462, %466 : vector<8x128xf32>
    %469 = arith.addf %467, %468 : vector<8x128xf32>
    %470 = math.tanh %469 : vector<8x128xf32>
    %471 = arith.mulf %464, %470 : vector<8x128xf32>
    %c21_i32 = arith.constant 21 : i32
    %c8_i32_95 = arith.constant 8 : i32
    %472 = arith.muli %c21_i32, %c8_i32_95 : i32
    %473 = tpu.assume_multiple %472, 8 : i32
    %474 = arith.index_cast %473 : i32 to index
    %c0_96 = arith.constant 0 : index
    %475 = vector.load %arg7[%474, %c0_96] : memref<320x512xf32, #tpu.memory_space<vmem>>, vector<8x512xf32>
    %cst_97 = arith.constant dense<0.000000e+00> : vector<8x512xf32>
    %476 = tpu.matmul %471, %7, %cst_97 {dimension_numbers = #tpu.dot_dimension_numbers<[1], [0], [0], [1], [0, 0, 1, 1], [], []>} : vector<8x128xf32>, vector<128x512xf32>, vector<8x512xf32> -> vector<8x512xf32>
    %477 = arith.addf %475, %476 : vector<8x512xf32>
    %478 = vector.extract_strided_slice %477 {offsets = [0, 0], sizes = [8, 384], strides = [1, 1]} : vector<8x512xf32> to vector<8x384xf32>
    %479 = arith.negf %478 : vector<8x384xf32>
    %480 = math.exp %479 : vector<8x384xf32>
    %cst_98 = arith.constant 1.000000e+00 : f32
    %481 = vector.broadcast %cst_98 : f32 to vector<8x384xf32>
    %482 = arith.addf %481, %480 : vector<8x384xf32>
    %483 = arith.divf %481, %482 : vector<8x384xf32>
    %484 = vector.extract_strided_slice %483 {offsets = [0, 0], sizes = [8, 128], strides = [1, 1]} : vector<8x384xf32> to vector<8x128xf32>
    %485 = vector.extract_strided_slice %483 {offsets = [0, 128], sizes = [8, 128], strides = [1, 1]} : vector<8x384xf32> to vector<8x128xf32>
    %486 = vector.extract_strided_slice %483 {offsets = [0, 256], sizes = [8, 128], strides = [1, 1]} : vector<8x384xf32> to vector<8x128xf32>
    %487 = vector.extract_strided_slice %477 {offsets = [0, 384], sizes = [8, 128], strides = [1, 1]} : vector<8x512xf32> to vector<8x128xf32>
    %488 = math.tanh %487 : vector<8x128xf32>
    %489 = arith.mulf %485, %469 : vector<8x128xf32>
    %490 = arith.mulf %484, %488 : vector<8x128xf32>
    %491 = arith.addf %489, %490 : vector<8x128xf32>
    %492 = math.tanh %491 : vector<8x128xf32>
    %493 = arith.mulf %486, %492 : vector<8x128xf32>
    %c22_i32 = arith.constant 22 : i32
    %c8_i32_99 = arith.constant 8 : i32
    %494 = arith.muli %c22_i32, %c8_i32_99 : i32
    %495 = tpu.assume_multiple %494, 8 : i32
    %496 = arith.index_cast %495 : i32 to index
    %c0_100 = arith.constant 0 : index
    %497 = vector.load %arg7[%496, %c0_100] : memref<320x512xf32, #tpu.memory_space<vmem>>, vector<8x512xf32>
    %cst_101 = arith.constant dense<0.000000e+00> : vector<8x512xf32>
    %498 = tpu.matmul %493, %7, %cst_101 {dimension_numbers = #tpu.dot_dimension_numbers<[1], [0], [0], [1], [0, 0, 1, 1], [], []>} : vector<8x128xf32>, vector<128x512xf32>, vector<8x512xf32> -> vector<8x512xf32>
    %499 = arith.addf %497, %498 : vector<8x512xf32>
    %500 = vector.extract_strided_slice %499 {offsets = [0, 0], sizes = [8, 384], strides = [1, 1]} : vector<8x512xf32> to vector<8x384xf32>
    %501 = arith.negf %500 : vector<8x384xf32>
    %502 = math.exp %501 : vector<8x384xf32>
    %cst_102 = arith.constant 1.000000e+00 : f32
    %503 = vector.broadcast %cst_102 : f32 to vector<8x384xf32>
    %504 = arith.addf %503, %502 : vector<8x384xf32>
    %505 = arith.divf %503, %504 : vector<8x384xf32>
    %506 = vector.extract_strided_slice %505 {offsets = [0, 0], sizes = [8, 128], strides = [1, 1]} : vector<8x384xf32> to vector<8x128xf32>
    %507 = vector.extract_strided_slice %505 {offsets = [0, 128], sizes = [8, 128], strides = [1, 1]} : vector<8x384xf32> to vector<8x128xf32>
    %508 = vector.extract_strided_slice %505 {offsets = [0, 256], sizes = [8, 128], strides = [1, 1]} : vector<8x384xf32> to vector<8x128xf32>
    %509 = vector.extract_strided_slice %499 {offsets = [0, 384], sizes = [8, 128], strides = [1, 1]} : vector<8x512xf32> to vector<8x128xf32>
    %510 = math.tanh %509 : vector<8x128xf32>
    %511 = arith.mulf %507, %491 : vector<8x128xf32>
    %512 = arith.mulf %506, %510 : vector<8x128xf32>
    %513 = arith.addf %511, %512 : vector<8x128xf32>
    %514 = math.tanh %513 : vector<8x128xf32>
    %515 = arith.mulf %508, %514 : vector<8x128xf32>
    %c23_i32 = arith.constant 23 : i32
    %c8_i32_103 = arith.constant 8 : i32
    %516 = arith.muli %c23_i32, %c8_i32_103 : i32
    %517 = tpu.assume_multiple %516, 8 : i32
    %518 = arith.index_cast %517 : i32 to index
    %c0_104 = arith.constant 0 : index
    %519 = vector.load %arg7[%518, %c0_104] : memref<320x512xf32, #tpu.memory_space<vmem>>, vector<8x512xf32>
    %cst_105 = arith.constant dense<0.000000e+00> : vector<8x512xf32>
    %520 = tpu.matmul %515, %7, %cst_105 {dimension_numbers = #tpu.dot_dimension_numbers<[1], [0], [0], [1], [0, 0, 1, 1], [], []>} : vector<8x128xf32>, vector<128x512xf32>, vector<8x512xf32> -> vector<8x512xf32>
    %521 = arith.addf %519, %520 : vector<8x512xf32>
    %522 = vector.extract_strided_slice %521 {offsets = [0, 0], sizes = [8, 384], strides = [1, 1]} : vector<8x512xf32> to vector<8x384xf32>
    %523 = arith.negf %522 : vector<8x384xf32>
    %524 = math.exp %523 : vector<8x384xf32>
    %cst_106 = arith.constant 1.000000e+00 : f32
    %525 = vector.broadcast %cst_106 : f32 to vector<8x384xf32>
    %526 = arith.addf %525, %524 : vector<8x384xf32>
    %527 = arith.divf %525, %526 : vector<8x384xf32>
    %528 = vector.extract_strided_slice %527 {offsets = [0, 0], sizes = [8, 128], strides = [1, 1]} : vector<8x384xf32> to vector<8x128xf32>
    %529 = vector.extract_strided_slice %527 {offsets = [0, 128], sizes = [8, 128], strides = [1, 1]} : vector<8x384xf32> to vector<8x128xf32>
    %530 = vector.extract_strided_slice %527 {offsets = [0, 256], sizes = [8, 128], strides = [1, 1]} : vector<8x384xf32> to vector<8x128xf32>
    %531 = vector.extract_strided_slice %521 {offsets = [0, 384], sizes = [8, 128], strides = [1, 1]} : vector<8x512xf32> to vector<8x128xf32>
    %532 = math.tanh %531 : vector<8x128xf32>
    %533 = arith.mulf %529, %513 : vector<8x128xf32>
    %534 = arith.mulf %528, %532 : vector<8x128xf32>
    %535 = arith.addf %533, %534 : vector<8x128xf32>
    %536 = math.tanh %535 : vector<8x128xf32>
    %537 = arith.mulf %530, %536 : vector<8x128xf32>
    %c24_i32 = arith.constant 24 : i32
    %c8_i32_107 = arith.constant 8 : i32
    %538 = arith.muli %c24_i32, %c8_i32_107 : i32
    %539 = tpu.assume_multiple %538, 8 : i32
    %540 = arith.index_cast %539 : i32 to index
    %c0_108 = arith.constant 0 : index
    %541 = vector.load %arg7[%540, %c0_108] : memref<320x512xf32, #tpu.memory_space<vmem>>, vector<8x512xf32>
    %cst_109 = arith.constant dense<0.000000e+00> : vector<8x512xf32>
    %542 = tpu.matmul %537, %7, %cst_109 {dimension_numbers = #tpu.dot_dimension_numbers<[1], [0], [0], [1], [0, 0, 1, 1], [], []>} : vector<8x128xf32>, vector<128x512xf32>, vector<8x512xf32> -> vector<8x512xf32>
    %543 = arith.addf %541, %542 : vector<8x512xf32>
    %544 = vector.extract_strided_slice %543 {offsets = [0, 0], sizes = [8, 384], strides = [1, 1]} : vector<8x512xf32> to vector<8x384xf32>
    %545 = arith.negf %544 : vector<8x384xf32>
    %546 = math.exp %545 : vector<8x384xf32>
    %cst_110 = arith.constant 1.000000e+00 : f32
    %547 = vector.broadcast %cst_110 : f32 to vector<8x384xf32>
    %548 = arith.addf %547, %546 : vector<8x384xf32>
    %549 = arith.divf %547, %548 : vector<8x384xf32>
    %550 = vector.extract_strided_slice %549 {offsets = [0, 0], sizes = [8, 128], strides = [1, 1]} : vector<8x384xf32> to vector<8x128xf32>
    %551 = vector.extract_strided_slice %549 {offsets = [0, 128], sizes = [8, 128], strides = [1, 1]} : vector<8x384xf32> to vector<8x128xf32>
    %552 = vector.extract_strided_slice %549 {offsets = [0, 256], sizes = [8, 128], strides = [1, 1]} : vector<8x384xf32> to vector<8x128xf32>
    %553 = vector.extract_strided_slice %543 {offsets = [0, 384], sizes = [8, 128], strides = [1, 1]} : vector<8x512xf32> to vector<8x128xf32>
    %554 = math.tanh %553 : vector<8x128xf32>
    %555 = arith.mulf %551, %535 : vector<8x128xf32>
    %556 = arith.mulf %550, %554 : vector<8x128xf32>
    %557 = arith.addf %555, %556 : vector<8x128xf32>
    %558 = math.tanh %557 : vector<8x128xf32>
    %559 = arith.mulf %552, %558 : vector<8x128xf32>
    %c25_i32 = arith.constant 25 : i32
    %c8_i32_111 = arith.constant 8 : i32
    %560 = arith.muli %c25_i32, %c8_i32_111 : i32
    %561 = tpu.assume_multiple %560, 8 : i32
    %562 = arith.index_cast %561 : i32 to index
    %c0_112 = arith.constant 0 : index
    %563 = vector.load %arg7[%562, %c0_112] : memref<320x512xf32, #tpu.memory_space<vmem>>, vector<8x512xf32>
    %cst_113 = arith.constant dense<0.000000e+00> : vector<8x512xf32>
    %564 = tpu.matmul %559, %7, %cst_113 {dimension_numbers = #tpu.dot_dimension_numbers<[1], [0], [0], [1], [0, 0, 1, 1], [], []>} : vector<8x128xf32>, vector<128x512xf32>, vector<8x512xf32> -> vector<8x512xf32>
    %565 = arith.addf %563, %564 : vector<8x512xf32>
    %566 = vector.extract_strided_slice %565 {offsets = [0, 0], sizes = [8, 384], strides = [1, 1]} : vector<8x512xf32> to vector<8x384xf32>
    %567 = arith.negf %566 : vector<8x384xf32>
    %568 = math.exp %567 : vector<8x384xf32>
    %cst_114 = arith.constant 1.000000e+00 : f32
    %569 = vector.broadcast %cst_114 : f32 to vector<8x384xf32>
    %570 = arith.addf %569, %568 : vector<8x384xf32>
    %571 = arith.divf %569, %570 : vector<8x384xf32>
    %572 = vector.extract_strided_slice %571 {offsets = [0, 0], sizes = [8, 128], strides = [1, 1]} : vector<8x384xf32> to vector<8x128xf32>
    %573 = vector.extract_strided_slice %571 {offsets = [0, 128], sizes = [8, 128], strides = [1, 1]} : vector<8x384xf32> to vector<8x128xf32>
    %574 = vector.extract_strided_slice %571 {offsets = [0, 256], sizes = [8, 128], strides = [1, 1]} : vector<8x384xf32> to vector<8x128xf32>
    %575 = vector.extract_strided_slice %565 {offsets = [0, 384], sizes = [8, 128], strides = [1, 1]} : vector<8x512xf32> to vector<8x128xf32>
    %576 = math.tanh %575 : vector<8x128xf32>
    %577 = arith.mulf %573, %557 : vector<8x128xf32>
    %578 = arith.mulf %572, %576 : vector<8x128xf32>
    %579 = arith.addf %577, %578 : vector<8x128xf32>
    %580 = math.tanh %579 : vector<8x128xf32>
    %581 = arith.mulf %574, %580 : vector<8x128xf32>
    %c26_i32 = arith.constant 26 : i32
    %c8_i32_115 = arith.constant 8 : i32
    %582 = arith.muli %c26_i32, %c8_i32_115 : i32
    %583 = tpu.assume_multiple %582, 8 : i32
    %584 = arith.index_cast %583 : i32 to index
    %c0_116 = arith.constant 0 : index
    %585 = vector.load %arg7[%584, %c0_116] : memref<320x512xf32, #tpu.memory_space<vmem>>, vector<8x512xf32>
    %cst_117 = arith.constant dense<0.000000e+00> : vector<8x512xf32>
    %586 = tpu.matmul %581, %7, %cst_117 {dimension_numbers = #tpu.dot_dimension_numbers<[1], [0], [0], [1], [0, 0, 1, 1], [], []>} : vector<8x128xf32>, vector<128x512xf32>, vector<8x512xf32> -> vector<8x512xf32>
    %587 = arith.addf %585, %586 : vector<8x512xf32>
    %588 = vector.extract_strided_slice %587 {offsets = [0, 0], sizes = [8, 384], strides = [1, 1]} : vector<8x512xf32> to vector<8x384xf32>
    %589 = arith.negf %588 : vector<8x384xf32>
    %590 = math.exp %589 : vector<8x384xf32>
    %cst_118 = arith.constant 1.000000e+00 : f32
    %591 = vector.broadcast %cst_118 : f32 to vector<8x384xf32>
    %592 = arith.addf %591, %590 : vector<8x384xf32>
    %593 = arith.divf %591, %592 : vector<8x384xf32>
    %594 = vector.extract_strided_slice %593 {offsets = [0, 0], sizes = [8, 128], strides = [1, 1]} : vector<8x384xf32> to vector<8x128xf32>
    %595 = vector.extract_strided_slice %593 {offsets = [0, 128], sizes = [8, 128], strides = [1, 1]} : vector<8x384xf32> to vector<8x128xf32>
    %596 = vector.extract_strided_slice %593 {offsets = [0, 256], sizes = [8, 128], strides = [1, 1]} : vector<8x384xf32> to vector<8x128xf32>
    %597 = vector.extract_strided_slice %587 {offsets = [0, 384], sizes = [8, 128], strides = [1, 1]} : vector<8x512xf32> to vector<8x128xf32>
    %598 = math.tanh %597 : vector<8x128xf32>
    %599 = arith.mulf %595, %579 : vector<8x128xf32>
    %600 = arith.mulf %594, %598 : vector<8x128xf32>
    %601 = arith.addf %599, %600 : vector<8x128xf32>
    %602 = math.tanh %601 : vector<8x128xf32>
    %603 = arith.mulf %596, %602 : vector<8x128xf32>
    %c27_i32 = arith.constant 27 : i32
    %c8_i32_119 = arith.constant 8 : i32
    %604 = arith.muli %c27_i32, %c8_i32_119 : i32
    %605 = tpu.assume_multiple %604, 8 : i32
    %606 = arith.index_cast %605 : i32 to index
    %c0_120 = arith.constant 0 : index
    %607 = vector.load %arg7[%606, %c0_120] : memref<320x512xf32, #tpu.memory_space<vmem>>, vector<8x512xf32>
    %cst_121 = arith.constant dense<0.000000e+00> : vector<8x512xf32>
    %608 = tpu.matmul %603, %7, %cst_121 {dimension_numbers = #tpu.dot_dimension_numbers<[1], [0], [0], [1], [0, 0, 1, 1], [], []>} : vector<8x128xf32>, vector<128x512xf32>, vector<8x512xf32> -> vector<8x512xf32>
    %609 = arith.addf %607, %608 : vector<8x512xf32>
    %610 = vector.extract_strided_slice %609 {offsets = [0, 0], sizes = [8, 384], strides = [1, 1]} : vector<8x512xf32> to vector<8x384xf32>
    %611 = arith.negf %610 : vector<8x384xf32>
    %612 = math.exp %611 : vector<8x384xf32>
    %cst_122 = arith.constant 1.000000e+00 : f32
    %613 = vector.broadcast %cst_122 : f32 to vector<8x384xf32>
    %614 = arith.addf %613, %612 : vector<8x384xf32>
    %615 = arith.divf %613, %614 : vector<8x384xf32>
    %616 = vector.extract_strided_slice %615 {offsets = [0, 0], sizes = [8, 128], strides = [1, 1]} : vector<8x384xf32> to vector<8x128xf32>
    %617 = vector.extract_strided_slice %615 {offsets = [0, 128], sizes = [8, 128], strides = [1, 1]} : vector<8x384xf32> to vector<8x128xf32>
    %618 = vector.extract_strided_slice %615 {offsets = [0, 256], sizes = [8, 128], strides = [1, 1]} : vector<8x384xf32> to vector<8x128xf32>
    %619 = vector.extract_strided_slice %609 {offsets = [0, 384], sizes = [8, 128], strides = [1, 1]} : vector<8x512xf32> to vector<8x128xf32>
    %620 = math.tanh %619 : vector<8x128xf32>
    %621 = arith.mulf %617, %601 : vector<8x128xf32>
    %622 = arith.mulf %616, %620 : vector<8x128xf32>
    %623 = arith.addf %621, %622 : vector<8x128xf32>
    %624 = math.tanh %623 : vector<8x128xf32>
    %625 = arith.mulf %618, %624 : vector<8x128xf32>
    %c28_i32 = arith.constant 28 : i32
    %c8_i32_123 = arith.constant 8 : i32
    %626 = arith.muli %c28_i32, %c8_i32_123 : i32
    %627 = tpu.assume_multiple %626, 8 : i32
    %628 = arith.index_cast %627 : i32 to index
    %c0_124 = arith.constant 0 : index
    %629 = vector.load %arg7[%628, %c0_124] : memref<320x512xf32, #tpu.memory_space<vmem>>, vector<8x512xf32>
    %cst_125 = arith.constant dense<0.000000e+00> : vector<8x512xf32>
    %630 = tpu.matmul %625, %7, %cst_125 {dimension_numbers = #tpu.dot_dimension_numbers<[1], [0], [0], [1], [0, 0, 1, 1], [], []>} : vector<8x128xf32>, vector<128x512xf32>, vector<8x512xf32> -> vector<8x512xf32>
    %631 = arith.addf %629, %630 : vector<8x512xf32>
    %632 = vector.extract_strided_slice %631 {offsets = [0, 0], sizes = [8, 384], strides = [1, 1]} : vector<8x512xf32> to vector<8x384xf32>
    %633 = arith.negf %632 : vector<8x384xf32>
    %634 = math.exp %633 : vector<8x384xf32>
    %cst_126 = arith.constant 1.000000e+00 : f32
    %635 = vector.broadcast %cst_126 : f32 to vector<8x384xf32>
    %636 = arith.addf %635, %634 : vector<8x384xf32>
    %637 = arith.divf %635, %636 : vector<8x384xf32>
    %638 = vector.extract_strided_slice %637 {offsets = [0, 0], sizes = [8, 128], strides = [1, 1]} : vector<8x384xf32> to vector<8x128xf32>
    %639 = vector.extract_strided_slice %637 {offsets = [0, 128], sizes = [8, 128], strides = [1, 1]} : vector<8x384xf32> to vector<8x128xf32>
    %640 = vector.extract_strided_slice %637 {offsets = [0, 256], sizes = [8, 128], strides = [1, 1]} : vector<8x384xf32> to vector<8x128xf32>
    %641 = vector.extract_strided_slice %631 {offsets = [0, 384], sizes = [8, 128], strides = [1, 1]} : vector<8x512xf32> to vector<8x128xf32>
    %642 = math.tanh %641 : vector<8x128xf32>
    %643 = arith.mulf %639, %623 : vector<8x128xf32>
    %644 = arith.mulf %638, %642 : vector<8x128xf32>
    %645 = arith.addf %643, %644 : vector<8x128xf32>
    %646 = math.tanh %645 : vector<8x128xf32>
    %647 = arith.mulf %640, %646 : vector<8x128xf32>
    %c29_i32 = arith.constant 29 : i32
    %c8_i32_127 = arith.constant 8 : i32
    %648 = arith.muli %c29_i32, %c8_i32_127 : i32
    %649 = tpu.assume_multiple %648, 8 : i32
    %650 = arith.index_cast %649 : i32 to index
    %c0_128 = arith.constant 0 : index
    %651 = vector.load %arg7[%650, %c0_128] : memref<320x512xf32, #tpu.memory_space<vmem>>, vector<8x512xf32>
    %cst_129 = arith.constant dense<0.000000e+00> : vector<8x512xf32>
    %652 = tpu.matmul %647, %7, %cst_129 {dimension_numbers = #tpu.dot_dimension_numbers<[1], [0], [0], [1], [0, 0, 1, 1], [], []>} : vector<8x128xf32>, vector<128x512xf32>, vector<8x512xf32> -> vector<8x512xf32>
    %653 = arith.addf %651, %652 : vector<8x512xf32>
    %654 = vector.extract_strided_slice %653 {offsets = [0, 0], sizes = [8, 384], strides = [1, 1]} : vector<8x512xf32> to vector<8x384xf32>
    %655 = arith.negf %654 : vector<8x384xf32>
    %656 = math.exp %655 : vector<8x384xf32>
    %cst_130 = arith.constant 1.000000e+00 : f32
    %657 = vector.broadcast %cst_130 : f32 to vector<8x384xf32>
    %658 = arith.addf %657, %656 : vector<8x384xf32>
    %659 = arith.divf %657, %658 : vector<8x384xf32>
    %660 = vector.extract_strided_slice %659 {offsets = [0, 0], sizes = [8, 128], strides = [1, 1]} : vector<8x384xf32> to vector<8x128xf32>
    %661 = vector.extract_strided_slice %659 {offsets = [0, 128], sizes = [8, 128], strides = [1, 1]} : vector<8x384xf32> to vector<8x128xf32>
    %662 = vector.extract_strided_slice %659 {offsets = [0, 256], sizes = [8, 128], strides = [1, 1]} : vector<8x384xf32> to vector<8x128xf32>
    %663 = vector.extract_strided_slice %653 {offsets = [0, 384], sizes = [8, 128], strides = [1, 1]} : vector<8x512xf32> to vector<8x128xf32>
    %664 = math.tanh %663 : vector<8x128xf32>
    %665 = arith.mulf %661, %645 : vector<8x128xf32>
    %666 = arith.mulf %660, %664 : vector<8x128xf32>
    %667 = arith.addf %665, %666 : vector<8x128xf32>
    %668 = math.tanh %667 : vector<8x128xf32>
    %669 = arith.mulf %662, %668 : vector<8x128xf32>
    %c30_i32 = arith.constant 30 : i32
    %c8_i32_131 = arith.constant 8 : i32
    %670 = arith.muli %c30_i32, %c8_i32_131 : i32
    %671 = tpu.assume_multiple %670, 8 : i32
    %672 = arith.index_cast %671 : i32 to index
    %c0_132 = arith.constant 0 : index
    %673 = vector.load %arg7[%672, %c0_132] : memref<320x512xf32, #tpu.memory_space<vmem>>, vector<8x512xf32>
    %cst_133 = arith.constant dense<0.000000e+00> : vector<8x512xf32>
    %674 = tpu.matmul %669, %7, %cst_133 {dimension_numbers = #tpu.dot_dimension_numbers<[1], [0], [0], [1], [0, 0, 1, 1], [], []>} : vector<8x128xf32>, vector<128x512xf32>, vector<8x512xf32> -> vector<8x512xf32>
    %675 = arith.addf %673, %674 : vector<8x512xf32>
    %676 = vector.extract_strided_slice %675 {offsets = [0, 0], sizes = [8, 384], strides = [1, 1]} : vector<8x512xf32> to vector<8x384xf32>
    %677 = arith.negf %676 : vector<8x384xf32>
    %678 = math.exp %677 : vector<8x384xf32>
    %cst_134 = arith.constant 1.000000e+00 : f32
    %679 = vector.broadcast %cst_134 : f32 to vector<8x384xf32>
    %680 = arith.addf %679, %678 : vector<8x384xf32>
    %681 = arith.divf %679, %680 : vector<8x384xf32>
    %682 = vector.extract_strided_slice %681 {offsets = [0, 0], sizes = [8, 128], strides = [1, 1]} : vector<8x384xf32> to vector<8x128xf32>
    %683 = vector.extract_strided_slice %681 {offsets = [0, 128], sizes = [8, 128], strides = [1, 1]} : vector<8x384xf32> to vector<8x128xf32>
    %684 = vector.extract_strided_slice %681 {offsets = [0, 256], sizes = [8, 128], strides = [1, 1]} : vector<8x384xf32> to vector<8x128xf32>
    %685 = vector.extract_strided_slice %675 {offsets = [0, 384], sizes = [8, 128], strides = [1, 1]} : vector<8x512xf32> to vector<8x128xf32>
    %686 = math.tanh %685 : vector<8x128xf32>
    %687 = arith.mulf %683, %667 : vector<8x128xf32>
    %688 = arith.mulf %682, %686 : vector<8x128xf32>
    %689 = arith.addf %687, %688 : vector<8x128xf32>
    %690 = math.tanh %689 : vector<8x128xf32>
    %691 = arith.mulf %684, %690 : vector<8x128xf32>
    %c31_i32 = arith.constant 31 : i32
    %c8_i32_135 = arith.constant 8 : i32
    %692 = arith.muli %c31_i32, %c8_i32_135 : i32
    %693 = tpu.assume_multiple %692, 8 : i32
    %694 = arith.index_cast %693 : i32 to index
    %c0_136 = arith.constant 0 : index
    %695 = vector.load %arg7[%694, %c0_136] : memref<320x512xf32, #tpu.memory_space<vmem>>, vector<8x512xf32>
    %cst_137 = arith.constant dense<0.000000e+00> : vector<8x512xf32>
    %696 = tpu.matmul %691, %7, %cst_137 {dimension_numbers = #tpu.dot_dimension_numbers<[1], [0], [0], [1], [0, 0, 1, 1], [], []>} : vector<8x128xf32>, vector<128x512xf32>, vector<8x512xf32> -> vector<8x512xf32>
    %697 = arith.addf %695, %696 : vector<8x512xf32>
    %698 = vector.extract_strided_slice %697 {offsets = [0, 0], sizes = [8, 384], strides = [1, 1]} : vector<8x512xf32> to vector<8x384xf32>
    %699 = arith.negf %698 : vector<8x384xf32>
    %700 = math.exp %699 : vector<8x384xf32>
    %cst_138 = arith.constant 1.000000e+00 : f32
    %701 = vector.broadcast %cst_138 : f32 to vector<8x384xf32>
    %702 = arith.addf %701, %700 : vector<8x384xf32>
    %703 = arith.divf %701, %702 : vector<8x384xf32>
    %704 = vector.extract_strided_slice %703 {offsets = [0, 0], sizes = [8, 128], strides = [1, 1]} : vector<8x384xf32> to vector<8x128xf32>
    %705 = vector.extract_strided_slice %703 {offsets = [0, 128], sizes = [8, 128], strides = [1, 1]} : vector<8x384xf32> to vector<8x128xf32>
    %706 = vector.extract_strided_slice %703 {offsets = [0, 256], sizes = [8, 128], strides = [1, 1]} : vector<8x384xf32> to vector<8x128xf32>
    %707 = vector.extract_strided_slice %697 {offsets = [0, 384], sizes = [8, 128], strides = [1, 1]} : vector<8x512xf32> to vector<8x128xf32>
    %708 = math.tanh %707 : vector<8x128xf32>
    %709 = arith.mulf %705, %689 : vector<8x128xf32>
    %710 = arith.mulf %704, %708 : vector<8x128xf32>
    %711 = arith.addf %709, %710 : vector<8x128xf32>
    %712 = math.tanh %711 : vector<8x128xf32>
    %713 = arith.mulf %706, %712 : vector<8x128xf32>
    %c32_i32 = arith.constant 32 : i32
    %c8_i32_139 = arith.constant 8 : i32
    %714 = arith.muli %c32_i32, %c8_i32_139 : i32
    %715 = tpu.assume_multiple %714, 8 : i32
    %716 = arith.index_cast %715 : i32 to index
    %c0_140 = arith.constant 0 : index
    %717 = vector.load %arg7[%716, %c0_140] : memref<320x512xf32, #tpu.memory_space<vmem>>, vector<8x512xf32>
    %cst_141 = arith.constant dense<0.000000e+00> : vector<8x512xf32>
    %718 = tpu.matmul %713, %7, %cst_141 {dimension_numbers = #tpu.dot_dimension_numbers<[1], [0], [0], [1], [0, 0, 1, 1], [], []>} : vector<8x128xf32>, vector<128x512xf32>, vector<8x512xf32> -> vector<8x512xf32>
    %719 = arith.addf %717, %718 : vector<8x512xf32>
    %720 = vector.extract_strided_slice %719 {offsets = [0, 0], sizes = [8, 384], strides = [1, 1]} : vector<8x512xf32> to vector<8x384xf32>
    %721 = arith.negf %720 : vector<8x384xf32>
    %722 = math.exp %721 : vector<8x384xf32>
    %cst_142 = arith.constant 1.000000e+00 : f32
    %723 = vector.broadcast %cst_142 : f32 to vector<8x384xf32>
    %724 = arith.addf %723, %722 : vector<8x384xf32>
    %725 = arith.divf %723, %724 : vector<8x384xf32>
    %726 = vector.extract_strided_slice %725 {offsets = [0, 0], sizes = [8, 128], strides = [1, 1]} : vector<8x384xf32> to vector<8x128xf32>
    %727 = vector.extract_strided_slice %725 {offsets = [0, 128], sizes = [8, 128], strides = [1, 1]} : vector<8x384xf32> to vector<8x128xf32>
    %728 = vector.extract_strided_slice %725 {offsets = [0, 256], sizes = [8, 128], strides = [1, 1]} : vector<8x384xf32> to vector<8x128xf32>
    %729 = vector.extract_strided_slice %719 {offsets = [0, 384], sizes = [8, 128], strides = [1, 1]} : vector<8x512xf32> to vector<8x128xf32>
    %730 = math.tanh %729 : vector<8x128xf32>
    %731 = arith.mulf %727, %711 : vector<8x128xf32>
    %732 = arith.mulf %726, %730 : vector<8x128xf32>
    %733 = arith.addf %731, %732 : vector<8x128xf32>
    %734 = math.tanh %733 : vector<8x128xf32>
    %735 = arith.mulf %728, %734 : vector<8x128xf32>
    %c33_i32 = arith.constant 33 : i32
    %c8_i32_143 = arith.constant 8 : i32
    %736 = arith.muli %c33_i32, %c8_i32_143 : i32
    %737 = tpu.assume_multiple %736, 8 : i32
    %738 = arith.index_cast %737 : i32 to index
    %c0_144 = arith.constant 0 : index
    %739 = vector.load %arg7[%738, %c0_144] : memref<320x512xf32, #tpu.memory_space<vmem>>, vector<8x512xf32>
    %cst_145 = arith.constant dense<0.000000e+00> : vector<8x512xf32>
    %740 = tpu.matmul %735, %7, %cst_145 {dimension_numbers = #tpu.dot_dimension_numbers<[1], [0], [0], [1], [0, 0, 1, 1], [], []>} : vector<8x128xf32>, vector<128x512xf32>, vector<8x512xf32> -> vector<8x512xf32>
    %741 = arith.addf %739, %740 : vector<8x512xf32>
    %742 = vector.extract_strided_slice %741 {offsets = [0, 0], sizes = [8, 384], strides = [1, 1]} : vector<8x512xf32> to vector<8x384xf32>
    %743 = arith.negf %742 : vector<8x384xf32>
    %744 = math.exp %743 : vector<8x384xf32>
    %cst_146 = arith.constant 1.000000e+00 : f32
    %745 = vector.broadcast %cst_146 : f32 to vector<8x384xf32>
    %746 = arith.addf %745, %744 : vector<8x384xf32>
    %747 = arith.divf %745, %746 : vector<8x384xf32>
    %748 = vector.extract_strided_slice %747 {offsets = [0, 0], sizes = [8, 128], strides = [1, 1]} : vector<8x384xf32> to vector<8x128xf32>
    %749 = vector.extract_strided_slice %747 {offsets = [0, 128], sizes = [8, 128], strides = [1, 1]} : vector<8x384xf32> to vector<8x128xf32>
    %750 = vector.extract_strided_slice %747 {offsets = [0, 256], sizes = [8, 128], strides = [1, 1]} : vector<8x384xf32> to vector<8x128xf32>
    %751 = vector.extract_strided_slice %741 {offsets = [0, 384], sizes = [8, 128], strides = [1, 1]} : vector<8x512xf32> to vector<8x128xf32>
    %752 = math.tanh %751 : vector<8x128xf32>
    %753 = arith.mulf %749, %733 : vector<8x128xf32>
    %754 = arith.mulf %748, %752 : vector<8x128xf32>
    %755 = arith.addf %753, %754 : vector<8x128xf32>
    %756 = math.tanh %755 : vector<8x128xf32>
    %757 = arith.mulf %750, %756 : vector<8x128xf32>
    %c34_i32 = arith.constant 34 : i32
    %c8_i32_147 = arith.constant 8 : i32
    %758 = arith.muli %c34_i32, %c8_i32_147 : i32
    %759 = tpu.assume_multiple %758, 8 : i32
    %760 = arith.index_cast %759 : i32 to index
    %c0_148 = arith.constant 0 : index
    %761 = vector.load %arg7[%760, %c0_148] : memref<320x512xf32, #tpu.memory_space<vmem>>, vector<8x512xf32>
    %cst_149 = arith.constant dense<0.000000e+00> : vector<8x512xf32>
    %762 = tpu.matmul %757, %7, %cst_149 {dimension_numbers = #tpu.dot_dimension_numbers<[1], [0], [0], [1], [0, 0, 1, 1], [], []>} : vector<8x128xf32>, vector<128x512xf32>, vector<8x512xf32> -> vector<8x512xf32>
    %763 = arith.addf %761, %762 : vector<8x512xf32>
    %764 = vector.extract_strided_slice %763 {offsets = [0, 0], sizes = [8, 384], strides = [1, 1]} : vector<8x512xf32> to vector<8x384xf32>
    %765 = arith.negf %764 : vector<8x384xf32>
    %766 = math.exp %765 : vector<8x384xf32>
    %cst_150 = arith.constant 1.000000e+00 : f32
    %767 = vector.broadcast %cst_150 : f32 to vector<8x384xf32>
    %768 = arith.addf %767, %766 : vector<8x384xf32>
    %769 = arith.divf %767, %768 : vector<8x384xf32>
    %770 = vector.extract_strided_slice %769 {offsets = [0, 0], sizes = [8, 128], strides = [1, 1]} : vector<8x384xf32> to vector<8x128xf32>
    %771 = vector.extract_strided_slice %769 {offsets = [0, 128], sizes = [8, 128], strides = [1, 1]} : vector<8x384xf32> to vector<8x128xf32>
    %772 = vector.extract_strided_slice %769 {offsets = [0, 256], sizes = [8, 128], strides = [1, 1]} : vector<8x384xf32> to vector<8x128xf32>
    %773 = vector.extract_strided_slice %763 {offsets = [0, 384], sizes = [8, 128], strides = [1, 1]} : vector<8x512xf32> to vector<8x128xf32>
    %774 = math.tanh %773 : vector<8x128xf32>
    %775 = arith.mulf %771, %755 : vector<8x128xf32>
    %776 = arith.mulf %770, %774 : vector<8x128xf32>
    %777 = arith.addf %775, %776 : vector<8x128xf32>
    %778 = math.tanh %777 : vector<8x128xf32>
    %779 = arith.mulf %772, %778 : vector<8x128xf32>
    %c35_i32 = arith.constant 35 : i32
    %c8_i32_151 = arith.constant 8 : i32
    %780 = arith.muli %c35_i32, %c8_i32_151 : i32
    %781 = tpu.assume_multiple %780, 8 : i32
    %782 = arith.index_cast %781 : i32 to index
    %c0_152 = arith.constant 0 : index
    %783 = vector.load %arg7[%782, %c0_152] : memref<320x512xf32, #tpu.memory_space<vmem>>, vector<8x512xf32>
    %cst_153 = arith.constant dense<0.000000e+00> : vector<8x512xf32>
    %784 = tpu.matmul %779, %7, %cst_153 {dimension_numbers = #tpu.dot_dimension_numbers<[1], [0], [0], [1], [0, 0, 1, 1], [], []>} : vector<8x128xf32>, vector<128x512xf32>, vector<8x512xf32> -> vector<8x512xf32>
    %785 = arith.addf %783, %784 : vector<8x512xf32>
    %786 = vector.extract_strided_slice %785 {offsets = [0, 0], sizes = [8, 384], strides = [1, 1]} : vector<8x512xf32> to vector<8x384xf32>
    %787 = arith.negf %786 : vector<8x384xf32>
    %788 = math.exp %787 : vector<8x384xf32>
    %cst_154 = arith.constant 1.000000e+00 : f32
    %789 = vector.broadcast %cst_154 : f32 to vector<8x384xf32>
    %790 = arith.addf %789, %788 : vector<8x384xf32>
    %791 = arith.divf %789, %790 : vector<8x384xf32>
    %792 = vector.extract_strided_slice %791 {offsets = [0, 0], sizes = [8, 128], strides = [1, 1]} : vector<8x384xf32> to vector<8x128xf32>
    %793 = vector.extract_strided_slice %791 {offsets = [0, 128], sizes = [8, 128], strides = [1, 1]} : vector<8x384xf32> to vector<8x128xf32>
    %794 = vector.extract_strided_slice %791 {offsets = [0, 256], sizes = [8, 128], strides = [1, 1]} : vector<8x384xf32> to vector<8x128xf32>
    %795 = vector.extract_strided_slice %785 {offsets = [0, 384], sizes = [8, 128], strides = [1, 1]} : vector<8x512xf32> to vector<8x128xf32>
    %796 = math.tanh %795 : vector<8x128xf32>
    %797 = arith.mulf %793, %777 : vector<8x128xf32>
    %798 = arith.mulf %792, %796 : vector<8x128xf32>
    %799 = arith.addf %797, %798 : vector<8x128xf32>
    %800 = math.tanh %799 : vector<8x128xf32>
    %801 = arith.mulf %794, %800 : vector<8x128xf32>
    %c36_i32 = arith.constant 36 : i32
    %c8_i32_155 = arith.constant 8 : i32
    %802 = arith.muli %c36_i32, %c8_i32_155 : i32
    %803 = tpu.assume_multiple %802, 8 : i32
    %804 = arith.index_cast %803 : i32 to index
    %c0_156 = arith.constant 0 : index
    %805 = vector.load %arg7[%804, %c0_156] : memref<320x512xf32, #tpu.memory_space<vmem>>, vector<8x512xf32>
    %cst_157 = arith.constant dense<0.000000e+00> : vector<8x512xf32>
    %806 = tpu.matmul %801, %7, %cst_157 {dimension_numbers = #tpu.dot_dimension_numbers<[1], [0], [0], [1], [0, 0, 1, 1], [], []>} : vector<8x128xf32>, vector<128x512xf32>, vector<8x512xf32> -> vector<8x512xf32>
    %807 = arith.addf %805, %806 : vector<8x512xf32>
    %808 = vector.extract_strided_slice %807 {offsets = [0, 0], sizes = [8, 384], strides = [1, 1]} : vector<8x512xf32> to vector<8x384xf32>
    %809 = arith.negf %808 : vector<8x384xf32>
    %810 = math.exp %809 : vector<8x384xf32>
    %cst_158 = arith.constant 1.000000e+00 : f32
    %811 = vector.broadcast %cst_158 : f32 to vector<8x384xf32>
    %812 = arith.addf %811, %810 : vector<8x384xf32>
    %813 = arith.divf %811, %812 : vector<8x384xf32>
    %814 = vector.extract_strided_slice %813 {offsets = [0, 0], sizes = [8, 128], strides = [1, 1]} : vector<8x384xf32> to vector<8x128xf32>
    %815 = vector.extract_strided_slice %813 {offsets = [0, 128], sizes = [8, 128], strides = [1, 1]} : vector<8x384xf32> to vector<8x128xf32>
    %816 = vector.extract_strided_slice %813 {offsets = [0, 256], sizes = [8, 128], strides = [1, 1]} : vector<8x384xf32> to vector<8x128xf32>
    %817 = vector.extract_strided_slice %807 {offsets = [0, 384], sizes = [8, 128], strides = [1, 1]} : vector<8x512xf32> to vector<8x128xf32>
    %818 = math.tanh %817 : vector<8x128xf32>
    %819 = arith.mulf %815, %799 : vector<8x128xf32>
    %820 = arith.mulf %814, %818 : vector<8x128xf32>
    %821 = arith.addf %819, %820 : vector<8x128xf32>
    %822 = math.tanh %821 : vector<8x128xf32>
    %823 = arith.mulf %816, %822 : vector<8x128xf32>
    %c37_i32 = arith.constant 37 : i32
    %c8_i32_159 = arith.constant 8 : i32
    %824 = arith.muli %c37_i32, %c8_i32_159 : i32
    %825 = tpu.assume_multiple %824, 8 : i32
    %826 = arith.index_cast %825 : i32 to index
    %c0_160 = arith.constant 0 : index
    %827 = vector.load %arg7[%826, %c0_160] : memref<320x512xf32, #tpu.memory_space<vmem>>, vector<8x512xf32>
    %cst_161 = arith.constant dense<0.000000e+00> : vector<8x512xf32>
    %828 = tpu.matmul %823, %7, %cst_161 {dimension_numbers = #tpu.dot_dimension_numbers<[1], [0], [0], [1], [0, 0, 1, 1], [], []>} : vector<8x128xf32>, vector<128x512xf32>, vector<8x512xf32> -> vector<8x512xf32>
    %829 = arith.addf %827, %828 : vector<8x512xf32>
    %830 = vector.extract_strided_slice %829 {offsets = [0, 0], sizes = [8, 384], strides = [1, 1]} : vector<8x512xf32> to vector<8x384xf32>
    %831 = arith.negf %830 : vector<8x384xf32>
    %832 = math.exp %831 : vector<8x384xf32>
    %cst_162 = arith.constant 1.000000e+00 : f32
    %833 = vector.broadcast %cst_162 : f32 to vector<8x384xf32>
    %834 = arith.addf %833, %832 : vector<8x384xf32>
    %835 = arith.divf %833, %834 : vector<8x384xf32>
    %836 = vector.extract_strided_slice %835 {offsets = [0, 0], sizes = [8, 128], strides = [1, 1]} : vector<8x384xf32> to vector<8x128xf32>
    %837 = vector.extract_strided_slice %835 {offsets = [0, 128], sizes = [8, 128], strides = [1, 1]} : vector<8x384xf32> to vector<8x128xf32>
    %838 = vector.extract_strided_slice %835 {offsets = [0, 256], sizes = [8, 128], strides = [1, 1]} : vector<8x384xf32> to vector<8x128xf32>
    %839 = vector.extract_strided_slice %829 {offsets = [0, 384], sizes = [8, 128], strides = [1, 1]} : vector<8x512xf32> to vector<8x128xf32>
    %840 = math.tanh %839 : vector<8x128xf32>
    %841 = arith.mulf %837, %821 : vector<8x128xf32>
    %842 = arith.mulf %836, %840 : vector<8x128xf32>
    %843 = arith.addf %841, %842 : vector<8x128xf32>
    %844 = math.tanh %843 : vector<8x128xf32>
    %845 = arith.mulf %838, %844 : vector<8x128xf32>
    %c38_i32 = arith.constant 38 : i32
    %c8_i32_163 = arith.constant 8 : i32
    %846 = arith.muli %c38_i32, %c8_i32_163 : i32
    %847 = tpu.assume_multiple %846, 8 : i32
    %848 = arith.index_cast %847 : i32 to index
    %c0_164 = arith.constant 0 : index
    %849 = vector.load %arg7[%848, %c0_164] : memref<320x512xf32, #tpu.memory_space<vmem>>, vector<8x512xf32>
    %cst_165 = arith.constant dense<0.000000e+00> : vector<8x512xf32>
    %850 = tpu.matmul %845, %7, %cst_165 {dimension_numbers = #tpu.dot_dimension_numbers<[1], [0], [0], [1], [0, 0, 1, 1], [], []>} : vector<8x128xf32>, vector<128x512xf32>, vector<8x512xf32> -> vector<8x512xf32>
    %851 = arith.addf %849, %850 : vector<8x512xf32>
    %852 = vector.extract_strided_slice %851 {offsets = [0, 0], sizes = [8, 384], strides = [1, 1]} : vector<8x512xf32> to vector<8x384xf32>
    %853 = arith.negf %852 : vector<8x384xf32>
    %854 = math.exp %853 : vector<8x384xf32>
    %cst_166 = arith.constant 1.000000e+00 : f32
    %855 = vector.broadcast %cst_166 : f32 to vector<8x384xf32>
    %856 = arith.addf %855, %854 : vector<8x384xf32>
    %857 = arith.divf %855, %856 : vector<8x384xf32>
    %858 = vector.extract_strided_slice %857 {offsets = [0, 0], sizes = [8, 128], strides = [1, 1]} : vector<8x384xf32> to vector<8x128xf32>
    %859 = vector.extract_strided_slice %857 {offsets = [0, 128], sizes = [8, 128], strides = [1, 1]} : vector<8x384xf32> to vector<8x128xf32>
    %860 = vector.extract_strided_slice %857 {offsets = [0, 256], sizes = [8, 128], strides = [1, 1]} : vector<8x384xf32> to vector<8x128xf32>
    %861 = vector.extract_strided_slice %851 {offsets = [0, 384], sizes = [8, 128], strides = [1, 1]} : vector<8x512xf32> to vector<8x128xf32>
    %862 = math.tanh %861 : vector<8x128xf32>
    %863 = arith.mulf %859, %843 : vector<8x128xf32>
    %864 = arith.mulf %858, %862 : vector<8x128xf32>
    %865 = arith.addf %863, %864 : vector<8x128xf32>
    %866 = math.tanh %865 : vector<8x128xf32>
    %867 = arith.mulf %860, %866 : vector<8x128xf32>
    %c39_i32 = arith.constant 39 : i32
    %c8_i32_167 = arith.constant 8 : i32
    %868 = arith.muli %c39_i32, %c8_i32_167 : i32
    %869 = tpu.assume_multiple %868, 8 : i32
    %870 = arith.index_cast %869 : i32 to index
    %c0_168 = arith.constant 0 : index
    %871 = vector.load %arg7[%870, %c0_168] : memref<320x512xf32, #tpu.memory_space<vmem>>, vector<8x512xf32>
    %cst_169 = arith.constant dense<0.000000e+00> : vector<8x512xf32>
    %872 = tpu.matmul %867, %7, %cst_169 {dimension_numbers = #tpu.dot_dimension_numbers<[1], [0], [0], [1], [0, 0, 1, 1], [], []>} : vector<8x128xf32>, vector<128x512xf32>, vector<8x512xf32> -> vector<8x512xf32>
    %873 = arith.addf %871, %872 : vector<8x512xf32>
    %874 = vector.extract_strided_slice %873 {offsets = [0, 0], sizes = [8, 384], strides = [1, 1]} : vector<8x512xf32> to vector<8x384xf32>
    %875 = arith.negf %874 : vector<8x384xf32>
    %876 = math.exp %875 : vector<8x384xf32>
    %cst_170 = arith.constant 1.000000e+00 : f32
    %877 = vector.broadcast %cst_170 : f32 to vector<8x384xf32>
    %878 = arith.addf %877, %876 : vector<8x384xf32>
    %879 = arith.divf %877, %878 : vector<8x384xf32>
    %880 = vector.extract_strided_slice %879 {offsets = [0, 0], sizes = [8, 128], strides = [1, 1]} : vector<8x384xf32> to vector<8x128xf32>
    %881 = vector.extract_strided_slice %879 {offsets = [0, 128], sizes = [8, 128], strides = [1, 1]} : vector<8x384xf32> to vector<8x128xf32>
    %882 = vector.extract_strided_slice %879 {offsets = [0, 256], sizes = [8, 128], strides = [1, 1]} : vector<8x384xf32> to vector<8x128xf32>
    %883 = vector.extract_strided_slice %873 {offsets = [0, 384], sizes = [8, 128], strides = [1, 1]} : vector<8x512xf32> to vector<8x128xf32>
    %884 = math.tanh %883 : vector<8x128xf32>
    %885 = arith.mulf %881, %865 : vector<8x128xf32>
    %886 = arith.mulf %880, %884 : vector<8x128xf32>
    %887 = arith.addf %885, %886 : vector<8x128xf32>
    %888 = math.tanh %887 : vector<8x128xf32>
    %889 = arith.mulf %882, %888 : vector<8x128xf32>
    %c40_i32 = arith.constant 40 : i32
    %c0_171 = arith.constant 0 : index
    %c0_172 = arith.constant 0 : index
    %890 = vector.load %arg4[%c0_171, %c0_172] : memref<128x4xf32, #tpu.memory_space<vmem>>, vector<128x4xf32>
    %cst_173 = arith.constant dense<0.000000e+00> : vector<8x4xf32>
    %891 = tpu.matmul %889, %890, %cst_173 {dimension_numbers = #tpu.dot_dimension_numbers<[1], [0], [0], [1], [0, 0, 1, 1], [], []>} : vector<8x128xf32>, vector<128x4xf32>, vector<8x4xf32> -> vector<8x4xf32>
    %c0_174 = arith.constant 0 : index
    %c0_175 = arith.constant 0 : index
    %892 = vector.load %arg5[%c0_174, %c0_175] : memref<1x4xf32, #tpu.memory_space<vmem>>, vector<1x4xf32>
    %893 = vector.broadcast %892 : vector<1x4xf32> to vector<8x4xf32>
    %894 = arith.addf %891, %893 : vector<8x4xf32>
    %c0_176 = arith.constant 0 : index
    %c0_177 = arith.constant 0 : index
    %895 = vector.load %arg6[%c0_176, %c0_177] : memref<8x4xf32, #tpu.memory_space<vmem>>, vector<8x4xf32>
    tpu.vector_store %arg6[%c0_176, %c0_177], %894 {strides = array<i32>} : memref<8x4xf32, #tpu.memory_space<vmem>>, vector<8x4xf32>,
    return
  }
}

</mosaic_0001>

<llo_original>
// kernel: tpu_custom_call.1
$region0: #{tpu_custom_call.1}
  #allocation0 [shape = 'u32[]', space=smem, size = 0x4, offset = 0x4, fixed_abs, tag = 'smem constant byte address 0x4 - core index']
  #allocation1 [shape = 'u32[144,128]{1,0:T(1,128)}', space=vmem, size = 0x12000, scoped, tag = 'internal scratch']
  #allocation2 [shape = 'f32[320,512]{1,0:T(8,128)}', space=vmem, size = 0xa0000, scoped, tag = 'scratch operand']
  %s0 = inlined_call_operand.vmem [shape: f32[320,8], index: 0, kind: input, shape index: {}]
  %s1 = inlined_call_operand.vmem [shape: f32[8,512], index: 1, kind: input, shape index: {}]
  %s2 = inlined_call_operand.hbm [shape: f32[128,512], index: 2, kind: input, shape index: {}]
  %s3 = inlined_call_operand.vmem [shape: f32[1,512], index: 3, kind: input, shape index: {}]
  %s4 = inlined_call_operand.vmem [shape: f32[128,4], index: 4, kind: input, shape index: {}]
  %s5 = inlined_call_operand.vmem [shape: f32[1,4], index: 5, kind: input, shape index: {}]
  %s6 = inlined_call_operand.vmem [shape: f32[8,4], index: 6, kind: output, shape index: {}]
  %s7 = sld [smem:[#allocation0]]
  $region38: #{tpu_custom_call.1} parent=0
    _
  %s9 = ssub.s32 1, %s7
  %s10 = scalar_select 0, %s9, %s7
  $region1: #{tpu_custom_call.1} parent=0
    #allocation3 [shape = 'u8[262144]{0}', space=vmem, size = 0x40000, scoped, tag = 'input window, operand 2, single buffered']
    #allocation4 [shape = 's32[1]{0}', space=sflag, size = 0x4, scoped, tag = 'scoped memory for tpu_custom_call.1']
    %11 = vsyncpa [#allocation4], 0
    // Predicated region
    $region2: #{tpu_custom_call.1} parent=1 // pred_check
      _
    $region3: #{tpu_custom_call.1} parent=1 // pred_check_branch
      %13 = sbr.rel (0) target = $region5
    $region4: #{tpu_custom_call.1} parent=1 // pred_region
      _
    $region5: #{tpu_custom_call.1} parent=1 // pred_fallthru
      _
    // Predicated region
    $region6: #{tpu_custom_call.1} parent=1 // pred_check
      _
    $region7: #{tpu_custom_call.1} parent=1 // pred_check_branch
      %15 = sbr.rel (0) target = $region9
    $region8: #{tpu_custom_call.1} parent=1 // pred_region
      _
    $region9: #{tpu_custom_call.1} parent=1 // pred_fallthru
      _
    // Predicated region
    $region10: #{tpu_custom_call.1} parent=1 // pred_check
      _
    $region11: #{tpu_custom_call.1} parent=1 // pred_check_branch
      %17 = sbr.rel (0) target = $region13
    $region12: #{tpu_custom_call.1} parent=1 // pred_region
      %s19 = ssub.s32 8192, 8192
      %20 = vsyncadd [#allocation4], %s19
      %s21 = sshll.u32 [#allocation3], 4
      %s22 = int_to_ptr.vmem [resolvable:$true] %s21
      %27 = dma.hbm_to_vmem [thread:$0]  %s2, 8192, %s22, [#allocation4], 512, 512, 32
    $region13: #{tpu_custom_call.1} parent=1 // pred_fallthru
      _
    // Predicated region
    $region14: #{tpu_custom_call.1} parent=1 // pred_check
      _
    $region15: #{tpu_custom_call.1} parent=1 // pred_check_branch
      %29 = sbr.rel (0) target = $region17
    $region16: #{tpu_custom_call.1} parent=1 // pred_region
      _
    $region17: #{tpu_custom_call.1} parent=1 // pred_fallthru
      _
    // Predicated region
    $region18: #{tpu_custom_call.1} parent=1 // pred_check
      _
    $region19: #{tpu_custom_call.1} parent=1 // pred_check_branch
      %31 = sbr.rel (0) target = $region21
    $region20: #{tpu_custom_call.1} parent=1 // pred_region
      _
    $region21: #{tpu_custom_call.1} parent=1 // pred_fallthru
      _
    // Predicated region
    $region22: #{tpu_custom_call.1} parent=1 // pred_check
      _
    $region23: #{tpu_custom_call.1} parent=1 // pred_check_branch
      %33 = sbr.rel (0) target = $region25
    $region24: #{tpu_custom_call.1} parent=1 // pred_region
      _
    $region25: #{tpu_custom_call.1} parent=1 // pred_fallthru
      _
    // Predicated region
    $region26: #{tpu_custom_call.1} parent=1 // pred_check
      _
    $region27: #{tpu_custom_call.1} parent=1 // pred_check_branch
      %35 = sbr.rel (0) target = $region29
    $region28: #{tpu_custom_call.1} parent=1 // pred_region
      %36 = dma.done [#allocation4], 8192
    $region29: #{tpu_custom_call.1} parent=1 // pred_fallthru
      _
    %v37 = vld [vmem:[%s0] sm:$0xff]
    %v38 = vld [vmem:[%s0 + $0x8] sm:$0xff]
    %v39 = vld [vmem:[%s0 + $0x10] sm:$0xff]
    %v40 = vld [vmem:[%s0 + $0x18] sm:$0xff]
    %v41 = vld [vmem:[%s0 + $0x20] sm:$0xff]
    %v42 = vld [vmem:[%s0 + $0x28] sm:$0xff]
    %v43 = vld [vmem:[%s0 + $0x30] sm:$0xff]
    %v44 = vld [vmem:[%s0 + $0x38] sm:$0xff]
    %v45 = vld [vmem:[%s0 + $0x40] sm:$0xff]
    %v46 = vld [vmem:[%s0 + $0x48] sm:$0xff]
    %v47 = vld [vmem:[%s0 + $0x50] sm:$0xff]
    %v48 = vld [vmem:[%s0 + $0x58] sm:$0xff]
    %v49 = vld [vmem:[%s0 + $0x60] sm:$0xff]
    %v50 = vld [vmem:[%s0 + $0x68] sm:$0xff]
    %v51 = vld [vmem:[%s0 + $0x70] sm:$0xff]
    %v52 = vld [vmem:[%s0 + $0x78] sm:$0xff]
    %v53 = vld [vmem:[%s0 + $0x80] sm:$0xff]
    %v54 = vld [vmem:[%s0 + $0x88] sm:$0xff]
    %v55 = vld [vmem:[%s0 + $0x90] sm:$0xff]
    %v56 = vld [vmem:[%s0 + $0x98] sm:$0xff]
    %v57 = vld [vmem:[%s0 + $0xa0] sm:$0xff]
    %v58 = vld [vmem:[%s0 + $0xa8] sm:$0xff]
    %v59 = vld [vmem:[%s0 + $0xb0] sm:$0xff]
    %v60 = vld [vmem:[%s0 + $0xb8] sm:$0xff]
    %v61 = vld [vmem:[%s0 + $0xc0] sm:$0xff]
    %v62 = vld [vmem:[%s0 + $0xc8] sm:$0xff]
    %v63 = vld [vmem:[%s0 + $0xd0] sm:$0xff]
    %v64 = vld [vmem:[%s0 + $0xd8] sm:$0xff]
    %v65 = vld [vmem:[%s0 + $0xe0] sm:$0xff]
    %v66 = vld [vmem:[%s0 + $0xe8] sm:$0xff]
    %v67 = vld [vmem:[%s0 + $0xf0] sm:$0xff]
    %v68 = vld [vmem:[%s0 + $0xf8] sm:$0xff]
    %v69 = vld [vmem:[%s0 + $0x100] sm:$0xff]
    %v70 = vld [vmem:[%s0 + $0x108] sm:$0xff]
    %v71 = vld [vmem:[%s0 + $0x110] sm:$0xff]
    %v72 = vld [vmem:[%s0 + $0x118] sm:$0xff]
    %v73 = vld [vmem:[%s0 + $0x120] sm:$0xff]
    %v74 = vld [vmem:[%s0 + $0x128] sm:$0xff]
    %v75 = vld [vmem:[%s0 + $0x130] sm:$0xff]
    %v76 = vld [vmem:[%s0 + $0x138] sm:$0xff]
    %v77 = vld [vmem:[%s1] sm:$0xff]
    %v78 = vld [vmem:[%s1 + $0x8] sm:$0xff]
    %v79 = vld [vmem:[%s1 + $0x10] sm:$0xff]
    %v80 = vld [vmem:[%s1 + $0x18] sm:$0xff]
    %v81 = vld [vmem:[%s3] sm:$0xf]
    %v83 = vlaneseq
    %v84 = vshrl.u32 %v83, 7
    %v85 = vsub.s32 0, %v84
    %v86 = vrot.slane %v81, %v85
    %v87 = vlaneseq
    %v88 = vshrl.u32 %v87, 7
    %v89 = vsub.s32 1, %v88
    %v90 = vrot.slane %v81, %v89
    %v91 = vlaneseq
    %v92 = vshrl.u32 %v91, 7
    %v93 = vsub.s32 2, %v92
    %v94 = vrot.slane %v81, %v93
    %v95 = vlaneseq
    %v96 = vshrl.u32 %v95, 7
    %v97 = vsub.s32 3, %v96
    %v98 = vrot.slane %v81, %v97
    %vm103 = vcmask 64512
    %v105 = vsel %vm103, %v37, 0
    %v108 = vsel %vm103, %v38, 0
    %v111 = vsel %vm103, %v39, 0
    %v114 = vsel %vm103, %v40, 0
    %v117 = vsel %vm103, %v41, 0
    %v120 = vsel %vm103, %v42, 0
    %v123 = vsel %vm103, %v43, 0
    %v126 = vsel %vm103, %v44, 0
    %v129 = vsel %vm103, %v45, 0
    %v132 = vsel %vm103, %v46, 0
    %v135 = vsel %vm103, %v47, 0
    %v138 = vsel %vm103, %v48, 0
    %v141 = vsel %vm103, %v49, 0
    %v144 = vsel %vm103, %v50, 0
    %v147 = vsel %vm103, %v51, 0
    %v150 = vsel %vm103, %v52, 0
    %v153 = vsel %vm103, %v53, 0
    %v156 = vsel %vm103, %v54, 0
    %v159 = vsel %vm103, %v55, 0
    %v162 = vsel %vm103, %v56, 0
    %v165 = vsel %vm103, %v57, 0
    %v168 = vsel %vm103, %v58, 0
    %v171 = vsel %vm103, %v59, 0
    %v174 = vsel %vm103, %v60, 0
    %v177 = vsel %vm103, %v61, 0
    %v180 = vsel %vm103, %v62, 0
    %v183 = vsel %vm103, %v63, 0
    %v186 = vsel %vm103, %v64, 0
    %v189 = vsel %vm103, %v65, 0
    %v192 = vsel %vm103, %v66, 0
    %v195 = vsel %vm103, %v67, 0
    %v198 = vsel %vm103, %v68, 0
    %v201 = vsel %vm103, %v69, 0
    %v204 = vsel %vm103, %v70, 0
    %v207 = vsel %vm103, %v71, 0
    %v210 = vsel %vm103, %v72, 0
    %v213 = vsel %vm103, %v73, 0
    %v216 = vsel %vm103, %v74, 0
    %v219 = vsel %vm103, %v75, 0
    %v222 = vsel %vm103, %v76, 0
    %224 = vmatprep.subr.mxu0 %v78
    %225 = vmatpush1.msra.mxu0 %v77
    %226 = vmatprep.subr.mxu0 0.0
    %227 = vmatpush1.msra.mxu0 0.0
    %228 = vmatprep.subr.mxu0 0.0
    %229 = vmatpush1.msra.mxu0 0.0
    %230 = vmatprep.subr.mxu0 0.0
    %231 = vmatpush1.msra.mxu0 0.0
    %232 = vmatprep.subr.mxu0 0.0
    %233 = vmatpush1.msra.mxu0 0.0
    %234 = vmatprep.subr.mxu0 0.0
    %235 = vmatpush1.msra.mxu0 0.0
    %236 = vmatprep.subr.mxu0 0.0
    %237 = vmatpush1.msra.mxu0 0.0
    %238 = vmatprep.subr.mxu0 0.0
    %239 = vmatpush1.msra.mxu0 0.0
    %240 = vmatprep.subr.mxu0 0.0
    %241 = vmatpush1.msra.mxu0 0.0
    %242 = vmatprep.subr.mxu0 0.0
    %243 = vmatpush1.msra.mxu0 0.0
    %244 = vmatprep.subr.mxu0 0.0
    %245 = vmatpush1.msra.mxu0 0.0
    %246 = vmatprep.subr.mxu0 0.0
    %247 = vmatpush1.msra.mxu0 0.0
    %248 = vmatprep.subr.mxu0 0.0
    %249 = vmatpush1.msra.mxu0 0.0
    %250 = vmatprep.subr.mxu0 0.0
    %251 = vmatpush1.msra.mxu0 0.0
    %252 = vmatprep.subr.mxu0 0.0
    %253 = vmatpush1.msra.mxu0 0.0
    %254 = vmatprep.subr.mxu0 0.0
    %255 = vmatpush1.msra.mxu0 0.0
    %256 = vmatprep.subr.mxu0 0.0
    %257 = vmatpush1.msra.mxu0 0.0
    %258 = vmatprep.subr.mxu0 0.0
    %259 = vmatpush1.msra.mxu0 0.0
    %260 = vmatprep.subr.mxu0 0.0
    %261 = vmatpush1.msra.mxu0 0.0
    %262 = vmatprep.subr.mxu0 0.0
    %263 = vmatpush1.msra.mxu0 0.0
    %264 = vmatprep.subr.mxu0 0.0
    %265 = vmatpush1.msra.mxu0 0.0
    %266 = vmatprep.subr.mxu0 0.0
    %267 = vmatpush1.msra.mxu0 0.0
    %268 = vmatprep.subr.mxu0 0.0
    %269 = vmatpush1.msra.mxu0 0.0
    %270 = vmatprep.subr.mxu0 0.0
    %271 = vmatpush1.msra.mxu0 0.0
    %272 = vmatprep.subr.mxu0 0.0
    %273 = vmatpush1.msra.mxu0 0.0
    %274 = vmatprep.subr.mxu0 0.0
    %275 = vmatpush1.msra.mxu0 0.0
    %276 = vmatprep.subr.mxu0 0.0
    %277 = vmatpush1.msra.mxu0 0.0
    %278 = vmatprep.subr.mxu0 0.0
    %279 = vmatpush1.msra.mxu0 0.0
    %280 = vmatprep.subr.mxu0 0.0
    %281 = vmatpush1.msra.mxu0 0.0
    %282 = vmatprep.subr.mxu0 0.0
    %283 = vmatpush1.msra.mxu0 0.0
    %284 = vmatprep.subr.mxu0 0.0
    %285 = vmatpush1.msra.mxu0 0.0
    %286 = vmatprep.subr.mxu0 0.0
    %287 = vmatpush1.msra.mxu0 0.0
    %288 = vmatprep.mubr.f32.mxu0 0.0
    %289 = vmatmul.mubr.f32.gmra.mrb[0].mxu0 %v105
    %v290 = vpop.f32.mrb[0].mxu0
    %v291 = vadd.f32 %v86, %v290
    %v292 = vpop.f32.mrb[0].mxu0
    %v293 = vadd.f32 %v90, %v292
    %294 = vmatprep.mubr.f32.mxu0 0.0
    %295 = vmatmul.mubr.f32.gmra.mrb[0].mxu0 %v108
    %v296 = vpop.f32.mrb[0].mxu0
    %v297 = vadd.f32 %v86, %v296
    %v298 = vpop.f32.mrb[0].mxu0
    %v299 = vadd.f32 %v90, %v298
    %300 = vmatprep.mubr.f32.mxu0 0.0
    %301 = vmatmul.mubr.f32.gmra.mrb[0].mxu0 %v111
    %v302 = vpop.f32.mrb[0].mxu0
    %v303 = vadd.f32 %v86, %v302
    %v304 = vpop.f32.mrb[0].mxu0
    %v305 = vadd.f32 %v90, %v304
    %306 = vmatprep.mubr.f32.mxu0 0.0
    %307 = vmatmul.mubr.f32.gmra.mrb[0].mxu0 %v114
    %v308 = vpop.f32.mrb[0].mxu0
    %v309 = vadd.f32 %v86, %v308
    %v310 = vpop.f32.mrb[0].mxu0
    %v311 = vadd.f32 %v90, %v310
    %312 = vmatprep.mubr.f32.mxu0 0.0
    %313 = vmatmul.mubr.f32.gmra.mrb[0].mxu0 %v117
    %v314 = vpop.f32.mrb[0].mxu0
    %v315 = vadd.f32 %v86, %v314
    %v316 = vpop.f32.mrb[0].mxu0
    %v317 = vadd.f32 %v90, %v316
    %318 = vmatprep.mubr.f32.mxu0 0.0
    %319 = vmatmul.mubr.f32.gmra.mrb[0].mxu0 %v120
    %v320 = vpop.f32.mrb[0].mxu0
    %v321 = vadd.f32 %v86, %v320
    %v322 = vpop.f32.mrb[0].mxu0
    %v323 = vadd.f32 %v90, %v322
    %324 = vmatprep.mubr.f32.mxu0 0.0
    %325 = vmatmul.mubr.f32.gmra.mrb[0].mxu0 %v123
    %v326 = vpop.f32.mrb[0].mxu0
    %v327 = vadd.f32 %v86, %v326
    %v328 = vpop.f32.mrb[0].mxu0
    %v329 = vadd.f32 %v90, %v328
    %330 = vmatprep.mubr.f32.mxu0 0.0
    %331 = vmatmul.mubr.f32.gmra.mrb[0].mxu0 %v126
    %v332 = vpop.f32.mrb[0].mxu0
    %v333 = vadd.f32 %v86, %v332
    %v334 = vpop.f32.mrb[0].mxu0
    %v335 = vadd.f32 %v90, %v334
    %336 = vmatprep.mubr.f32.mxu0 0.0
    %337 = vmatmul.mubr.f32.gmra.mrb[0].mxu0 %v129
    %v338 = vpop.f32.mrb[0].mxu0
    %v339 = vadd.f32 %v86, %v338
    %v340 = vpop.f32.mrb[0].mxu0
    %v341 = vadd.f32 %v90, %v340
    %342 = vmatprep.mubr.f32.mxu0 0.0
    %343 = vmatmul.mubr.f32.gmra.mrb[0].mxu0 %v132
    %v344 = vpop.f32.mrb[0].mxu0
    %v345 = vadd.f32 %v86, %v344
    %v346 = vpop.f32.mrb[0].mxu0
    %v347 = vadd.f32 %v90, %v346
    %348 = vmatprep.mubr.f32.mxu0 0.0
    %349 = vmatmul.mubr.f32.gmra.mrb[0].mxu0 %v135
    %v350 = vpop.f32.mrb[0].mxu0
    %v351 = vadd.f32 %v86, %v350
    %v352 = vpop.f32.mrb[0].mxu0
    %v353 = vadd.f32 %v90, %v352
    %354 = vmatprep.mubr.f32.mxu0 0.0
    %355 = vmatmul.mubr.f32.gmra.mrb[0].mxu0 %v138
    %v356 = vpop.f32.mrb[0].mxu0
    %v357 = vadd.f32 %v86, %v356
    %v358 = vpop.f32.mrb[0].mxu0
    %v359 = vadd.f32 %v90, %v358
    %360 = vmatprep.mubr.f32.mxu0 0.0
    %361 = vmatmul.mubr.f32.gmra.mrb[0].mxu0 %v141
    %v362 = vpop.f32.mrb[0].mxu0
    %v363 = vadd.f32 %v86, %v362
    %v364 = vpop.f32.mrb[0].mxu0
    %v365 = vadd.f32 %v90, %v364
    %366 = vmatprep.mubr.f32.mxu0 0.0
    %367 = vmatmul.mubr.f32.gmra.mrb[0].mxu0 %v144
    %v368 = vpop.f32.mrb[0].mxu0
    %v369 = vadd.f32 %v86, %v368
    %v370 = vpop.f32.mrb[0].mxu0
    %v371 = vadd.f32 %v90, %v370
    %372 = vmatprep.mubr.f32.mxu0 0.0
    %373 = vmatmul.mubr.f32.gmra.mrb[0].mxu0 %v147
    %v374 = vpop.f32.mrb[0].mxu0
    %v375 = vadd.f32 %v86, %v374
    %v376 = vpop.f32.mrb[0].mxu0
    %v377 = vadd.f32 %v90, %v376
    %378 = vmatprep.mubr.f32.mxu0 0.0
    %379 = vmatmul.mubr.f32.gmra.mrb[0].mxu0 %v150
    %v380 = vpop.f32.mrb[0].mxu0
    %v381 = vadd.f32 %v86, %v380
    %v382 = vpop.f32.mrb[0].mxu0
    %v383 = vadd.f32 %v90, %v382
    %384 = vmatprep.mubr.f32.mxu0 0.0
    %385 = vmatmul.mubr.f32.gmra.mrb[0].mxu0 %v153
    %v386 = vpop.f32.mrb[0].mxu0
    %v387 = vadd.f32 %v86, %v386
    %v388 = vpop.f32.mrb[0].mxu0
    %v389 = vadd.f32 %v90, %v388
    %390 = vmatprep.mubr.f32.mxu0 0.0
    %391 = vmatmul.mubr.f32.gmra.mrb[0].mxu0 %v156
    %v392 = vpop.f32.mrb[0].mxu0
    %v393 = vadd.f32 %v86, %v392
    %v394 = vpop.f32.mrb[0].mxu0
    %v395 = vadd.f32 %v90, %v394
    %396 = vmatprep.mubr.f32.mxu0 0.0
    %397 = vmatmul.mubr.f32.gmra.mrb[0].mxu0 %v159
    %v398 = vpop.f32.mrb[0].mxu0
    %v399 = vadd.f32 %v86, %v398
    %v400 = vpop.f32.mrb[0].mxu0
    %v401 = vadd.f32 %v90, %v400
    %402 = vmatprep.mubr.f32.mxu0 0.0
    %403 = vmatmul.mubr.f32.gmra.mrb[0].mxu0 %v162
    %v404 = vpop.f32.mrb[0].mxu0
    %v405 = vadd.f32 %v86, %v404
    %v406 = vpop.f32.mrb[0].mxu0
    %v407 = vadd.f32 %v90, %v406
    %408 = vmatprep.mubr.f32.mxu0 0.0
    %409 = vmatmul.mubr.f32.gmra.mrb[0].mxu0 %v165
    %v410 = vpop.f32.mrb[0].mxu0
    %v411 = vadd.f32 %v86, %v410
    %v412 = vpop.f32.mrb[0].mxu0
    %v413 = vadd.f32 %v90, %v412
    %414 = vmatprep.mubr.f32.mxu0 0.0
    %415 = vmatmul.mubr.f32.gmra.mrb[0].mxu0 %v168
    %v416 = vpop.f32.mrb[0].mxu0
    %v417 = vadd.f32 %v86, %v416
    %v418 = vpop.f32.mrb[0].mxu0
    %v419 = vadd.f32 %v90, %v418
    %420 = vmatprep.mubr.f32.mxu0 0.0
    %421 = vmatmul.mubr.f32.gmra.mrb[0].mxu0 %v171
    %v422 = vpop.f32.mrb[0].mxu0
    %v423 = vadd.f32 %v86, %v422
    %v424 = vpop.f32.mrb[0].mxu0
    %v425 = vadd.f32 %v90, %v424
    %426 = vmatprep.mubr.f32.mxu0 0.0
    %427 = vmatmul.mubr.f32.gmra.mrb[0].mxu0 %v174
    %v428 = vpop.f32.mrb[0].mxu0
    %v429 = vadd.f32 %v86, %v428
    %v430 = vpop.f32.mrb[0].mxu0
    %v431 = vadd.f32 %v90, %v430
    %432 = vmatprep.mubr.f32.mxu0 0.0
    %433 = vmatmul.mubr.f32.gmra.mrb[0].mxu0 %v177
    %v434 = vpop.f32.mrb[0].mxu0
    %v435 = vadd.f32 %v86, %v434
    %v436 = vpop.f32.mrb[0].mxu0
    %v437 = vadd.f32 %v90, %v436
    %438 = vmatprep.mubr.f32.mxu0 0.0
    %439 = vmatmul.mubr.f32.gmra.mrb[0].mxu0 %v180
    %v440 = vpop.f32.mrb[0].mxu0
    %v441 = vadd.f32 %v86, %v440
    %v442 = vpop.f32.mrb[0].mxu0
    %v443 = vadd.f32 %v90, %v442
    %444 = vmatprep.mubr.f32.mxu0 0.0
    %445 = vmatmul.mubr.f32.gmra.mrb[0].mxu0 %v183
    %v446 = vpop.f32.mrb[0].mxu0
    %v447 = vadd.f32 %v86, %v446
    %v448 = vpop.f32.mrb[0].mxu0
    %v449 = vadd.f32 %v90, %v448
    %450 = vmatprep.mubr.f32.mxu0 0.0
    %451 = vmatmul.mubr.f32.gmra.mrb[0].mxu0 %v186
    %v452 = vpop.f32.mrb[0].mxu0
    %v453 = vadd.f32 %v86, %v452
    %v454 = vpop.f32.mrb[0].mxu0
    %v455 = vadd.f32 %v90, %v454
    %456 = vmatprep.mubr.f32.mxu0 0.0
    %457 = vmatmul.mubr.f32.gmra.mrb[0].mxu0 %v189
    %v458 = vpop.f32.mrb[0].mxu0
    %v459 = vadd.f32 %v86, %v458
    %v460 = vpop.f32.mrb[0].mxu0
    %v461 = vadd.f32 %v90, %v460
    %462 = vmatprep.mubr.f32.mxu0 0.0
    %463 = vmatmul.mubr.f32.gmra.mrb[0].mxu0 %v192
    %v464 = vpop.f32.mrb[0].mxu0
    %v465 = vadd.f32 %v86, %v464
    %v466 = vpop.f32.mrb[0].mxu0
    %v467 = vadd.f32 %v90, %v466
    %468 = vmatprep.mubr.f32.mxu0 0.0
    %469 = vmatmul.mubr.f32.gmra.mrb[0].mxu0 %v195
    %v470 = vpop.f32.mrb[0].mxu0
    %v471 = vadd.f32 %v86, %v470
    %v472 = vpop.f32.mrb[0].mxu0
    %v473 = vadd.f32 %v90, %v472
    %474 = vmatprep.mubr.f32.mxu0 0.0
    %475 = vmatmul.mubr.f32.gmra.mrb[0].mxu0 %v198
    %v476 = vpop.f32.mrb[0].mxu0
    %v477 = vadd.f32 %v86, %v476
    %v478 = vpop.f32.mrb[0].mxu0
    %v479 = vadd.f32 %v90, %v478
    %480 = vmatprep.mubr.f32.mxu0 0.0
    %481 = vmatmul.mubr.f32.gmra.mrb[0].mxu0 %v201
    %v482 = vpop.f32.mrb[0].mxu0
    %v483 = vadd.f32 %v86, %v482
    %v484 = vpop.f32.mrb[0].mxu0
    %v485 = vadd.f32 %v90, %v484
    %486 = vmatprep.mubr.f32.mxu0 0.0
    %487 = vmatmul.mubr.f32.gmra.mrb[0].mxu0 %v204
    %v488 = vpop.f32.mrb[0].mxu0
    %v489 = vadd.f32 %v86, %v488
    %v490 = vpop.f32.mrb[0].mxu0
    %v491 = vadd.f32 %v90, %v490
    %492 = vmatprep.mubr.f32.mxu0 0.0
    %493 = vmatmul.mubr.f32.gmra.mrb[0].mxu0 %v207
    %v494 = vpop.f32.mrb[0].mxu0
    %v495 = vadd.f32 %v86, %v494
    %v496 = vpop.f32.mrb[0].mxu0
    %v497 = vadd.f32 %v90, %v496
    %498 = vmatprep.mubr.f32.mxu0 0.0
    %499 = vmatmul.mubr.f32.gmra.mrb[0].mxu0 %v210
    %v500 = vpop.f32.mrb[0].mxu0
    %v501 = vadd.f32 %v86, %v500
    %v502 = vpop.f32.mrb[0].mxu0
    %v503 = vadd.f32 %v90, %v502
    %504 = vmatprep.mubr.f32.mxu0 0.0
    %505 = vmatmul.mubr.f32.gmra.mrb[0].mxu0 %v213
    %v506 = vpop.f32.mrb[0].mxu0
    %v507 = vadd.f32 %v86, %v506
    %v508 = vpop.f32.mrb[0].mxu0
    %v509 = vadd.f32 %v90, %v508
    %510 = vmatprep.mubr.f32.mxu0 0.0
    %511 = vmatmul.mubr.f32.gmra.mrb[0].mxu0 %v216
    %v512 = vpop.f32.mrb[0].mxu0
    %v513 = vadd.f32 %v86, %v512
    %v514 = vpop.f32.mrb[0].mxu0
    %v515 = vadd.f32 %v90, %v514
    %516 = vmatprep.mubr.f32.mxu0 0.0
    %517 = vmatmul.mubr.f32.gmra.mrb[0].mxu0 %v219
    %v518 = vpop.f32.mrb[0].mxu0
    %v519 = vadd.f32 %v86, %v518
    %v520 = vpop.f32.mrb[0].mxu0
    %v521 = vadd.f32 %v90, %v520
    %522 = vmatprep.mubr.f32.mxu0 0.0
    %523 = vmatmul.mubr.f32.gmra.mrb[0].mxu0 %v222
    %v524 = vpop.f32.mrb[0].mxu0
    %v525 = vadd.f32 %v86, %v524
    %v526 = vpop.f32.mrb[0].mxu0
    %v527 = vadd.f32 %v90, %v526
    %528 = vdwg.mxu0
    %529 = vmatprep.subr.mxu0 %v80
    %530 = vmatpush1.msra.mxu0 %v79
    %531 = vmatprep.subr.mxu0 0.0
    %532 = vmatpush1.msra.mxu0 0.0
    %533 = vmatprep.subr.mxu0 0.0
    %534 = vmatpush1.msra.mxu0 0.0
    %535 = vmatprep.subr.mxu0 0.0
    %536 = vmatpush1.msra.mxu0 0.0
    %537 = vmatprep.subr.mxu0 0.0
    %538 = vmatpush1.msra.mxu0 0.0
    %539 = vmatprep.subr.mxu0 0.0
    %540 = vmatpush1.msra.mxu0 0.0
    %541 = vmatprep.subr.mxu0 0.0
    %542 = vmatpush1.msra.mxu0 0.0
    %543 = vmatprep.subr.mxu0 0.0
    %544 = vmatpush1.msra.mxu0 0.0
    %545 = vmatprep.subr.mxu0 0.0
    %546 = vmatpush1.msra.mxu0 0.0
    %547 = vmatprep.subr.mxu0 0.0
    %548 = vmatpush1.msra.mxu0 0.0
    %549 = vmatprep.subr.mxu0 0.0
    %550 = vmatpush1.msra.mxu0 0.0
    %551 = vmatprep.subr.mxu0 0.0
    %552 = vmatpush1.msra.mxu0 0.0
    %553 = vmatprep.subr.mxu0 0.0
    %554 = vmatpush1.msra.mxu0 0.0
    %555 = vmatprep.subr.mxu0 0.0
    %556 = vmatpush1.msra.mxu0 0.0
    %557 = vmatprep.subr.mxu0 0.0
    %558 = vmatpush1.msra.mxu0 0.0
    %559 = vmatprep.subr.mxu0 0.0
    %560 = vmatpush1.msra.mxu0 0.0
    %561 = vmatprep.subr.mxu0 0.0
    %562 = vmatpush1.msra.mxu0 0.0
    %563 = vmatprep.subr.mxu0 0.0
    %564 = vmatpush1.msra.mxu0 0.0
    %565 = vmatprep.subr.mxu0 0.0
    %566 = vmatpush1.msra.mxu0 0.0
    %567 = vmatprep.subr.mxu0 0.0
    %568 = vmatpush1.msra.mxu0 0.0
    %569 = vmatprep.subr.mxu0 0.0
    %570 = vmatpush1.msra.mxu0 0.0
    %571 = vmatprep.subr.mxu0 0.0
    %572 = vmatpush1.msra.mxu0 0.0
    %573 = vmatprep.subr.mxu0 0.0
    %574 = vmatpush1.msra.mxu0 0.0
    %575 = vmatprep.subr.mxu0 0.0
    %576 = vmatpush1.msra.mxu0 0.0
    %577 = vmatprep.subr.mxu0 0.0
    %578 = vmatpush1.msra.mxu0 0.0
    %579 = vmatprep.subr.mxu0 0.0
    %580 = vmatpush1.msra.mxu0 0.0
    %581 = vmatprep.subr.mxu0 0.0
    %582 = vmatpush1.msra.mxu0 0.0
    %583 = vmatprep.subr.mxu0 0.0
    %584 = vmatpush1.msra.mxu0 0.0
    %585 = vmatprep.subr.mxu0 0.0
    %586 = vmatpush1.msra.mxu0 0.0
    %587 = vmatprep.subr.mxu0 0.0
    %588 = vmatpush1.msra.mxu0 0.0
    %589 = vmatprep.subr.mxu0 0.0
    %590 = vmatpush1.msra.mxu0 0.0
    %591 = vmatprep.subr.mxu0 0.0
    %592 = vmatpush1.msra.mxu0 0.0
    %593 = vmatprep.mubr.f32.mxu0 0.0
    %594 = vmatmul.mubr.f32.gmra.mrb[0].mxu0 %v105
    %v595 = vpop.f32.mrb[0].mxu0
    %v596 = vadd.f32 %v94, %v595
    %v597 = vpop.f32.mrb[0].mxu0
    %v598 = vadd.f32 %v98, %v597
    %599 = vmatprep.mubr.f32.mxu0 0.0
    %600 = vmatmul.mubr.f32.gmra.mrb[0].mxu0 %v108
    %v601 = vpop.f32.mrb[0].mxu0
    %v602 = vadd.f32 %v94, %v601
    %v603 = vpop.f32.mrb[0].mxu0
    %v604 = vadd.f32 %v98, %v603
    %605 = vmatprep.mubr.f32.mxu0 0.0
    %606 = vmatmul.mubr.f32.gmra.mrb[0].mxu0 %v111
    %v607 = vpop.f32.mrb[0].mxu0
    %v608 = vadd.f32 %v94, %v607
    %v609 = vpop.f32.mrb[0].mxu0
    %v610 = vadd.f32 %v98, %v609
    %611 = vmatprep.mubr.f32.mxu0 0.0
    %612 = vmatmul.mubr.f32.gmra.mrb[0].mxu0 %v114
    %v613 = vpop.f32.mrb[0].mxu0
    %v614 = vadd.f32 %v94, %v613
    %v615 = vpop.f32.mrb[0].mxu0
    %v616 = vadd.f32 %v98, %v615
    %617 = vmatprep.mubr.f32.mxu0 0.0
    %618 = vmatmul.mubr.f32.gmra.mrb[0].mxu0 %v117
    %v619 = vpop.f32.mrb[0].mxu0
    %v620 = vadd.f32 %v94, %v619
    %v621 = vpop.f32.mrb[0].mxu0
    %v622 = vadd.f32 %v98, %v621
    %623 = vmatprep.mubr.f32.mxu0 0.0
    %624 = vmatmul.mubr.f32.gmra.mrb[0].mxu0 %v120
    %v625 = vpop.f32.mrb[0].mxu0
    %v626 = vadd.f32 %v94, %v625
    %v627 = vpop.f32.mrb[0].mxu0
    %v628 = vadd.f32 %v98, %v627
    %629 = vmatprep.mubr.f32.mxu0 0.0
    %630 = vmatmul.mubr.f32.gmra.mrb[0].mxu0 %v123
    %v631 = vpop.f32.mrb[0].mxu0
    %v632 = vadd.f32 %v94, %v631
    %v633 = vpop.f32.mrb[0].mxu0
    %v634 = vadd.f32 %v98, %v633
    %635 = vmatprep.mubr.f32.mxu0 0.0
    %636 = vmatmul.mubr.f32.gmra.mrb[0].mxu0 %v126
    %v637 = vpop.f32.mrb[0].mxu0
    %v638 = vadd.f32 %v94, %v637
    %v639 = vpop.f32.mrb[0].mxu0
    %v640 = vadd.f32 %v98, %v639
    %641 = vmatprep.mubr.f32.mxu0 0.0
    %642 = vmatmul.mubr.f32.gmra.mrb[0].mxu0 %v129
    %v643 = vpop.f32.mrb[0].mxu0
    %v644 = vadd.f32 %v94, %v643
    %v645 = vpop.f32.mrb[0].mxu0
    %v646 = vadd.f32 %v98, %v645
    %647 = vmatprep.mubr.f32.mxu0 0.0
    %648 = vmatmul.mubr.f32.gmra.mrb[0].mxu0 %v132
    %v649 = vpop.f32.mrb[0].mxu0
    %v650 = vadd.f32 %v94, %v649
    %v651 = vpop.f32.mrb[0].mxu0
    %v652 = vadd.f32 %v98, %v651
    %653 = vmatprep.mubr.f32.mxu0 0.0
    %654 = vmatmul.mubr.f32.gmra.mrb[0].mxu0 %v135
    %v655 = vpop.f32.mrb[0].mxu0
    %v656 = vadd.f32 %v94, %v655
    %v657 = vpop.f32.mrb[0].mxu0
    %v658 = vadd.f32 %v98, %v657
    %659 = vmatprep.mubr.f32.mxu0 0.0
    %660 = vmatmul.mubr.f32.gmra.mrb[0].mxu0 %v138
    %v661 = vpop.f32.mrb[0].mxu0
    %v662 = vadd.f32 %v94, %v661
    %v663 = vpop.f32.mrb[0].mxu0
    %v664 = vadd.f32 %v98, %v663
    %665 = vmatprep.mubr.f32.mxu0 0.0
    %666 = vmatmul.mubr.f32.gmra.mrb[0].mxu0 %v141
    %v667 = vpop.f32.mrb[0].mxu0
    %v668 = vadd.f32 %v94, %v667
    %v669 = vpop.f32.mrb[0].mxu0
    %v670 = vadd.f32 %v98, %v669
    %671 = vmatprep.mubr.f32.mxu0 0.0
    %672 = vmatmul.mubr.f32.gmra.mrb[0].mxu0 %v144
    %v673 = vpop.f32.mrb[0].mxu0
    %v674 = vadd.f32 %v94, %v673
    %v675 = vpop.f32.mrb[0].mxu0
    %v676 = vadd.f32 %v98, %v675
    %677 = vmatprep.mubr.f32.mxu0 0.0
    %678 = vmatmul.mubr.f32.gmra.mrb[0].mxu0 %v147
    %v679 = vpop.f32.mrb[0].mxu0
    %v680 = vadd.f32 %v94, %v679
    %v681 = vpop.f32.mrb[0].mxu0
    %v682 = vadd.f32 %v98, %v681
    %683 = vmatprep.mubr.f32.mxu0 0.0
    %684 = vmatmul.mubr.f32.gmra.mrb[0].mxu0 %v150
    %v685 = vpop.f32.mrb[0].mxu0
    %v686 = vadd.f32 %v94, %v685
    %v687 = vpop.f32.mrb[0].mxu0
    %v688 = vadd.f32 %v98, %v687
    %689 = vmatprep.mubr.f32.mxu0 0.0
    %690 = vmatmul.mubr.f32.gmra.mrb[0].mxu0 %v153
    %v691 = vpop.f32.mrb[0].mxu0
    %v692 = vadd.f32 %v94, %v691
    %v693 = vpop.f32.mrb[0].mxu0
    %v694 = vadd.f32 %v98, %v693
    %695 = vmatprep.mubr.f32.mxu0 0.0
    %696 = vmatmul.mubr.f32.gmra.mrb[0].mxu0 %v156
    %v697 = vpop.f32.mrb[0].mxu0
    %v698 = vadd.f32 %v94, %v697
    %v699 = vpop.f32.mrb[0].mxu0
    %v700 = vadd.f32 %v98, %v699
    %701 = vmatprep.mubr.f32.mxu0 0.0
    %702 = vmatmul.mubr.f32.gmra.mrb[0].mxu0 %v159
    %v703 = vpop.f32.mrb[0].mxu0
    %v704 = vadd.f32 %v94, %v703
    %v705 = vpop.f32.mrb[0].mxu0
    %v706 = vadd.f32 %v98, %v705
    %707 = vmatprep.mubr.f32.mxu0 0.0
    %708 = vmatmul.mubr.f32.gmra.mrb[0].mxu0 %v162
    %v709 = vpop.f32.mrb[0].mxu0
    %v710 = vadd.f32 %v94, %v709
    %v711 = vpop.f32.mrb[0].mxu0
    %v712 = vadd.f32 %v98, %v711
    %713 = vmatprep.mubr.f32.mxu0 0.0
    %714 = vmatmul.mubr.f32.gmra.mrb[0].mxu0 %v165
    %v715 = vpop.f32.mrb[0].mxu0
    %v716 = vadd.f32 %v94, %v715
    %v717 = vpop.f32.mrb[0].mxu0
    %v718 = vadd.f32 %v98, %v717
    %719 = vmatprep.mubr.f32.mxu0 0.0
    %720 = vmatmul.mubr.f32.gmra.mrb[0].mxu0 %v168
    %v721 = vpop.f32.mrb[0].mxu0
    %v722 = vadd.f32 %v94, %v721
    %v723 = vpop.f32.mrb[0].mxu0
    %v724 = vadd.f32 %v98, %v723
    %725 = vmatprep.mubr.f32.mxu0 0.0
    %726 = vmatmul.mubr.f32.gmra.mrb[0].mxu0 %v171
    %v727 = vpop.f32.mrb[0].mxu0
    %v728 = vadd.f32 %v94, %v727
    %v729 = vpop.f32.mrb[0].mxu0
    %v730 = vadd.f32 %v98, %v729
    %731 = vmatprep.mubr.f32.mxu0 0.0
    %732 = vmatmul.mubr.f32.gmra.mrb[0].mxu0 %v174
    %v733 = vpop.f32.mrb[0].mxu0
    %v734 = vadd.f32 %v94, %v733
    %v735 = vpop.f32.mrb[0].mxu0
    %v736 = vadd.f32 %v98, %v735
    %737 = vmatprep.mubr.f32.mxu0 0.0
    %738 = vmatmul.mubr.f32.gmra.mrb[0].mxu0 %v177
    %v739 = vpop.f32.mrb[0].mxu0
    %v740 = vadd.f32 %v94, %v739
    %v741 = vpop.f32.mrb[0].mxu0
    %v742 = vadd.f32 %v98, %v741
    %743 = vmatprep.mubr.f32.mxu0 0.0
    %744 = vmatmul.mubr.f32.gmra.mrb[0].mxu0 %v180
    %v745 = vpop.f32.mrb[0].mxu0
    %v746 = vadd.f32 %v94, %v745
    %v747 = vpop.f32.mrb[0].mxu0
    %v748 = vadd.f32 %v98, %v747
    %749 = vmatprep.mubr.f32.mxu0 0.0
    %750 = vmatmul.mubr.f32.gmra.mrb[0].mxu0 %v183
    %v751 = vpop.f32.mrb[0].mxu0
    %v752 = vadd.f32 %v94, %v751
    %v753 = vpop.f32.mrb[0].mxu0
    %v754 = vadd.f32 %v98, %v753
    %755 = vmatprep.mubr.f32.mxu0 0.0
    %756 = vmatmul.mubr.f32.gmra.mrb[0].mxu0 %v186
    %v757 = vpop.f32.mrb[0].mxu0
    %v758 = vadd.f32 %v94, %v757
    %v759 = vpop.f32.mrb[0].mxu0
    %v760 = vadd.f32 %v98, %v759
    %761 = vmatprep.mubr.f32.mxu0 0.0
    %762 = vmatmul.mubr.f32.gmra.mrb[0].mxu0 %v189
    %v763 = vpop.f32.mrb[0].mxu0
    %v764 = vadd.f32 %v94, %v763
    %v765 = vpop.f32.mrb[0].mxu0
    %v766 = vadd.f32 %v98, %v765
    %767 = vmatprep.mubr.f32.mxu0 0.0
    %768 = vmatmul.mubr.f32.gmra.mrb[0].mxu0 %v192
    %v769 = vpop.f32.mrb[0].mxu0
    %v770 = vadd.f32 %v94, %v769
    %v771 = vpop.f32.mrb[0].mxu0
    %v772 = vadd.f32 %v98, %v771
    %773 = vmatprep.mubr.f32.mxu0 0.0
    %774 = vmatmul.mubr.f32.gmra.mrb[0].mxu0 %v195
    %v775 = vpop.f32.mrb[0].mxu0
    %v776 = vadd.f32 %v94, %v775
    %v777 = vpop.f32.mrb[0].mxu0
    %v778 = vadd.f32 %v98, %v777
    %779 = vmatprep.mubr.f32.mxu0 0.0
    %780 = vmatmul.mubr.f32.gmra.mrb[0].mxu0 %v198
    %v781 = vpop.f32.mrb[0].mxu0
    %v782 = vadd.f32 %v94, %v781
    %v783 = vpop.f32.mrb[0].mxu0
    %v784 = vadd.f32 %v98, %v783
    %785 = vmatprep.mubr.f32.mxu0 0.0
    %786 = vmatmul.mubr.f32.gmra.mrb[0].mxu0 %v201
    %v787 = vpop.f32.mrb[0].mxu0
    %v788 = vadd.f32 %v94, %v787
    %v789 = vpop.f32.mrb[0].mxu0
    %v790 = vadd.f32 %v98, %v789
    %791 = vmatprep.mubr.f32.mxu0 0.0
    %792 = vmatmul.mubr.f32.gmra.mrb[0].mxu0 %v204
    %v793 = vpop.f32.mrb[0].mxu0
    %v794 = vadd.f32 %v94, %v793
    %v795 = vpop.f32.mrb[0].mxu0
    %v796 = vadd.f32 %v98, %v795
    %797 = vmatprep.mubr.f32.mxu0 0.0
    %798 = vmatmul.mubr.f32.gmra.mrb[0].mxu0 %v207
    %v799 = vpop.f32.mrb[0].mxu0
    %v800 = vadd.f32 %v94, %v799
    %v801 = vpop.f32.mrb[0].mxu0
    %v802 = vadd.f32 %v98, %v801
    %803 = vmatprep.mubr.f32.mxu0 0.0
    %804 = vmatmul.mubr.f32.gmra.mrb[0].mxu0 %v210
    %v805 = vpop.f32.mrb[0].mxu0
    %v806 = vadd.f32 %v94, %v805
    %v807 = vpop.f32.mrb[0].mxu0
    %v808 = vadd.f32 %v98, %v807
    %809 = vmatprep.mubr.f32.mxu0 0.0
    %810 = vmatmul.mubr.f32.gmra.mrb[0].mxu0 %v213
    %v811 = vpop.f32.mrb[0].mxu0
    %v812 = vadd.f32 %v94, %v811
    %v813 = vpop.f32.mrb[0].mxu0
    %v814 = vadd.f32 %v98, %v813
    %815 = vmatprep.mubr.f32.mxu0 0.0
    %816 = vmatmul.mubr.f32.gmra.mrb[0].mxu0 %v216
    %v817 = vpop.f32.mrb[0].mxu0
    %v818 = vadd.f32 %v94, %v817
    %v819 = vpop.f32.mrb[0].mxu0
    %v820 = vadd.f32 %v98, %v819
    %821 = vmatprep.mubr.f32.mxu0 0.0
    %822 = vmatmul.mubr.f32.gmra.mrb[0].mxu0 %v219
    %v823 = vpop.f32.mrb[0].mxu0
    %v824 = vadd.f32 %v94, %v823
    %v825 = vpop.f32.mrb[0].mxu0
    %v826 = vadd.f32 %v98, %v825
    %827 = vmatprep.mubr.f32.mxu0 0.0
    %828 = vmatmul.mubr.f32.gmra.mrb[0].mxu0 %v222
    %v829 = vpop.f32.mrb[0].mxu0
    %v830 = vadd.f32 %v94, %v829
    %v831 = vpop.f32.mrb[0].mxu0
    %v832 = vadd.f32 %v98, %v831
    %833 = vdwg.mxu0
    %834 = vst [vmem:[#allocation2] sm:$0xff] %v291
    %835 = vst [vmem:[#allocation2 + $0x8] sm:$0xff] %v293
    %836 = vst [vmem:[#allocation2 + $0x10] sm:$0xff] %v596
    %837 = vst [vmem:[#allocation2 + $0x18] sm:$0xff] %v598
    %838 = vst [vmem:[#allocation2 + $0x20] sm:$0xff] %v297
    %839 = vst [vmem:[#allocation2 + $0x28] sm:$0xff] %v299
    %840 = vst [vmem:[#allocation2 + $0x30] sm:$0xff] %v602
    %841 = vst [vmem:[#allocation2 + $0x38] sm:$0xff] %v604
    %842 = vst [vmem:[#allocation2 + $0x40] sm:$0xff] %v303
    %843 = vst [vmem:[#allocation2 + $0x48] sm:$0xff] %v305
    %844 = vst [vmem:[#allocation2 + $0x50] sm:$0xff] %v608
    %845 = vst [vmem:[#allocation2 + $0x58] sm:$0xff] %v610
    %846 = vst [vmem:[#allocation2 + $0x60] sm:$0xff] %v309
    %847 = vst [vmem:[#allocation2 + $0x68] sm:$0xff] %v311
    %848 = vst [vmem:[#allocation2 + $0x70] sm:$0xff] %v614
    %849 = vst [vmem:[#allocation2 + $0x78] sm:$0xff] %v616
    %850 = vst [vmem:[#allocation2 + $0x80] sm:$0xff] %v315
    %851 = vst [vmem:[#allocation2 + $0x88] sm:$0xff] %v317
    %852 = vst [vmem:[#allocation2 + $0x90] sm:$0xff] %v620
    %853 = vst [vmem:[#allocation2 + $0x98] sm:$0xff] %v622
    %854 = vst [vmem:[#allocation2 + $0xa0] sm:$0xff] %v321
    %855 = vst [vmem:[#allocation2 + $0xa8] sm:$0xff] %v323
    %856 = vst [vmem:[#allocation2 + $0xb0] sm:$0xff] %v626
    %857 = vst [vmem:[#allocation2 + $0xb8] sm:$0xff] %v628
    %858 = vst [vmem:[#allocation2 + $0xc0] sm:$0xff] %v327
    %859 = vst [vmem:[#allocation2 + $0xc8] sm:$0xff] %v329
    %860 = vst [vmem:[#allocation2 + $0xd0] sm:$0xff] %v632
    %861 = vst [vmem:[#allocation2 + $0xd8] sm:$0xff] %v634
    %862 = vst [vmem:[#allocation2 + $0xe0] sm:$0xff] %v333
    %863 = vst [vmem:[#allocation2 + $0xe8] sm:$0xff] %v335
    %864 = vst [vmem:[#allocation2 + $0xf0] sm:$0xff] %v638
    %865 = vst [vmem:[#allocation2 + $0xf8] sm:$0xff] %v640
    %866 = vst [vmem:[#allocation2 + $0x100] sm:$0xff] %v339
    %867 = vst [vmem:[#allocation2 + $0x108] sm:$0xff] %v341
    %868 = vst [vmem:[#allocation2 + $0x110] sm:$0xff] %v644
    %869 = vst [vmem:[#allocation2 + $0x118] sm:$0xff] %v646
    %870 = vst [vmem:[#allocation2 + $0x120] sm:$0xff] %v345
    %871 = vst [vmem:[#allocation2 + $0x128] sm:$0xff] %v347
    %872 = vst [vmem:[#allocation2 + $0x130] sm:$0xff] %v650
    %873 = vst [vmem:[#allocation2 + $0x138] sm:$0xff] %v652
    %874 = vst [vmem:[#allocation2 + $0x140] sm:$0xff] %v351
    %875 = vst [vmem:[#allocation2 + $0x148] sm:$0xff] %v353
    %876 = vst [vmem:[#allocation2 + $0x150] sm:$0xff] %v656
    %877 = vst [vmem:[#allocation2 + $0x158] sm:$0xff] %v658
    %878 = vst [vmem:[#allocation2 + $0x160] sm:$0xff] %v357
    %879 = vst [vmem:[#allocation2 + $0x168] sm:$0xff] %v359
    %880 = vst [vmem:[#allocation2 + $0x170] sm:$0xff] %v662
    %881 = vst [vmem:[#allocation2 + $0x178] sm:$0xff] %v664
    %882 = vst [vmem:[#allocation2 + $0x180] sm:$0xff] %v363
    %883 = vst [vmem:[#allocation2 + $0x188] sm:$0xff] %v365
    %884 = vst [vmem:[#allocation2 + $0x190] sm:$0xff] %v668
    %885 = vst [vmem:[#allocation2 + $0x198] sm:$0xff] %v670
    %886 = vst [vmem:[#allocation2 + $0x1a0] sm:$0xff] %v369
    %887 = vst [vmem:[#allocation2 + $0x1a8] sm:$0xff] %v371
    %888 = vst [vmem:[#allocation2 + $0x1b0] sm:$0xff] %v674
    %889 = vst [vmem:[#allocation2 + $0x1b8] sm:$0xff] %v676
    %890 = vst [vmem:[#allocation2 + $0x1c0] sm:$0xff] %v375
    %891 = vst [vmem:[#allocation2 + $0x1c8] sm:$0xff] %v377
    %892 = vst [vmem:[#allocation2 + $0x1d0] sm:$0xff] %v680
    %893 = vst [vmem:[#allocation2 + $0x1d8] sm:$0xff] %v682
    %894 = vst [vmem:[#allocation2 + $0x1e0] sm:$0xff] %v381
    %895 = vst [vmem:[#allocation2 + $0x1e8] sm:$0xff] %v383
    %896 = vst [vmem:[#allocation2 + $0x1f0] sm:$0xff] %v686
    %897 = vst [vmem:[#allocation2 + $0x1f8] sm:$0xff] %v688
    %898 = vst [vmem:[#allocation2 + $0x200] sm:$0xff] %v387
    %899 = vst [vmem:[#allocation2 + $0x208] sm:$0xff] %v389
    %900 = vst [vmem:[#allocation2 + $0x210] sm:$0xff] %v692
    %901 = vst [vmem:[#allocation2 + $0x218] sm:$0xff] %v694
    %902 = vst [vmem:[#allocation2 + $0x220] sm:$0xff] %v393
    %903 = vst [vmem:[#allocation2 + $0x228] sm:$0xff] %v395
    %904 = vst [vmem:[#allocation2 + $0x230] sm:$0xff] %v698
    %905 = vst [vmem:[#allocation2 + $0x238] sm:$0xff] %v700
    %906 = vst [vmem:[#allocation2 + $0x240] sm:$0xff] %v399
    %907 = vst [vmem:[#allocation2 + $0x248] sm:$0xff] %v401
    %908 = vst [vmem:[#allocation2 + $0x250] sm:$0xff] %v704
    %909 = vst [vmem:[#allocation2 + $0x258] sm:$0xff] %v706
    %910 = vst [vmem:[#allocation2 + $0x260] sm:$0xff] %v405
    %911 = vst [vmem:[#allocation2 + $0x268] sm:$0xff] %v407
    %912 = vst [vmem:[#allocation2 + $0x270] sm:$0xff] %v710
    %913 = vst [vmem:[#allocation2 + $0x278] sm:$0xff] %v712
    %914 = vst [vmem:[#allocation2 + $0x280] sm:$0xff] %v411
    %915 = vst [vmem:[#allocation2 + $0x288] sm:$0xff] %v413
    %916 = vst [vmem:[#allocation2 + $0x290] sm:$0xff] %v716
    %917 = vst [vmem:[#allocation2 + $0x298] sm:$0xff] %v718
    %918 = vst [vmem:[#allocation2 + $0x2a0] sm:$0xff] %v417
    %919 = vst [vmem:[#allocation2 + $0x2a8] sm:$0xff] %v419
    %920 = vst [vmem:[#allocation2 + $0x2b0] sm:$0xff] %v722
    %921 = vst [vmem:[#allocation2 + $0x2b8] sm:$0xff] %v724
    %922 = vst [vmem:[#allocation2 + $0x2c0] sm:$0xff] %v423
    %923 = vst [vmem:[#allocation2 + $0x2c8] sm:$0xff] %v425
    %924 = vst [vmem:[#allocation2 + $0x2d0] sm:$0xff] %v728
    %925 = vst [vmem:[#allocation2 + $0x2d8] sm:$0xff] %v730
    %926 = vst [vmem:[#allocation2 + $0x2e0] sm:$0xff] %v429
    %927 = vst [vmem:[#allocation2 + $0x2e8] sm:$0xff] %v431
    %928 = vst [vmem:[#allocation2 + $0x2f0] sm:$0xff] %v734
    %929 = vst [vmem:[#allocation2 + $0x2f8] sm:$0xff] %v736
    %930 = vst [vmem:[#allocation2 + $0x300] sm:$0xff] %v435
    %931 = vst [vmem:[#allocation2 + $0x308] sm:$0xff] %v437
    %932 = vst [vmem:[#allocation2 + $0x310] sm:$0xff] %v740
    %933 = vst [vmem:[#allocation2 + $0x318] sm:$0xff] %v742
    %934 = vst [vmem:[#allocation2 + $0x320] sm:$0xff] %v441
    %935 = vst [vmem:[#allocation2 + $0x328] sm:$0xff] %v443
    %936 = vst [vmem:[#allocation2 + $0x330] sm:$0xff] %v746
    %937 = vst [vmem:[#allocation2 + $0x338] sm:$0xff] %v748
    %938 = vst [vmem:[#allocation2 + $0x340] sm:$0xff] %v447
    %939 = vst [vmem:[#allocation2 + $0x348] sm:$0xff] %v449
    %940 = vst [vmem:[#allocation2 + $0x350] sm:$0xff] %v752
    %941 = vst [vmem:[#allocation2 + $0x358] sm:$0xff] %v754
    %942 = vst [vmem:[#allocation2 + $0x360] sm:$0xff] %v453
    %943 = vst [vmem:[#allocation2 + $0x368] sm:$0xff] %v455
    %944 = vst [vmem:[#allocation2 + $0x370] sm:$0xff] %v758
    %945 = vst [vmem:[#allocation2 + $0x378] sm:$0xff] %v760
    %946 = vst [vmem:[#allocation2 + $0x380] sm:$0xff] %v459
    %947 = vst [vmem:[#allocation2 + $0x388] sm:$0xff] %v461
    %948 = vst [vmem:[#allocation2 + $0x390] sm:$0xff] %v764
    %949 = vst [vmem:[#allocation2 + $0x398] sm:$0xff] %v766
    %950 = vst [vmem:[#allocation2 + $0x3a0] sm:$0xff] %v465
    %951 = vst [vmem:[#allocation2 + $0x3a8] sm:$0xff] %v467
    %952 = vst [vmem:[#allocation2 + $0x3b0] sm:$0xff] %v770
    %953 = vst [vmem:[#allocation2 + $0x3b8] sm:$0xff] %v772
    %954 = vst [vmem:[#allocation2 + $0x3c0] sm:$0xff] %v471
    %955 = vst [vmem:[#allocation2 + $0x3c8] sm:$0xff] %v473
    %956 = vst [vmem:[#allocation2 + $0x3d0] sm:$0xff] %v776
    %957 = vst [vmem:[#allocation2 + $0x3d8] sm:$0xff] %v778
    %958 = vst [vmem:[#allocation2 + $0x3e0] sm:$0xff] %v477
    %959 = vst [vmem:[#allocation2 + $0x3e8] sm:$0xff] %v479
    %960 = vst [vmem:[#allocation2 + $0x3f0] sm:$0xff] %v782
    %961 = vst [vmem:[#allocation2 + $0x3f8] sm:$0xff] %v784
    %962 = vst [vmem:[#allocation2 + $0x400] sm:$0xff] %v483
    %963 = vst [vmem:[#allocation2 + $0x408] sm:$0xff] %v485
    %964 = vst [vmem:[#allocation2 + $0x410] sm:$0xff] %v788
    %965 = vst [vmem:[#allocation2 + $0x418] sm:$0xff] %v790
    %966 = vst [vmem:[#allocation2 + $0x420] sm:$0xff] %v489
    %967 = vst [vmem:[#allocation2 + $0x428] sm:$0xff] %v491
    %968 = vst [vmem:[#allocation2 + $0x430] sm:$0xff] %v794
    %969 = vst [vmem:[#allocation2 + $0x438] sm:$0xff] %v796
    %970 = vst [vmem:[#allocation2 + $0x440] sm:$0xff] %v495
    %971 = vst [vmem:[#allocation2 + $0x448] sm:$0xff] %v497
    %972 = vst [vmem:[#allocation2 + $0x450] sm:$0xff] %v800
    %973 = vst [vmem:[#allocation2 + $0x458] sm:$0xff] %v802
    %974 = vst [vmem:[#allocation2 + $0x460] sm:$0xff] %v501
    %975 = vst [vmem:[#allocation2 + $0x468] sm:$0xff] %v503
    %976 = vst [vmem:[#allocation2 + $0x470] sm:$0xff] %v806
    %977 = vst [vmem:[#allocation2 + $0x478] sm:$0xff] %v808
    %978 = vst [vmem:[#allocation2 + $0x480] sm:$0xff] %v507
    %979 = vst [vmem:[#allocation2 + $0x488] sm:$0xff] %v509
    %980 = vst [vmem:[#allocation2 + $0x490] sm:$0xff] %v812
    %981 = vst [vmem:[#allocation2 + $0x498] sm:$0xff] %v814
    %982 = vst [vmem:[#allocation2 + $0x4a0] sm:$0xff] %v513
    %983 = vst [vmem:[#allocation2 + $0x4a8] sm:$0xff] %v515
    %984 = vst [vmem:[#allocation2 + $0x4b0] sm:$0xff] %v818
    %985 = vst [vmem:[#allocation2 + $0x4b8] sm:$0xff] %v820
    %986 = vst [vmem:[#allocation2 + $0x4c0] sm:$0xff] %v519
    %987 = vst [vmem:[#allocation2 + $0x4c8] sm:$0xff] %v521
    %988 = vst [vmem:[#allocation2 + $0x4d0] sm:$0xff] %v824
    %989 = vst [vmem:[#allocation2 + $0x4d8] sm:$0xff] %v826
    %990 = vst [vmem:[#allocation2 + $0x4e0] sm:$0xff] %v525
    %991 = vst [vmem:[#allocation2 + $0x4e8] sm:$0xff] %v527
    %992 = vst [vmem:[#allocation2 + $0x4f0] sm:$0xff] %v830
    %993 = vst [vmem:[#allocation2 + $0x4f8] sm:$0xff] %v832
    %v994 = vld [vmem:[#allocation3] sm:$0xff]
    %v995 = vld [vmem:[#allocation3 + $0x8] sm:$0xff]
    %v996 = vld [vmem:[#allocation3 + $0x10] sm:$0xff]
    %v997 = vld [vmem:[#allocation3 + $0x18] sm:$0xff]
    %v998 = vld [vmem:[#allocation3 + $0x20] sm:$0xff]
    %v999 = vld [vmem:[#allocation3 + $0x28] sm:$0xff]
    %v1000 = vld [vmem:[#allocation3 + $0x30] sm:$0xff]
    %v1001 = vld [vmem:[#allocation3 + $0x38] sm:$0xff]
    %v1002 = vld [vmem:[#allocation3 + $0x40] sm:$0xff]
    %v1003 = vld [vmem:[#allocation3 + $0x48] sm:$0xff]
    %v1004 = vld [vmem:[#allocation3 + $0x50] sm:$0xff]
    %v1005 = vld [vmem:[#allocation3 + $0x58] sm:$0xff]
    %v1006 = vld [vmem:[#allocation3 + $0x60] sm:$0xff]
    %v1007 = vld [vmem:[#allocation3 + $0x68] sm:$0xff]
    %v1008 = vld [vmem:[#allocation3 + $0x70] sm:$0xff]
    %v1009 = vld [vmem:[#allocation3 + $0x78] sm:$0xff]
    %v1010 = vld [vmem:[#allocation3 + $0x80] sm:$0xff]
    %v1011 = vld [vmem:[#allocation3 + $0x88] sm:$0xff]
    %v1012 = vld [vmem:[#allocation3 + $0x90] sm:$0xff]
    %v1013 = vld [vmem:[#allocation3 + $0x98] sm:$0xff]
    %v1014 = vld [vmem:[#allocation3 + $0xa0] sm:$0xff]
    %v1015 = vld [vmem:[#allocation3 + $0xa8] sm:$0xff]
    %v1016 = vld [vmem:[#allocation3 + $0xb0] sm:$0xff]
    %v1017 = vld [vmem:[#allocation3 + $0xb8] sm:$0xff]
    %v1018 = vld [vmem:[#allocation3 + $0xc0] sm:$0xff]
    %v1019 = vld [vmem:[#allocation3 + $0xc8] sm:$0xff]
    %v1020 = vld [vmem:[#allocation3 + $0xd0] sm:$0xff]
    %v1021 = vld [vmem:[#allocation3 + $0xd8] sm:$0xff]
    %v1022 = vld [vmem:[#allocation3 + $0xe0] sm:$0xff]
    %v1023 = vld [vmem:[#allocation3 + $0xe8] sm:$0xff]
    %v1024 = vld [vmem:[#allocation3 + $0xf0] sm:$0xff]
    %v1025 = vld [vmem:[#allocation3 + $0xf8] sm:$0xff]
    %v1026 = vld [vmem:[#allocation3 + $0x100] sm:$0xff]
    %v1027 = vld [vmem:[#allocation3 + $0x108] sm:$0xff]
    %v1028 = vld [vmem:[#allocation3 + $0x110] sm:$0xff]
    %v1029 = vld [vmem:[#allocation3 + $0x118] sm:$0xff]
    %v1030 = vld [vmem:[#allocation3 + $0x120] sm:$0xff]
    %v1031 = vld [vmem:[#allocation3 + $0x128] sm:$0xff]
    %v1032 = vld [vmem:[#allocation3 + $0x130] sm:$0xff]
    %v1033 = vld [vmem:[#allocation3 + $0x138] sm:$0xff]
    %v1034 = vld [vmem:[#allocation3 + $0x140] sm:$0xff]
    %v1035 = vld [vmem:[#allocation3 + $0x148] sm:$0xff]
    %v1036 = vld [vmem:[#allocation3 + $0x150] sm:$0xff]
    %v1037 = vld [vmem:[#allocation3 + $0x158] sm:$0xff]
    %v1038 = vld [vmem:[#allocation3 + $0x160] sm:$0xff]
    %v1039 = vld [vmem:[#allocation3 + $0x168] sm:$0xff]
    %v1040 = vld [vmem:[#allocation3 + $0x170] sm:$0xff]
    %v1041 = vld [vmem:[#allocation3 + $0x178] sm:$0xff]
    %v1042 = vld [vmem:[#allocation3 + $0x180] sm:$0xff]
    %v1043 = vld [vmem:[#allocation3 + $0x188] sm:$0xff]
    %v1044 = vld [vmem:[#allocation3 + $0x190] sm:$0xff]
    %v1045 = vld [vmem:[#allocation3 + $0x198] sm:$0xff]
    %v1046 = vld [vmem:[#allocation3 + $0x1a0] sm:$0xff]
    %v1047 = vld [vmem:[#allocation3 + $0x1a8] sm:$0xff]
    %v1048 = vld [vmem:[#allocation3 + $0x1b0] sm:$0xff]
    %v1049 = vld [vmem:[#allocation3 + $0x1b8] sm:$0xff]
    %v1050 = vld [vmem:[#allocation3 + $0x1c0] sm:$0xff]
    %v1051 = vld [vmem:[#allocation3 + $0x1c8] sm:$0xff]
    %v1052 = vld [vmem:[#allocation3 + $0x1d0] sm:$0xff]
    %v1053 = vld [vmem:[#allocation3 + $0x1d8] sm:$0xff]
    %v1054 = vld [vmem:[#allocation3 + $0x1e0] sm:$0xff]
    %v1055 = vld [vmem:[#allocation3 + $0x1e8] sm:$0xff]
    %v1056 = vld [vmem:[#allocation3 + $0x1f0] sm:$0xff]
    %v1057 = vld [vmem:[#allocation3 + $0x1f8] sm:$0xff]
    %s1058 = smul.u32 0, 4
    %s1059 = smul.addr %s1058, 8
    %s1060 = scalar_lea.vmem [#allocation2], %s1059
    %v1061 = vld [vmem:[%s1060] sm:$0xff]
    %v1062 = vld [vmem:[%s1060 + $0x8] sm:$0xff]
    %v1063 = vld [vmem:[%s1060 + $0x10] sm:$0xff]
    %v1064 = vld [vmem:[%s1060 + $0x18] sm:$0xff]
    %1065 = vmatprep.subr.mxu0 %v995
    %1066 = vmatpush1.msra.mxu0 %v994
    %1067 = vmatprep.subr.mxu0 %v999
    %1068 = vmatpush1.msra.mxu0 %v998
    %1069 = vmatprep.subr.mxu0 %v1003
    %1070 = vmatpush1.msra.mxu0 %v1002
    %1071 = vmatprep.subr.mxu0 %v1007
    %1072 = vmatpush1.msra.mxu0 %v1006
    %1073 = vmatprep.subr.mxu0 %v1011
    %1074 = vmatpush1.msra.mxu0 %v1010
    %1075 = vmatprep.subr.mxu0 %v1015
    %1076 = vmatpush1.msra.mxu0 %v1014
    %1077 = vmatprep.subr.mxu0 %v1019
    %1078 = vmatpush1.msra.mxu0 %v1018
    %1079 = vmatprep.subr.mxu0 %v1023
    %1080 = vmatpush1.msra.mxu0 %v1022
    %1081 = vmatprep.subr.mxu0 %v1027
    %1082 = vmatpush1.msra.mxu0 %v1026
    %1083 = vmatprep.subr.mxu0 %v1031
    %1084 = vmatpush1.msra.mxu0 %v1030
    %1085 = vmatprep.subr.mxu0 %v1035
    %1086 = vmatpush1.msra.mxu0 %v1034
    %1087 = vmatprep.subr.mxu0 %v1039
    %1088 = vmatpush1.msra.mxu0 %v1038
    %1089 = vmatprep.subr.mxu0 %v1043
    %1090 = vmatpush1.msra.mxu0 %v1042
    %1091 = vmatprep.subr.mxu0 %v1047
    %1092 = vmatpush1.msra.mxu0 %v1046
    %1093 = vmatprep.subr.mxu0 %v1051
    %1094 = vmatpush1.msra.mxu0 %v1050
    %1095 = vmatprep.subr.mxu0 %v1055
    %1096 = vmatpush1.msra.mxu0 %v1054
    %1097 = vmatprep.subr.mxu0 0.0
    %1098 = vmatpush1.msra.mxu0 0.0
    %1099 = vmatprep.subr.mxu0 0.0
    %1100 = vmatpush1.msra.mxu0 0.0
    %1101 = vmatprep.subr.mxu0 0.0
    %1102 = vmatpush1.msra.mxu0 0.0
    %1103 = vmatprep.subr.mxu0 0.0
    %1104 = vmatpush1.msra.mxu0 0.0
    %1105 = vmatprep.subr.mxu0 0.0
    %1106 = vmatpush1.msra.mxu0 0.0
    %1107 = vmatprep.subr.mxu0 0.0
    %1108 = vmatpush1.msra.mxu0 0.0
    %1109 = vmatprep.subr.mxu0 0.0
    %1110 = vmatpush1.msra.mxu0 0.0
    %1111 = vmatprep.subr.mxu0 0.0
    %1112 = vmatpush1.msra.mxu0 0.0
    %1113 = vmatprep.subr.mxu0 0.0
    %1114 = vmatpush1.msra.mxu0 0.0
    %1115 = vmatprep.subr.mxu0 0.0
    %1116 = vmatpush1.msra.mxu0 0.0
    %1117 = vmatprep.subr.mxu0 0.0
    %1118 = vmatpush1.msra.mxu0 0.0
    %1119 = vmatprep.subr.mxu0 0.0
    %1120 = vmatpush1.msra.mxu0 0.0
    %1121 = vmatprep.subr.mxu0 0.0
    %1122 = vmatpush1.msra.mxu0 0.0
    %1123 = vmatprep.subr.mxu0 0.0
    %1124 = vmatpush1.msra.mxu0 0.0
    %1125 = vmatprep.subr.mxu0 0.0
    %1126 = vmatpush1.msra.mxu0 0.0
    %1127 = vmatprep.subr.mxu0 0.0
    %1128 = vmatpush1.msra.mxu0 0.0
    %1129 = vmatprep.mubr.f32.mxu0 0.0
    %1130 = vmatmul.mubr.f32.gmra.mrb[0].mxu0 0.0
    %v1131 = vpop.f32.mrb[0].mxu0
    %v1132 = vadd.f32 0.0, %v1131
    %v1133 = vpop.f32.mrb[0].mxu0
    %v1134 = vadd.f32 0.0, %v1133
    %1135 = vdwg.mxu0
    %1136 = vmatprep.subr.mxu0 %v997
    %1137 = vmatpush1.msra.mxu0 %v996
    %1138 = vmatprep.subr.mxu0 %v1001
    %1139 = vmatpush1.msra.mxu0 %v1000
    %1140 = vmatprep.subr.mxu0 %v1005
    %1141 = vmatpush1.msra.mxu0 %v1004
    %1142 = vmatprep.subr.mxu0 %v1009
    %1143 = vmatpush1.msra.mxu0 %v1008
    %1144 = vmatprep.subr.mxu0 %v1013
    %1145 = vmatpush1.msra.mxu0 %v1012
    %1146 = vmatprep.subr.mxu0 %v1017
    %1147 = vmatpush1.msra.mxu0 %v1016
    %1148 = vmatprep.subr.mxu0 %v1021
    %1149 = vmatpush1.msra.mxu0 %v1020
    %1150 = vmatprep.subr.mxu0 %v1025
    %1151 = vmatpush1.msra.mxu0 %v1024
    %1152 = vmatprep.subr.mxu0 %v1029
    %1153 = vmatpush1.msra.mxu0 %v1028
    %1154 = vmatprep.subr.mxu0 %v1033
    %1155 = vmatpush1.msra.mxu0 %v1032
    %1156 = vmatprep.subr.mxu0 %v1037
    %1157 = vmatpush1.msra.mxu0 %v1036
    %1158 = vmatprep.subr.mxu0 %v1041
    %1159 = vmatpush1.msra.mxu0 %v1040
    %1160 = vmatprep.subr.mxu0 %v1045
    %1161 = vmatpush1.msra.mxu0 %v1044
    %1162 = vmatprep.subr.mxu0 %v1049
    %1163 = vmatpush1.msra.mxu0 %v1048
    %1164 = vmatprep.subr.mxu0 %v1053
    %1165 = vmatpush1.msra.mxu0 %v1052
    %1166 = vmatprep.subr.mxu0 %v1057
    %1167 = vmatpush1.msra.mxu0 %v1056
    %1168 = vmatprep.subr.mxu0 0.0
    %1169 = vmatpush1.msra.mxu0 0.0
    %1170 = vmatprep.subr.mxu0 0.0
    %1171 = vmatpush1.msra.mxu0 0.0
    %1172 = vmatprep.subr.mxu0 0.0
    %1173 = vmatpush1.msra.mxu0 0.0
    %1174 = vmatprep.subr.mxu0 0.0
    %1175 = vmatpush1.msra.mxu0 0.0
    %1176 = vmatprep.subr.mxu0 0.0
    %1177 = vmatpush1.msra.mxu0 0.0
    %1178 = vmatprep.subr.mxu0 0.0
    %1179 = vmatpush1.msra.mxu0 0.0
    %1180 = vmatprep.subr.mxu0 0.0
    %1181 = vmatpush1.msra.mxu0 0.0
    %1182 = vmatprep.subr.mxu0 0.0
    %1183 = vmatpush1.msra.mxu0 0.0
    %1184 = vmatprep.subr.mxu0 0.0
    %1185 = vmatpush1.msra.mxu0 0.0
    %1186 = vmatprep.subr.mxu0 0.0
    %1187 = vmatpush1.msra.mxu0 0.0
    %1188 = vmatprep.subr.mxu0 0.0
    %1189 = vmatpush1.msra.mxu0 0.0
    %1190 = vmatprep.subr.mxu0 0.0
    %1191 = vmatpush1.msra.mxu0 0.0
    %1192 = vmatprep.subr.mxu0 0.0
    %1193 = vmatpush1.msra.mxu0 0.0
    %1194 = vmatprep.subr.mxu0 0.0
    %1195 = vmatpush1.msra.mxu0 0.0
    %1196 = vmatprep.subr.mxu0 0.0
    %1197 = vmatpush1.msra.mxu0 0.0
    %1198 = vmatprep.subr.mxu0 0.0
    %1199 = vmatpush1.msra.mxu0 0.0
    %1200 = vmatprep.mubr.f32.mxu0 0.0
    %1201 = vmatmul.mubr.f32.gmra.mrb[0].mxu0 0.0
    %v1202 = vpop.f32.mrb[0].mxu0
    %v1203 = vadd.f32 0.0, %v1202
    %v1204 = vpop.f32.mrb[0].mxu0
    %v1205 = vadd.f32 0.0, %v1204
    %1206 = vdwg.mxu0
    %v1207 = vadd.f32 %v1061, %v1132
    %v1208 = vadd.f32 %v1062, %v1134
    %v1209 = vadd.f32 %v1063, %v1203
    %v1210 = vadd.f32 %v1064, %v1205
    %v1211 = vxor.u32 %v1207, 2147483648
    %v1212 = vxor.u32 %v1208, 2147483648
    %v1213 = vxor.u32 %v1209, 2147483648
    %v1214 = vmul.f32 %v1211, 1.442695
    %v1215 = vpow.pop %v1214
    %v1216 = vmul.f32 %v1212, 1.442695
    %v1217 = vpow.pop %v1216
    %v1218 = vmul.f32 %v1213, 1.442695
    %v1219 = vpow.pop %v1218
    %v1220 = vadd.f32 %v1215, 1.0
    %v1221 = vadd.f32 %v1217, 1.0
    %v1222 = vadd.f32 %v1219, 1.0
    %v1223 = vrcp.pop %v1220
    %v1224 = vmul.f32 1.0, %v1223
    %v1225 = vrcp.pop %v1221
    %v1226 = vmul.f32 1.0, %v1225
    %v1227 = vrcp.pop %v1222
    %v1228 = vmul.f32 1.0, %v1227
    %v1229 = vtanh.pop %v1210
    %v1230 = vmul.f32 %v1226, 0.0
    %v1231 = vmul.f32 %v1224, %v1229
    %v1232 = vadd.f32 %v1230, %v1231
    %v1233 = vtanh.pop %v1232
    %v1234 = vmul.f32 %v1228, %v1233
    %s1235 = smul.u32 1, 4
    %s1236 = smul.addr %s1235, 8
    %s1237 = scalar_lea.vmem [#allocation2], %s1236
    %v1238 = vld [vmem:[%s1237] sm:$0xff]
    %v1239 = vld [vmem:[%s1237 + $0x8] sm:$0xff]
    %v1240 = vld [vmem:[%s1237 + $0x10] sm:$0xff]
    %v1241 = vld [vmem:[%s1237 + $0x18] sm:$0xff]
    %1242 = vmatprep.subr.mxu0 %v995
    %1243 = vmatpush1.msra.mxu0 %v994
    %1244 = vmatprep.subr.mxu0 %v999
    %1245 = vmatpush1.msra.mxu0 %v998
    %1246 = vmatprep.subr.mxu0 %v1003
    %1247 = vmatpush1.msra.mxu0 %v1002
    %1248 = vmatprep.subr.mxu0 %v1007
    %1249 = vmatpush1.msra.mxu0 %v1006
    %1250 = vmatprep.subr.mxu0 %v1011
    %1251 = vmatpush1.msra.mxu0 %v1010
    %1252 = vmatprep.subr.mxu0 %v1015
    %1253 = vmatpush1.msra.mxu0 %v1014
    %1254 = vmatprep.subr.mxu0 %v1019
    %1255 = vmatpush1.msra.mxu0 %v1018
    %1256 = vmatprep.subr.mxu0 %v1023
    %1257 = vmatpush1.msra.mxu0 %v1022
    %1258 = vmatprep.subr.mxu0 %v1027
    %1259 = vmatpush1.msra.mxu0 %v1026
    %1260 = vmatprep.subr.mxu0 %v1031
    %1261 = vmatpush1.msra.mxu0 %v1030
    %1262 = vmatprep.subr.mxu0 %v1035
    %1263 = vmatpush1.msra.mxu0 %v1034
    %1264 = vmatprep.subr.mxu0 %v1039
    %1265 = vmatpush1.msra.mxu0 %v1038
    %1266 = vmatprep.subr.mxu0 %v1043
    %1267 = vmatpush1.msra.mxu0 %v1042
    %1268 = vmatprep.subr.mxu0 %v1047
    %1269 = vmatpush1.msra.mxu0 %v1046
    %1270 = vmatprep.subr.mxu0 %v1051
    %1271 = vmatpush1.msra.mxu0 %v1050
    %1272 = vmatprep.subr.mxu0 %v1055
    %1273 = vmatpush1.msra.mxu0 %v1054
    %1274 = vmatprep.subr.mxu0 0.0
    %1275 = vmatpush1.msra.mxu0 0.0
    %1276 = vmatprep.subr.mxu0 0.0
    %1277 = vmatpush1.msra.mxu0 0.0
    %1278 = vmatprep.subr.mxu0 0.0
    %1279 = vmatpush1.msra.mxu0 0.0
    %1280 = vmatprep.subr.mxu0 0.0
    %1281 = vmatpush1.msra.mxu0 0.0
    %1282 = vmatprep.subr.mxu0 0.0
    %1283 = vmatpush1.msra.mxu0 0.0
    %1284 = vmatprep.subr.mxu0 0.0
    %1285 = vmatpush1.msra.mxu0 0.0
    %1286 = vmatprep.subr.mxu0 0.0
    %1287 = vmatpush1.msra.mxu0 0.0
    %1288 = vmatprep.subr.mxu0 0.0
    %1289 = vmatpush1.msra.mxu0 0.0
    %1290 = vmatprep.subr.mxu0 0.0
    %1291 = vmatpush1.msra.mxu0 0.0
    %1292 = vmatprep.subr.mxu0 0.0
    %1293 = vmatpush1.msra.mxu0 0.0
    %1294 = vmatprep.subr.mxu0 0.0
    %1295 = vmatpush1.msra.mxu0 0.0
    %1296 = vmatprep.subr.mxu0 0.0
    %1297 = vmatpush1.msra.mxu0 0.0
    %1298 = vmatprep.subr.mxu0 0.0
    %1299 = vmatpush1.msra.mxu0 0.0
    %1300 = vmatprep.subr.mxu0 0.0
    %1301 = vmatpush1.msra.mxu0 0.0
    %1302 = vmatprep.subr.mxu0 0.0
    %1303 = vmatpush1.msra.mxu0 0.0
    %1304 = vmatprep.subr.mxu0 0.0
    %1305 = vmatpush1.msra.mxu0 0.0
    %1306 = vmatprep.mubr.f32.mxu0 0.0
    %1307 = vmatmul.mubr.f32.gmra.mrb[0].mxu0 %v1234
    %v1308 = vpop.f32.mrb[0].mxu0
    %v1309 = vadd.f32 0.0, %v1308
    %v1310 = vpop.f32.mrb[0].mxu0
    %v1311 = vadd.f32 0.0, %v1310
    %1312 = vdwg.mxu0
    %1313 = vmatprep.subr.mxu0 %v997
    %1314 = vmatpush1.msra.mxu0 %v996
    %1315 = vmatprep.subr.mxu0 %v1001
    %1316 = vmatpush1.msra.mxu0 %v1000
    %1317 = vmatprep.subr.mxu0 %v1005
    %1318 = vmatpush1.msra.mxu0 %v1004
    %1319 = vmatprep.subr.mxu0 %v1009
    %1320 = vmatpush1.msra.mxu0 %v1008
    %1321 = vmatprep.subr.mxu0 %v1013
    %1322 = vmatpush1.msra.mxu0 %v1012
    %1323 = vmatprep.subr.mxu0 %v1017
    %1324 = vmatpush1.msra.mxu0 %v1016
    %1325 = vmatprep.subr.mxu0 %v1021
    %1326 = vmatpush1.msra.mxu0 %v1020
    %1327 = vmatprep.subr.mxu0 %v1025
    %1328 = vmatpush1.msra.mxu0 %v1024
    %1329 = vmatprep.subr.mxu0 %v1029
    %1330 = vmatpush1.msra.mxu0 %v1028
    %1331 = vmatprep.subr.mxu0 %v1033
    %1332 = vmatpush1.msra.mxu0 %v1032
    %1333 = vmatprep.subr.mxu0 %v1037
    %1334 = vmatpush1.msra.mxu0 %v1036
    %1335 = vmatprep.subr.mxu0 %v1041
    %1336 = vmatpush1.msra.mxu0 %v1040
    %1337 = vmatprep.subr.mxu0 %v1045
    %1338 = vmatpush1.msra.mxu0 %v1044
    %1339 = vmatprep.subr.mxu0 %v1049
    %1340 = vmatpush1.msra.mxu0 %v1048
    %1341 = vmatprep.subr.mxu0 %v1053
    %1342 = vmatpush1.msra.mxu0 %v1052
    %1343 = vmatprep.subr.mxu0 %v1057
    %1344 = vmatpush1.msra.mxu0 %v1056
    %1345 = vmatprep.subr.mxu0 0.0
    %1346 = vmatpush1.msra.mxu0 0.0
    %1347 = vmatprep.subr.mxu0 0.0
    %1348 = vmatpush1.msra.mxu0 0.0
    %1349 = vmatprep.subr.mxu0 0.0
    %1350 = vmatpush1.msra.mxu0 0.0
    %1351 = vmatprep.subr.mxu0 0.0
    %1352 = vmatpush1.msra.mxu0 0.0
    %1353 = vmatprep.subr.mxu0 0.0
    %1354 = vmatpush1.msra.mxu0 0.0
    %1355 = vmatprep.subr.mxu0 0.0
    %1356 = vmatpush1.msra.mxu0 0.0
    %1357 = vmatprep.subr.mxu0 0.0
    %1358 = vmatpush1.msra.mxu0 0.0
    %1359 = vmatprep.subr.mxu0 0.0
    %1360 = vmatpush1.msra.mxu0 0.0
    %1361 = vmatprep.subr.mxu0 0.0
    %1362 = vmatpush1.msra.mxu0 0.0
    %1363 = vmatprep.subr.mxu0 0.0
    %1364 = vmatpush1.msra.mxu0 0.0
    %1365 = vmatprep.subr.mxu0 0.0
    %1366 = vmatpush1.msra.mxu0 0.0
    %1367 = vmatprep.subr.mxu0 0.0
    %1368 = vmatpush1.msra.mxu0 0.0
    %1369 = vmatprep.subr.mxu0 0.0
    %1370 = vmatpush1.msra.mxu0 0.0
    %1371 = vmatprep.subr.mxu0 0.0
    %1372 = vmatpush1.msra.mxu0 0.0
    %1373 = vmatprep.subr.mxu0 0.0
    %1374 = vmatpush1.msra.mxu0 0.0
    %1375 = vmatprep.subr.mxu0 0.0
    %1376 = vmatpush1.msra.mxu0 0.0
    %1377 = vmatprep.mubr.f32.mxu0 0.0
    %1378 = vmatmul.mubr.f32.gmra.mrb[0].mxu0 %v1234
    %v1379 = vpop.f32.mrb[0].mxu0
    %v1380 = vadd.f32 0.0, %v1379
    %v1381 = vpop.f32.mrb[0].mxu0
    %v1382 = vadd.f32 0.0, %v1381
    %1383 = vdwg.mxu0
    %v1384 = vadd.f32 %v1238, %v1309
    %v1385 = vadd.f32 %v1239, %v1311
    %v1386 = vadd.f32 %v1240, %v1380
    %v1387 = vadd.f32 %v1241, %v1382
    %v1388 = vxor.u32 %v1384, 2147483648
    %v1389 = vxor.u32 %v1385, 2147483648
    %v1390 = vxor.u32 %v1386, 2147483648
    %v1391 = vmul.f32 %v1388, 1.442695
    %v1392 = vpow.pop %v1391
    %v1393 = vmul.f32 %v1389, 1.442695
    %v1394 = vpow.pop %v1393
    %v1395 = vmul.f32 %v1390, 1.442695
    %v1396 = vpow.pop %v1395
    %v1397 = vadd.f32 %v1392, 1.0
    %v1398 = vadd.f32 %v1394, 1.0
    %v1399 = vadd.f32 %v1396, 1.0
    %v1400 = vrcp.pop %v1397
    %v1401 = vmul.f32 1.0, %v1400
    %v1402 = vrcp.pop %v1398
    %v1403 = vmul.f32 1.0, %v1402
    %v1404 = vrcp.pop %v1399
    %v1405 = vmul.f32 1.0, %v1404
    %v1406 = vtanh.pop %v1387
    %v1407 = vmul.f32 %v1403, %v1232
    %v1408 = vmul.f32 %v1401, %v1406
    %v1409 = vadd.f32 %v1407, %v1408
    %v1410 = vtanh.pop %v1409
    %v1411 = vmul.f32 %v1405, %v1410
    %s1412 = smul.u32 2, 4
    %s1413 = smul.addr %s1412, 8
    %s1414 = scalar_lea.vmem [#allocation2], %s1413
    %v1415 = vld [vmem:[%s1414] sm:$0xff]
    %v1416 = vld [vmem:[%s1414 + $0x8] sm:$0xff]
    %v1417 = vld [vmem:[%s1414 + $0x10] sm:$0xff]
    %v1418 = vld [vmem:[%s1414 + $0x18] sm:$0xff]
    %1419 = vmatprep.subr.mxu0 %v995
    %1420 = vmatpush1.msra.mxu0 %v994
    %1421 = vmatprep.subr.mxu0 %v999
    %1422 = vmatpush1.msra.mxu0 %v998
    %1423 = vmatprep.subr.mxu0 %v1003
    %1424 = vmatpush1.msra.mxu0 %v1002
    %1425 = vmatprep.subr.mxu0 %v1007
    %1426 = vmatpush1.msra.mxu0 %v1006
    %1427 = vmatprep.subr.mxu0 %v1011
    %1428 = vmatpush1.msra.mxu0 %v1010
    %1429 = vmatprep.subr.mxu0 %v1015
    %1430 = vmatpush1.msra.mxu0 %v1014
    %1431 = vmatprep.subr.mxu0 %v1019
    %1432 = vmatpush1.msra.mxu0 %v1018
    %1433 = vmatprep.subr.mxu0 %v1023
    %1434 = vmatpush1.msra.mxu0 %v1022
    %1435 = vmatprep.subr.mxu0 %v1027
    %1436 = vmatpush1.msra.mxu0 %v1026
    %1437 = vmatprep.subr.mxu0 %v1031
    %1438 = vmatpush1.msra.mxu0 %v1030
    %1439 = vmatprep.subr.mxu0 %v1035
    %1440 = vmatpush1.msra.mxu0 %v1034
    %1441 = vmatprep.subr.mxu0 %v1039
    %1442 = vmatpush1.msra.mxu0 %v1038
    %1443 = vmatprep.subr.mxu0 %v1043
    %1444 = vmatpush1.msra.mxu0 %v1042
    %1445 = vmatprep.subr.mxu0 %v1047
    %1446 = vmatpush1.msra.mxu0 %v1046
    %1447 = vmatprep.subr.mxu0 %v1051
    %1448 = vmatpush1.msra.mxu0 %v1050
    %1449 = vmatprep.subr.mxu0 %v1055
    %1450 = vmatpush1.msra.mxu0 %v1054
    %1451 = vmatprep.subr.mxu0 0.0
    %1452 = vmatpush1.msra.mxu0 0.0
    %1453 = vmatprep.subr.mxu0 0.0
    %1454 = vmatpush1.msra.mxu0 0.0
    %1455 = vmatprep.subr.mxu0 0.0
    %1456 = vmatpush1.msra.mxu0 0.0
    %1457 = vmatprep.subr.mxu0 0.0
    %1458 = vmatpush1.msra.mxu0 0.0
    %1459 = vmatprep.subr.mxu0 0.0
    %1460 = vmatpush1.msra.mxu0 0.0
    %1461 = vmatprep.subr.mxu0 0.0
    %1462 = vmatpush1.msra.mxu0 0.0
    %1463 = vmatprep.subr.mxu0 0.0
    %1464 = vmatpush1.msra.mxu0 0.0
    %1465 = vmatprep.subr.mxu0 0.0
    %1466 = vmatpush1.msra.mxu0 0.0
    %1467 = vmatprep.subr.mxu0 0.0
    %1468 = vmatpush1.msra.mxu0 0.0
    %1469 = vmatprep.subr.mxu0 0.0
    %1470 = vmatpush1.msra.mxu0 0.0
    %1471 = vmatprep.subr.mxu0 0.0
    %1472 = vmatpush1.msra.mxu0 0.0
    %1473 = vmatprep.subr.mxu0 0.0
    %1474 = vmatpush1.msra.mxu0 0.0
    %1475 = vmatprep.subr.mxu0 0.0
    %1476 = vmatpush1.msra.mxu0 0.0
    %1477 = vmatprep.subr.mxu0 0.0
    %1478 = vmatpush1.msra.mxu0 0.0
    %1479 = vmatprep.subr.mxu0 0.0
    %1480 = vmatpush1.msra.mxu0 0.0
    %1481 = vmatprep.subr.mxu0 0.0
    %1482 = vmatpush1.msra.mxu0 0.0
    %1483 = vmatprep.mubr.f32.mxu0 0.0
    %1484 = vmatmul.mubr.f32.gmra.mrb[0].mxu0 %v1411
    %v1485 = vpop.f32.mrb[0].mxu0
    %v1486 = vadd.f32 0.0, %v1485
    %v1487 = vpop.f32.mrb[0].mxu0
    %v1488 = vadd.f32 0.0, %v1487
    %1489 = vdwg.mxu0
    %1490 = vmatprep.subr.mxu0 %v997
    %1491 = vmatpush1.msra.mxu0 %v996
    %1492 = vmatprep.subr.mxu0 %v1001
    %1493 = vmatpush1.msra.mxu0 %v1000
    %1494 = vmatprep.subr.mxu0 %v1005
    %1495 = vmatpush1.msra.mxu0 %v1004
    %1496 = vmatprep.subr.mxu0 %v1009
    %1497 = vmatpush1.msra.mxu0 %v1008
    %1498 = vmatprep.subr.mxu0 %v1013
    %1499 = vmatpush1.msra.mxu0 %v1012
    %1500 = vmatprep.subr.mxu0 %v1017
    %1501 = vmatpush1.msra.mxu0 %v1016
    %1502 = vmatprep.subr.mxu0 %v1021
    %1503 = vmatpush1.msra.mxu0 %v1020
    %1504 = vmatprep.subr.mxu0 %v1025
    %1505 = vmatpush1.msra.mxu0 %v1024
    %1506 = vmatprep.subr.mxu0 %v1029
    %1507 = vmatpush1.msra.mxu0 %v1028
    %1508 = vmatprep.subr.mxu0 %v1033
    %1509 = vmatpush1.msra.mxu0 %v1032
    %1510 = vmatprep.subr.mxu0 %v1037
    %1511 = vmatpush1.msra.mxu0 %v1036
    %1512 = vmatprep.subr.mxu0 %v1041
    %1513 = vmatpush1.msra.mxu0 %v1040
    %1514 = vmatprep.subr.mxu0 %v1045
    %1515 = vmatpush1.msra.mxu0 %v1044
    %1516 = vmatprep.subr.mxu0 %v1049
    %1517 = vmatpush1.msra.mxu0 %v1048
    %1518 = vmatprep.subr.mxu0 %v1053
    %1519 = vmatpush1.msra.mxu0 %v1052
    %1520 = vmatprep.subr.mxu0 %v1057
    %1521 = vmatpush1.msra.mxu0 %v1056
    %1522 = vmatprep.subr.mxu0 0.0
    %1523 = vmatpush1.msra.mxu0 0.0
    %1524 = vmatprep.subr.mxu0 0.0
    %1525 = vmatpush1.msra.mxu0 0.0
    %1526 = vmatprep.subr.mxu0 0.0
    %1527 = vmatpush1.msra.mxu0 0.0
    %1528 = vmatprep.subr.mxu0 0.0
    %1529 = vmatpush1.msra.mxu0 0.0
    %1530 = vmatprep.subr.mxu0 0.0
    %1531 = vmatpush1.msra.mxu0 0.0
    %1532 = vmatprep.subr.mxu0 0.0
    %1533 = vmatpush1.msra.mxu0 0.0
    %1534 = vmatprep.subr.mxu0 0.0
    %1535 = vmatpush1.msra.mxu0 0.0
    %1536 = vmatprep.subr.mxu0 0.0
    %1537 = vmatpush1.msra.mxu0 0.0
    %1538 = vmatprep.subr.mxu0 0.0
    %1539 = vmatpush1.msra.mxu0 0.0
    %1540 = vmatprep.subr.mxu0 0.0
    %1541 = vmatpush1.msra.mxu0 0.0
    %1542 = vmatprep.subr.mxu0 0.0
    %1543 = vmatpush1.msra.mxu0 0.0
    %1544 = vmatprep.subr.mxu0 0.0
    %1545 = vmatpush1.msra.mxu0 0.0
    %1546 = vmatprep.subr.mxu0 0.0
    %1547 = vmatpush1.msra.mxu0 0.0
    %1548 = vmatprep.subr.mxu0 0.0
    %1549 = vmatpush1.msra.mxu0 0.0
    %1550 = vmatprep.subr.mxu0 0.0
    %1551 = vmatpush1.msra.mxu0 0.0
    %1552 = vmatprep.subr.mxu0 0.0
    %1553 = vmatpush1.msra.mxu0 0.0
    %1554 = vmatprep.mubr.f32.mxu0 0.0
    %1555 = vmatmul.mubr.f32.gmra.mrb[0].mxu0 %v1411
    %v1556 = vpop.f32.mrb[0].mxu0
    %v1557 = vadd.f32 0.0, %v1556
    %v1558 = vpop.f32.mrb[0].mxu0
    %v1559 = vadd.f32 0.0, %v1558
    %1560 = vdwg.mxu0
    %v1561 = vadd.f32 %v1415, %v1486
    %v1562 = vadd.f32 %v1416, %v1488
    %v1563 = vadd.f32 %v1417, %v1557
    %v1564 = vadd.f32 %v1418, %v1559
    %v1565 = vxor.u32 %v1561, 2147483648
    %v1566 = vxor.u32 %v1562, 2147483648
    %v1567 = vxor.u32 %v1563, 2147483648
    %v1568 = vmul.f32 %v1565, 1.442695
    %v1569 = vpow.pop %v1568
    %v1570 = vmul.f32 %v1566, 1.442695
    %v1571 = vpow.pop %v1570
    %v1572 = vmul.f32 %v1567, 1.442695
    %v1573 = vpow.pop %v1572
    %v1574 = vadd.f32 %v1569, 1.0
    %v1575 = vadd.f32 %v1571, 1.0
    %v1576 = vadd.f32 %v1573, 1.0
    %v1577 = vrcp.pop %v1574
    %v1578 = vmul.f32 1.0, %v1577
    %v1579 = vrcp.pop %v1575
    %v1580 = vmul.f32 1.0, %v1579
    %v1581 = vrcp.pop %v1576
    %v1582 = vmul.f32 1.0, %v1581
    %v1583 = vtanh.pop %v1564
    %v1584 = vmul.f32 %v1580, %v1409
    %v1585 = vmul.f32 %v1578, %v1583
    %v1586 = vadd.f32 %v1584, %v1585
    %v1587 = vtanh.pop %v1586
    %v1588 = vmul.f32 %v1582, %v1587
    %s1589 = smul.u32 3, 4
    %s1590 = smul.addr %s1589, 8
    %s1591 = scalar_lea.vmem [#allocation2], %s1590
    %v1592 = vld [vmem:[%s1591] sm:$0xff]
    %v1593 = vld [vmem:[%s1591 + $0x8] sm:$0xff]
    %v1594 = vld [vmem:[%s1591 + $0x10] sm:$0xff]
    %v1595 = vld [vmem:[%s1591 + $0x18] sm:$0xff]
    %1596 = vmatprep.subr.mxu0 %v995
    %1597 = vmatpush1.msra.mxu0 %v994
    %1598 = vmatprep.subr.mxu0 %v999
    %1599 = vmatpush1.msra.mxu0 %v998
    %1600 = vmatprep.subr.mxu0 %v1003
    %1601 = vmatpush1.msra.mxu0 %v1002
    %1602 = vmatprep.subr.mxu0 %v1007
    %1603 = vmatpush1.msra.mxu0 %v1006
    %1604 = vmatprep.subr.mxu0 %v1011
    %1605 = vmatpush1.msra.mxu0 %v1010
    %1606 = vmatprep.subr.mxu0 %v1015
    %1607 = vmatpush1.msra.mxu0 %v1014
    %1608 = vmatprep.subr.mxu0 %v1019
    %1609 = vmatpush1.msra.mxu0 %v1018
    %1610 = vmatprep.subr.mxu0 %v1023
    %1611 = vmatpush1.msra.mxu0 %v1022
    %1612 = vmatprep.subr.mxu0 %v1027
    %1613 = vmatpush1.msra.mxu0 %v1026
    %1614 = vmatprep.subr.mxu0 %v1031
    %1615 = vmatpush1.msra.mxu0 %v1030
    %1616 = vmatprep.subr.mxu0 %v1035
    %1617 = vmatpush1.msra.mxu0 %v1034
    %1618 = vmatprep.subr.mxu0 %v1039
    %1619 = vmatpush1.msra.mxu0 %v1038
    %1620 = vmatprep.subr.mxu0 %v1043
    %1621 = vmatpush1.msra.mxu0 %v1042
    %1622 = vmatprep.subr.mxu0 %v1047
    %1623 = vmatpush1.msra.mxu0 %v1046
    %1624 = vmatprep.subr.mxu0 %v1051
    %1625 = vmatpush1.msra.mxu0 %v1050
    %1626 = vmatprep.subr.mxu0 %v1055
    %1627 = vmatpush1.msra.mxu0 %v1054
    %1628 = vmatprep.subr.mxu0 0.0
    %1629 = vmatpush1.msra.mxu0 0.0
    %1630 = vmatprep.subr.mxu0 0.0
    %1631 = vmatpush1.msra.mxu0 0.0
    %1632 = vmatprep.subr.mxu0 0.0
    %1633 = vmatpush1.msra.mxu0 0.0
    %1634 = vmatprep.subr.mxu0 0.0
    %1635 = vmatpush1.msra.mxu0 0.0
    %1636 = vmatprep.subr.mxu0 0.0
    %1637 = vmatpush1.msra.mxu0 0.0
    %1638 = vmatprep.subr.mxu0 0.0
    %1639 = vmatpush1.msra.mxu0 0.0
    %1640 = vmatprep.subr.mxu0 0.0
    %1641 = vmatpush1.msra.mxu0 0.0
    %1642 = vmatprep.subr.mxu0 0.0
    %1643 = vmatpush1.msra.mxu0 0.0
    %1644 = vmatprep.subr.mxu0 0.0
    %1645 = vmatpush1.msra.mxu0 0.0
    %1646 = vmatprep.subr.mxu0 0.0
    %1647 = vmatpush1.msra.mxu0 0.0
    %1648 = vmatprep.subr.mxu0 0.0
    %1649 = vmatpush1.msra.mxu0 0.0
    %1650 = vmatprep.subr.mxu0 0.0
    %1651 = vmatpush1.msra.mxu0 0.0
    %1652 = vmatprep.subr.mxu0 0.0
    %1653 = vmatpush1.msra.mxu0 0.0
    %1654 = vmatprep.subr.mxu0 0.0
    %1655 = vmatpush1.msra.mxu0 0.0
    %1656 = vmatprep.subr.mxu0 0.0
    %1657 = vmatpush1.msra.mxu0 0.0
    %1658 = vmatprep.subr.mxu0 0.0
    %1659 = vmatpush1.msra.mxu0 0.0
    %1660 = vmatprep.mubr.f32.mxu0 0.0
    %1661 = vmatmul.mubr.f32.gmra.mrb[0].mxu0 %v1588
    %v1662 = vpop.f32.mrb[0].mxu0
    %v1663 = vadd.f32 0.0, %v1662
    %v1664 = vpop.f32.mrb[0].mxu0
    %v1665 = vadd.f32 0.0, %v1664
    %1666 = vdwg.mxu0
    %1667 = vmatprep.subr.mxu0 %v997
    %1668 = vmatpush1.msra.mxu0 %v996
    %1669 = vmatprep.subr.mxu0 %v1001
    %1670 = vmatpush1.msra.mxu0 %v1000
    %1671 = vmatprep.subr.mxu0 %v1005
    %1672 = vmatpush1.msra.mxu0 %v1004
    %1673 = vmatprep.subr.mxu0 %v1009
    %1674 = vmatpush1.msra.mxu0 %v1008
    %1675 = vmatprep.subr.mxu0 %v1013
    %1676 = vmatpush1.msra.mxu0 %v1012
    %1677 = vmatprep.subr.mxu0 %v1017
    %1678 = vmatpush1.msra.mxu0 %v1016
    %1679 = vmatprep.subr.mxu0 %v1021
    %1680 = vmatpush1.msra.mxu0 %v1020
    %1681 = vmatprep.subr.mxu0 %v1025
    %1682 = vmatpush1.msra.mxu0 %v1024
    %1683 = vmatprep.subr.mxu0 %v1029
    %1684 = vmatpush1.msra.mxu0 %v1028
    %1685 = vmatprep.subr.mxu0 %v1033
    %1686 = vmatpush1.msra.mxu0 %v1032
    %1687 = vmatprep.subr.mxu0 %v1037
    %1688 = vmatpush1.msra.mxu0 %v1036
    %1689 = vmatprep.subr.mxu0 %v1041
    %1690 = vmatpush1.msra.mxu0 %v1040
    %1691 = vmatprep.subr.mxu0 %v1045
    %1692 = vmatpush1.msra.mxu0 %v1044
    %1693 = vmatprep.subr.mxu0 %v1049
    %1694 = vmatpush1.msra.mxu0 %v1048
    %1695 = vmatprep.subr.mxu0 %v1053
    %1696 = vmatpush1.msra.mxu0 %v1052
    %1697 = vmatprep.subr.mxu0 %v1057
    %1698 = vmatpush1.msra.mxu0 %v1056
    %1699 = vmatprep.subr.mxu0 0.0
    %1700 = vmatpush1.msra.mxu0 0.0
    %1701 = vmatprep.subr.mxu0 0.0
    %1702 = vmatpush1.msra.mxu0 0.0
    %1703 = vmatprep.subr.mxu0 0.0
    %1704 = vmatpush1.msra.mxu0 0.0
    %1705 = vmatprep.subr.mxu0 0.0
    %1706 = vmatpush1.msra.mxu0 0.0
    %1707 = vmatprep.subr.mxu0 0.0
    %1708 = vmatpush1.msra.mxu0 0.0
    %1709 = vmatprep.subr.mxu0 0.0
    %1710 = vmatpush1.msra.mxu0 0.0
    %1711 = vmatprep.subr.mxu0 0.0
    %1712 = vmatpush1.msra.mxu0 0.0
    %1713 = vmatprep.subr.mxu0 0.0
    %1714 = vmatpush1.msra.mxu0 0.0
    %1715 = vmatprep.subr.mxu0 0.0
    %1716 = vmatpush1.msra.mxu0 0.0
    %1717 = vmatprep.subr.mxu0 0.0
    %1718 = vmatpush1.msra.mxu0 0.0
    %1719 = vmatprep.subr.mxu0 0.0
    %1720 = vmatpush1.msra.mxu0 0.0
    %1721 = vmatprep.subr.mxu0 0.0
    %1722 = vmatpush1.msra.mxu0 0.0
    %1723 = vmatprep.subr.mxu0 0.0
    %1724 = vmatpush1.msra.mxu0 0.0
    %1725 = vmatprep.subr.mxu0 0.0
    %1726 = vmatpush1.msra.mxu0 0.0
    %1727 = vmatprep.subr.mxu0 0.0
    %1728 = vmatpush1.msra.mxu0 0.0
    %1729 = vmatprep.subr.mxu0 0.0
    %1730 = vmatpush1.msra.mxu0 0.0
    %1731 = vmatprep.mubr.f32.mxu0 0.0
    %1732 = vmatmul.mubr.f32.gmra.mrb[0].mxu0 %v1588
    %v1733 = vpop.f32.mrb[0].mxu0
    %v1734 = vadd.f32 0.0, %v1733
    %v1735 = vpop.f32.mrb[0].mxu0
    %v1736 = vadd.f32 0.0, %v1735
    %1737 = vdwg.mxu0
    %v1738 = vadd.f32 %v1592, %v1663
    %v1739 = vadd.f32 %v1593, %v1665
    %v1740 = vadd.f32 %v1594, %v1734
    %v1741 = vadd.f32 %v1595, %v1736
    %v1742 = vxor.u32 %v1738, 2147483648
    %v1743 = vxor.u32 %v1739, 2147483648
    %v1744 = vxor.u32 %v1740, 2147483648
    %v1745 = vmul.f32 %v1742, 1.442695
    %v1746 = vpow.pop %v1745
    %v1747 = vmul.f32 %v1743, 1.442695
    %v1748 = vpow.pop %v1747
    %v1749 = vmul.f32 %v1744, 1.442695
    %v1750 = vpow.pop %v1749
    %v1751 = vadd.f32 %v1746, 1.0
    %v1752 = vadd.f32 %v1748, 1.0
    %v1753 = vadd.f32 %v1750, 1.0
    %v1754 = vrcp.pop %v1751
    %v1755 = vmul.f32 1.0, %v1754
    %v1756 = vrcp.pop %v1752
    %v1757 = vmul.f32 1.0, %v1756
    %v1758 = vrcp.pop %v1753
    %v1759 = vmul.f32 1.0, %v1758
    %v1760 = vtanh.pop %v1741
    %v1761 = vmul.f32 %v1757, %v1586
    %v1762 = vmul.f32 %v1755, %v1760
    %v1763 = vadd.f32 %v1761, %v1762
    %v1764 = vtanh.pop %v1763
    %v1765 = vmul.f32 %v1759, %v1764
    %s1766 = smul.u32 4, 4
    %s1767 = smul.addr %s1766, 8
    %s1768 = scalar_lea.vmem [#allocation2], %s1767
    %v1769 = vld [vmem:[%s1768] sm:$0xff]
    %v1770 = vld [vmem:[%s1768 + $0x8] sm:$0xff]
    %v1771 = vld [vmem:[%s1768 + $0x10] sm:$0xff]
    %v1772 = vld [vmem:[%s1768 + $0x18] sm:$0xff]
    %1773 = vmatprep.subr.mxu0 %v995
    %1774 = vmatpush1.msra.mxu0 %v994
    %1775 = vmatprep.subr.mxu0 %v999
    %1776 = vmatpush1.msra.mxu0 %v998
    %1777 = vmatprep.subr.mxu0 %v1003
    %1778 = vmatpush1.msra.mxu0 %v1002
    %1779 = vmatprep.subr.mxu0 %v1007
    %1780 = vmatpush1.msra.mxu0 %v1006
    %1781 = vmatprep.subr.mxu0 %v1011
    %1782 = vmatpush1.msra.mxu0 %v1010
    %1783 = vmatprep.subr.mxu0 %v1015
    %1784 = vmatpush1.msra.mxu0 %v1014
    %1785 = vmatprep.subr.mxu0 %v1019
    %1786 = vmatpush1.msra.mxu0 %v1018
    %1787 = vmatprep.subr.mxu0 %v1023
    %1788 = vmatpush1.msra.mxu0 %v1022
    %1789 = vmatprep.subr.mxu0 %v1027
    %1790 = vmatpush1.msra.mxu0 %v1026
    %1791 = vmatprep.subr.mxu0 %v1031
    %1792 = vmatpush1.msra.mxu0 %v1030
    %1793 = vmatprep.subr.mxu0 %v1035
    %1794 = vmatpush1.msra.mxu0 %v1034
    %1795 = vmatprep.subr.mxu0 %v1039
    %1796 = vmatpush1.msra.mxu0 %v1038
    %1797 = vmatprep.subr.mxu0 %v1043
    %1798 = vmatpush1.msra.mxu0 %v1042
    %1799 = vmatprep.subr.mxu0 %v1047
    %1800 = vmatpush1.msra.mxu0 %v1046
    %1801 = vmatprep.subr.mxu0 %v1051
    %1802 = vmatpush1.msra.mxu0 %v1050
    %1803 = vmatprep.subr.mxu0 %v1055
    %1804 = vmatpush1.msra.mxu0 %v1054
    %1805 = vmatprep.subr.mxu0 0.0
    %1806 = vmatpush1.msra.mxu0 0.0
    %1807 = vmatprep.subr.mxu0 0.0
    %1808 = vmatpush1.msra.mxu0 0.0
    %1809 = vmatprep.subr.mxu0 0.0
    %1810 = vmatpush1.msra.mxu0 0.0
    %1811 = vmatprep.subr.mxu0 0.0
    %1812 = vmatpush1.msra.mxu0 0.0
    %1813 = vmatprep.subr.mxu0 0.0
    %1814 = vmatpush1.msra.mxu0 0.0
    %1815 = vmatprep.subr.mxu0 0.0
    %1816 = vmatpush1.msra.mxu0 0.0
    %1817 = vmatprep.subr.mxu0 0.0
    %1818 = vmatpush1.msra.mxu0 0.0
    %1819 = vmatprep.subr.mxu0 0.0
    %1820 = vmatpush1.msra.mxu0 0.0
    %1821 = vmatprep.subr.mxu0 0.0
    %1822 = vmatpush1.msra.mxu0 0.0
    %1823 = vmatprep.subr.mxu0 0.0
    %1824 = vmatpush1.msra.mxu0 0.0
    %1825 = vmatprep.subr.mxu0 0.0
    %1826 = vmatpush1.msra.mxu0 0.0
    %1827 = vmatprep.subr.mxu0 0.0
    %1828 = vmatpush1.msra.mxu0 0.0
    %1829 = vmatprep.subr.mxu0 0.0
    %1830 = vmatpush1.msra.mxu0 0.0
    %1831 = vmatprep.subr.mxu0 0.0
    %1832 = vmatpush1.msra.mxu0 0.0
    %1833 = vmatprep.subr.mxu0 0.0
    %1834 = vmatpush1.msra.mxu0 0.0
    %1835 = vmatprep.subr.mxu0 0.0
    %1836 = vmatpush1.msra.mxu0 0.0
    %1837 = vmatprep.mubr.f32.mxu0 0.0
    %1838 = vmatmul.mubr.f32.gmra.mrb[0].mxu0 %v1765
    %v1839 = vpop.f32.mrb[0].mxu0
    %v1840 = vadd.f32 0.0, %v1839
    %v1841 = vpop.f32.mrb[0].mxu0
    %v1842 = vadd.f32 0.0, %v1841
    %1843 = vdwg.mxu0
    %1844 = vmatprep.subr.mxu0 %v997
    %1845 = vmatpush1.msra.mxu0 %v996
    %1846 = vmatprep.subr.mxu0 %v1001
    %1847 = vmatpush1.msra.mxu0 %v1000
    %1848 = vmatprep.subr.mxu0 %v1005
    %1849 = vmatpush1.msra.mxu0 %v1004
    %1850 = vmatprep.subr.mxu0 %v1009
    %1851 = vmatpush1.msra.mxu0 %v1008
    %1852 = vmatprep.subr.mxu0 %v1013
    %1853 = vmatpush1.msra.mxu0 %v1012
    %1854 = vmatprep.subr.mxu0 %v1017
    %1855 = vmatpush1.msra.mxu0 %v1016
    %1856 = vmatprep.subr.mxu0 %v1021
    %1857 = vmatpush1.msra.mxu0 %v1020
    %1858 = vmatprep.subr.mxu0 %v1025
    %1859 = vmatpush1.msra.mxu0 %v1024
    %1860 = vmatprep.subr.mxu0 %v1029
    %1861 = vmatpush1.msra.mxu0 %v1028
    %1862 = vmatprep.subr.mxu0 %v1033
    %1863 = vmatpush1.msra.mxu0 %v1032
    %1864 = vmatprep.subr.mxu0 %v1037
    %1865 = vmatpush1.msra.mxu0 %v1036
    %1866 = vmatprep.subr.mxu0 %v1041
    %1867 = vmatpush1.msra.mxu0 %v1040
    %1868 = vmatprep.subr.mxu0 %v1045
    %1869 = vmatpush1.msra.mxu0 %v1044
    %1870 = vmatprep.subr.mxu0 %v1049
    %1871 = vmatpush1.msra.mxu0 %v1048
    %1872 = vmatprep.subr.mxu0 %v1053
    %1873 = vmatpush1.msra.mxu0 %v1052
    %1874 = vmatprep.subr.mxu0 %v1057
    %1875 = vmatpush1.msra.mxu0 %v1056
    %1876 = vmatprep.subr.mxu0 0.0
    %1877 = vmatpush1.msra.mxu0 0.0
    %1878 = vmatprep.subr.mxu0 0.0
    %1879 = vmatpush1.msra.mxu0 0.0
    %1880 = vmatprep.subr.mxu0 0.0
    %1881 = vmatpush1.msra.mxu0 0.0
    %1882 = vmatprep.subr.mxu0 0.0
    %1883 = vmatpush1.msra.mxu0 0.0
    %1884 = vmatprep.subr.mxu0 0.0
    %1885 = vmatpush1.msra.mxu0 0.0
    %1886 = vmatprep.subr.mxu0 0.0
    %1887 = vmatpush1.msra.mxu0 0.0
    %1888 = vmatprep.subr.mxu0 0.0
    %1889 = vmatpush1.msra.mxu0 0.0
    %1890 = vmatprep.subr.mxu0 0.0
    %1891 = vmatpush1.msra.mxu0 0.0
    %1892 = vmatprep.subr.mxu0 0.0
    %1893 = vmatpush1.msra.mxu0 0.0
    %1894 = vmatprep.subr.mxu0 0.0
    %1895 = vmatpush1.msra.mxu0 0.0
    %1896 = vmatprep.subr.mxu0 0.0
    %1897 = vmatpush1.msra.mxu0 0.0
    %1898 = vmatprep.subr.mxu0 0.0
    %1899 = vmatpush1.msra.mxu0 0.0
    %1900 = vmatprep.subr.mxu0 0.0
    %1901 = vmatpush1.msra.mxu0 0.0
    %1902 = vmatprep.subr.mxu0 0.0
    %1903 = vmatpush1.msra.mxu0 0.0
    %1904 = vmatprep.subr.mxu0 0.0
    %1905 = vmatpush1.msra.mxu0 0.0
    %1906 = vmatprep.subr.mxu0 0.0
    %1907 = vmatpush1.msra.mxu0 0.0
    %1908 = vmatprep.mubr.f32.mxu0 0.0
    %1909 = vmatmul.mubr.f32.gmra.mrb[0].mxu0 %v1765
    %v1910 = vpop.f32.mrb[0].mxu0
    %v1911 = vadd.f32 0.0, %v1910
    %v1912 = vpop.f32.mrb[0].mxu0
    %v1913 = vadd.f32 0.0, %v1912
    %1914 = vdwg.mxu0
    %v1915 = vadd.f32 %v1769, %v1840
    %v1916 = vadd.f32 %v1770, %v1842
    %v1917 = vadd.f32 %v1771, %v1911
    %v1918 = vadd.f32 %v1772, %v1913
    %v1919 = vxor.u32 %v1915, 2147483648
    %v1920 = vxor.u32 %v1916, 2147483648
    %v1921 = vxor.u32 %v1917, 2147483648
    %v1922 = vmul.f32 %v1919, 1.442695
    %v1923 = vpow.pop %v1922
    %v1924 = vmul.f32 %v1920, 1.442695
    %v1925 = vpow.pop %v1924
    %v1926 = vmul.f32 %v1921, 1.442695
    %v1927 = vpow.pop %v1926
    %v1928 = vadd.f32 %v1923, 1.0
    %v1929 = vadd.f32 %v1925, 1.0
    %v1930 = vadd.f32 %v1927, 1.0
    %v1931 = vrcp.pop %v1928
    %v1932 = vmul.f32 1.0, %v1931
    %v1933 = vrcp.pop %v1929
    %v1934 = vmul.f32 1.0, %v1933
    %v1935 = vrcp.pop %v1930
    %v1936 = vmul.f32 1.0, %v1935
    %v1937 = vtanh.pop %v1918
    %v1938 = vmul.f32 %v1934, %v1763
    %v1939 = vmul.f32 %v1932, %v1937
    %v1940 = vadd.f32 %v1938, %v1939
    %v1941 = vtanh.pop %v1940
    %v1942 = vmul.f32 %v1936, %v1941
    %s1943 = smul.u32 5, 4
    %s1944 = smul.addr %s1943, 8
    %s1945 = scalar_lea.vmem [#allocation2], %s1944
    %v1946 = vld [vmem:[%s1945] sm:$0xff]
    %v1947 = vld [vmem:[%s1945 + $0x8] sm:$0xff]
    %v1948 = vld [vmem:[%s1945 + $0x10] sm:$0xff]
    %v1949 = vld [vmem:[%s1945 + $0x18] sm:$0xff]
    %1950 = vmatprep.subr.mxu0 %v995
    %1951 = vmatpush1.msra.mxu0 %v994
    %1952 = vmatprep.subr.mxu0 %v999
    %1953 = vmatpush1.msra.mxu0 %v998
    %1954 = vmatprep.subr.mxu0 %v1003
    %1955 = vmatpush1.msra.mxu0 %v1002
    %1956 = vmatprep.subr.mxu0 %v1007
    %1957 = vmatpush1.msra.mxu0 %v1006
    %1958 = vmatprep.subr.mxu0 %v1011
    %1959 = vmatpush1.msra.mxu0 %v1010
    %1960 = vmatprep.subr.mxu0 %v1015
    %1961 = vmatpush1.msra.mxu0 %v1014
    %1962 = vmatprep.subr.mxu0 %v1019
    %1963 = vmatpush1.msra.mxu0 %v1018
    %1964 = vmatprep.subr.mxu0 %v1023
    %1965 = vmatpush1.msra.mxu0 %v1022
    %1966 = vmatprep.subr.mxu0 %v1027
    %1967 = vmatpush1.msra.mxu0 %v1026
    %1968 = vmatprep.subr.mxu0 %v1031
    %1969 = vmatpush1.msra.mxu0 %v1030
    %1970 = vmatprep.subr.mxu0 %v1035
    %1971 = vmatpush1.msra.mxu0 %v1034
    %1972 = vmatprep.subr.mxu0 %v1039
    %1973 = vmatpush1.msra.mxu0 %v1038
    %1974 = vmatprep.subr.mxu0 %v1043
    %1975 = vmatpush1.msra.mxu0 %v1042
    %1976 = vmatprep.subr.mxu0 %v1047
    %1977 = vmatpush1.msra.mxu0 %v1046
    %1978 = vmatprep.subr.mxu0 %v1051
    %1979 = vmatpush1.msra.mxu0 %v1050
    %1980 = vmatprep.subr.mxu0 %v1055
    %1981 = vmatpush1.msra.mxu0 %v1054
    %1982 = vmatprep.subr.mxu0 0.0
    %1983 = vmatpush1.msra.mxu0 0.0
    %1984 = vmatprep.subr.mxu0 0.0
    %1985 = vmatpush1.msra.mxu0 0.0
    %1986 = vmatprep.subr.mxu0 0.0
    %1987 = vmatpush1.msra.mxu0 0.0
    %1988 = vmatprep.subr.mxu0 0.0
    %1989 = vmatpush1.msra.mxu0 0.0
    %1990 = vmatprep.subr.mxu0 0.0
    %1991 = vmatpush1.msra.mxu0 0.0
    %1992 = vmatprep.subr.mxu0 0.0
    %1993 = vmatpush1.msra.mxu0 0.0
    %1994 = vmatprep.subr.mxu0 0.0
    %1995 = vmatpush1.msra.mxu0 0.0
    %1996 = vmatprep.subr.mxu0 0.0
    %1997 = vmatpush1.msra.mxu0 0.0
    %1998 = vmatprep.subr.mxu0 0.0
    %1999 = vmatpush1.msra.mxu0 0.0
    %2000 = vmatprep.subr.mxu0 0.0
    %2001 = vmatpush1.msra.mxu0 0.0
    %2002 = vmatprep.subr.mxu0 0.0
    %2003 = vmatpush1.msra.mxu0 0.0
    %2004 = vmatprep.subr.mxu0 0.0
    %2005 = vmatpush1.msra.mxu0 0.0
    %2006 = vmatprep.subr.mxu0 0.0
    %2007 = vmatpush1.msra.mxu0 0.0
    %2008 = vmatprep.subr.mxu0 0.0
    %2009 = vmatpush1.msra.mxu0 0.0
    %2010 = vmatprep.subr.mxu0 0.0
    %2011 = vmatpush1.msra.mxu0 0.0
    %2012 = vmatprep.subr.mxu0 0.0
    %2013 = vmatpush1.msra.mxu0 0.0
    %2014 = vmatprep.mubr.f32.mxu0 0.0
    %2015 = vmatmul.mubr.f32.gmra.mrb[0].mxu0 %v1942
    %v2016 = vpop.f32.mrb[0].mxu0
    %v2017 = vadd.f32 0.0, %v2016
    %v2018 = vpop.f32.mrb[0].mxu0
    %v2019 = vadd.f32 0.0, %v2018
    %2020 = vdwg.mxu0
    %2021 = vmatprep.subr.mxu0 %v997
    %2022 = vmatpush1.msra.mxu0 %v996
    %2023 = vmatprep.subr.mxu0 %v1001
    %2024 = vmatpush1.msra.mxu0 %v1000
    %2025 = vmatprep.subr.mxu0 %v1005
    %2026 = vmatpush1.msra.mxu0 %v1004
    %2027 = vmatprep.subr.mxu0 %v1009
    %2028 = vmatpush1.msra.mxu0 %v1008
    %2029 = vmatprep.subr.mxu0 %v1013
    %2030 = vmatpush1.msra.mxu0 %v1012
    %2031 = vmatprep.subr.mxu0 %v1017
    %2032 = vmatpush1.msra.mxu0 %v1016
    %2033 = vmatprep.subr.mxu0 %v1021
    %2034 = vmatpush1.msra.mxu0 %v1020
    %2035 = vmatprep.subr.mxu0 %v1025
    %2036 = vmatpush1.msra.mxu0 %v1024
    %2037 = vmatprep.subr.mxu0 %v1029
    %2038 = vmatpush1.msra.mxu0 %v1028
    %2039 = vmatprep.subr.mxu0 %v1033
    %2040 = vmatpush1.msra.mxu0 %v1032
    %2041 = vmatprep.subr.mxu0 %v1037
    %2042 = vmatpush1.msra.mxu0 %v1036
    %2043 = vmatprep.subr.mxu0 %v1041
    %2044 = vmatpush1.msra.mxu0 %v1040
    %2045 = vmatprep.subr.mxu0 %v1045
    %2046 = vmatpush1.msra.mxu0 %v1044
    %2047 = vmatprep.subr.mxu0 %v1049
    %2048 = vmatpush1.msra.mxu0 %v1048
    %2049 = vmatprep.subr.mxu0 %v1053
    %2050 = vmatpush1.msra.mxu0 %v1052
    %2051 = vmatprep.subr.mxu0 %v1057
    %2052 = vmatpush1.msra.mxu0 %v1056
    %2053 = vmatprep.subr.mxu0 0.0
    %2054 = vmatpush1.msra.mxu0 0.0
    %2055 = vmatprep.subr.mxu0 0.0
    %2056 = vmatpush1.msra.mxu0 0.0
    %2057 = vmatprep.subr.mxu0 0.0
    %2058 = vmatpush1.msra.mxu0 0.0
    %2059 = vmatprep.subr.mxu0 0.0
    %2060 = vmatpush1.msra.mxu0 0.0
    %2061 = vmatprep.subr.mxu0 0.0
    %2062 = vmatpush1.msra.mxu0 0.0
    %2063 = vmatprep.subr.mxu0 0.0
    %2064 = vmatpush1.msra.mxu0 0.0
    %2065 = vmatprep.subr.mxu0 0.0
    %2066 = vmatpush1.msra.mxu0 0.0
    %2067 = vmatprep.subr.mxu0 0.0
    %2068 = vmatpush1.msra.mxu0 0.0
    %2069 = vmatprep.subr.mxu0 0.0
    %2070 = vmatpush1.msra.mxu0 0.0
    %2071 = vmatprep.subr.mxu0 0.0
    %2072 = vmatpush1.msra.mxu0 0.0
    %2073 = vmatprep.subr.mxu0 0.0
    %2074 = vmatpush1.msra.mxu0 0.0
    %2075 = vmatprep.subr.mxu0 0.0
    %2076 = vmatpush1.msra.mxu0 0.0
    %2077 = vmatprep.subr.mxu0 0.0
    %2078 = vmatpush1.msra.mxu0 0.0
    %2079 = vmatprep.subr.mxu0 0.0
    %2080 = vmatpush1.msra.mxu0 0.0
    %2081 = vmatprep.subr.mxu0 0.0
    %2082 = vmatpush1.msra.mxu0 0.0
    %2083 = vmatprep.subr.mxu0 0.0
    %2084 = vmatpush1.msra.mxu0 0.0
    %2085 = vmatprep.mubr.f32.mxu0 0.0
    %2086 = vmatmul.mubr.f32.gmra.mrb[0].mxu0 %v1942
    %v2087 = vpop.f32.mrb[0].mxu0
    %v2088 = vadd.f32 0.0, %v2087
    %v2089 = vpop.f32.mrb[0].mxu0
    %v2090 = vadd.f32 0.0, %v2089
    %2091 = vdwg.mxu0
    %v2092 = vadd.f32 %v1946, %v2017
    %v2093 = vadd.f32 %v1947, %v2019
    %v2094 = vadd.f32 %v1948, %v2088
    %v2095 = vadd.f32 %v1949, %v2090
    %v2096 = vxor.u32 %v2092, 2147483648
    %v2097 = vxor.u32 %v2093, 2147483648
    %v2098 = vxor.u32 %v2094, 2147483648
    %v2099 = vmul.f32 %v2096, 1.442695
    %v2100 = vpow.pop %v2099
    %v2101 = vmul.f32 %v2097, 1.442695
    %v2102 = vpow.pop %v2101
    %v2103 = vmul.f32 %v2098, 1.442695
    %v2104 = vpow.pop %v2103
    %v2105 = vadd.f32 %v2100, 1.0
    %v2106 = vadd.f32 %v2102, 1.0
    %v2107 = vadd.f32 %v2104, 1.0
    %v2108 = vrcp.pop %v2105
    %v2109 = vmul.f32 1.0, %v2108
    %v2110 = vrcp.pop %v2106
    %v2111 = vmul.f32 1.0, %v2110
    %v2112 = vrcp.pop %v2107
    %v2113 = vmul.f32 1.0, %v2112
    %v2114 = vtanh.pop %v2095
    %v2115 = vmul.f32 %v2111, %v1940
    %v2116 = vmul.f32 %v2109, %v2114
    %v2117 = vadd.f32 %v2115, %v2116
    %v2118 = vtanh.pop %v2117
    %v2119 = vmul.f32 %v2113, %v2118
    %s2120 = smul.u32 6, 4
    %s2121 = smul.addr %s2120, 8
    %s2122 = scalar_lea.vmem [#allocation2], %s2121
    %v2123 = vld [vmem:[%s2122] sm:$0xff]
    %v2124 = vld [vmem:[%s2122 + $0x8] sm:$0xff]
    %v2125 = vld [vmem:[%s2122 + $0x10] sm:$0xff]
    %v2126 = vld [vmem:[%s2122 + $0x18] sm:$0xff]
    %2127 = vmatprep.subr.mxu0 %v995
    %2128 = vmatpush1.msra.mxu0 %v994
    %2129 = vmatprep.subr.mxu0 %v999
    %2130 = vmatpush1.msra.mxu0 %v998
    %2131 = vmatprep.subr.mxu0 %v1003
    %2132 = vmatpush1.msra.mxu0 %v1002
    %2133 = vmatprep.subr.mxu0 %v1007
    %2134 = vmatpush1.msra.mxu0 %v1006
    %2135 = vmatprep.subr.mxu0 %v1011
    %2136 = vmatpush1.msra.mxu0 %v1010
    %2137 = vmatprep.subr.mxu0 %v1015
    %2138 = vmatpush1.msra.mxu0 %v1014
    %2139 = vmatprep.subr.mxu0 %v1019
    %2140 = vmatpush1.msra.mxu0 %v1018
    %2141 = vmatprep.subr.mxu0 %v1023
    %2142 = vmatpush1.msra.mxu0 %v1022
    %2143 = vmatprep.subr.mxu0 %v1027
    %2144 = vmatpush1.msra.mxu0 %v1026
    %2145 = vmatprep.subr.mxu0 %v1031
    %2146 = vmatpush1.msra.mxu0 %v1030
    %2147 = vmatprep.subr.mxu0 %v1035
    %2148 = vmatpush1.msra.mxu0 %v1034
    %2149 = vmatprep.subr.mxu0 %v1039
    %2150 = vmatpush1.msra.mxu0 %v1038
    %2151 = vmatprep.subr.mxu0 %v1043
    %2152 = vmatpush1.msra.mxu0 %v1042
    %2153 = vmatprep.subr.mxu0 %v1047
    %2154 = vmatpush1.msra.mxu0 %v1046
    %2155 = vmatprep.subr.mxu0 %v1051
    %2156 = vmatpush1.msra.mxu0 %v1050
    %2157 = vmatprep.subr.mxu0 %v1055
    %2158 = vmatpush1.msra.mxu0 %v1054
    %2159 = vmatprep.subr.mxu0 0.0
    %2160 = vmatpush1.msra.mxu0 0.0
    %2161 = vmatprep.subr.mxu0 0.0
    %2162 = vmatpush1.msra.mxu0 0.0
    %2163 = vmatprep.subr.mxu0 0.0
    %2164 = vmatpush1.msra.mxu0 0.0
    %2165 = vmatprep.subr.mxu0 0.0
    %2166 = vmatpush1.msra.mxu0 0.0
    %2167 = vmatprep.subr.mxu0 0.0
    %2168 = vmatpush1.msra.mxu0 0.0
    %2169 = vmatprep.subr.mxu0 0.0
    %2170 = vmatpush1.msra.mxu0 0.0
    %2171 = vmatprep.subr.mxu0 0.0
    %2172 = vmatpush1.msra.mxu0 0.0
    %2173 = vmatprep.subr.mxu0 0.0
    %2174 = vmatpush1.msra.mxu0 0.0
    %2175 = vmatprep.subr.mxu0 0.0
    %2176 = vmatpush1.msra.mxu0 0.0
    %2177 = vmatprep.subr.mxu0 0.0
    %2178 = vmatpush1.msra.mxu0 0.0
    %2179 = vmatprep.subr.mxu0 0.0
    %2180 = vmatpush1.msra.mxu0 0.0
    %2181 = vmatprep.subr.mxu0 0.0
    %2182 = vmatpush1.msra.mxu0 0.0
    %2183 = vmatprep.subr.mxu0 0.0
    %2184 = vmatpush1.msra.mxu0 0.0
    %2185 = vmatprep.subr.mxu0 0.0
    %2186 = vmatpush1.msra.mxu0 0.0
    %2187 = vmatprep.subr.mxu0 0.0
    %2188 = vmatpush1.msra.mxu0 0.0
    %2189 = vmatprep.subr.mxu0 0.0
    %2190 = vmatpush1.msra.mxu0 0.0
    %2191 = vmatprep.mubr.f32.mxu0 0.0
    %2192 = vmatmul.mubr.f32.gmra.mrb[0].mxu0 %v2119
    %v2193 = vpop.f32.mrb[0].mxu0
    %v2194 = vadd.f32 0.0, %v2193
    %v2195 = vpop.f32.mrb[0].mxu0
    %v2196 = vadd.f32 0.0, %v2195
    %2197 = vdwg.mxu0
    %2198 = vmatprep.subr.mxu0 %v997
    %2199 = vmatpush1.msra.mxu0 %v996
    %2200 = vmatprep.subr.mxu0 %v1001
    %2201 = vmatpush1.msra.mxu0 %v1000
    %2202 = vmatprep.subr.mxu0 %v1005
    %2203 = vmatpush1.msra.mxu0 %v1004
    %2204 = vmatprep.subr.mxu0 %v1009
    %2205 = vmatpush1.msra.mxu0 %v1008
    %2206 = vmatprep.subr.mxu0 %v1013
    %2207 = vmatpush1.msra.mxu0 %v1012
    %2208 = vmatprep.subr.mxu0 %v1017
    %2209 = vmatpush1.msra.mxu0 %v1016
    %2210 = vmatprep.subr.mxu0 %v1021
    %2211 = vmatpush1.msra.mxu0 %v1020
    %2212 = vmatprep.subr.mxu0 %v1025
    %2213 = vmatpush1.msra.mxu0 %v1024
    %2214 = vmatprep.subr.mxu0 %v1029
    %2215 = vmatpush1.msra.mxu0 %v1028
    %2216 = vmatprep.subr.mxu0 %v1033
    %2217 = vmatpush1.msra.mxu0 %v1032
    %2218 = vmatprep.subr.mxu0 %v1037
    %2219 = vmatpush1.msra.mxu0 %v1036
    %2220 = vmatprep.subr.mxu0 %v1041
    %2221 = vmatpush1.msra.mxu0 %v1040
    %2222 = vmatprep.subr.mxu0 %v1045
    %2223 = vmatpush1.msra.mxu0 %v1044
    %2224 = vmatprep.subr.mxu0 %v1049
    %2225 = vmatpush1.msra.mxu0 %v1048
    %2226 = vmatprep.subr.mxu0 %v1053
    %2227 = vmatpush1.msra.mxu0 %v1052
    %2228 = vmatprep.subr.mxu0 %v1057
    %2229 = vmatpush1.msra.mxu0 %v1056
    %2230 = vmatprep.subr.mxu0 0.0
    %2231 = vmatpush1.msra.mxu0 0.0
    %2232 = vmatprep.subr.mxu0 0.0
    %2233 = vmatpush1.msra.mxu0 0.0
    %2234 = vmatprep.subr.mxu0 0.0
    %2235 = vmatpush1.msra.mxu0 0.0
    %2236 = vmatprep.subr.mxu0 0.0
    %2237 = vmatpush1.msra.mxu0 0.0
    %2238 = vmatprep.subr.mxu0 0.0
    %2239 = vmatpush1.msra.mxu0 0.0
    %2240 = vmatprep.subr.mxu0 0.0
    %2241 = vmatpush1.msra.mxu0 0.0
    %2242 = vmatprep.subr.mxu0 0.0
    %2243 = vmatpush1.msra.mxu0 0.0
    %2244 = vmatprep.subr.mxu0 0.0
    %2245 = vmatpush1.msra.mxu0 0.0
    %2246 = vmatprep.subr.mxu0 0.0
    %2247 = vmatpush1.msra.mxu0 0.0
    %2248 = vmatprep.subr.mxu0 0.0
    %2249 = vmatpush1.msra.mxu0 0.0
    %2250 = vmatprep.subr.mxu0 0.0
    %2251 = vmatpush1.msra.mxu0 0.0
    %2252 = vmatprep.subr.mxu0 0.0
    %2253 = vmatpush1.msra.mxu0 0.0
    %2254 = vmatprep.subr.mxu0 0.0
    %2255 = vmatpush1.msra.mxu0 0.0
    %2256 = vmatprep.subr.mxu0 0.0
    %2257 = vmatpush1.msra.mxu0 0.0
    %2258 = vmatprep.subr.mxu0 0.0
    %2259 = vmatpush1.msra.mxu0 0.0
    %2260 = vmatprep.subr.mxu0 0.0
    %2261 = vmatpush1.msra.mxu0 0.0
    %2262 = vmatprep.mubr.f32.mxu0 0.0
    %2263 = vmatmul.mubr.f32.gmra.mrb[0].mxu0 %v2119
    %v2264 = vpop.f32.mrb[0].mxu0
    %v2265 = vadd.f32 0.0, %v2264
    %v2266 = vpop.f32.mrb[0].mxu0
    %v2267 = vadd.f32 0.0, %v2266
    %2268 = vdwg.mxu0
    %v2269 = vadd.f32 %v2123, %v2194
    %v2270 = vadd.f32 %v2124, %v2196
    %v2271 = vadd.f32 %v2125, %v2265
    %v2272 = vadd.f32 %v2126, %v2267
    %v2273 = vxor.u32 %v2269, 2147483648
    %v2274 = vxor.u32 %v2270, 2147483648
    %v2275 = vxor.u32 %v2271, 2147483648
    %v2276 = vmul.f32 %v2273, 1.442695
    %v2277 = vpow.pop %v2276
    %v2278 = vmul.f32 %v2274, 1.442695
    %v2279 = vpow.pop %v2278
    %v2280 = vmul.f32 %v2275, 1.442695
    %v2281 = vpow.pop %v2280
    %v2282 = vadd.f32 %v2277, 1.0
    %v2283 = vadd.f32 %v2279, 1.0
    %v2284 = vadd.f32 %v2281, 1.0
    %v2285 = vrcp.pop %v2282
    %v2286 = vmul.f32 1.0, %v2285
    %v2287 = vrcp.pop %v2283
    %v2288 = vmul.f32 1.0, %v2287
    %v2289 = vrcp.pop %v2284
    %v2290 = vmul.f32 1.0, %v2289
    %v2291 = vtanh.pop %v2272
    %v2292 = vmul.f32 %v2288, %v2117
    %v2293 = vmul.f32 %v2286, %v2291
    %v2294 = vadd.f32 %v2292, %v2293
    %v2295 = vtanh.pop %v2294
    %v2296 = vmul.f32 %v2290, %v2295
    %s2297 = smul.u32 7, 4
    %s2298 = smul.addr %s2297, 8
    %s2299 = scalar_lea.vmem [#allocation2], %s2298
    %v2300 = vld [vmem:[%s2299] sm:$0xff]
    %v2301 = vld [vmem:[%s2299 + $0x8] sm:$0xff]
    %v2302 = vld [vmem:[%s2299 + $0x10] sm:$0xff]
    %v2303 = vld [vmem:[%s2299 + $0x18] sm:$0xff]
    %2304 = vmatprep.subr.mxu0 %v995
    %2305 = vmatpush1.msra.mxu0 %v994
    %2306 = vmatprep.subr.mxu0 %v999
    %2307 = vmatpush1.msra.mxu0 %v998
    %2308 = vmatprep.subr.mxu0 %v1003
    %2309 = vmatpush1.msra.mxu0 %v1002
    %2310 = vmatprep.subr.mxu0 %v1007
    %2311 = vmatpush1.msra.mxu0 %v1006
    %2312 = vmatprep.subr.mxu0 %v1011
    %2313 = vmatpush1.msra.mxu0 %v1010
    %2314 = vmatprep.subr.mxu0 %v1015
    %2315 = vmatpush1.msra.mxu0 %v1014
    %2316 = vmatprep.subr.mxu0 %v1019
    %2317 = vmatpush1.msra.mxu0 %v1018
    %2318 = vmatprep.subr.mxu0 %v1023
    %2319 = vmatpush1.msra.mxu0 %v1022
    %2320 = vmatprep.subr.mxu0 %v1027
    %2321 = vmatpush1.msra.mxu0 %v1026
    %2322 = vmatprep.subr.mxu0 %v1031
    %2323 = vmatpush1.msra.mxu0 %v1030
    %2324 = vmatprep.subr.mxu0 %v1035
    %2325 = vmatpush1.msra.mxu0 %v1034
    %2326 = vmatprep.subr.mxu0 %v1039
    %2327 = vmatpush1.msra.mxu0 %v1038
    %2328 = vmatprep.subr.mxu0 %v1043
    %2329 = vmatpush1.msra.mxu0 %v1042
    %2330 = vmatprep.subr.mxu0 %v1047
    %2331 = vmatpush1.msra.mxu0 %v1046
    %2332 = vmatprep.subr.mxu0 %v1051
    %2333 = vmatpush1.msra.mxu0 %v1050
    %2334 = vmatprep.subr.mxu0 %v1055
    %2335 = vmatpush1.msra.mxu0 %v1054
    %2336 = vmatprep.subr.mxu0 0.0
    %2337 = vmatpush1.msra.mxu0 0.0
    %2338 = vmatprep.subr.mxu0 0.0
    %2339 = vmatpush1.msra.mxu0 0.0
    %2340 = vmatprep.subr.mxu0 0.0
    %2341 = vmatpush1.msra.mxu0 0.0
    %2342 = vmatprep.subr.mxu0 0.0
    %2343 = vmatpush1.msra.mxu0 0.0
    %2344 = vmatprep.subr.mxu0 0.0
    %2345 = vmatpush1.msra.mxu0 0.0
    %2346 = vmatprep.subr.mxu0 0.0
    %2347 = vmatpush1.msra.mxu0 0.0
    %2348 = vmatprep.subr.mxu0 0.0
    %2349 = vmatpush1.msra.mxu0 0.0
    %2350 = vmatprep.subr.mxu0 0.0
    %2351 = vmatpush1.msra.mxu0 0.0
    %2352 = vmatprep.subr.mxu0 0.0
    %2353 = vmatpush1.msra.mxu0 0.0
    %2354 = vmatprep.subr.mxu0 0.0
    %2355 = vmatpush1.msra.mxu0 0.0
    %2356 = vmatprep.subr.mxu0 0.0
    %2357 = vmatpush1.msra.mxu0 0.0
    %2358 = vmatprep.subr.mxu0 0.0
    %2359 = vmatpush1.msra.mxu0 0.0
    %2360 = vmatprep.subr.mxu0 0.0
    %2361 = vmatpush1.msra.mxu0 0.0
    %2362 = vmatprep.subr.mxu0 0.0
    %2363 = vmatpush1.msra.mxu0 0.0
    %2364 = vmatprep.subr.mxu0 0.0
    %2365 = vmatpush1.msra.mxu0 0.0
    %2366 = vmatprep.subr.mxu0 0.0
    %2367 = vmatpush1.msra.mxu0 0.0
    %2368 = vmatprep.mubr.f32.mxu0 0.0
    %2369 = vmatmul.mubr.f32.gmra.mrb[0].mxu0 %v2296
    %v2370 = vpop.f32.mrb[0].mxu0
    %v2371 = vadd.f32 0.0, %v2370
    %v2372 = vpop.f32.mrb[0].mxu0
    %v2373 = vadd.f32 0.0, %v2372
    %2374 = vdwg.mxu0
    %2375 = vmatprep.subr.mxu0 %v997
    %2376 = vmatpush1.msra.mxu0 %v996
    %2377 = vmatprep.subr.mxu0 %v1001
    %2378 = vmatpush1.msra.mxu0 %v1000
    %2379 = vmatprep.subr.mxu0 %v1005
    %2380 = vmatpush1.msra.mxu0 %v1004
    %2381 = vmatprep.subr.mxu0 %v1009
    %2382 = vmatpush1.msra.mxu0 %v1008
    %2383 = vmatprep.subr.mxu0 %v1013
    %2384 = vmatpush1.msra.mxu0 %v1012
    %2385 = vmatprep.subr.mxu0 %v1017
    %2386 = vmatpush1.msra.mxu0 %v1016
    %2387 = vmatprep.subr.mxu0 %v1021
    %2388 = vmatpush1.msra.mxu0 %v1020
    %2389 = vmatprep.subr.mxu0 %v1025
    %2390 = vmatpush1.msra.mxu0 %v1024
    %2391 = vmatprep.subr.mxu0 %v1029
    %2392 = vmatpush1.msra.mxu0 %v1028
    %2393 = vmatprep.subr.mxu0 %v1033
    %2394 = vmatpush1.msra.mxu0 %v1032
    %2395 = vmatprep.subr.mxu0 %v1037
    %2396 = vmatpush1.msra.mxu0 %v1036
    %2397 = vmatprep.subr.mxu0 %v1041
    %2398 = vmatpush1.msra.mxu0 %v1040
    %2399 = vmatprep.subr.mxu0 %v1045
    %2400 = vmatpush1.msra.mxu0 %v1044
    %2401 = vmatprep.subr.mxu0 %v1049
    %2402 = vmatpush1.msra.mxu0 %v1048
    %2403 = vmatprep.subr.mxu0 %v1053
    %2404 = vmatpush1.msra.mxu0 %v1052
    %2405 = vmatprep.subr.mxu0 %v1057
    %2406 = vmatpush1.msra.mxu0 %v1056
    %2407 = vmatprep.subr.mxu0 0.0
    %2408 = vmatpush1.msra.mxu0 0.0
    %2409 = vmatprep.subr.mxu0 0.0
    %2410 = vmatpush1.msra.mxu0 0.0
    %2411 = vmatprep.subr.mxu0 0.0
    %2412 = vmatpush1.msra.mxu0 0.0
    %2413 = vmatprep.subr.mxu0 0.0
    %2414 = vmatpush1.msra.mxu0 0.0
    %2415 = vmatprep.subr.mxu0 0.0
    %2416 = vmatpush1.msra.mxu0 0.0
    %2417 = vmatprep.subr.mxu0 0.0
    %2418 = vmatpush1.msra.mxu0 0.0
    %2419 = vmatprep.subr.mxu0 0.0
    %2420 = vmatpush1.msra.mxu0 0.0
    %2421 = vmatprep.subr.mxu0 0.0
    %2422 = vmatpush1.msra.mxu0 0.0
    %2423 = vmatprep.subr.mxu0 0.0
    %2424 = vmatpush1.msra.mxu0 0.0
    %2425 = vmatprep.subr.mxu0 0.0
    %2426 = vmatpush1.msra.mxu0 0.0
    %2427 = vmatprep.subr.mxu0 0.0
    %2428 = vmatpush1.msra.mxu0 0.0
    %2429 = vmatprep.subr.mxu0 0.0
    %2430 = vmatpush1.msra.mxu0 0.0
    %2431 = vmatprep.subr.mxu0 0.0
    %2432 = vmatpush1.msra.mxu0 0.0
    %2433 = vmatprep.subr.mxu0 0.0
    %2434 = vmatpush1.msra.mxu0 0.0
    %2435 = vmatprep.subr.mxu0 0.0
    %2436 = vmatpush1.msra.mxu0 0.0
    %2437 = vmatprep.subr.mxu0 0.0
    %2438 = vmatpush1.msra.mxu0 0.0
    %2439 = vmatprep.mubr.f32.mxu0 0.0
    %2440 = vmatmul.mubr.f32.gmra.mrb[0].mxu0 %v2296
    %v2441 = vpop.f32.mrb[0].mxu0
    %v2442 = vadd.f32 0.0, %v2441
    %v2443 = vpop.f32.mrb[0].mxu0
    %v2444 = vadd.f32 0.0, %v2443
    %2445 = vdwg.mxu0
    %v2446 = vadd.f32 %v2300, %v2371
    %v2447 = vadd.f32 %v2301, %v2373
    %v2448 = vadd.f32 %v2302, %v2442
    %v2449 = vadd.f32 %v2303, %v2444
    %v2450 = vxor.u32 %v2446, 2147483648
    %v2451 = vxor.u32 %v2447, 2147483648
    %v2452 = vxor.u32 %v2448, 2147483648
    %v2453 = vmul.f32 %v2450, 1.442695
    %v2454 = vpow.pop %v2453
    %v2455 = vmul.f32 %v2451, 1.442695
    %v2456 = vpow.pop %v2455
    %v2457 = vmul.f32 %v2452, 1.442695
    %v2458 = vpow.pop %v2457
    %v2459 = vadd.f32 %v2454, 1.0
    %v2460 = vadd.f32 %v2456, 1.0
    %v2461 = vadd.f32 %v2458, 1.0
    %v2462 = vrcp.pop %v2459
    %v2463 = vmul.f32 1.0, %v2462
    %v2464 = vrcp.pop %v2460
    %v2465 = vmul.f32 1.0, %v2464
    %v2466 = vrcp.pop %v2461
    %v2467 = vmul.f32 1.0, %v2466
    %v2468 = vtanh.pop %v2449
    %v2469 = vmul.f32 %v2465, %v2294
    %v2470 = vmul.f32 %v2463, %v2468
    %v2471 = vadd.f32 %v2469, %v2470
    %v2472 = vtanh.pop %v2471
    %v2473 = vmul.f32 %v2467, %v2472
    %s2474 = smul.u32 8, 4
    %s2475 = smul.addr %s2474, 8
    %s2476 = scalar_lea.vmem [#allocation2], %s2475
    %v2477 = vld [vmem:[%s2476] sm:$0xff]
    %v2478 = vld [vmem:[%s2476 + $0x8] sm:$0xff]
    %v2479 = vld [vmem:[%s2476 + $0x10] sm:$0xff]
    %v2480 = vld [vmem:[%s2476 + $0x18] sm:$0xff]
    %2481 = vmatprep.subr.mxu0 %v995
    %2482 = vmatpush1.msra.mxu0 %v994
    %2483 = vmatprep.subr.mxu0 %v999
    %2484 = vmatpush1.msra.mxu0 %v998
    %2485 = vmatprep.subr.mxu0 %v1003
    %2486 = vmatpush1.msra.mxu0 %v1002
    %2487 = vmatprep.subr.mxu0 %v1007
    %2488 = vmatpush1.msra.mxu0 %v1006
    %2489 = vmatprep.subr.mxu0 %v1011
    %2490 = vmatpush1.msra.mxu0 %v1010
    %2491 = vmatprep.subr.mxu0 %v1015
    %2492 = vmatpush1.msra.mxu0 %v1014
    %2493 = vmatprep.subr.mxu0 %v1019
    %2494 = vmatpush1.msra.mxu0 %v1018
    %2495 = vmatprep.subr.mxu0 %v1023
    %2496 = vmatpush1.msra.mxu0 %v1022
    %2497 = vmatprep.subr.mxu0 %v1027
    %2498 = vmatpush1.msra.mxu0 %v1026
    %2499 = vmatprep.subr.mxu0 %v1031
    %2500 = vmatpush1.msra.mxu0 %v1030
    %2501 = vmatprep.subr.mxu0 %v1035
    %2502 = vmatpush1.msra.mxu0 %v1034
    %2503 = vmatprep.subr.mxu0 %v1039
    %2504 = vmatpush1.msra.mxu0 %v1038
    %2505 = vmatprep.subr.mxu0 %v1043
    %2506 = vmatpush1.msra.mxu0 %v1042
    %2507 = vmatprep.subr.mxu0 %v1047
    %2508 = vmatpush1.msra.mxu0 %v1046
    %2509 = vmatprep.subr.mxu0 %v1051
    %2510 = vmatpush1.msra.mxu0 %v1050
    %2511 = vmatprep.subr.mxu0 %v1055
    %2512 = vmatpush1.msra.mxu0 %v1054
    %2513 = vmatprep.subr.mxu0 0.0
    %2514 = vmatpush1.msra.mxu0 0.0
    %2515 = vmatprep.subr.mxu0 0.0
    %2516 = vmatpush1.msra.mxu0 0.0
    %2517 = vmatprep.subr.mxu0 0.0
    %2518 = vmatpush1.msra.mxu0 0.0
    %2519 = vmatprep.subr.mxu0 0.0
    %2520 = vmatpush1.msra.mxu0 0.0
    %2521 = vmatprep.subr.mxu0 0.0
    %2522 = vmatpush1.msra.mxu0 0.0
    %2523 = vmatprep.subr.mxu0 0.0
    %2524 = vmatpush1.msra.mxu0 0.0
    %2525 = vmatprep.subr.mxu0 0.0
    %2526 = vmatpush1.msra.mxu0 0.0
    %2527 = vmatprep.subr.mxu0 0.0
    %2528 = vmatpush1.msra.mxu0 0.0
    %2529 = vmatprep.subr.mxu0 0.0
    %2530 = vmatpush1.msra.mxu0 0.0
    %2531 = vmatprep.subr.mxu0 0.0
    %2532 = vmatpush1.msra.mxu0 0.0
    %2533 = vmatprep.subr.mxu0 0.0
    %2534 = vmatpush1.msra.mxu0 0.0
    %2535 = vmatprep.subr.mxu0 0.0
    %2536 = vmatpush1.msra.mxu0 0.0
    %2537 = vmatprep.subr.mxu0 0.0
    %2538 = vmatpush1.msra.mxu0 0.0
    %2539 = vmatprep.subr.mxu0 0.0
    %2540 = vmatpush1.msra.mxu0 0.0
    %2541 = vmatprep.subr.mxu0 0.0
    %2542 = vmatpush1.msra.mxu0 0.0
    %2543 = vmatprep.subr.mxu0 0.0
    %2544 = vmatpush1.msra.mxu0 0.0
    %2545 = vmatprep.mubr.f32.mxu0 0.0
    %2546 = vmatmul.mubr.f32.gmra.mrb[0].mxu0 %v2473
    %v2547 = vpop.f32.mrb[0].mxu0
    %v2548 = vadd.f32 0.0, %v2547
    %v2549 = vpop.f32.mrb[0].mxu0
    %v2550 = vadd.f32 0.0, %v2549
    %2551 = vdwg.mxu0
    %2552 = vmatprep.subr.mxu0 %v997
    %2553 = vmatpush1.msra.mxu0 %v996
    %2554 = vmatprep.subr.mxu0 %v1001
    %2555 = vmatpush1.msra.mxu0 %v1000
    %2556 = vmatprep.subr.mxu0 %v1005
    %2557 = vmatpush1.msra.mxu0 %v1004
    %2558 = vmatprep.subr.mxu0 %v1009
    %2559 = vmatpush1.msra.mxu0 %v1008
    %2560 = vmatprep.subr.mxu0 %v1013
    %2561 = vmatpush1.msra.mxu0 %v1012
    %2562 = vmatprep.subr.mxu0 %v1017
    %2563 = vmatpush1.msra.mxu0 %v1016
    %2564 = vmatprep.subr.mxu0 %v1021
    %2565 = vmatpush1.msra.mxu0 %v1020
    %2566 = vmatprep.subr.mxu0 %v1025
    %2567 = vmatpush1.msra.mxu0 %v1024
    %2568 = vmatprep.subr.mxu0 %v1029
    %2569 = vmatpush1.msra.mxu0 %v1028
    %2570 = vmatprep.subr.mxu0 %v1033
    %2571 = vmatpush1.msra.mxu0 %v1032
    %2572 = vmatprep.subr.mxu0 %v1037
    %2573 = vmatpush1.msra.mxu0 %v1036
    %2574 = vmatprep.subr.mxu0 %v1041
    %2575 = vmatpush1.msra.mxu0 %v1040
    %2576 = vmatprep.subr.mxu0 %v1045
    %2577 = vmatpush1.msra.mxu0 %v1044
    %2578 = vmatprep.subr.mxu0 %v1049
    %2579 = vmatpush1.msra.mxu0 %v1048
    %2580 = vmatprep.subr.mxu0 %v1053
    %2581 = vmatpush1.msra.mxu0 %v1052
    %2582 = vmatprep.subr.mxu0 %v1057
    %2583 = vmatpush1.msra.mxu0 %v1056
    %2584 = vmatprep.subr.mxu0 0.0
    %2585 = vmatpush1.msra.mxu0 0.0
    %2586 = vmatprep.subr.mxu0 0.0
    %2587 = vmatpush1.msra.mxu0 0.0
    %2588 = vmatprep.subr.mxu0 0.0
    %2589 = vmatpush1.msra.mxu0 0.0
    %2590 = vmatprep.subr.mxu0 0.0
    %2591 = vmatpush1.msra.mxu0 0.0
    %2592 = vmatprep.subr.mxu0 0.0
    %2593 = vmatpush1.msra.mxu0 0.0
    %2594 = vmatprep.subr.mxu0 0.0
    %2595 = vmatpush1.msra.mxu0 0.0
    %2596 = vmatprep.subr.mxu0 0.0
    %2597 = vmatpush1.msra.mxu0 0.0
    %2598 = vmatprep.subr.mxu0 0.0
    %2599 = vmatpush1.msra.mxu0 0.0
    %2600 = vmatprep.subr.mxu0 0.0
    %2601 = vmatpush1.msra.mxu0 0.0
    %2602 = vmatprep.subr.mxu0 0.0
    %2603 = vmatpush1.msra.mxu0 0.0
    %2604 = vmatprep.subr.mxu0 0.0
    %2605 = vmatpush1.msra.mxu0 0.0
    %2606 = vmatprep.subr.mxu0 0.0
    %2607 = vmatpush1.msra.mxu0 0.0
    %2608 = vmatprep.subr.mxu0 0.0
    %2609 = vmatpush1.msra.mxu0 0.0
    %2610 = vmatprep.subr.mxu0 0.0
    %2611 = vmatpush1.msra.mxu0 0.0
    %2612 = vmatprep.subr.mxu0 0.0
    %2613 = vmatpush1.msra.mxu0 0.0
    %2614 = vmatprep.subr.mxu0 0.0
    %2615 = vmatpush1.msra.mxu0 0.0
    %2616 = vmatprep.mubr.f32.mxu0 0.0
    %2617 = vmatmul.mubr.f32.gmra.mrb[0].mxu0 %v2473
    %v2618 = vpop.f32.mrb[0].mxu0
    %v2619 = vadd.f32 0.0, %v2618
    %v2620 = vpop.f32.mrb[0].mxu0
    %v2621 = vadd.f32 0.0, %v2620
    %2622 = vdwg.mxu0
    %v2623 = vadd.f32 %v2477, %v2548
    %v2624 = vadd.f32 %v2478, %v2550
    %v2625 = vadd.f32 %v2479, %v2619
    %v2626 = vadd.f32 %v2480, %v2621
    %v2627 = vxor.u32 %v2623, 2147483648
    %v2628 = vxor.u32 %v2624, 2147483648
    %v2629 = vxor.u32 %v2625, 2147483648
    %v2630 = vmul.f32 %v2627, 1.442695
    %v2631 = vpow.pop %v2630
    %v2632 = vmul.f32 %v2628, 1.442695
    %v2633 = vpow.pop %v2632
    %v2634 = vmul.f32 %v2629, 1.442695
    %v2635 = vpow.pop %v2634
    %v2636 = vadd.f32 %v2631, 1.0
    %v2637 = vadd.f32 %v2633, 1.0
    %v2638 = vadd.f32 %v2635, 1.0
    %v2639 = vrcp.pop %v2636
    %v2640 = vmul.f32 1.0, %v2639
    %v2641 = vrcp.pop %v2637
    %v2642 = vmul.f32 1.0, %v2641
    %v2643 = vrcp.pop %v2638
    %v2644 = vmul.f32 1.0, %v2643
    %v2645 = vtanh.pop %v2626
    %v2646 = vmul.f32 %v2642, %v2471
    %v2647 = vmul.f32 %v2640, %v2645
    %v2648 = vadd.f32 %v2646, %v2647
    %v2649 = vtanh.pop %v2648
    %v2650 = vmul.f32 %v2644, %v2649
    %s2651 = smul.u32 9, 4
    %s2652 = smul.addr %s2651, 8
    %s2653 = scalar_lea.vmem [#allocation2], %s2652
    %v2654 = vld [vmem:[%s2653] sm:$0xff]
    %v2655 = vld [vmem:[%s2653 + $0x8] sm:$0xff]
    %v2656 = vld [vmem:[%s2653 + $0x10] sm:$0xff]
    %v2657 = vld [vmem:[%s2653 + $0x18] sm:$0xff]
    %2658 = vmatprep.subr.mxu0 %v995
    %2659 = vmatpush1.msra.mxu0 %v994
    %2660 = vmatprep.subr.mxu0 %v999
    %2661 = vmatpush1.msra.mxu0 %v998
    %2662 = vmatprep.subr.mxu0 %v1003
    %2663 = vmatpush1.msra.mxu0 %v1002
    %2664 = vmatprep.subr.mxu0 %v1007
    %2665 = vmatpush1.msra.mxu0 %v1006
    %2666 = vmatprep.subr.mxu0 %v1011
    %2667 = vmatpush1.msra.mxu0 %v1010
    %2668 = vmatprep.subr.mxu0 %v1015
    %2669 = vmatpush1.msra.mxu0 %v1014
    %2670 = vmatprep.subr.mxu0 %v1019
    %2671 = vmatpush1.msra.mxu0 %v1018
    %2672 = vmatprep.subr.mxu0 %v1023
    %2673 = vmatpush1.msra.mxu0 %v1022
    %2674 = vmatprep.subr.mxu0 %v1027
    %2675 = vmatpush1.msra.mxu0 %v1026
    %2676 = vmatprep.subr.mxu0 %v1031
    %2677 = vmatpush1.msra.mxu0 %v1030
    %2678 = vmatprep.subr.mxu0 %v1035
    %2679 = vmatpush1.msra.mxu0 %v1034
    %2680 = vmatprep.subr.mxu0 %v1039
    %2681 = vmatpush1.msra.mxu0 %v1038
    %2682 = vmatprep.subr.mxu0 %v1043
    %2683 = vmatpush1.msra.mxu0 %v1042
    %2684 = vmatprep.subr.mxu0 %v1047
    %2685 = vmatpush1.msra.mxu0 %v1046
    %2686 = vmatprep.subr.mxu0 %v1051
    %2687 = vmatpush1.msra.mxu0 %v1050
    %2688 = vmatprep.subr.mxu0 %v1055
    %2689 = vmatpush1.msra.mxu0 %v1054
    %2690 = vmatprep.subr.mxu0 0.0
    %2691 = vmatpush1.msra.mxu0 0.0
    %2692 = vmatprep.subr.mxu0 0.0
    %2693 = vmatpush1.msra.mxu0 0.0
    %2694 = vmatprep.subr.mxu0 0.0
    %2695 = vmatpush1.msra.mxu0 0.0
    %2696 = vmatprep.subr.mxu0 0.0
    %2697 = vmatpush1.msra.mxu0 0.0
    %2698 = vmatprep.subr.mxu0 0.0
    %2699 = vmatpush1.msra.mxu0 0.0
    %2700 = vmatprep.subr.mxu0 0.0
    %2701 = vmatpush1.msra.mxu0 0.0
    %2702 = vmatprep.subr.mxu0 0.0
    %2703 = vmatpush1.msra.mxu0 0.0
    %2704 = vmatprep.subr.mxu0 0.0
    %2705 = vmatpush1.msra.mxu0 0.0
    %2706 = vmatprep.subr.mxu0 0.0
    %2707 = vmatpush1.msra.mxu0 0.0
    %2708 = vmatprep.subr.mxu0 0.0
    %2709 = vmatpush1.msra.mxu0 0.0
    %2710 = vmatprep.subr.mxu0 0.0
    %2711 = vmatpush1.msra.mxu0 0.0
    %2712 = vmatprep.subr.mxu0 0.0
    %2713 = vmatpush1.msra.mxu0 0.0
    %2714 = vmatprep.subr.mxu0 0.0
    %2715 = vmatpush1.msra.mxu0 0.0
    %2716 = vmatprep.subr.mxu0 0.0
    %2717 = vmatpush1.msra.mxu0 0.0
    %2718 = vmatprep.subr.mxu0 0.0
    %2719 = vmatpush1.msra.mxu0 0.0
    %2720 = vmatprep.subr.mxu0 0.0
    %2721 = vmatpush1.msra.mxu0 0.0
    %2722 = vmatprep.mubr.f32.mxu0 0.0
    %2723 = vmatmul.mubr.f32.gmra.mrb[0].mxu0 %v2650
    %v2724 = vpop.f32.mrb[0].mxu0
    %v2725 = vadd.f32 0.0, %v2724
    %v2726 = vpop.f32.mrb[0].mxu0
    %v2727 = vadd.f32 0.0, %v2726
    %2728 = vdwg.mxu0
    %2729 = vmatprep.subr.mxu0 %v997
    %2730 = vmatpush1.msra.mxu0 %v996
    %2731 = vmatprep.subr.mxu0 %v1001
    %2732 = vmatpush1.msra.mxu0 %v1000
    %2733 = vmatprep.subr.mxu0 %v1005
    %2734 = vmatpush1.msra.mxu0 %v1004
    %2735 = vmatprep.subr.mxu0 %v1009
    %2736 = vmatpush1.msra.mxu0 %v1008
    %2737 = vmatprep.subr.mxu0 %v1013
    %2738 = vmatpush1.msra.mxu0 %v1012
    %2739 = vmatprep.subr.mxu0 %v1017
    %2740 = vmatpush1.msra.mxu0 %v1016
    %2741 = vmatprep.subr.mxu0 %v1021
    %2742 = vmatpush1.msra.mxu0 %v1020
    %2743 = vmatprep.subr.mxu0 %v1025
    %2744 = vmatpush1.msra.mxu0 %v1024
    %2745 = vmatprep.subr.mxu0 %v1029
    %2746 = vmatpush1.msra.mxu0 %v1028
    %2747 = vmatprep.subr.mxu0 %v1033
    %2748 = vmatpush1.msra.mxu0 %v1032
    %2749 = vmatprep.subr.mxu0 %v1037
    %2750 = vmatpush1.msra.mxu0 %v1036
    %2751 = vmatprep.subr.mxu0 %v1041
    %2752 = vmatpush1.msra.mxu0 %v1040
    %2753 = vmatprep.subr.mxu0 %v1045
    %2754 = vmatpush1.msra.mxu0 %v1044
    %2755 = vmatprep.subr.mxu0 %v1049
    %2756 = vmatpush1.msra.mxu0 %v1048
    %2757 = vmatprep.subr.mxu0 %v1053
    %2758 = vmatpush1.msra.mxu0 %v1052
    %2759 = vmatprep.subr.mxu0 %v1057
    %2760 = vmatpush1.msra.mxu0 %v1056
    %2761 = vmatprep.subr.mxu0 0.0
    %2762 = vmatpush1.msra.mxu0 0.0
    %2763 = vmatprep.subr.mxu0 0.0
    %2764 = vmatpush1.msra.mxu0 0.0
    %2765 = vmatprep.subr.mxu0 0.0
    %2766 = vmatpush1.msra.mxu0 0.0
    %2767 = vmatprep.subr.mxu0 0.0
    %2768 = vmatpush1.msra.mxu0 0.0
    %2769 = vmatprep.subr.mxu0 0.0
    %2770 = vmatpush1.msra.mxu0 0.0
    %2771 = vmatprep.subr.mxu0 0.0
    %2772 = vmatpush1.msra.mxu0 0.0
    %2773 = vmatprep.subr.mxu0 0.0
    %2774 = vmatpush1.msra.mxu0 0.0
    %2775 = vmatprep.subr.mxu0 0.0
    %2776 = vmatpush1.msra.mxu0 0.0
    %2777 = vmatprep.subr.mxu0 0.0
    %2778 = vmatpush1.msra.mxu0 0.0
    %2779 = vmatprep.subr.mxu0 0.0
    %2780 = vmatpush1.msra.mxu0 0.0
    %2781 = vmatprep.subr.mxu0 0.0
    %2782 = vmatpush1.msra.mxu0 0.0
    %2783 = vmatprep.subr.mxu0 0.0
    %2784 = vmatpush1.msra.mxu0 0.0
    %2785 = vmatprep.subr.mxu0 0.0
    %2786 = vmatpush1.msra.mxu0 0.0
    %2787 = vmatprep.subr.mxu0 0.0
    %2788 = vmatpush1.msra.mxu0 0.0
    %2789 = vmatprep.subr.mxu0 0.0
    %2790 = vmatpush1.msra.mxu0 0.0
    %2791 = vmatprep.subr.mxu0 0.0
    %2792 = vmatpush1.msra.mxu0 0.0
    %2793 = vmatprep.mubr.f32.mxu0 0.0
    %2794 = vmatmul.mubr.f32.gmra.mrb[0].mxu0 %v2650
    %v2795 = vpop.f32.mrb[0].mxu0
    %v2796 = vadd.f32 0.0, %v2795
    %v2797 = vpop.f32.mrb[0].mxu0
    %v2798 = vadd.f32 0.0, %v2797
    %2799 = vdwg.mxu0
    %v2800 = vadd.f32 %v2654, %v2725
    %v2801 = vadd.f32 %v2655, %v2727
    %v2802 = vadd.f32 %v2656, %v2796
    %v2803 = vadd.f32 %v2657, %v2798
    %v2804 = vxor.u32 %v2800, 2147483648
    %v2805 = vxor.u32 %v2801, 2147483648
    %v2806 = vxor.u32 %v2802, 2147483648
    %v2807 = vmul.f32 %v2804, 1.442695
    %v2808 = vpow.pop %v2807
    %v2809 = vmul.f32 %v2805, 1.442695
    %v2810 = vpow.pop %v2809
    %v2811 = vmul.f32 %v2806, 1.442695
    %v2812 = vpow.pop %v2811
    %v2813 = vadd.f32 %v2808, 1.0
    %v2814 = vadd.f32 %v2810, 1.0
    %v2815 = vadd.f32 %v2812, 1.0
    %v2816 = vrcp.pop %v2813
    %v2817 = vmul.f32 1.0, %v2816
    %v2818 = vrcp.pop %v2814
    %v2819 = vmul.f32 1.0, %v2818
    %v2820 = vrcp.pop %v2815
    %v2821 = vmul.f32 1.0, %v2820
    %v2822 = vtanh.pop %v2803
    %v2823 = vmul.f32 %v2819, %v2648
    %v2824 = vmul.f32 %v2817, %v2822
    %v2825 = vadd.f32 %v2823, %v2824
    %v2826 = vtanh.pop %v2825
    %v2827 = vmul.f32 %v2821, %v2826
    %s2828 = smul.u32 10, 4
    %s2829 = smul.addr %s2828, 8
    %s2830 = scalar_lea.vmem [#allocation2], %s2829
    %v2831 = vld [vmem:[%s2830] sm:$0xff]
    %v2832 = vld [vmem:[%s2830 + $0x8] sm:$0xff]
    %v2833 = vld [vmem:[%s2830 + $0x10] sm:$0xff]
    %v2834 = vld [vmem:[%s2830 + $0x18] sm:$0xff]
    %2835 = vmatprep.subr.mxu0 %v995
    %2836 = vmatpush1.msra.mxu0 %v994
    %2837 = vmatprep.subr.mxu0 %v999
    %2838 = vmatpush1.msra.mxu0 %v998
    %2839 = vmatprep.subr.mxu0 %v1003
    %2840 = vmatpush1.msra.mxu0 %v1002
    %2841 = vmatprep.subr.mxu0 %v1007
    %2842 = vmatpush1.msra.mxu0 %v1006
    %2843 = vmatprep.subr.mxu0 %v1011
    %2844 = vmatpush1.msra.mxu0 %v1010
    %2845 = vmatprep.subr.mxu0 %v1015
    %2846 = vmatpush1.msra.mxu0 %v1014
    %2847 = vmatprep.subr.mxu0 %v1019
    %2848 = vmatpush1.msra.mxu0 %v1018
    %2849 = vmatprep.subr.mxu0 %v1023
    %2850 = vmatpush1.msra.mxu0 %v1022
    %2851 = vmatprep.subr.mxu0 %v1027
    %2852 = vmatpush1.msra.mxu0 %v1026
    %2853 = vmatprep.subr.mxu0 %v1031
    %2854 = vmatpush1.msra.mxu0 %v1030
    %2855 = vmatprep.subr.mxu0 %v1035
    %2856 = vmatpush1.msra.mxu0 %v1034
    %2857 = vmatprep.subr.mxu0 %v1039
    %2858 = vmatpush1.msra.mxu0 %v1038
    %2859 = vmatprep.subr.mxu0 %v1043
    %2860 = vmatpush1.msra.mxu0 %v1042
    %2861 = vmatprep.subr.mxu0 %v1047
    %2862 = vmatpush1.msra.mxu0 %v1046
    %2863 = vmatprep.subr.mxu0 %v1051
    %2864 = vmatpush1.msra.mxu0 %v1050
    %2865 = vmatprep.subr.mxu0 %v1055
    %2866 = vmatpush1.msra.mxu0 %v1054
    %2867 = vmatprep.subr.mxu0 0.0
    %2868 = vmatpush1.msra.mxu0 0.0
    %2869 = vmatprep.subr.mxu0 0.0
    %2870 = vmatpush1.msra.mxu0 0.0
    %2871 = vmatprep.subr.mxu0 0.0
    %2872 = vmatpush1.msra.mxu0 0.0
    %2873 = vmatprep.subr.mxu0 0.0
    %2874 = vmatpush1.msra.mxu0 0.0
    %2875 = vmatprep.subr.mxu0 0.0
    %2876 = vmatpush1.msra.mxu0 0.0
    %2877 = vmatprep.subr.mxu0 0.0
    %2878 = vmatpush1.msra.mxu0 0.0
    %2879 = vmatprep.subr.mxu0 0.0
    %2880 = vmatpush1.msra.mxu0 0.0
    %2881 = vmatprep.subr.mxu0 0.0
    %2882 = vmatpush1.msra.mxu0 0.0
    %2883 = vmatprep.subr.mxu0 0.0
    %2884 = vmatpush1.msra.mxu0 0.0
    %2885 = vmatprep.subr.mxu0 0.0
    %2886 = vmatpush1.msra.mxu0 0.0
    %2887 = vmatprep.subr.mxu0 0.0
    %2888 = vmatpush1.msra.mxu0 0.0
    %2889 = vmatprep.subr.mxu0 0.0
    %2890 = vmatpush1.msra.mxu0 0.0
    %2891 = vmatprep.subr.mxu0 0.0
    %2892 = vmatpush1.msra.mxu0 0.0
    %2893 = vmatprep.subr.mxu0 0.0
    %2894 = vmatpush1.msra.mxu0 0.0
    %2895 = vmatprep.subr.mxu0 0.0
    %2896 = vmatpush1.msra.mxu0 0.0
    %2897 = vmatprep.subr.mxu0 0.0
    %2898 = vmatpush1.msra.mxu0 0.0
    %2899 = vmatprep.mubr.f32.mxu0 0.0
    %2900 = vmatmul.mubr.f32.gmra.mrb[0].mxu0 %v2827
    %v2901 = vpop.f32.mrb[0].mxu0
    %v2902 = vadd.f32 0.0, %v2901
    %v2903 = vpop.f32.mrb[0].mxu0
    %v2904 = vadd.f32 0.0, %v2903
    %2905 = vdwg.mxu0
    %2906 = vmatprep.subr.mxu0 %v997
    %2907 = vmatpush1.msra.mxu0 %v996
    %2908 = vmatprep.subr.mxu0 %v1001
    %2909 = vmatpush1.msra.mxu0 %v1000
    %2910 = vmatprep.subr.mxu0 %v1005
    %2911 = vmatpush1.msra.mxu0 %v1004
    %2912 = vmatprep.subr.mxu0 %v1009
    %2913 = vmatpush1.msra.mxu0 %v1008
    %2914 = vmatprep.subr.mxu0 %v1013
    %2915 = vmatpush1.msra.mxu0 %v1012
    %2916 = vmatprep.subr.mxu0 %v1017
    %2917 = vmatpush1.msra.mxu0 %v1016
    %2918 = vmatprep.subr.mxu0 %v1021
    %2919 = vmatpush1.msra.mxu0 %v1020
    %2920 = vmatprep.subr.mxu0 %v1025
    %2921 = vmatpush1.msra.mxu0 %v1024
    %2922 = vmatprep.subr.mxu0 %v1029
    %2923 = vmatpush1.msra.mxu0 %v1028
    %2924 = vmatprep.subr.mxu0 %v1033
    %2925 = vmatpush1.msra.mxu0 %v1032
    %2926 = vmatprep.subr.mxu0 %v1037
    %2927 = vmatpush1.msra.mxu0 %v1036
    %2928 = vmatprep.subr.mxu0 %v1041
    %2929 = vmatpush1.msra.mxu0 %v1040
    %2930 = vmatprep.subr.mxu0 %v1045
    %2931 = vmatpush1.msra.mxu0 %v1044
    %2932 = vmatprep.subr.mxu0 %v1049
    %2933 = vmatpush1.msra.mxu0 %v1048
    %2934 = vmatprep.subr.mxu0 %v1053
    %2935 = vmatpush1.msra.mxu0 %v1052
    %2936 = vmatprep.subr.mxu0 %v1057
    %2937 = vmatpush1.msra.mxu0 %v1056
    %2938 = vmatprep.subr.mxu0 0.0
    %2939 = vmatpush1.msra.mxu0 0.0
    %2940 = vmatprep.subr.mxu0 0.0
    %2941 = vmatpush1.msra.mxu0 0.0
    %2942 = vmatprep.subr.mxu0 0.0
    %2943 = vmatpush1.msra.mxu0 0.0
    %2944 = vmatprep.subr.mxu0 0.0
    %2945 = vmatpush1.msra.mxu0 0.0
    %2946 = vmatprep.subr.mxu0 0.0
    %2947 = vmatpush1.msra.mxu0 0.0
    %2948 = vmatprep.subr.mxu0 0.0
    %2949 = vmatpush1.msra.mxu0 0.0
    %2950 = vmatprep.subr.mxu0 0.0
    %2951 = vmatpush1.msra.mxu0 0.0
    %2952 = vmatprep.subr.mxu0 0.0
    %2953 = vmatpush1.msra.mxu0 0.0
    %2954 = vmatprep.subr.mxu0 0.0
    %2955 = vmatpush1.msra.mxu0 0.0
    %2956 = vmatprep.subr.mxu0 0.0
    %2957 = vmatpush1.msra.mxu0 0.0
    %2958 = vmatprep.subr.mxu0 0.0
    %2959 = vmatpush1.msra.mxu0 0.0
    %2960 = vmatprep.subr.mxu0 0.0
    %2961 = vmatpush1.msra.mxu0 0.0
    %2962 = vmatprep.subr.mxu0 0.0
    %2963 = vmatpush1.msra.mxu0 0.0
    %2964 = vmatprep.subr.mxu0 0.0
    %2965 = vmatpush1.msra.mxu0 0.0
    %2966 = vmatprep.subr.mxu0 0.0
    %2967 = vmatpush1.msra.mxu0 0.0
    %2968 = vmatprep.subr.mxu0 0.0
    %2969 = vmatpush1.msra.mxu0 0.0
    %2970 = vmatprep.mubr.f32.mxu0 0.0
    %2971 = vmatmul.mubr.f32.gmra.mrb[0].mxu0 %v2827
    %v2972 = vpop.f32.mrb[0].mxu0
    %v2973 = vadd.f32 0.0, %v2972
    %v2974 = vpop.f32.mrb[0].mxu0
    %v2975 = vadd.f32 0.0, %v2974
    %2976 = vdwg.mxu0
    %v2977 = vadd.f32 %v2831, %v2902
    %v2978 = vadd.f32 %v2832, %v2904
    %v2979 = vadd.f32 %v2833, %v2973
    %v2980 = vadd.f32 %v2834, %v2975
    %v2981 = vxor.u32 %v2977, 2147483648
    %v2982 = vxor.u32 %v2978, 2147483648
    %v2983 = vxor.u32 %v2979, 2147483648
    %v2984 = vmul.f32 %v2981, 1.442695
    %v2985 = vpow.pop %v2984
    %v2986 = vmul.f32 %v2982, 1.442695
    %v2987 = vpow.pop %v2986
    %v2988 = vmul.f32 %v2983, 1.442695
    %v2989 = vpow.pop %v2988
    %v2990 = vadd.f32 %v2985, 1.0
    %v2991 = vadd.f32 %v2987, 1.0
    %v2992 = vadd.f32 %v2989, 1.0
    %v2993 = vrcp.pop %v2990
    %v2994 = vmul.f32 1.0, %v2993
    %v2995 = vrcp.pop %v2991
    %v2996 = vmul.f32 1.0, %v2995
    %v2997 = vrcp.pop %v2992
    %v2998 = vmul.f32 1.0, %v2997
    %v2999 = vtanh.pop %v2980
    %v3000 = vmul.f32 %v2996, %v2825
    %v3001 = vmul.f32 %v2994, %v2999
    %v3002 = vadd.f32 %v3000, %v3001
    %v3003 = vtanh.pop %v3002
    %v3004 = vmul.f32 %v2998, %v3003
    %s3005 = smul.u32 11, 4
    %s3006 = smul.addr %s3005, 8
    %s3007 = scalar_lea.vmem [#allocation2], %s3006
    %v3008 = vld [vmem:[%s3007] sm:$0xff]
    %v3009 = vld [vmem:[%s3007 + $0x8] sm:$0xff]
    %v3010 = vld [vmem:[%s3007 + $0x10] sm:$0xff]
    %v3011 = vld [vmem:[%s3007 + $0x18] sm:$0xff]
    %3012 = vmatprep.subr.mxu0 %v995
    %3013 = vmatpush1.msra.mxu0 %v994
    %3014 = vmatprep.subr.mxu0 %v999
    %3015 = vmatpush1.msra.mxu0 %v998
    %3016 = vmatprep.subr.mxu0 %v1003
    %3017 = vmatpush1.msra.mxu0 %v1002
    %3018 = vmatprep.subr.mxu0 %v1007
    %3019 = vmatpush1.msra.mxu0 %v1006
    %3020 = vmatprep.subr.mxu0 %v1011
    %3021 = vmatpush1.msra.mxu0 %v1010
    %3022 = vmatprep.subr.mxu0 %v1015
    %3023 = vmatpush1.msra.mxu0 %v1014
    %3024 = vmatprep.subr.mxu0 %v1019
    %3025 = vmatpush1.msra.mxu0 %v1018
    %3026 = vmatprep.subr.mxu0 %v1023
    %3027 = vmatpush1.msra.mxu0 %v1022
    %3028 = vmatprep.subr.mxu0 %v1027
    %3029 = vmatpush1.msra.mxu0 %v1026
    %3030 = vmatprep.subr.mxu0 %v1031
    %3031 = vmatpush1.msra.mxu0 %v1030
    %3032 = vmatprep.subr.mxu0 %v1035
    %3033 = vmatpush1.msra.mxu0 %v1034
    %3034 = vmatprep.subr.mxu0 %v1039
    %3035 = vmatpush1.msra.mxu0 %v1038
    %3036 = vmatprep.subr.mxu0 %v1043
    %3037 = vmatpush1.msra.mxu0 %v1042
    %3038 = vmatprep.subr.mxu0 %v1047
    %3039 = vmatpush1.msra.mxu0 %v1046
    %3040 = vmatprep.subr.mxu0 %v1051
    %3041 = vmatpush1.msra.mxu0 %v1050
    %3042 = vmatprep.subr.mxu0 %v1055
    %3043 = vmatpush1.msra.mxu0 %v1054
    %3044 = vmatprep.subr.mxu0 0.0
    %3045 = vmatpush1.msra.mxu0 0.0
    %3046 = vmatprep.subr.mxu0 0.0
    %3047 = vmatpush1.msra.mxu0 0.0
    %3048 = vmatprep.subr.mxu0 0.0
    %3049 = vmatpush1.msra.mxu0 0.0
    %3050 = vmatprep.subr.mxu0 0.0
    %3051 = vmatpush1.msra.mxu0 0.0
    %3052 = vmatprep.subr.mxu0 0.0
    %3053 = vmatpush1.msra.mxu0 0.0
    %3054 = vmatprep.subr.mxu0 0.0
    %3055 = vmatpush1.msra.mxu0 0.0
    %3056 = vmatprep.subr.mxu0 0.0
    %3057 = vmatpush1.msra.mxu0 0.0
    %3058 = vmatprep.subr.mxu0 0.0
    %3059 = vmatpush1.msra.mxu0 0.0
    %3060 = vmatprep.subr.mxu0 0.0
    %3061 = vmatpush1.msra.mxu0 0.0
    %3062 = vmatprep.subr.mxu0 0.0
    %3063 = vmatpush1.msra.mxu0 0.0
    %3064 = vmatprep.subr.mxu0 0.0
    %3065 = vmatpush1.msra.mxu0 0.0
    %3066 = vmatprep.subr.mxu0 0.0
    %3067 = vmatpush1.msra.mxu0 0.0
    %3068 = vmatprep.subr.mxu0 0.0
    %3069 = vmatpush1.msra.mxu0 0.0
    %3070 = vmatprep.subr.mxu0 0.0
    %3071 = vmatpush1.msra.mxu0 0.0
    %3072 = vmatprep.subr.mxu0 0.0
    %3073 = vmatpush1.msra.mxu0 0.0
    %3074 = vmatprep.subr.mxu0 0.0
    %3075 = vmatpush1.msra.mxu0 0.0
    %3076 = vmatprep.mubr.f32.mxu0 0.0
    %3077 = vmatmul.mubr.f32.gmra.mrb[0].mxu0 %v3004
    %v3078 = vpop.f32.mrb[0].mxu0
    %v3079 = vadd.f32 0.0, %v3078
    %v3080 = vpop.f32.mrb[0].mxu0
    %v3081 = vadd.f32 0.0, %v3080
    %3082 = vdwg.mxu0
    %3083 = vmatprep.subr.mxu0 %v997
    %3084 = vmatpush1.msra.mxu0 %v996
    %3085 = vmatprep.subr.mxu0 %v1001
    %3086 = vmatpush1.msra.mxu0 %v1000
    %3087 = vmatprep.subr.mxu0 %v1005
    %3088 = vmatpush1.msra.mxu0 %v1004
    %3089 = vmatprep.subr.mxu0 %v1009
    %3090 = vmatpush1.msra.mxu0 %v1008
    %3091 = vmatprep.subr.mxu0 %v1013
    %3092 = vmatpush1.msra.mxu0 %v1012
    %3093 = vmatprep.subr.mxu0 %v1017
    %3094 = vmatpush1.msra.mxu0 %v1016
    %3095 = vmatprep.subr.mxu0 %v1021
    %3096 = vmatpush1.msra.mxu0 %v1020
    %3097 = vmatprep.subr.mxu0 %v1025
    %3098 = vmatpush1.msra.mxu0 %v1024
    %3099 = vmatprep.subr.mxu0 %v1029
    %3100 = vmatpush1.msra.mxu0 %v1028
    %3101 = vmatprep.subr.mxu0 %v1033
    %3102 = vmatpush1.msra.mxu0 %v1032
    %3103 = vmatprep.subr.mxu0 %v1037
    %3104 = vmatpush1.msra.mxu0 %v1036
    %3105 = vmatprep.subr.mxu0 %v1041
    %3106 = vmatpush1.msra.mxu0 %v1040
    %3107 = vmatprep.subr.mxu0 %v1045
    %3108 = vmatpush1.msra.mxu0 %v1044
    %3109 = vmatprep.subr.mxu0 %v1049
    %3110 = vmatpush1.msra.mxu0 %v1048
    %3111 = vmatprep.subr.mxu0 %v1053
    %3112 = vmatpush1.msra.mxu0 %v1052
    %3113 = vmatprep.subr.mxu0 %v1057
    %3114 = vmatpush1.msra.mxu0 %v1056
    %3115 = vmatprep.subr.mxu0 0.0
    %3116 = vmatpush1.msra.mxu0 0.0
    %3117 = vmatprep.subr.mxu0 0.0
    %3118 = vmatpush1.msra.mxu0 0.0
    %3119 = vmatprep.subr.mxu0 0.0
    %3120 = vmatpush1.msra.mxu0 0.0
    %3121 = vmatprep.subr.mxu0 0.0
    %3122 = vmatpush1.msra.mxu0 0.0
    %3123 = vmatprep.subr.mxu0 0.0
    %3124 = vmatpush1.msra.mxu0 0.0
    %3125 = vmatprep.subr.mxu0 0.0
    %3126 = vmatpush1.msra.mxu0 0.0
    %3127 = vmatprep.subr.mxu0 0.0
    %3128 = vmatpush1.msra.mxu0 0.0
    %3129 = vmatprep.subr.mxu0 0.0
    %3130 = vmatpush1.msra.mxu0 0.0
    %3131 = vmatprep.subr.mxu0 0.0
    %3132 = vmatpush1.msra.mxu0 0.0
    %3133 = vmatprep.subr.mxu0 0.0
    %3134 = vmatpush1.msra.mxu0 0.0
    %3135 = vmatprep.subr.mxu0 0.0
    %3136 = vmatpush1.msra.mxu0 0.0
    %3137 = vmatprep.subr.mxu0 0.0
    %3138 = vmatpush1.msra.mxu0 0.0
    %3139 = vmatprep.subr.mxu0 0.0
    %3140 = vmatpush1.msra.mxu0 0.0
    %3141 = vmatprep.subr.mxu0 0.0
    %3142 = vmatpush1.msra.mxu0 0.0
    %3143 = vmatprep.subr.mxu0 0.0
    %3144 = vmatpush1.msra.mxu0 0.0
    %3145 = vmatprep.subr.mxu0 0.0
    %3146 = vmatpush1.msra.mxu0 0.0
    %3147 = vmatprep.mubr.f32.mxu0 0.0
    %3148 = vmatmul.mubr.f32.gmra.mrb[0].mxu0 %v3004
    %v3149 = vpop.f32.mrb[0].mxu0
    %v3150 = vadd.f32 0.0, %v3149
    %v3151 = vpop.f32.mrb[0].mxu0
    %v3152 = vadd.f32 0.0, %v3151
    %3153 = vdwg.mxu0
    %v3154 = vadd.f32 %v3008, %v3079
    %v3155 = vadd.f32 %v3009, %v3081
    %v3156 = vadd.f32 %v3010, %v3150
    %v3157 = vadd.f32 %v3011, %v3152
    %v3158 = vxor.u32 %v3154, 2147483648
    %v3159 = vxor.u32 %v3155, 2147483648
    %v3160 = vxor.u32 %v3156, 2147483648
    %v3161 = vmul.f32 %v3158, 1.442695
    %v3162 = vpow.pop %v3161
    %v3163 = vmul.f32 %v3159, 1.442695
    %v3164 = vpow.pop %v3163
    %v3165 = vmul.f32 %v3160, 1.442695
    %v3166 = vpow.pop %v3165
    %v3167 = vadd.f32 %v3162, 1.0
    %v3168 = vadd.f32 %v3164, 1.0
    %v3169 = vadd.f32 %v3166, 1.0
    %v3170 = vrcp.pop %v3167
    %v3171 = vmul.f32 1.0, %v3170
    %v3172 = vrcp.pop %v3168
    %v3173 = vmul.f32 1.0, %v3172
    %v3174 = vrcp.pop %v3169
    %v3175 = vmul.f32 1.0, %v3174
    %v3176 = vtanh.pop %v3157
    %v3177 = vmul.f32 %v3173, %v3002
    %v3178 = vmul.f32 %v3171, %v3176
    %v3179 = vadd.f32 %v3177, %v3178
    %v3180 = vtanh.pop %v3179
    %v3181 = vmul.f32 %v3175, %v3180
    %s3182 = smul.u32 12, 4
    %s3183 = smul.addr %s3182, 8
    %s3184 = scalar_lea.vmem [#allocation2], %s3183
    %v3185 = vld [vmem:[%s3184] sm:$0xff]
    %v3186 = vld [vmem:[%s3184 + $0x8] sm:$0xff]
    %v3187 = vld [vmem:[%s3184 + $0x10] sm:$0xff]
    %v3188 = vld [vmem:[%s3184 + $0x18] sm:$0xff]
    %3189 = vmatprep.subr.mxu0 %v995
    %3190 = vmatpush1.msra.mxu0 %v994
    %3191 = vmatprep.subr.mxu0 %v999
    %3192 = vmatpush1.msra.mxu0 %v998
    %3193 = vmatprep.subr.mxu0 %v1003
    %3194 = vmatpush1.msra.mxu0 %v1002
    %3195 = vmatprep.subr.mxu0 %v1007
    %3196 = vmatpush1.msra.mxu0 %v1006
    %3197 = vmatprep.subr.mxu0 %v1011
    %3198 = vmatpush1.msra.mxu0 %v1010
    %3199 = vmatprep.subr.mxu0 %v1015
    %3200 = vmatpush1.msra.mxu0 %v1014
    %3201 = vmatprep.subr.mxu0 %v1019
    %3202 = vmatpush1.msra.mxu0 %v1018
    %3203 = vmatprep.subr.mxu0 %v1023
    %3204 = vmatpush1.msra.mxu0 %v1022
    %3205 = vmatprep.subr.mxu0 %v1027
    %3206 = vmatpush1.msra.mxu0 %v1026
    %3207 = vmatprep.subr.mxu0 %v1031
    %3208 = vmatpush1.msra.mxu0 %v1030
    %3209 = vmatprep.subr.mxu0 %v1035
    %3210 = vmatpush1.msra.mxu0 %v1034
    %3211 = vmatprep.subr.mxu0 %v1039
    %3212 = vmatpush1.msra.mxu0 %v1038
    %3213 = vmatprep.subr.mxu0 %v1043
    %3214 = vmatpush1.msra.mxu0 %v1042
    %3215 = vmatprep.subr.mxu0 %v1047
    %3216 = vmatpush1.msra.mxu0 %v1046
    %3217 = vmatprep.subr.mxu0 %v1051
    %3218 = vmatpush1.msra.mxu0 %v1050
    %3219 = vmatprep.subr.mxu0 %v1055
    %3220 = vmatpush1.msra.mxu0 %v1054
    %3221 = vmatprep.subr.mxu0 0.0
    %3222 = vmatpush1.msra.mxu0 0.0
    %3223 = vmatprep.subr.mxu0 0.0
    %3224 = vmatpush1.msra.mxu0 0.0
    %3225 = vmatprep.subr.mxu0 0.0
    %3226 = vmatpush1.msra.mxu0 0.0
    %3227 = vmatprep.subr.mxu0 0.0
    %3228 = vmatpush1.msra.mxu0 0.0
    %3229 = vmatprep.subr.mxu0 0.0
    %3230 = vmatpush1.msra.mxu0 0.0
    %3231 = vmatprep.subr.mxu0 0.0
    %3232 = vmatpush1.msra.mxu0 0.0
    %3233 = vmatprep.subr.mxu0 0.0
    %3234 = vmatpush1.msra.mxu0 0.0
    %3235 = vmatprep.subr.mxu0 0.0
    %3236 = vmatpush1.msra.mxu0 0.0
    %3237 = vmatprep.subr.mxu0 0.0
    %3238 = vmatpush1.msra.mxu0 0.0
    %3239 = vmatprep.subr.mxu0 0.0
    %3240 = vmatpush1.msra.mxu0 0.0
    %3241 = vmatprep.subr.mxu0 0.0
    %3242 = vmatpush1.msra.mxu0 0.0
    %3243 = vmatprep.subr.mxu0 0.0
    %3244 = vmatpush1.msra.mxu0 0.0
    %3245 = vmatprep.subr.mxu0 0.0
    %3246 = vmatpush1.msra.mxu0 0.0
    %3247 = vmatprep.subr.mxu0 0.0
    %3248 = vmatpush1.msra.mxu0 0.0
    %3249 = vmatprep.subr.mxu0 0.0
    %3250 = vmatpush1.msra.mxu0 0.0
    %3251 = vmatprep.subr.mxu0 0.0
    %3252 = vmatpush1.msra.mxu0 0.0
    %3253 = vmatprep.mubr.f32.mxu0 0.0
    %3254 = vmatmul.mubr.f32.gmra.mrb[0].mxu0 %v3181
    %v3255 = vpop.f32.mrb[0].mxu0
    %v3256 = vadd.f32 0.0, %v3255
    %v3257 = vpop.f32.mrb[0].mxu0
    %v3258 = vadd.f32 0.0, %v3257
    %3259 = vdwg.mxu0
    %3260 = vmatprep.subr.mxu0 %v997
    %3261 = vmatpush1.msra.mxu0 %v996
    %3262 = vmatprep.subr.mxu0 %v1001
    %3263 = vmatpush1.msra.mxu0 %v1000
    %3264 = vmatprep.subr.mxu0 %v1005
    %3265 = vmatpush1.msra.mxu0 %v1004
    %3266 = vmatprep.subr.mxu0 %v1009
    %3267 = vmatpush1.msra.mxu0 %v1008
    %3268 = vmatprep.subr.mxu0 %v1013
    %3269 = vmatpush1.msra.mxu0 %v1012
    %3270 = vmatprep.subr.mxu0 %v1017
    %3271 = vmatpush1.msra.mxu0 %v1016
    %3272 = vmatprep.subr.mxu0 %v1021
    %3273 = vmatpush1.msra.mxu0 %v1020
    %3274 = vmatprep.subr.mxu0 %v1025
    %3275 = vmatpush1.msra.mxu0 %v1024
    %3276 = vmatprep.subr.mxu0 %v1029
    %3277 = vmatpush1.msra.mxu0 %v1028
    %3278 = vmatprep.subr.mxu0 %v1033
    %3279 = vmatpush1.msra.mxu0 %v1032
    %3280 = vmatprep.subr.mxu0 %v1037
    %3281 = vmatpush1.msra.mxu0 %v1036
    %3282 = vmatprep.subr.mxu0 %v1041
    %3283 = vmatpush1.msra.mxu0 %v1040
    %3284 = vmatprep.subr.mxu0 %v1045
    %3285 = vmatpush1.msra.mxu0 %v1044
    %3286 = vmatprep.subr.mxu0 %v1049
    %3287 = vmatpush1.msra.mxu0 %v1048
    %3288 = vmatprep.subr.mxu0 %v1053
    %3289 = vmatpush1.msra.mxu0 %v1052
    %3290 = vmatprep.subr.mxu0 %v1057
    %3291 = vmatpush1.msra.mxu0 %v1056
    %3292 = vmatprep.subr.mxu0 0.0
    %3293 = vmatpush1.msra.mxu0 0.0
    %3294 = vmatprep.subr.mxu0 0.0
    %3295 = vmatpush1.msra.mxu0 0.0
    %3296 = vmatprep.subr.mxu0 0.0
    %3297 = vmatpush1.msra.mxu0 0.0
    %3298 = vmatprep.subr.mxu0 0.0
    %3299 = vmatpush1.msra.mxu0 0.0
    %3300 = vmatprep.subr.mxu0 0.0
    %3301 = vmatpush1.msra.mxu0 0.0
    %3302 = vmatprep.subr.mxu0 0.0
    %3303 = vmatpush1.msra.mxu0 0.0
    %3304 = vmatprep.subr.mxu0 0.0
    %3305 = vmatpush1.msra.mxu0 0.0
    %3306 = vmatprep.subr.mxu0 0.0
    %3307 = vmatpush1.msra.mxu0 0.0
    %3308 = vmatprep.subr.mxu0 0.0
    %3309 = vmatpush1.msra.mxu0 0.0
    %3310 = vmatprep.subr.mxu0 0.0
    %3311 = vmatpush1.msra.mxu0 0.0
    %3312 = vmatprep.subr.mxu0 0.0
    %3313 = vmatpush1.msra.mxu0 0.0
    %3314 = vmatprep.subr.mxu0 0.0
    %3315 = vmatpush1.msra.mxu0 0.0
    %3316 = vmatprep.subr.mxu0 0.0
    %3317 = vmatpush1.msra.mxu0 0.0
    %3318 = vmatprep.subr.mxu0 0.0
    %3319 = vmatpush1.msra.mxu0 0.0
    %3320 = vmatprep.subr.mxu0 0.0
    %3321 = vmatpush1.msra.mxu0 0.0
    %3322 = vmatprep.subr.mxu0 0.0
    %3323 = vmatpush1.msra.mxu0 0.0
    %3324 = vmatprep.mubr.f32.mxu0 0.0
    %3325 = vmatmul.mubr.f32.gmra.mrb[0].mxu0 %v3181
    %v3326 = vpop.f32.mrb[0].mxu0
    %v3327 = vadd.f32 0.0, %v3326
    %v3328 = vpop.f32.mrb[0].mxu0
    %v3329 = vadd.f32 0.0, %v3328
    %3330 = vdwg.mxu0
    %v3331 = vadd.f32 %v3185, %v3256
    %v3332 = vadd.f32 %v3186, %v3258
    %v3333 = vadd.f32 %v3187, %v3327
    %v3334 = vadd.f32 %v3188, %v3329
    %v3335 = vxor.u32 %v3331, 2147483648
    %v3336 = vxor.u32 %v3332, 2147483648
    %v3337 = vxor.u32 %v3333, 2147483648
    %v3338 = vmul.f32 %v3335, 1.442695
    %v3339 = vpow.pop %v3338
    %v3340 = vmul.f32 %v3336, 1.442695
    %v3341 = vpow.pop %v3340
    %v3342 = vmul.f32 %v3337, 1.442695
    %v3343 = vpow.pop %v3342
    %v3344 = vadd.f32 %v3339, 1.0
    %v3345 = vadd.f32 %v3341, 1.0
    %v3346 = vadd.f32 %v3343, 1.0
    %v3347 = vrcp.pop %v3344
    %v3348 = vmul.f32 1.0, %v3347
    %v3349 = vrcp.pop %v3345
    %v3350 = vmul.f32 1.0, %v3349
    %v3351 = vrcp.pop %v3346
    %v3352 = vmul.f32 1.0, %v3351
    %v3353 = vtanh.pop %v3334
    %v3354 = vmul.f32 %v3350, %v3179
    %v3355 = vmul.f32 %v3348, %v3353
    %v3356 = vadd.f32 %v3354, %v3355
    %v3357 = vtanh.pop %v3356
    %v3358 = vmul.f32 %v3352, %v3357
    %s3359 = smul.u32 13, 4
    %s3360 = smul.addr %s3359, 8
    %s3361 = scalar_lea.vmem [#allocation2], %s3360
    %v3362 = vld [vmem:[%s3361] sm:$0xff]
    %v3363 = vld [vmem:[%s3361 + $0x8] sm:$0xff]
    %v3364 = vld [vmem:[%s3361 + $0x10] sm:$0xff]
    %v3365 = vld [vmem:[%s3361 + $0x18] sm:$0xff]
    %3366 = vmatprep.subr.mxu0 %v995
    %3367 = vmatpush1.msra.mxu0 %v994
    %3368 = vmatprep.subr.mxu0 %v999
    %3369 = vmatpush1.msra.mxu0 %v998
    %3370 = vmatprep.subr.mxu0 %v1003
    %3371 = vmatpush1.msra.mxu0 %v1002
    %3372 = vmatprep.subr.mxu0 %v1007
    %3373 = vmatpush1.msra.mxu0 %v1006
    %3374 = vmatprep.subr.mxu0 %v1011
    %3375 = vmatpush1.msra.mxu0 %v1010
    %3376 = vmatprep.subr.mxu0 %v1015
    %3377 = vmatpush1.msra.mxu0 %v1014
    %3378 = vmatprep.subr.mxu0 %v1019
    %3379 = vmatpush1.msra.mxu0 %v1018
    %3380 = vmatprep.subr.mxu0 %v1023
    %3381 = vmatpush1.msra.mxu0 %v1022
    %3382 = vmatprep.subr.mxu0 %v1027
    %3383 = vmatpush1.msra.mxu0 %v1026
    %3384 = vmatprep.subr.mxu0 %v1031
    %3385 = vmatpush1.msra.mxu0 %v1030
    %3386 = vmatprep.subr.mxu0 %v1035
    %3387 = vmatpush1.msra.mxu0 %v1034
    %3388 = vmatprep.subr.mxu0 %v1039
    %3389 = vmatpush1.msra.mxu0 %v1038
    %3390 = vmatprep.subr.mxu0 %v1043
    %3391 = vmatpush1.msra.mxu0 %v1042
    %3392 = vmatprep.subr.mxu0 %v1047
    %3393 = vmatpush1.msra.mxu0 %v1046
    %3394 = vmatprep.subr.mxu0 %v1051
    %3395 = vmatpush1.msra.mxu0 %v1050
    %3396 = vmatprep.subr.mxu0 %v1055
    %3397 = vmatpush1.msra.mxu0 %v1054
    %3398 = vmatprep.subr.mxu0 0.0
    %3399 = vmatpush1.msra.mxu0 0.0
    %3400 = vmatprep.subr.mxu0 0.0
    %3401 = vmatpush1.msra.mxu0 0.0
    %3402 = vmatprep.subr.mxu0 0.0
    %3403 = vmatpush1.msra.mxu0 0.0
    %3404 = vmatprep.subr.mxu0 0.0
    %3405 = vmatpush1.msra.mxu0 0.0
    %3406 = vmatprep.subr.mxu0 0.0
    %3407 = vmatpush1.msra.mxu0 0.0
    %3408 = vmatprep.subr.mxu0 0.0
    %3409 = vmatpush1.msra.mxu0 0.0
    %3410 = vmatprep.subr.mxu0 0.0
    %3411 = vmatpush1.msra.mxu0 0.0
    %3412 = vmatprep.subr.mxu0 0.0
    %3413 = vmatpush1.msra.mxu0 0.0
    %3414 = vmatprep.subr.mxu0 0.0
    %3415 = vmatpush1.msra.mxu0 0.0
    %3416 = vmatprep.subr.mxu0 0.0
    %3417 = vmatpush1.msra.mxu0 0.0
    %3418 = vmatprep.subr.mxu0 0.0
    %3419 = vmatpush1.msra.mxu0 0.0
    %3420 = vmatprep.subr.mxu0 0.0
    %3421 = vmatpush1.msra.mxu0 0.0
    %3422 = vmatprep.subr.mxu0 0.0
    %3423 = vmatpush1.msra.mxu0 0.0
    %3424 = vmatprep.subr.mxu0 0.0
    %3425 = vmatpush1.msra.mxu0 0.0
    %3426 = vmatprep.subr.mxu0 0.0
    %3427 = vmatpush1.msra.mxu0 0.0
    %3428 = vmatprep.subr.mxu0 0.0
    %3429 = vmatpush1.msra.mxu0 0.0
    %3430 = vmatprep.mubr.f32.mxu0 0.0
    %3431 = vmatmul.mubr.f32.gmra.mrb[0].mxu0 %v3358
    %v3432 = vpop.f32.mrb[0].mxu0
    %v3433 = vadd.f32 0.0, %v3432
    %v3434 = vpop.f32.mrb[0].mxu0
    %v3435 = vadd.f32 0.0, %v3434
    %3436 = vdwg.mxu0
    %3437 = vmatprep.subr.mxu0 %v997
    %3438 = vmatpush1.msra.mxu0 %v996
    %3439 = vmatprep.subr.mxu0 %v1001
    %3440 = vmatpush1.msra.mxu0 %v1000
    %3441 = vmatprep.subr.mxu0 %v1005
    %3442 = vmatpush1.msra.mxu0 %v1004
    %3443 = vmatprep.subr.mxu0 %v1009
    %3444 = vmatpush1.msra.mxu0 %v1008
    %3445 = vmatprep.subr.mxu0 %v1013
    %3446 = vmatpush1.msra.mxu0 %v1012
    %3447 = vmatprep.subr.mxu0 %v1017
    %3448 = vmatpush1.msra.mxu0 %v1016
    %3449 = vmatprep.subr.mxu0 %v1021
    %3450 = vmatpush1.msra.mxu0 %v1020
    %3451 = vmatprep.subr.mxu0 %v1025
    %3452 = vmatpush1.msra.mxu0 %v1024
    %3453 = vmatprep.subr.mxu0 %v1029
    %3454 = vmatpush1.msra.mxu0 %v1028
    %3455 = vmatprep.subr.mxu0 %v1033
    %3456 = vmatpush1.msra.mxu0 %v1032
    %3457 = vmatprep.subr.mxu0 %v1037
    %3458 = vmatpush1.msra.mxu0 %v1036
    %3459 = vmatprep.subr.mxu0 %v1041
    %3460 = vmatpush1.msra.mxu0 %v1040
    %3461 = vmatprep.subr.mxu0 %v1045
    %3462 = vmatpush1.msra.mxu0 %v1044
    %3463 = vmatprep.subr.mxu0 %v1049
    %3464 = vmatpush1.msra.mxu0 %v1048
    %3465 = vmatprep.subr.mxu0 %v1053
    %3466 = vmatpush1.msra.mxu0 %v1052
    %3467 = vmatprep.subr.mxu0 %v1057
    %3468 = vmatpush1.msra.mxu0 %v1056
    %3469 = vmatprep.subr.mxu0 0.0
    %3470 = vmatpush1.msra.mxu0 0.0
    %3471 = vmatprep.subr.mxu0 0.0
    %3472 = vmatpush1.msra.mxu0 0.0
    %3473 = vmatprep.subr.mxu0 0.0
    %3474 = vmatpush1.msra.mxu0 0.0
    %3475 = vmatprep.subr.mxu0 0.0
    %3476 = vmatpush1.msra.mxu0 0.0
    %3477 = vmatprep.subr.mxu0 0.0
    %3478 = vmatpush1.msra.mxu0 0.0
    %3479 = vmatprep.subr.mxu0 0.0
    %3480 = vmatpush1.msra.mxu0 0.0
    %3481 = vmatprep.subr.mxu0 0.0
    %3482 = vmatpush1.msra.mxu0 0.0
    %3483 = vmatprep.subr.mxu0 0.0
    %3484 = vmatpush1.msra.mxu0 0.0
    %3485 = vmatprep.subr.mxu0 0.0
    %3486 = vmatpush1.msra.mxu0 0.0
    %3487 = vmatprep.subr.mxu0 0.0
    %3488 = vmatpush1.msra.mxu0 0.0
    %3489 = vmatprep.subr.mxu0 0.0
    %3490 = vmatpush1.msra.mxu0 0.0
    %3491 = vmatprep.subr.mxu0 0.0
    %3492 = vmatpush1.msra.mxu0 0.0
    %3493 = vmatprep.subr.mxu0 0.0
    %3494 = vmatpush1.msra.mxu0 0.0
    %3495 = vmatprep.subr.mxu0 0.0
    %3496 = vmatpush1.msra.mxu0 0.0
    %3497 = vmatprep.subr.mxu0 0.0
    %3498 = vmatpush1.msra.mxu0 0.0
    %3499 = vmatprep.subr.mxu0 0.0
    %3500 = vmatpush1.msra.mxu0 0.0
    %3501 = vmatprep.mubr.f32.mxu0 0.0
    %3502 = vmatmul.mubr.f32.gmra.mrb[0].mxu0 %v3358
    %v3503 = vpop.f32.mrb[0].mxu0
    %v3504 = vadd.f32 0.0, %v3503
    %v3505 = vpop.f32.mrb[0].mxu0
    %v3506 = vadd.f32 0.0, %v3505
    %3507 = vdwg.mxu0
    %v3508 = vadd.f32 %v3362, %v3433
    %v3509 = vadd.f32 %v3363, %v3435
    %v3510 = vadd.f32 %v3364, %v3504
    %v3511 = vadd.f32 %v3365, %v3506
    %v3512 = vxor.u32 %v3508, 2147483648
    %v3513 = vxor.u32 %v3509, 2147483648
    %v3514 = vxor.u32 %v3510, 2147483648
    %v3515 = vmul.f32 %v3512, 1.442695
    %v3516 = vpow.pop %v3515
    %v3517 = vmul.f32 %v3513, 1.442695
    %v3518 = vpow.pop %v3517
    %v3519 = vmul.f32 %v3514, 1.442695
    %v3520 = vpow.pop %v3519
    %v3521 = vadd.f32 %v3516, 1.0
    %v3522 = vadd.f32 %v3518, 1.0
    %v3523 = vadd.f32 %v3520, 1.0
    %v3524 = vrcp.pop %v3521
    %v3525 = vmul.f32 1.0, %v3524
    %v3526 = vrcp.pop %v3522
    %v3527 = vmul.f32 1.0, %v3526
    %v3528 = vrcp.pop %v3523
    %v3529 = vmul.f32 1.0, %v3528
    %v3530 = vtanh.pop %v3511
    %v3531 = vmul.f32 %v3527, %v3356
    %v3532 = vmul.f32 %v3525, %v3530
    %v3533 = vadd.f32 %v3531, %v3532
    %v3534 = vtanh.pop %v3533
    %v3535 = vmul.f32 %v3529, %v3534
    %s3536 = smul.u32 14, 4
    %s3537 = smul.addr %s3536, 8
    %s3538 = scalar_lea.vmem [#allocation2], %s3537
    %v3539 = vld [vmem:[%s3538] sm:$0xff]
    %v3540 = vld [vmem:[%s3538 + $0x8] sm:$0xff]
    %v3541 = vld [vmem:[%s3538 + $0x10] sm:$0xff]
    %v3542 = vld [vmem:[%s3538 + $0x18] sm:$0xff]
    %3543 = vmatprep.subr.mxu0 %v995
    %3544 = vmatpush1.msra.mxu0 %v994
    %3545 = vmatprep.subr.mxu0 %v999
    %3546 = vmatpush1.msra.mxu0 %v998
    %3547 = vmatprep.subr.mxu0 %v1003
    %3548 = vmatpush1.msra.mxu0 %v1002
    %3549 = vmatprep.subr.mxu0 %v1007
    %3550 = vmatpush1.msra.mxu0 %v1006
    %3551 = vmatprep.subr.mxu0 %v1011
    %3552 = vmatpush1.msra.mxu0 %v1010
    %3553 = vmatprep.subr.mxu0 %v1015
    %3554 = vmatpush1.msra.mxu0 %v1014
    %3555 = vmatprep.subr.mxu0 %v1019
    %3556 = vmatpush1.msra.mxu0 %v1018
    %3557 = vmatprep.subr.mxu0 %v1023
    %3558 = vmatpush1.msra.mxu0 %v1022
    %3559 = vmatprep.subr.mxu0 %v1027
    %3560 = vmatpush1.msra.mxu0 %v1026
    %3561 = vmatprep.subr.mxu0 %v1031
    %3562 = vmatpush1.msra.mxu0 %v1030
    %3563 = vmatprep.subr.mxu0 %v1035
    %3564 = vmatpush1.msra.mxu0 %v1034
    %3565 = vmatprep.subr.mxu0 %v1039
    %3566 = vmatpush1.msra.mxu0 %v1038
    %3567 = vmatprep.subr.mxu0 %v1043
    %3568 = vmatpush1.msra.mxu0 %v1042
    %3569 = vmatprep.subr.mxu0 %v1047
    %3570 = vmatpush1.msra.mxu0 %v1046
    %3571 = vmatprep.subr.mxu0 %v1051
    %3572 = vmatpush1.msra.mxu0 %v1050
    %3573 = vmatprep.subr.mxu0 %v1055
    %3574 = vmatpush1.msra.mxu0 %v1054
    %3575 = vmatprep.subr.mxu0 0.0
    %3576 = vmatpush1.msra.mxu0 0.0
    %3577 = vmatprep.subr.mxu0 0.0
    %3578 = vmatpush1.msra.mxu0 0.0
    %3579 = vmatprep.subr.mxu0 0.0
    %3580 = vmatpush1.msra.mxu0 0.0
    %3581 = vmatprep.subr.mxu0 0.0
    %3582 = vmatpush1.msra.mxu0 0.0
    %3583 = vmatprep.subr.mxu0 0.0
    %3584 = vmatpush1.msra.mxu0 0.0
    %3585 = vmatprep.subr.mxu0 0.0
    %3586 = vmatpush1.msra.mxu0 0.0
    %3587 = vmatprep.subr.mxu0 0.0
    %3588 = vmatpush1.msra.mxu0 0.0
    %3589 = vmatprep.subr.mxu0 0.0
    %3590 = vmatpush1.msra.mxu0 0.0
    %3591 = vmatprep.subr.mxu0 0.0
    %3592 = vmatpush1.msra.mxu0 0.0
    %3593 = vmatprep.subr.mxu0 0.0
    %3594 = vmatpush1.msra.mxu0 0.0
    %3595 = vmatprep.subr.mxu0 0.0
    %3596 = vmatpush1.msra.mxu0 0.0
    %3597 = vmatprep.subr.mxu0 0.0
    %3598 = vmatpush1.msra.mxu0 0.0
    %3599 = vmatprep.subr.mxu0 0.0
    %3600 = vmatpush1.msra.mxu0 0.0
    %3601 = vmatprep.subr.mxu0 0.0
    %3602 = vmatpush1.msra.mxu0 0.0
    %3603 = vmatprep.subr.mxu0 0.0
    %3604 = vmatpush1.msra.mxu0 0.0
    %3605 = vmatprep.subr.mxu0 0.0
    %3606 = vmatpush1.msra.mxu0 0.0
    %3607 = vmatprep.mubr.f32.mxu0 0.0
    %3608 = vmatmul.mubr.f32.gmra.mrb[0].mxu0 %v3535
    %v3609 = vpop.f32.mrb[0].mxu0
    %v3610 = vadd.f32 0.0, %v3609
    %v3611 = vpop.f32.mrb[0].mxu0
    %v3612 = vadd.f32 0.0, %v3611
    %3613 = vdwg.mxu0
    %3614 = vmatprep.subr.mxu0 %v997
    %3615 = vmatpush1.msra.mxu0 %v996
    %3616 = vmatprep.subr.mxu0 %v1001
    %3617 = vmatpush1.msra.mxu0 %v1000
    %3618 = vmatprep.subr.mxu0 %v1005
    %3619 = vmatpush1.msra.mxu0 %v1004
    %3620 = vmatprep.subr.mxu0 %v1009
    %3621 = vmatpush1.msra.mxu0 %v1008
    %3622 = vmatprep.subr.mxu0 %v1013
    %3623 = vmatpush1.msra.mxu0 %v1012
    %3624 = vmatprep.subr.mxu0 %v1017
    %3625 = vmatpush1.msra.mxu0 %v1016
    %3626 = vmatprep.subr.mxu0 %v1021
    %3627 = vmatpush1.msra.mxu0 %v1020
    %3628 = vmatprep.subr.mxu0 %v1025
    %3629 = vmatpush1.msra.mxu0 %v1024
    %3630 = vmatprep.subr.mxu0 %v1029
    %3631 = vmatpush1.msra.mxu0 %v1028
    %3632 = vmatprep.subr.mxu0 %v1033
    %3633 = vmatpush1.msra.mxu0 %v1032
    %3634 = vmatprep.subr.mxu0 %v1037
    %3635 = vmatpush1.msra.mxu0 %v1036
    %3636 = vmatprep.subr.mxu0 %v1041
    %3637 = vmatpush1.msra.mxu0 %v1040
    %3638 = vmatprep.subr.mxu0 %v1045
    %3639 = vmatpush1.msra.mxu0 %v1044
    %3640 = vmatprep.subr.mxu0 %v1049
    %3641 = vmatpush1.msra.mxu0 %v1048
    %3642 = vmatprep.subr.mxu0 %v1053
    %3643 = vmatpush1.msra.mxu0 %v1052
    %3644 = vmatprep.subr.mxu0 %v1057
    %3645 = vmatpush1.msra.mxu0 %v1056
    %3646 = vmatprep.subr.mxu0 0.0
    %3647 = vmatpush1.msra.mxu0 0.0
    %3648 = vmatprep.subr.mxu0 0.0
    %3649 = vmatpush1.msra.mxu0 0.0
    %3650 = vmatprep.subr.mxu0 0.0
    %3651 = vmatpush1.msra.mxu0 0.0
    %3652 = vmatprep.subr.mxu0 0.0
    %3653 = vmatpush1.msra.mxu0 0.0
    %3654 = vmatprep.subr.mxu0 0.0
    %3655 = vmatpush1.msra.mxu0 0.0
    %3656 = vmatprep.subr.mxu0 0.0
    %3657 = vmatpush1.msra.mxu0 0.0
    %3658 = vmatprep.subr.mxu0 0.0
    %3659 = vmatpush1.msra.mxu0 0.0
    %3660 = vmatprep.subr.mxu0 0.0
    %3661 = vmatpush1.msra.mxu0 0.0
    %3662 = vmatprep.subr.mxu0 0.0
    %3663 = vmatpush1.msra.mxu0 0.0
    %3664 = vmatprep.subr.mxu0 0.0
    %3665 = vmatpush1.msra.mxu0 0.0
    %3666 = vmatprep.subr.mxu0 0.0
    %3667 = vmatpush1.msra.mxu0 0.0
    %3668 = vmatprep.subr.mxu0 0.0
    %3669 = vmatpush1.msra.mxu0 0.0
    %3670 = vmatprep.subr.mxu0 0.0
    %3671 = vmatpush1.msra.mxu0 0.0
    %3672 = vmatprep.subr.mxu0 0.0
    %3673 = vmatpush1.msra.mxu0 0.0
    %3674 = vmatprep.subr.mxu0 0.0
    %3675 = vmatpush1.msra.mxu0 0.0
    %3676 = vmatprep.subr.mxu0 0.0
    %3677 = vmatpush1.msra.mxu0 0.0
    %3678 = vmatprep.mubr.f32.mxu0 0.0
    %3679 = vmatmul.mubr.f32.gmra.mrb[0].mxu0 %v3535
    %v3680 = vpop.f32.mrb[0].mxu0
    %v3681 = vadd.f32 0.0, %v3680
    %v3682 = vpop.f32.mrb[0].mxu0
    %v3683 = vadd.f32 0.0, %v3682
    %3684 = vdwg.mxu0
    %v3685 = vadd.f32 %v3539, %v3610
    %v3686 = vadd.f32 %v3540, %v3612
    %v3687 = vadd.f32 %v3541, %v3681
    %v3688 = vadd.f32 %v3542, %v3683
    %v3689 = vxor.u32 %v3685, 2147483648
    %v3690 = vxor.u32 %v3686, 2147483648
    %v3691 = vxor.u32 %v3687, 2147483648
    %v3692 = vmul.f32 %v3689, 1.442695
    %v3693 = vpow.pop %v3692
    %v3694 = vmul.f32 %v3690, 1.442695
    %v3695 = vpow.pop %v3694
    %v3696 = vmul.f32 %v3691, 1.442695
    %v3697 = vpow.pop %v3696
    %v3698 = vadd.f32 %v3693, 1.0
    %v3699 = vadd.f32 %v3695, 1.0
    %v3700 = vadd.f32 %v3697, 1.0
    %v3701 = vrcp.pop %v3698
    %v3702 = vmul.f32 1.0, %v3701
    %v3703 = vrcp.pop %v3699
    %v3704 = vmul.f32 1.0, %v3703
    %v3705 = vrcp.pop %v3700
    %v3706 = vmul.f32 1.0, %v3705
    %v3707 = vtanh.pop %v3688
    %v3708 = vmul.f32 %v3704, %v3533
    %v3709 = vmul.f32 %v3702, %v3707
    %v3710 = vadd.f32 %v3708, %v3709
    %v3711 = vtanh.pop %v3710
    %v3712 = vmul.f32 %v3706, %v3711
    %s3713 = smul.u32 15, 4
    %s3714 = smul.addr %s3713, 8
    %s3715 = scalar_lea.vmem [#allocation2], %s3714
    %v3716 = vld [vmem:[%s3715] sm:$0xff]
    %v3717 = vld [vmem:[%s3715 + $0x8] sm:$0xff]
    %v3718 = vld [vmem:[%s3715 + $0x10] sm:$0xff]
    %v3719 = vld [vmem:[%s3715 + $0x18] sm:$0xff]
    %3720 = vmatprep.subr.mxu0 %v995
    %3721 = vmatpush1.msra.mxu0 %v994
    %3722 = vmatprep.subr.mxu0 %v999
    %3723 = vmatpush1.msra.mxu0 %v998
    %3724 = vmatprep.subr.mxu0 %v1003
    %3725 = vmatpush1.msra.mxu0 %v1002
    %3726 = vmatprep.subr.mxu0 %v1007
    %3727 = vmatpush1.msra.mxu0 %v1006
    %3728 = vmatprep.subr.mxu0 %v1011
    %3729 = vmatpush1.msra.mxu0 %v1010
    %3730 = vmatprep.subr.mxu0 %v1015
    %3731 = vmatpush1.msra.mxu0 %v1014
    %3732 = vmatprep.subr.mxu0 %v1019
    %3733 = vmatpush1.msra.mxu0 %v1018
    %3734 = vmatprep.subr.mxu0 %v1023
    %3735 = vmatpush1.msra.mxu0 %v1022
    %3736 = vmatprep.subr.mxu0 %v1027
    %3737 = vmatpush1.msra.mxu0 %v1026
    %3738 = vmatprep.subr.mxu0 %v1031
    %3739 = vmatpush1.msra.mxu0 %v1030
    %3740 = vmatprep.subr.mxu0 %v1035
    %3741 = vmatpush1.msra.mxu0 %v1034
    %3742 = vmatprep.subr.mxu0 %v1039
    %3743 = vmatpush1.msra.mxu0 %v1038
    %3744 = vmatprep.subr.mxu0 %v1043
    %3745 = vmatpush1.msra.mxu0 %v1042
    %3746 = vmatprep.subr.mxu0 %v1047
    %3747 = vmatpush1.msra.mxu0 %v1046
    %3748 = vmatprep.subr.mxu0 %v1051
    %3749 = vmatpush1.msra.mxu0 %v1050
    %3750 = vmatprep.subr.mxu0 %v1055
    %3751 = vmatpush1.msra.mxu0 %v1054
    %3752 = vmatprep.subr.mxu0 0.0
    %3753 = vmatpush1.msra.mxu0 0.0
    %3754 = vmatprep.subr.mxu0 0.0
    %3755 = vmatpush1.msra.mxu0 0.0
    %3756 = vmatprep.subr.mxu0 0.0
    %3757 = vmatpush1.msra.mxu0 0.0
    %3758 = vmatprep.subr.mxu0 0.0
    %3759 = vmatpush1.msra.mxu0 0.0
    %3760 = vmatprep.subr.mxu0 0.0
    %3761 = vmatpush1.msra.mxu0 0.0
    %3762 = vmatprep.subr.mxu0 0.0
    %3763 = vmatpush1.msra.mxu0 0.0
    %3764 = vmatprep.subr.mxu0 0.0
    %3765 = vmatpush1.msra.mxu0 0.0
    %3766 = vmatprep.subr.mxu0 0.0
    %3767 = vmatpush1.msra.mxu0 0.0
    %3768 = vmatprep.subr.mxu0 0.0
    %3769 = vmatpush1.msra.mxu0 0.0
    %3770 = vmatprep.subr.mxu0 0.0
    %3771 = vmatpush1.msra.mxu0 0.0
    %3772 = vmatprep.subr.mxu0 0.0
    %3773 = vmatpush1.msra.mxu0 0.0
    %3774 = vmatprep.subr.mxu0 0.0
    %3775 = vmatpush1.msra.mxu0 0.0
    %3776 = vmatprep.subr.mxu0 0.0
    %3777 = vmatpush1.msra.mxu0 0.0
    %3778 = vmatprep.subr.mxu0 0.0
    %3779 = vmatpush1.msra.mxu0 0.0
    %3780 = vmatprep.subr.mxu0 0.0
    %3781 = vmatpush1.msra.mxu0 0.0
    %3782 = vmatprep.subr.mxu0 0.0
    %3783 = vmatpush1.msra.mxu0 0.0
    %3784 = vmatprep.mubr.f32.mxu0 0.0
    %3785 = vmatmul.mubr.f32.gmra.mrb[0].mxu0 %v3712
    %v3786 = vpop.f32.mrb[0].mxu0
    %v3787 = vadd.f32 0.0, %v3786
    %v3788 = vpop.f32.mrb[0].mxu0
    %v3789 = vadd.f32 0.0, %v3788
    %3790 = vdwg.mxu0
    %3791 = vmatprep.subr.mxu0 %v997
    %3792 = vmatpush1.msra.mxu0 %v996
    %3793 = vmatprep.subr.mxu0 %v1001
    %3794 = vmatpush1.msra.mxu0 %v1000
    %3795 = vmatprep.subr.mxu0 %v1005
    %3796 = vmatpush1.msra.mxu0 %v1004
    %3797 = vmatprep.subr.mxu0 %v1009
    %3798 = vmatpush1.msra.mxu0 %v1008
    %3799 = vmatprep.subr.mxu0 %v1013
    %3800 = vmatpush1.msra.mxu0 %v1012
    %3801 = vmatprep.subr.mxu0 %v1017
    %3802 = vmatpush1.msra.mxu0 %v1016
    %3803 = vmatprep.subr.mxu0 %v1021
    %3804 = vmatpush1.msra.mxu0 %v1020
    %3805 = vmatprep.subr.mxu0 %v1025
    %3806 = vmatpush1.msra.mxu0 %v1024
    %3807 = vmatprep.subr.mxu0 %v1029
    %3808 = vmatpush1.msra.mxu0 %v1028
    %3809 = vmatprep.subr.mxu0 %v1033
    %3810 = vmatpush1.msra.mxu0 %v1032
    %3811 = vmatprep.subr.mxu0 %v1037
    %3812 = vmatpush1.msra.mxu0 %v1036
    %3813 = vmatprep.subr.mxu0 %v1041
    %3814 = vmatpush1.msra.mxu0 %v1040
    %3815 = vmatprep.subr.mxu0 %v1045
    %3816 = vmatpush1.msra.mxu0 %v1044
    %3817 = vmatprep.subr.mxu0 %v1049
    %3818 = vmatpush1.msra.mxu0 %v1048
    %3819 = vmatprep.subr.mxu0 %v1053
    %3820 = vmatpush1.msra.mxu0 %v1052
    %3821 = vmatprep.subr.mxu0 %v1057
    %3822 = vmatpush1.msra.mxu0 %v1056
    %3823 = vmatprep.subr.mxu0 0.0
    %3824 = vmatpush1.msra.mxu0 0.0
    %3825 = vmatprep.subr.mxu0 0.0
    %3826 = vmatpush1.msra.mxu0 0.0
    %3827 = vmatprep.subr.mxu0 0.0
    %3828 = vmatpush1.msra.mxu0 0.0
    %3829 = vmatprep.subr.mxu0 0.0
    %3830 = vmatpush1.msra.mxu0 0.0
    %3831 = vmatprep.subr.mxu0 0.0
    %3832 = vmatpush1.msra.mxu0 0.0
    %3833 = vmatprep.subr.mxu0 0.0
    %3834 = vmatpush1.msra.mxu0 0.0
    %3835 = vmatprep.subr.mxu0 0.0
    %3836 = vmatpush1.msra.mxu0 0.0
    %3837 = vmatprep.subr.mxu0 0.0
    %3838 = vmatpush1.msra.mxu0 0.0
    %3839 = vmatprep.subr.mxu0 0.0
    %3840 = vmatpush1.msra.mxu0 0.0
    %3841 = vmatprep.subr.mxu0 0.0
    %3842 = vmatpush1.msra.mxu0 0.0
    %3843 = vmatprep.subr.mxu0 0.0
    %3844 = vmatpush1.msra.mxu0 0.0
    %3845 = vmatprep.subr.mxu0 0.0
    %3846 = vmatpush1.msra.mxu0 0.0
    %3847 = vmatprep.subr.mxu0 0.0
    %3848 = vmatpush1.msra.mxu0 0.0
    %3849 = vmatprep.subr.mxu0 0.0
    %3850 = vmatpush1.msra.mxu0 0.0
    %3851 = vmatprep.subr.mxu0 0.0
    %3852 = vmatpush1.msra.mxu0 0.0
    %3853 = vmatprep.subr.mxu0 0.0
    %3854 = vmatpush1.msra.mxu0 0.0
    %3855 = vmatprep.mubr.f32.mxu0 0.0
    %3856 = vmatmul.mubr.f32.gmra.mrb[0].mxu0 %v3712
    %v3857 = vpop.f32.mrb[0].mxu0
    %v3858 = vadd.f32 0.0, %v3857
    %v3859 = vpop.f32.mrb[0].mxu0
    %v3860 = vadd.f32 0.0, %v3859
    %3861 = vdwg.mxu0
    %v3862 = vadd.f32 %v3716, %v3787
    %v3863 = vadd.f32 %v3717, %v3789
    %v3864 = vadd.f32 %v3718, %v3858
    %v3865 = vadd.f32 %v3719, %v3860
    %v3866 = vxor.u32 %v3862, 2147483648
    %v3867 = vxor.u32 %v3863, 2147483648
    %v3868 = vxor.u32 %v3864, 2147483648
    %v3869 = vmul.f32 %v3866, 1.442695
    %v3870 = vpow.pop %v3869
    %v3871 = vmul.f32 %v3867, 1.442695
    %v3872 = vpow.pop %v3871
    %v3873 = vmul.f32 %v3868, 1.442695
    %v3874 = vpow.pop %v3873
    %v3875 = vadd.f32 %v3870, 1.0
    %v3876 = vadd.f32 %v3872, 1.0
    %v3877 = vadd.f32 %v3874, 1.0
    %v3878 = vrcp.pop %v3875
    %v3879 = vmul.f32 1.0, %v3878
    %v3880 = vrcp.pop %v3876
    %v3881 = vmul.f32 1.0, %v3880
    %v3882 = vrcp.pop %v3877
    %v3883 = vmul.f32 1.0, %v3882
    %v3884 = vtanh.pop %v3865
    %v3885 = vmul.f32 %v3881, %v3710
    %v3886 = vmul.f32 %v3879, %v3884
    %v3887 = vadd.f32 %v3885, %v3886
    %v3888 = vtanh.pop %v3887
    %v3889 = vmul.f32 %v3883, %v3888
    %s3890 = smul.u32 16, 4
    %s3891 = smul.addr %s3890, 8
    %s3892 = scalar_lea.vmem [#allocation2], %s3891
    %v3893 = vld [vmem:[%s3892] sm:$0xff]
    %v3894 = vld [vmem:[%s3892 + $0x8] sm:$0xff]
    %v3895 = vld [vmem:[%s3892 + $0x10] sm:$0xff]
    %v3896 = vld [vmem:[%s3892 + $0x18] sm:$0xff]
    %3897 = vmatprep.subr.mxu0 %v995
    %3898 = vmatpush1.msra.mxu0 %v994
    %3899 = vmatprep.subr.mxu0 %v999
    %3900 = vmatpush1.msra.mxu0 %v998
    %3901 = vmatprep.subr.mxu0 %v1003
    %3902 = vmatpush1.msra.mxu0 %v1002
    %3903 = vmatprep.subr.mxu0 %v1007
    %3904 = vmatpush1.msra.mxu0 %v1006
    %3905 = vmatprep.subr.mxu0 %v1011
    %3906 = vmatpush1.msra.mxu0 %v1010
    %3907 = vmatprep.subr.mxu0 %v1015
    %3908 = vmatpush1.msra.mxu0 %v1014
    %3909 = vmatprep.subr.mxu0 %v1019
    %3910 = vmatpush1.msra.mxu0 %v1018
    %3911 = vmatprep.subr.mxu0 %v1023
    %3912 = vmatpush1.msra.mxu0 %v1022
    %3913 = vmatprep.subr.mxu0 %v1027
    %3914 = vmatpush1.msra.mxu0 %v1026
    %3915 = vmatprep.subr.mxu0 %v1031
    %3916 = vmatpush1.msra.mxu0 %v1030
    %3917 = vmatprep.subr.mxu0 %v1035
    %3918 = vmatpush1.msra.mxu0 %v1034
    %3919 = vmatprep.subr.mxu0 %v1039
    %3920 = vmatpush1.msra.mxu0 %v1038
    %3921 = vmatprep.subr.mxu0 %v1043
    %3922 = vmatpush1.msra.mxu0 %v1042
    %3923 = vmatprep.subr.mxu0 %v1047
    %3924 = vmatpush1.msra.mxu0 %v1046
    %3925 = vmatprep.subr.mxu0 %v1051
    %3926 = vmatpush1.msra.mxu0 %v1050
    %3927 = vmatprep.subr.mxu0 %v1055
    %3928 = vmatpush1.msra.mxu0 %v1054
    %3929 = vmatprep.subr.mxu0 0.0
    %3930 = vmatpush1.msra.mxu0 0.0
    %3931 = vmatprep.subr.mxu0 0.0
    %3932 = vmatpush1.msra.mxu0 0.0
    %3933 = vmatprep.subr.mxu0 0.0
    %3934 = vmatpush1.msra.mxu0 0.0
    %3935 = vmatprep.subr.mxu0 0.0
    %3936 = vmatpush1.msra.mxu0 0.0
    %3937 = vmatprep.subr.mxu0 0.0
    %3938 = vmatpush1.msra.mxu0 0.0
    %3939 = vmatprep.subr.mxu0 0.0
    %3940 = vmatpush1.msra.mxu0 0.0
    %3941 = vmatprep.subr.mxu0 0.0
    %3942 = vmatpush1.msra.mxu0 0.0
    %3943 = vmatprep.subr.mxu0 0.0
    %3944 = vmatpush1.msra.mxu0 0.0
    %3945 = vmatprep.subr.mxu0 0.0
    %3946 = vmatpush1.msra.mxu0 0.0
    %3947 = vmatprep.subr.mxu0 0.0
    %3948 = vmatpush1.msra.mxu0 0.0
    %3949 = vmatprep.subr.mxu0 0.0
    %3950 = vmatpush1.msra.mxu0 0.0
    %3951 = vmatprep.subr.mxu0 0.0
    %3952 = vmatpush1.msra.mxu0 0.0
    %3953 = vmatprep.subr.mxu0 0.0
    %3954 = vmatpush1.msra.mxu0 0.0
    %3955 = vmatprep.subr.mxu0 0.0
    %3956 = vmatpush1.msra.mxu0 0.0
    %3957 = vmatprep.subr.mxu0 0.0
    %3958 = vmatpush1.msra.mxu0 0.0
    %3959 = vmatprep.subr.mxu0 0.0
    %3960 = vmatpush1.msra.mxu0 0.0
    %3961 = vmatprep.mubr.f32.mxu0 0.0
    %3962 = vmatmul.mubr.f32.gmra.mrb[0].mxu0 %v3889
    %v3963 = vpop.f32.mrb[0].mxu0
    %v3964 = vadd.f32 0.0, %v3963
    %v3965 = vpop.f32.mrb[0].mxu0
    %v3966 = vadd.f32 0.0, %v3965
    %3967 = vdwg.mxu0
    %3968 = vmatprep.subr.mxu0 %v997
    %3969 = vmatpush1.msra.mxu0 %v996
    %3970 = vmatprep.subr.mxu0 %v1001
    %3971 = vmatpush1.msra.mxu0 %v1000
    %3972 = vmatprep.subr.mxu0 %v1005
    %3973 = vmatpush1.msra.mxu0 %v1004
    %3974 = vmatprep.subr.mxu0 %v1009
    %3975 = vmatpush1.msra.mxu0 %v1008
    %3976 = vmatprep.subr.mxu0 %v1013
    %3977 = vmatpush1.msra.mxu0 %v1012
    %3978 = vmatprep.subr.mxu0 %v1017
    %3979 = vmatpush1.msra.mxu0 %v1016
    %3980 = vmatprep.subr.mxu0 %v1021
    %3981 = vmatpush1.msra.mxu0 %v1020
    %3982 = vmatprep.subr.mxu0 %v1025
    %3983 = vmatpush1.msra.mxu0 %v1024
    %3984 = vmatprep.subr.mxu0 %v1029
    %3985 = vmatpush1.msra.mxu0 %v1028
    %3986 = vmatprep.subr.mxu0 %v1033
    %3987 = vmatpush1.msra.mxu0 %v1032
    %3988 = vmatprep.subr.mxu0 %v1037
    %3989 = vmatpush1.msra.mxu0 %v1036
    %3990 = vmatprep.subr.mxu0 %v1041
    %3991 = vmatpush1.msra.mxu0 %v1040
    %3992 = vmatprep.subr.mxu0 %v1045
    %3993 = vmatpush1.msra.mxu0 %v1044
    %3994 = vmatprep.subr.mxu0 %v1049
    %3995 = vmatpush1.msra.mxu0 %v1048
    %3996 = vmatprep.subr.mxu0 %v1053
    %3997 = vmatpush1.msra.mxu0 %v1052
    %3998 = vmatprep.subr.mxu0 %v1057
    %3999 = vmatpush1.msra.mxu0 %v1056
    %4000 = vmatprep.subr.mxu0 0.0
    %4001 = vmatpush1.msra.mxu0 0.0
    %4002 = vmatprep.subr.mxu0 0.0
    %4003 = vmatpush1.msra.mxu0 0.0
    %4004 = vmatprep.subr.mxu0 0.0
    %4005 = vmatpush1.msra.mxu0 0.0
    %4006 = vmatprep.subr.mxu0 0.0
    %4007 = vmatpush1.msra.mxu0 0.0
    %4008 = vmatprep.subr.mxu0 0.0
    %4009 = vmatpush1.msra.mxu0 0.0
    %4010 = vmatprep.subr.mxu0 0.0
    %4011 = vmatpush1.msra.mxu0 0.0
    %4012 = vmatprep.subr.mxu0 0.0
    %4013 = vmatpush1.msra.mxu0 0.0
    %4014 = vmatprep.subr.mxu0 0.0
    %4015 = vmatpush1.msra.mxu0 0.0
    %4016 = vmatprep.subr.mxu0 0.0
    %4017 = vmatpush1.msra.mxu0 0.0
    %4018 = vmatprep.subr.mxu0 0.0
    %4019 = vmatpush1.msra.mxu0 0.0
    %4020 = vmatprep.subr.mxu0 0.0
    %4021 = vmatpush1.msra.mxu0 0.0
    %4022 = vmatprep.subr.mxu0 0.0
    %4023 = vmatpush1.msra.mxu0 0.0
    %4024 = vmatprep.subr.mxu0 0.0
    %4025 = vmatpush1.msra.mxu0 0.0
    %4026 = vmatprep.subr.mxu0 0.0
    %4027 = vmatpush1.msra.mxu0 0.0
    %4028 = vmatprep.subr.mxu0 0.0
    %4029 = vmatpush1.msra.mxu0 0.0
    %4030 = vmatprep.subr.mxu0 0.0
    %4031 = vmatpush1.msra.mxu0 0.0
    %4032 = vmatprep.mubr.f32.mxu0 0.0
    %4033 = vmatmul.mubr.f32.gmra.mrb[0].mxu0 %v3889
    %v4034 = vpop.f32.mrb[0].mxu0
    %v4035 = vadd.f32 0.0, %v4034
    %v4036 = vpop.f32.mrb[0].mxu0
    %v4037 = vadd.f32 0.0, %v4036
    %4038 = vdwg.mxu0
    %v4039 = vadd.f32 %v3893, %v3964
    %v4040 = vadd.f32 %v3894, %v3966
    %v4041 = vadd.f32 %v3895, %v4035
    %v4042 = vadd.f32 %v3896, %v4037
    %v4043 = vxor.u32 %v4039, 2147483648
    %v4044 = vxor.u32 %v4040, 2147483648
    %v4045 = vxor.u32 %v4041, 2147483648
    %v4046 = vmul.f32 %v4043, 1.442695
    %v4047 = vpow.pop %v4046
    %v4048 = vmul.f32 %v4044, 1.442695
    %v4049 = vpow.pop %v4048
    %v4050 = vmul.f32 %v4045, 1.442695
    %v4051 = vpow.pop %v4050
    %v4052 = vadd.f32 %v4047, 1.0
    %v4053 = vadd.f32 %v4049, 1.0
    %v4054 = vadd.f32 %v4051, 1.0
    %v4055 = vrcp.pop %v4052
    %v4056 = vmul.f32 1.0, %v4055
    %v4057 = vrcp.pop %v4053
    %v4058 = vmul.f32 1.0, %v4057
    %v4059 = vrcp.pop %v4054
    %v4060 = vmul.f32 1.0, %v4059
    %v4061 = vtanh.pop %v4042
    %v4062 = vmul.f32 %v4058, %v3887
    %v4063 = vmul.f32 %v4056, %v4061
    %v4064 = vadd.f32 %v4062, %v4063
    %v4065 = vtanh.pop %v4064
    %v4066 = vmul.f32 %v4060, %v4065
    %s4067 = smul.u32 17, 4
    %s4068 = smul.addr %s4067, 8
    %s4069 = scalar_lea.vmem [#allocation2], %s4068
    %v4070 = vld [vmem:[%s4069] sm:$0xff]
    %v4071 = vld [vmem:[%s4069 + $0x8] sm:$0xff]
    %v4072 = vld [vmem:[%s4069 + $0x10] sm:$0xff]
    %v4073 = vld [vmem:[%s4069 + $0x18] sm:$0xff]
    %4074 = vmatprep.subr.mxu0 %v995
    %4075 = vmatpush1.msra.mxu0 %v994
    %4076 = vmatprep.subr.mxu0 %v999
    %4077 = vmatpush1.msra.mxu0 %v998
    %4078 = vmatprep.subr.mxu0 %v1003
    %4079 = vmatpush1.msra.mxu0 %v1002
    %4080 = vmatprep.subr.mxu0 %v1007
    %4081 = vmatpush1.msra.mxu0 %v1006
    %4082 = vmatprep.subr.mxu0 %v1011
    %4083 = vmatpush1.msra.mxu0 %v1010
    %4084 = vmatprep.subr.mxu0 %v1015
    %4085 = vmatpush1.msra.mxu0 %v1014
    %4086 = vmatprep.subr.mxu0 %v1019
    %4087 = vmatpush1.msra.mxu0 %v1018
    %4088 = vmatprep.subr.mxu0 %v1023
    %4089 = vmatpush1.msra.mxu0 %v1022
    %4090 = vmatprep.subr.mxu0 %v1027
    %4091 = vmatpush1.msra.mxu0 %v1026
    %4092 = vmatprep.subr.mxu0 %v1031
    %4093 = vmatpush1.msra.mxu0 %v1030
    %4094 = vmatprep.subr.mxu0 %v1035
    %4095 = vmatpush1.msra.mxu0 %v1034
    %4096 = vmatprep.subr.mxu0 %v1039
    %4097 = vmatpush1.msra.mxu0 %v1038
    %4098 = vmatprep.subr.mxu0 %v1043
    %4099 = vmatpush1.msra.mxu0 %v1042
    %4100 = vmatprep.subr.mxu0 %v1047
    %4101 = vmatpush1.msra.mxu0 %v1046
    %4102 = vmatprep.subr.mxu0 %v1051
    %4103 = vmatpush1.msra.mxu0 %v1050
    %4104 = vmatprep.subr.mxu0 %v1055
    %4105 = vmatpush1.msra.mxu0 %v1054
    %4106 = vmatprep.subr.mxu0 0.0
    %4107 = vmatpush1.msra.mxu0 0.0
    %4108 = vmatprep.subr.mxu0 0.0
    %4109 = vmatpush1.msra.mxu0 0.0
    %4110 = vmatprep.subr.mxu0 0.0
    %4111 = vmatpush1.msra.mxu0 0.0
    %4112 = vmatprep.subr.mxu0 0.0
    %4113 = vmatpush1.msra.mxu0 0.0
    %4114 = vmatprep.subr.mxu0 0.0
    %4115 = vmatpush1.msra.mxu0 0.0
    %4116 = vmatprep.subr.mxu0 0.0
    %4117 = vmatpush1.msra.mxu0 0.0
    %4118 = vmatprep.subr.mxu0 0.0
    %4119 = vmatpush1.msra.mxu0 0.0
    %4120 = vmatprep.subr.mxu0 0.0
    %4121 = vmatpush1.msra.mxu0 0.0
    %4122 = vmatprep.subr.mxu0 0.0
    %4123 = vmatpush1.msra.mxu0 0.0
    %4124 = vmatprep.subr.mxu0 0.0
    %4125 = vmatpush1.msra.mxu0 0.0
    %4126 = vmatprep.subr.mxu0 0.0
    %4127 = vmatpush1.msra.mxu0 0.0
    %4128 = vmatprep.subr.mxu0 0.0
    %4129 = vmatpush1.msra.mxu0 0.0
    %4130 = vmatprep.subr.mxu0 0.0
    %4131 = vmatpush1.msra.mxu0 0.0
    %4132 = vmatprep.subr.mxu0 0.0
    %4133 = vmatpush1.msra.mxu0 0.0
    %4134 = vmatprep.subr.mxu0 0.0
    %4135 = vmatpush1.msra.mxu0 0.0
    %4136 = vmatprep.subr.mxu0 0.0
    %4137 = vmatpush1.msra.mxu0 0.0
    %4138 = vmatprep.mubr.f32.mxu0 0.0
    %4139 = vmatmul.mubr.f32.gmra.mrb[0].mxu0 %v4066
    %v4140 = vpop.f32.mrb[0].mxu0
    %v4141 = vadd.f32 0.0, %v4140
    %v4142 = vpop.f32.mrb[0].mxu0
    %v4143 = vadd.f32 0.0, %v4142
    %4144 = vdwg.mxu0
    %4145 = vmatprep.subr.mxu0 %v997
    %4146 = vmatpush1.msra.mxu0 %v996
    %4147 = vmatprep.subr.mxu0 %v1001
    %4148 = vmatpush1.msra.mxu0 %v1000
    %4149 = vmatprep.subr.mxu0 %v1005
    %4150 = vmatpush1.msra.mxu0 %v1004
    %4151 = vmatprep.subr.mxu0 %v1009
    %4152 = vmatpush1.msra.mxu0 %v1008
    %4153 = vmatprep.subr.mxu0 %v1013
    %4154 = vmatpush1.msra.mxu0 %v1012
    %4155 = vmatprep.subr.mxu0 %v1017
    %4156 = vmatpush1.msra.mxu0 %v1016
    %4157 = vmatprep.subr.mxu0 %v1021
    %4158 = vmatpush1.msra.mxu0 %v1020
    %4159 = vmatprep.subr.mxu0 %v1025
    %4160 = vmatpush1.msra.mxu0 %v1024
    %4161 = vmatprep.subr.mxu0 %v1029
    %4162 = vmatpush1.msra.mxu0 %v1028
    %4163 = vmatprep.subr.mxu0 %v1033
    %4164 = vmatpush1.msra.mxu0 %v1032
    %4165 = vmatprep.subr.mxu0 %v1037
    %4166 = vmatpush1.msra.mxu0 %v1036
    %4167 = vmatprep.subr.mxu0 %v1041
    %4168 = vmatpush1.msra.mxu0 %v1040
    %4169 = vmatprep.subr.mxu0 %v1045
    %4170 = vmatpush1.msra.mxu0 %v1044
    %4171 = vmatprep.subr.mxu0 %v1049
    %4172 = vmatpush1.msra.mxu0 %v1048
    %4173 = vmatprep.subr.mxu0 %v1053
    %4174 = vmatpush1.msra.mxu0 %v1052
    %4175 = vmatprep.subr.mxu0 %v1057
    %4176 = vmatpush1.msra.mxu0 %v1056
    %4177 = vmatprep.subr.mxu0 0.0
    %4178 = vmatpush1.msra.mxu0 0.0
    %4179 = vmatprep.subr.mxu0 0.0
    %4180 = vmatpush1.msra.mxu0 0.0
    %4181 = vmatprep.subr.mxu0 0.0
    %4182 = vmatpush1.msra.mxu0 0.0
    %4183 = vmatprep.subr.mxu0 0.0
    %4184 = vmatpush1.msra.mxu0 0.0
    %4185 = vmatprep.subr.mxu0 0.0
    %4186 = vmatpush1.msra.mxu0 0.0
    %4187 = vmatprep.subr.mxu0 0.0
    %4188 = vmatpush1.msra.mxu0 0.0
    %4189 = vmatprep.subr.mxu0 0.0
    %4190 = vmatpush1.msra.mxu0 0.0
    %4191 = vmatprep.subr.mxu0 0.0
    %4192 = vmatpush1.msra.mxu0 0.0
    %4193 = vmatprep.subr.mxu0 0.0
    %4194 = vmatpush1.msra.mxu0 0.0
    %4195 = vmatprep.subr.mxu0 0.0
    %4196 = vmatpush1.msra.mxu0 0.0
    %4197 = vmatprep.subr.mxu0 0.0
    %4198 = vmatpush1.msra.mxu0 0.0
    %4199 = vmatprep.subr.mxu0 0.0
    %4200 = vmatpush1.msra.mxu0 0.0
    %4201 = vmatprep.subr.mxu0 0.0
    %4202 = vmatpush1.msra.mxu0 0.0
    %4203 = vmatprep.subr.mxu0 0.0
    %4204 = vmatpush1.msra.mxu0 0.0
    %4205 = vmatprep.subr.mxu0 0.0
    %4206 = vmatpush1.msra.mxu0 0.0
    %4207 = vmatprep.subr.mxu0 0.0
    %4208 = vmatpush1.msra.mxu0 0.0
    %4209 = vmatprep.mubr.f32.mxu0 0.0
    %4210 = vmatmul.mubr.f32.gmra.mrb[0].mxu0 %v4066
    %v4211 = vpop.f32.mrb[0].mxu0
    %v4212 = vadd.f32 0.0, %v4211
    %v4213 = vpop.f32.mrb[0].mxu0
    %v4214 = vadd.f32 0.0, %v4213
    %4215 = vdwg.mxu0
    %v4216 = vadd.f32 %v4070, %v4141
    %v4217 = vadd.f32 %v4071, %v4143
    %v4218 = vadd.f32 %v4072, %v4212
    %v4219 = vadd.f32 %v4073, %v4214
    %v4220 = vxor.u32 %v4216, 2147483648
    %v4221 = vxor.u32 %v4217, 2147483648
    %v4222 = vxor.u32 %v4218, 2147483648
    %v4223 = vmul.f32 %v4220, 1.442695
    %v4224 = vpow.pop %v4223
    %v4225 = vmul.f32 %v4221, 1.442695
    %v4226 = vpow.pop %v4225
    %v4227 = vmul.f32 %v4222, 1.442695
    %v4228 = vpow.pop %v4227
    %v4229 = vadd.f32 %v4224, 1.0
    %v4230 = vadd.f32 %v4226, 1.0
    %v4231 = vadd.f32 %v4228, 1.0
    %v4232 = vrcp.pop %v4229
    %v4233 = vmul.f32 1.0, %v4232
    %v4234 = vrcp.pop %v4230
    %v4235 = vmul.f32 1.0, %v4234
    %v4236 = vrcp.pop %v4231
    %v4237 = vmul.f32 1.0, %v4236
    %v4238 = vtanh.pop %v4219
    %v4239 = vmul.f32 %v4235, %v4064
    %v4240 = vmul.f32 %v4233, %v4238
    %v4241 = vadd.f32 %v4239, %v4240
    %v4242 = vtanh.pop %v4241
    %v4243 = vmul.f32 %v4237, %v4242
    %s4244 = smul.u32 18, 4
    %s4245 = smul.addr %s4244, 8
    %s4246 = scalar_lea.vmem [#allocation2], %s4245
    %v4247 = vld [vmem:[%s4246] sm:$0xff]
    %v4248 = vld [vmem:[%s4246 + $0x8] sm:$0xff]
    %v4249 = vld [vmem:[%s4246 + $0x10] sm:$0xff]
    %v4250 = vld [vmem:[%s4246 + $0x18] sm:$0xff]
    %4251 = vmatprep.subr.mxu0 %v995
    %4252 = vmatpush1.msra.mxu0 %v994
    %4253 = vmatprep.subr.mxu0 %v999
    %4254 = vmatpush1.msra.mxu0 %v998
    %4255 = vmatprep.subr.mxu0 %v1003
    %4256 = vmatpush1.msra.mxu0 %v1002
    %4257 = vmatprep.subr.mxu0 %v1007
    %4258 = vmatpush1.msra.mxu0 %v1006
    %4259 = vmatprep.subr.mxu0 %v1011
    %4260 = vmatpush1.msra.mxu0 %v1010
    %4261 = vmatprep.subr.mxu0 %v1015
    %4262 = vmatpush1.msra.mxu0 %v1014
    %4263 = vmatprep.subr.mxu0 %v1019
    %4264 = vmatpush1.msra.mxu0 %v1018
    %4265 = vmatprep.subr.mxu0 %v1023
    %4266 = vmatpush1.msra.mxu0 %v1022
    %4267 = vmatprep.subr.mxu0 %v1027
    %4268 = vmatpush1.msra.mxu0 %v1026
    %4269 = vmatprep.subr.mxu0 %v1031
    %4270 = vmatpush1.msra.mxu0 %v1030
    %4271 = vmatprep.subr.mxu0 %v1035
    %4272 = vmatpush1.msra.mxu0 %v1034
    %4273 = vmatprep.subr.mxu0 %v1039
    %4274 = vmatpush1.msra.mxu0 %v1038
    %4275 = vmatprep.subr.mxu0 %v1043
    %4276 = vmatpush1.msra.mxu0 %v1042
    %4277 = vmatprep.subr.mxu0 %v1047
    %4278 = vmatpush1.msra.mxu0 %v1046
    %4279 = vmatprep.subr.mxu0 %v1051
    %4280 = vmatpush1.msra.mxu0 %v1050
    %4281 = vmatprep.subr.mxu0 %v1055
    %4282 = vmatpush1.msra.mxu0 %v1054
    %4283 = vmatprep.subr.mxu0 0.0
    %4284 = vmatpush1.msra.mxu0 0.0
    %4285 = vmatprep.subr.mxu0 0.0
    %4286 = vmatpush1.msra.mxu0 0.0
    %4287 = vmatprep.subr.mxu0 0.0
    %4288 = vmatpush1.msra.mxu0 0.0
    %4289 = vmatprep.subr.mxu0 0.0
    %4290 = vmatpush1.msra.mxu0 0.0
    %4291 = vmatprep.subr.mxu0 0.0
    %4292 = vmatpush1.msra.mxu0 0.0
    %4293 = vmatprep.subr.mxu0 0.0
    %4294 = vmatpush1.msra.mxu0 0.0
    %4295 = vmatprep.subr.mxu0 0.0
    %4296 = vmatpush1.msra.mxu0 0.0
    %4297 = vmatprep.subr.mxu0 0.0
    %4298 = vmatpush1.msra.mxu0 0.0
    %4299 = vmatprep.subr.mxu0 0.0
    %4300 = vmatpush1.msra.mxu0 0.0
    %4301 = vmatprep.subr.mxu0 0.0
    %4302 = vmatpush1.msra.mxu0 0.0
    %4303 = vmatprep.subr.mxu0 0.0
    %4304 = vmatpush1.msra.mxu0 0.0
    %4305 = vmatprep.subr.mxu0 0.0
    %4306 = vmatpush1.msra.mxu0 0.0
    %4307 = vmatprep.subr.mxu0 0.0
    %4308 = vmatpush1.msra.mxu0 0.0
    %4309 = vmatprep.subr.mxu0 0.0
    %4310 = vmatpush1.msra.mxu0 0.0
    %4311 = vmatprep.subr.mxu0 0.0
    %4312 = vmatpush1.msra.mxu0 0.0
    %4313 = vmatprep.subr.mxu0 0.0
    %4314 = vmatpush1.msra.mxu0 0.0
    %4315 = vmatprep.mubr.f32.mxu0 0.0
    %4316 = vmatmul.mubr.f32.gmra.mrb[0].mxu0 %v4243
    %v4317 = vpop.f32.mrb[0].mxu0
    %v4318 = vadd.f32 0.0, %v4317
    %v4319 = vpop.f32.mrb[0].mxu0
    %v4320 = vadd.f32 0.0, %v4319
    %4321 = vdwg.mxu0
    %4322 = vmatprep.subr.mxu0 %v997
    %4323 = vmatpush1.msra.mxu0 %v996
    %4324 = vmatprep.subr.mxu0 %v1001
    %4325 = vmatpush1.msra.mxu0 %v1000
    %4326 = vmatprep.subr.mxu0 %v1005
    %4327 = vmatpush1.msra.mxu0 %v1004
    %4328 = vmatprep.subr.mxu0 %v1009
    %4329 = vmatpush1.msra.mxu0 %v1008
    %4330 = vmatprep.subr.mxu0 %v1013
    %4331 = vmatpush1.msra.mxu0 %v1012
    %4332 = vmatprep.subr.mxu0 %v1017
    %4333 = vmatpush1.msra.mxu0 %v1016
    %4334 = vmatprep.subr.mxu0 %v1021
    %4335 = vmatpush1.msra.mxu0 %v1020
    %4336 = vmatprep.subr.mxu0 %v1025
    %4337 = vmatpush1.msra.mxu0 %v1024
    %4338 = vmatprep.subr.mxu0 %v1029
    %4339 = vmatpush1.msra.mxu0 %v1028
    %4340 = vmatprep.subr.mxu0 %v1033
    %4341 = vmatpush1.msra.mxu0 %v1032
    %4342 = vmatprep.subr.mxu0 %v1037
    %4343 = vmatpush1.msra.mxu0 %v1036
    %4344 = vmatprep.subr.mxu0 %v1041
    %4345 = vmatpush1.msra.mxu0 %v1040
    %4346 = vmatprep.subr.mxu0 %v1045
    %4347 = vmatpush1.msra.mxu0 %v1044
    %4348 = vmatprep.subr.mxu0 %v1049
    %4349 = vmatpush1.msra.mxu0 %v1048
    %4350 = vmatprep.subr.mxu0 %v1053
    %4351 = vmatpush1.msra.mxu0 %v1052
    %4352 = vmatprep.subr.mxu0 %v1057
    %4353 = vmatpush1.msra.mxu0 %v1056
    %4354 = vmatprep.subr.mxu0 0.0
    %4355 = vmatpush1.msra.mxu0 0.0
    %4356 = vmatprep.subr.mxu0 0.0
    %4357 = vmatpush1.msra.mxu0 0.0
    %4358 = vmatprep.subr.mxu0 0.0
    %4359 = vmatpush1.msra.mxu0 0.0
    %4360 = vmatprep.subr.mxu0 0.0
    %4361 = vmatpush1.msra.mxu0 0.0
    %4362 = vmatprep.subr.mxu0 0.0
    %4363 = vmatpush1.msra.mxu0 0.0
    %4364 = vmatprep.subr.mxu0 0.0
    %4365 = vmatpush1.msra.mxu0 0.0
    %4366 = vmatprep.subr.mxu0 0.0
    %4367 = vmatpush1.msra.mxu0 0.0
    %4368 = vmatprep.subr.mxu0 0.0
    %4369 = vmatpush1.msra.mxu0 0.0
    %4370 = vmatprep.subr.mxu0 0.0
    %4371 = vmatpush1.msra.mxu0 0.0
    %4372 = vmatprep.subr.mxu0 0.0
    %4373 = vmatpush1.msra.mxu0 0.0
    %4374 = vmatprep.subr.mxu0 0.0
    %4375 = vmatpush1.msra.mxu0 0.0
    %4376 = vmatprep.subr.mxu0 0.0
    %4377 = vmatpush1.msra.mxu0 0.0
    %4378 = vmatprep.subr.mxu0 0.0
    %4379 = vmatpush1.msra.mxu0 0.0
    %4380 = vmatprep.subr.mxu0 0.0
    %4381 = vmatpush1.msra.mxu0 0.0
    %4382 = vmatprep.subr.mxu0 0.0
    %4383 = vmatpush1.msra.mxu0 0.0
    %4384 = vmatprep.subr.mxu0 0.0
    %4385 = vmatpush1.msra.mxu0 0.0
    %4386 = vmatprep.mubr.f32.mxu0 0.0
    %4387 = vmatmul.mubr.f32.gmra.mrb[0].mxu0 %v4243
    %v4388 = vpop.f32.mrb[0].mxu0
    %v4389 = vadd.f32 0.0, %v4388
    %v4390 = vpop.f32.mrb[0].mxu0
    %v4391 = vadd.f32 0.0, %v4390
    %4392 = vdwg.mxu0
    %v4393 = vadd.f32 %v4247, %v4318
    %v4394 = vadd.f32 %v4248, %v4320
    %v4395 = vadd.f32 %v4249, %v4389
    %v4396 = vadd.f32 %v4250, %v4391
    %v4397 = vxor.u32 %v4393, 2147483648
    %v4398 = vxor.u32 %v4394, 2147483648
    %v4399 = vxor.u32 %v4395, 2147483648
    %v4400 = vmul.f32 %v4397, 1.442695
    %v4401 = vpow.pop %v4400
    %v4402 = vmul.f32 %v4398, 1.442695
    %v4403 = vpow.pop %v4402
    %v4404 = vmul.f32 %v4399, 1.442695
    %v4405 = vpow.pop %v4404
    %v4406 = vadd.f32 %v4401, 1.0
    %v4407 = vadd.f32 %v4403, 1.0
    %v4408 = vadd.f32 %v4405, 1.0
    %v4409 = vrcp.pop %v4406
    %v4410 = vmul.f32 1.0, %v4409
    %v4411 = vrcp.pop %v4407
    %v4412 = vmul.f32 1.0, %v4411
    %v4413 = vrcp.pop %v4408
    %v4414 = vmul.f32 1.0, %v4413
    %v4415 = vtanh.pop %v4396
    %v4416 = vmul.f32 %v4412, %v4241
    %v4417 = vmul.f32 %v4410, %v4415
    %v4418 = vadd.f32 %v4416, %v4417
    %v4419 = vtanh.pop %v4418
    %v4420 = vmul.f32 %v4414, %v4419
    %s4421 = smul.u32 19, 4
    %s4422 = smul.addr %s4421, 8
    %s4423 = scalar_lea.vmem [#allocation2], %s4422
    %v4424 = vld [vmem:[%s4423] sm:$0xff]
    %v4425 = vld [vmem:[%s4423 + $0x8] sm:$0xff]
    %v4426 = vld [vmem:[%s4423 + $0x10] sm:$0xff]
    %v4427 = vld [vmem:[%s4423 + $0x18] sm:$0xff]
    %4428 = vmatprep.subr.mxu0 %v995
    %4429 = vmatpush1.msra.mxu0 %v994
    %4430 = vmatprep.subr.mxu0 %v999
    %4431 = vmatpush1.msra.mxu0 %v998
    %4432 = vmatprep.subr.mxu0 %v1003
    %4433 = vmatpush1.msra.mxu0 %v1002
    %4434 = vmatprep.subr.mxu0 %v1007
    %4435 = vmatpush1.msra.mxu0 %v1006
    %4436 = vmatprep.subr.mxu0 %v1011
    %4437 = vmatpush1.msra.mxu0 %v1010
    %4438 = vmatprep.subr.mxu0 %v1015
    %4439 = vmatpush1.msra.mxu0 %v1014
    %4440 = vmatprep.subr.mxu0 %v1019
    %4441 = vmatpush1.msra.mxu0 %v1018
    %4442 = vmatprep.subr.mxu0 %v1023
    %4443 = vmatpush1.msra.mxu0 %v1022
    %4444 = vmatprep.subr.mxu0 %v1027
    %4445 = vmatpush1.msra.mxu0 %v1026
    %4446 = vmatprep.subr.mxu0 %v1031
    %4447 = vmatpush1.msra.mxu0 %v1030
    %4448 = vmatprep.subr.mxu0 %v1035
    %4449 = vmatpush1.msra.mxu0 %v1034
    %4450 = vmatprep.subr.mxu0 %v1039
    %4451 = vmatpush1.msra.mxu0 %v1038
    %4452 = vmatprep.subr.mxu0 %v1043
    %4453 = vmatpush1.msra.mxu0 %v1042
    %4454 = vmatprep.subr.mxu0 %v1047
    %4455 = vmatpush1.msra.mxu0 %v1046
    %4456 = vmatprep.subr.mxu0 %v1051
    %4457 = vmatpush1.msra.mxu0 %v1050
    %4458 = vmatprep.subr.mxu0 %v1055
    %4459 = vmatpush1.msra.mxu0 %v1054
    %4460 = vmatprep.subr.mxu0 0.0
    %4461 = vmatpush1.msra.mxu0 0.0
    %4462 = vmatprep.subr.mxu0 0.0
    %4463 = vmatpush1.msra.mxu0 0.0
    %4464 = vmatprep.subr.mxu0 0.0
    %4465 = vmatpush1.msra.mxu0 0.0
    %4466 = vmatprep.subr.mxu0 0.0
    %4467 = vmatpush1.msra.mxu0 0.0
    %4468 = vmatprep.subr.mxu0 0.0
    %4469 = vmatpush1.msra.mxu0 0.0
    %4470 = vmatprep.subr.mxu0 0.0
    %4471 = vmatpush1.msra.mxu0 0.0
    %4472 = vmatprep.subr.mxu0 0.0
    %4473 = vmatpush1.msra.mxu0 0.0
    %4474 = vmatprep.subr.mxu0 0.0
    %4475 = vmatpush1.msra.mxu0 0.0
    %4476 = vmatprep.subr.mxu0 0.0
    %4477 = vmatpush1.msra.mxu0 0.0
    %4478 = vmatprep.subr.mxu0 0.0
    %4479 = vmatpush1.msra.mxu0 0.0
    %4480 = vmatprep.subr.mxu0 0.0
    %4481 = vmatpush1.msra.mxu0 0.0
    %4482 = vmatprep.subr.mxu0 0.0
    %4483 = vmatpush1.msra.mxu0 0.0
    %4484 = vmatprep.subr.mxu0 0.0
    %4485 = vmatpush1.msra.mxu0 0.0
    %4486 = vmatprep.subr.mxu0 0.0
    %4487 = vmatpush1.msra.mxu0 0.0
    %4488 = vmatprep.subr.mxu0 0.0
    %4489 = vmatpush1.msra.mxu0 0.0
    %4490 = vmatprep.subr.mxu0 0.0
    %4491 = vmatpush1.msra.mxu0 0.0
    %4492 = vmatprep.mubr.f32.mxu0 0.0
    %4493 = vmatmul.mubr.f32.gmra.mrb[0].mxu0 %v4420
    %v4494 = vpop.f32.mrb[0].mxu0
    %v4495 = vadd.f32 0.0, %v4494
    %v4496 = vpop.f32.mrb[0].mxu0
    %v4497 = vadd.f32 0.0, %v4496
    %4498 = vdwg.mxu0
    %4499 = vmatprep.subr.mxu0 %v997
    %4500 = vmatpush1.msra.mxu0 %v996
    %4501 = vmatprep.subr.mxu0 %v1001
    %4502 = vmatpush1.msra.mxu0 %v1000
    %4503 = vmatprep.subr.mxu0 %v1005
    %4504 = vmatpush1.msra.mxu0 %v1004
    %4505 = vmatprep.subr.mxu0 %v1009
    %4506 = vmatpush1.msra.mxu0 %v1008
    %4507 = vmatprep.subr.mxu0 %v1013
    %4508 = vmatpush1.msra.mxu0 %v1012
    %4509 = vmatprep.subr.mxu0 %v1017
    %4510 = vmatpush1.msra.mxu0 %v1016
    %4511 = vmatprep.subr.mxu0 %v1021
    %4512 = vmatpush1.msra.mxu0 %v1020
    %4513 = vmatprep.subr.mxu0 %v1025
    %4514 = vmatpush1.msra.mxu0 %v1024
    %4515 = vmatprep.subr.mxu0 %v1029
    %4516 = vmatpush1.msra.mxu0 %v1028
    %4517 = vmatprep.subr.mxu0 %v1033
    %4518 = vmatpush1.msra.mxu0 %v1032
    %4519 = vmatprep.subr.mxu0 %v1037
    %4520 = vmatpush1.msra.mxu0 %v1036
    %4521 = vmatprep.subr.mxu0 %v1041
    %4522 = vmatpush1.msra.mxu0 %v1040
    %4523 = vmatprep.subr.mxu0 %v1045
    %4524 = vmatpush1.msra.mxu0 %v1044
    %4525 = vmatprep.subr.mxu0 %v1049
    %4526 = vmatpush1.msra.mxu0 %v1048
    %4527 = vmatprep.subr.mxu0 %v1053
    %4528 = vmatpush1.msra.mxu0 %v1052
    %4529 = vmatprep.subr.mxu0 %v1057
    %4530 = vmatpush1.msra.mxu0 %v1056
    %4531 = vmatprep.subr.mxu0 0.0
    %4532 = vmatpush1.msra.mxu0 0.0
    %4533 = vmatprep.subr.mxu0 0.0
    %4534 = vmatpush1.msra.mxu0 0.0
    %4535 = vmatprep.subr.mxu0 0.0
    %4536 = vmatpush1.msra.mxu0 0.0
    %4537 = vmatprep.subr.mxu0 0.0
    %4538 = vmatpush1.msra.mxu0 0.0
    %4539 = vmatprep.subr.mxu0 0.0
    %4540 = vmatpush1.msra.mxu0 0.0
    %4541 = vmatprep.subr.mxu0 0.0
    %4542 = vmatpush1.msra.mxu0 0.0
    %4543 = vmatprep.subr.mxu0 0.0
    %4544 = vmatpush1.msra.mxu0 0.0
    %4545 = vmatprep.subr.mxu0 0.0
    %4546 = vmatpush1.msra.mxu0 0.0
    %4547 = vmatprep.subr.mxu0 0.0
    %4548 = vmatpush1.msra.mxu0 0.0
    %4549 = vmatprep.subr.mxu0 0.0
    %4550 = vmatpush1.msra.mxu0 0.0
    %4551 = vmatprep.subr.mxu0 0.0
    %4552 = vmatpush1.msra.mxu0 0.0
    %4553 = vmatprep.subr.mxu0 0.0
    %4554 = vmatpush1.msra.mxu0 0.0
    %4555 = vmatprep.subr.mxu0 0.0
    %4556 = vmatpush1.msra.mxu0 0.0
    %4557 = vmatprep.subr.mxu0 0.0
    %4558 = vmatpush1.msra.mxu0 0.0
    %4559 = vmatprep.subr.mxu0 0.0
    %4560 = vmatpush1.msra.mxu0 0.0
    %4561 = vmatprep.subr.mxu0 0.0
    %4562 = vmatpush1.msra.mxu0 0.0
    %4563 = vmatprep.mubr.f32.mxu0 0.0
    %4564 = vmatmul.mubr.f32.gmra.mrb[0].mxu0 %v4420
    %v4565 = vpop.f32.mrb[0].mxu0
    %v4566 = vadd.f32 0.0, %v4565
    %v4567 = vpop.f32.mrb[0].mxu0
    %v4568 = vadd.f32 0.0, %v4567
    %4569 = vdwg.mxu0
    %v4570 = vadd.f32 %v4424, %v4495
    %v4571 = vadd.f32 %v4425, %v4497
    %v4572 = vadd.f32 %v4426, %v4566
    %v4573 = vadd.f32 %v4427, %v4568
    %v4574 = vxor.u32 %v4570, 2147483648
    %v4575 = vxor.u32 %v4571, 2147483648
    %v4576 = vxor.u32 %v4572, 2147483648
    %v4577 = vmul.f32 %v4574, 1.442695
    %v4578 = vpow.pop %v4577
    %v4579 = vmul.f32 %v4575, 1.442695
    %v4580 = vpow.pop %v4579
    %v4581 = vmul.f32 %v4576, 1.442695
    %v4582 = vpow.pop %v4581
    %v4583 = vadd.f32 %v4578, 1.0
    %v4584 = vadd.f32 %v4580, 1.0
    %v4585 = vadd.f32 %v4582, 1.0
    %v4586 = vrcp.pop %v4583
    %v4587 = vmul.f32 1.0, %v4586
    %v4588 = vrcp.pop %v4584
    %v4589 = vmul.f32 1.0, %v4588
    %v4590 = vrcp.pop %v4585
    %v4591 = vmul.f32 1.0, %v4590
    %v4592 = vtanh.pop %v4573
    %v4593 = vmul.f32 %v4589, %v4418
    %v4594 = vmul.f32 %v4587, %v4592
    %v4595 = vadd.f32 %v4593, %v4594
    %v4596 = vtanh.pop %v4595
    %v4597 = vmul.f32 %v4591, %v4596
    %s4598 = smul.u32 20, 4
    %s4599 = smul.addr %s4598, 8
    %s4600 = scalar_lea.vmem [#allocation2], %s4599
    %v4601 = vld [vmem:[%s4600] sm:$0xff]
    %v4602 = vld [vmem:[%s4600 + $0x8] sm:$0xff]
    %v4603 = vld [vmem:[%s4600 + $0x10] sm:$0xff]
    %v4604 = vld [vmem:[%s4600 + $0x18] sm:$0xff]
    %4605 = vmatprep.subr.mxu0 %v995
    %4606 = vmatpush1.msra.mxu0 %v994
    %4607 = vmatprep.subr.mxu0 %v999
    %4608 = vmatpush1.msra.mxu0 %v998
    %4609 = vmatprep.subr.mxu0 %v1003
    %4610 = vmatpush1.msra.mxu0 %v1002
    %4611 = vmatprep.subr.mxu0 %v1007
    %4612 = vmatpush1.msra.mxu0 %v1006
    %4613 = vmatprep.subr.mxu0 %v1011
    %4614 = vmatpush1.msra.mxu0 %v1010
    %4615 = vmatprep.subr.mxu0 %v1015
    %4616 = vmatpush1.msra.mxu0 %v1014
    %4617 = vmatprep.subr.mxu0 %v1019
    %4618 = vmatpush1.msra.mxu0 %v1018
    %4619 = vmatprep.subr.mxu0 %v1023
    %4620 = vmatpush1.msra.mxu0 %v1022
    %4621 = vmatprep.subr.mxu0 %v1027
    %4622 = vmatpush1.msra.mxu0 %v1026
    %4623 = vmatprep.subr.mxu0 %v1031
    %4624 = vmatpush1.msra.mxu0 %v1030
    %4625 = vmatprep.subr.mxu0 %v1035
    %4626 = vmatpush1.msra.mxu0 %v1034
    %4627 = vmatprep.subr.mxu0 %v1039
    %4628 = vmatpush1.msra.mxu0 %v1038
    %4629 = vmatprep.subr.mxu0 %v1043
    %4630 = vmatpush1.msra.mxu0 %v1042
    %4631 = vmatprep.subr.mxu0 %v1047
    %4632 = vmatpush1.msra.mxu0 %v1046
    %4633 = vmatprep.subr.mxu0 %v1051
    %4634 = vmatpush1.msra.mxu0 %v1050
    %4635 = vmatprep.subr.mxu0 %v1055
    %4636 = vmatpush1.msra.mxu0 %v1054
    %4637 = vmatprep.subr.mxu0 0.0
    %4638 = vmatpush1.msra.mxu0 0.0
    %4639 = vmatprep.subr.mxu0 0.0
    %4640 = vmatpush1.msra.mxu0 0.0
    %4641 = vmatprep.subr.mxu0 0.0
    %4642 = vmatpush1.msra.mxu0 0.0
    %4643 = vmatprep.subr.mxu0 0.0
    %4644 = vmatpush1.msra.mxu0 0.0
    %4645 = vmatprep.subr.mxu0 0.0
    %4646 = vmatpush1.msra.mxu0 0.0
    %4647 = vmatprep.subr.mxu0 0.0
    %4648 = vmatpush1.msra.mxu0 0.0
    %4649 = vmatprep.subr.mxu0 0.0
    %4650 = vmatpush1.msra.mxu0 0.0
    %4651 = vmatprep.subr.mxu0 0.0
    %4652 = vmatpush1.msra.mxu0 0.0
    %4653 = vmatprep.subr.mxu0 0.0
    %4654 = vmatpush1.msra.mxu0 0.0
    %4655 = vmatprep.subr.mxu0 0.0
    %4656 = vmatpush1.msra.mxu0 0.0
    %4657 = vmatprep.subr.mxu0 0.0
    %4658 = vmatpush1.msra.mxu0 0.0
    %4659 = vmatprep.subr.mxu0 0.0
    %4660 = vmatpush1.msra.mxu0 0.0
    %4661 = vmatprep.subr.mxu0 0.0
    %4662 = vmatpush1.msra.mxu0 0.0
    %4663 = vmatprep.subr.mxu0 0.0
    %4664 = vmatpush1.msra.mxu0 0.0
    %4665 = vmatprep.subr.mxu0 0.0
    %4666 = vmatpush1.msra.mxu0 0.0
    %4667 = vmatprep.subr.mxu0 0.0
    %4668 = vmatpush1.msra.mxu0 0.0
    %4669 = vmatprep.mubr.f32.mxu0 0.0
    %4670 = vmatmul.mubr.f32.gmra.mrb[0].mxu0 %v4597
    %v4671 = vpop.f32.mrb[0].mxu0
    %v4672 = vadd.f32 0.0, %v4671
    %v4673 = vpop.f32.mrb[0].mxu0
    %v4674 = vadd.f32 0.0, %v4673
    %4675 = vdwg.mxu0
    %4676 = vmatprep.subr.mxu0 %v997
    %4677 = vmatpush1.msra.mxu0 %v996
    %4678 = vmatprep.subr.mxu0 %v1001
    %4679 = vmatpush1.msra.mxu0 %v1000
    %4680 = vmatprep.subr.mxu0 %v1005
    %4681 = vmatpush1.msra.mxu0 %v1004
    %4682 = vmatprep.subr.mxu0 %v1009
    %4683 = vmatpush1.msra.mxu0 %v1008
    %4684 = vmatprep.subr.mxu0 %v1013
    %4685 = vmatpush1.msra.mxu0 %v1012
    %4686 = vmatprep.subr.mxu0 %v1017
    %4687 = vmatpush1.msra.mxu0 %v1016
    %4688 = vmatprep.subr.mxu0 %v1021
    %4689 = vmatpush1.msra.mxu0 %v1020
    %4690 = vmatprep.subr.mxu0 %v1025
    %4691 = vmatpush1.msra.mxu0 %v1024
    %4692 = vmatprep.subr.mxu0 %v1029
    %4693 = vmatpush1.msra.mxu0 %v1028
    %4694 = vmatprep.subr.mxu0 %v1033
    %4695 = vmatpush1.msra.mxu0 %v1032
    %4696 = vmatprep.subr.mxu0 %v1037
    %4697 = vmatpush1.msra.mxu0 %v1036
    %4698 = vmatprep.subr.mxu0 %v1041
    %4699 = vmatpush1.msra.mxu0 %v1040
    %4700 = vmatprep.subr.mxu0 %v1045
    %4701 = vmatpush1.msra.mxu0 %v1044
    %4702 = vmatprep.subr.mxu0 %v1049
    %4703 = vmatpush1.msra.mxu0 %v1048
    %4704 = vmatprep.subr.mxu0 %v1053
    %4705 = vmatpush1.msra.mxu0 %v1052
    %4706 = vmatprep.subr.mxu0 %v1057
    %4707 = vmatpush1.msra.mxu0 %v1056
    %4708 = vmatprep.subr.mxu0 0.0
    %4709 = vmatpush1.msra.mxu0 0.0
    %4710 = vmatprep.subr.mxu0 0.0
    %4711 = vmatpush1.msra.mxu0 0.0
    %4712 = vmatprep.subr.mxu0 0.0
    %4713 = vmatpush1.msra.mxu0 0.0
    %4714 = vmatprep.subr.mxu0 0.0
    %4715 = vmatpush1.msra.mxu0 0.0
    %4716 = vmatprep.subr.mxu0 0.0
    %4717 = vmatpush1.msra.mxu0 0.0
    %4718 = vmatprep.subr.mxu0 0.0
    %4719 = vmatpush1.msra.mxu0 0.0
    %4720 = vmatprep.subr.mxu0 0.0
    %4721 = vmatpush1.msra.mxu0 0.0
    %4722 = vmatprep.subr.mxu0 0.0
    %4723 = vmatpush1.msra.mxu0 0.0
    %4724 = vmatprep.subr.mxu0 0.0
    %4725 = vmatpush1.msra.mxu0 0.0
    %4726 = vmatprep.subr.mxu0 0.0
    %4727 = vmatpush1.msra.mxu0 0.0
    %4728 = vmatprep.subr.mxu0 0.0
    %4729 = vmatpush1.msra.mxu0 0.0
    %4730 = vmatprep.subr.mxu0 0.0
    %4731 = vmatpush1.msra.mxu0 0.0
    %4732 = vmatprep.subr.mxu0 0.0
    %4733 = vmatpush1.msra.mxu0 0.0
    %4734 = vmatprep.subr.mxu0 0.0
    %4735 = vmatpush1.msra.mxu0 0.0
    %4736 = vmatprep.subr.mxu0 0.0
    %4737 = vmatpush1.msra.mxu0 0.0
    %4738 = vmatprep.subr.mxu0 0.0
    %4739 = vmatpush1.msra.mxu0 0.0
    %4740 = vmatprep.mubr.f32.mxu0 0.0
    %4741 = vmatmul.mubr.f32.gmra.mrb[0].mxu0 %v4597
    %v4742 = vpop.f32.mrb[0].mxu0
    %v4743 = vadd.f32 0.0, %v4742
    %v4744 = vpop.f32.mrb[0].mxu0
    %v4745 = vadd.f32 0.0, %v4744
    %4746 = vdwg.mxu0
    %v4747 = vadd.f32 %v4601, %v4672
    %v4748 = vadd.f32 %v4602, %v4674
    %v4749 = vadd.f32 %v4603, %v4743
    %v4750 = vadd.f32 %v4604, %v4745
    %v4751 = vxor.u32 %v4747, 2147483648
    %v4752 = vxor.u32 %v4748, 2147483648
    %v4753 = vxor.u32 %v4749, 2147483648
    %v4754 = vmul.f32 %v4751, 1.442695
    %v4755 = vpow.pop %v4754
    %v4756 = vmul.f32 %v4752, 1.442695
    %v4757 = vpow.pop %v4756
    %v4758 = vmul.f32 %v4753, 1.442695
    %v4759 = vpow.pop %v4758
    %v4760 = vadd.f32 %v4755, 1.0
    %v4761 = vadd.f32 %v4757, 1.0
    %v4762 = vadd.f32 %v4759, 1.0
    %v4763 = vrcp.pop %v4760
    %v4764 = vmul.f32 1.0, %v4763
    %v4765 = vrcp.pop %v4761
    %v4766 = vmul.f32 1.0, %v4765
    %v4767 = vrcp.pop %v4762
    %v4768 = vmul.f32 1.0, %v4767
    %v4769 = vtanh.pop %v4750
    %v4770 = vmul.f32 %v4766, %v4595
    %v4771 = vmul.f32 %v4764, %v4769
    %v4772 = vadd.f32 %v4770, %v4771
    %v4773 = vtanh.pop %v4772
    %v4774 = vmul.f32 %v4768, %v4773
    %s4775 = smul.u32 21, 4
    %s4776 = smul.addr %s4775, 8
    %s4777 = scalar_lea.vmem [#allocation2], %s4776
    %v4778 = vld [vmem:[%s4777] sm:$0xff]
    %v4779 = vld [vmem:[%s4777 + $0x8] sm:$0xff]
    %v4780 = vld [vmem:[%s4777 + $0x10] sm:$0xff]
    %v4781 = vld [vmem:[%s4777 + $0x18] sm:$0xff]
    %4782 = vmatprep.subr.mxu0 %v995
    %4783 = vmatpush1.msra.mxu0 %v994
    %4784 = vmatprep.subr.mxu0 %v999
    %4785 = vmatpush1.msra.mxu0 %v998
    %4786 = vmatprep.subr.mxu0 %v1003
    %4787 = vmatpush1.msra.mxu0 %v1002
    %4788 = vmatprep.subr.mxu0 %v1007
    %4789 = vmatpush1.msra.mxu0 %v1006
    %4790 = vmatprep.subr.mxu0 %v1011
    %4791 = vmatpush1.msra.mxu0 %v1010
    %4792 = vmatprep.subr.mxu0 %v1015
    %4793 = vmatpush1.msra.mxu0 %v1014
    %4794 = vmatprep.subr.mxu0 %v1019
    %4795 = vmatpush1.msra.mxu0 %v1018
    %4796 = vmatprep.subr.mxu0 %v1023
    %4797 = vmatpush1.msra.mxu0 %v1022
    %4798 = vmatprep.subr.mxu0 %v1027
    %4799 = vmatpush1.msra.mxu0 %v1026
    %4800 = vmatprep.subr.mxu0 %v1031
    %4801 = vmatpush1.msra.mxu0 %v1030
    %4802 = vmatprep.subr.mxu0 %v1035
    %4803 = vmatpush1.msra.mxu0 %v1034
    %4804 = vmatprep.subr.mxu0 %v1039
    %4805 = vmatpush1.msra.mxu0 %v1038
    %4806 = vmatprep.subr.mxu0 %v1043
    %4807 = vmatpush1.msra.mxu0 %v1042
    %4808 = vmatprep.subr.mxu0 %v1047
    %4809 = vmatpush1.msra.mxu0 %v1046
    %4810 = vmatprep.subr.mxu0 %v1051
    %4811 = vmatpush1.msra.mxu0 %v1050
    %4812 = vmatprep.subr.mxu0 %v1055
    %4813 = vmatpush1.msra.mxu0 %v1054
    %4814 = vmatprep.subr.mxu0 0.0
    %4815 = vmatpush1.msra.mxu0 0.0
    %4816 = vmatprep.subr.mxu0 0.0
    %4817 = vmatpush1.msra.mxu0 0.0
    %4818 = vmatprep.subr.mxu0 0.0
    %4819 = vmatpush1.msra.mxu0 0.0
    %4820 = vmatprep.subr.mxu0 0.0
    %4821 = vmatpush1.msra.mxu0 0.0
    %4822 = vmatprep.subr.mxu0 0.0
    %4823 = vmatpush1.msra.mxu0 0.0
    %4824 = vmatprep.subr.mxu0 0.0
    %4825 = vmatpush1.msra.mxu0 0.0
    %4826 = vmatprep.subr.mxu0 0.0
    %4827 = vmatpush1.msra.mxu0 0.0
    %4828 = vmatprep.subr.mxu0 0.0
    %4829 = vmatpush1.msra.mxu0 0.0
    %4830 = vmatprep.subr.mxu0 0.0
    %4831 = vmatpush1.msra.mxu0 0.0
    %4832 = vmatprep.subr.mxu0 0.0
    %4833 = vmatpush1.msra.mxu0 0.0
    %4834 = vmatprep.subr.mxu0 0.0
    %4835 = vmatpush1.msra.mxu0 0.0
    %4836 = vmatprep.subr.mxu0 0.0
    %4837 = vmatpush1.msra.mxu0 0.0
    %4838 = vmatprep.subr.mxu0 0.0
    %4839 = vmatpush1.msra.mxu0 0.0
    %4840 = vmatprep.subr.mxu0 0.0
    %4841 = vmatpush1.msra.mxu0 0.0
    %4842 = vmatprep.subr.mxu0 0.0
    %4843 = vmatpush1.msra.mxu0 0.0
    %4844 = vmatprep.subr.mxu0 0.0
    %4845 = vmatpush1.msra.mxu0 0.0
    %4846 = vmatprep.mubr.f32.mxu0 0.0
    %4847 = vmatmul.mubr.f32.gmra.mrb[0].mxu0 %v4774
    %v4848 = vpop.f32.mrb[0].mxu0
    %v4849 = vadd.f32 0.0, %v4848
    %v4850 = vpop.f32.mrb[0].mxu0
    %v4851 = vadd.f32 0.0, %v4850
    %4852 = vdwg.mxu0
    %4853 = vmatprep.subr.mxu0 %v997
    %4854 = vmatpush1.msra.mxu0 %v996
    %4855 = vmatprep.subr.mxu0 %v1001
    %4856 = vmatpush1.msra.mxu0 %v1000
    %4857 = vmatprep.subr.mxu0 %v1005
    %4858 = vmatpush1.msra.mxu0 %v1004
    %4859 = vmatprep.subr.mxu0 %v1009
    %4860 = vmatpush1.msra.mxu0 %v1008
    %4861 = vmatprep.subr.mxu0 %v1013
    %4862 = vmatpush1.msra.mxu0 %v1012
    %4863 = vmatprep.subr.mxu0 %v1017
    %4864 = vmatpush1.msra.mxu0 %v1016
    %4865 = vmatprep.subr.mxu0 %v1021
    %4866 = vmatpush1.msra.mxu0 %v1020
    %4867 = vmatprep.subr.mxu0 %v1025
    %4868 = vmatpush1.msra.mxu0 %v1024
    %4869 = vmatprep.subr.mxu0 %v1029
    %4870 = vmatpush1.msra.mxu0 %v1028
    %4871 = vmatprep.subr.mxu0 %v1033
    %4872 = vmatpush1.msra.mxu0 %v1032
    %4873 = vmatprep.subr.mxu0 %v1037
    %4874 = vmatpush1.msra.mxu0 %v1036
    %4875 = vmatprep.subr.mxu0 %v1041
    %4876 = vmatpush1.msra.mxu0 %v1040
    %4877 = vmatprep.subr.mxu0 %v1045
    %4878 = vmatpush1.msra.mxu0 %v1044
    %4879 = vmatprep.subr.mxu0 %v1049
    %4880 = vmatpush1.msra.mxu0 %v1048
    %4881 = vmatprep.subr.mxu0 %v1053
    %4882 = vmatpush1.msra.mxu0 %v1052
    %4883 = vmatprep.subr.mxu0 %v1057
    %4884 = vmatpush1.msra.mxu0 %v1056
    %4885 = vmatprep.subr.mxu0 0.0
    %4886 = vmatpush1.msra.mxu0 0.0
    %4887 = vmatprep.subr.mxu0 0.0
    %4888 = vmatpush1.msra.mxu0 0.0
    %4889 = vmatprep.subr.mxu0 0.0
    %4890 = vmatpush1.msra.mxu0 0.0
    %4891 = vmatprep.subr.mxu0 0.0
    %4892 = vmatpush1.msra.mxu0 0.0
    %4893 = vmatprep.subr.mxu0 0.0
    %4894 = vmatpush1.msra.mxu0 0.0
    %4895 = vmatprep.subr.mxu0 0.0
    %4896 = vmatpush1.msra.mxu0 0.0
    %4897 = vmatprep.subr.mxu0 0.0
    %4898 = vmatpush1.msra.mxu0 0.0
    %4899 = vmatprep.subr.mxu0 0.0
    %4900 = vmatpush1.msra.mxu0 0.0
    %4901 = vmatprep.subr.mxu0 0.0
    %4902 = vmatpush1.msra.mxu0 0.0
    %4903 = vmatprep.subr.mxu0 0.0
    %4904 = vmatpush1.msra.mxu0 0.0
    %4905 = vmatprep.subr.mxu0 0.0
    %4906 = vmatpush1.msra.mxu0 0.0
    %4907 = vmatprep.subr.mxu0 0.0
    %4908 = vmatpush1.msra.mxu0 0.0
    %4909 = vmatprep.subr.mxu0 0.0
    %4910 = vmatpush1.msra.mxu0 0.0
    %4911 = vmatprep.subr.mxu0 0.0
    %4912 = vmatpush1.msra.mxu0 0.0
    %4913 = vmatprep.subr.mxu0 0.0
    %4914 = vmatpush1.msra.mxu0 0.0
    %4915 = vmatprep.subr.mxu0 0.0
    %4916 = vmatpush1.msra.mxu0 0.0
    %4917 = vmatprep.mubr.f32.mxu0 0.0
    %4918 = vmatmul.mubr.f32.gmra.mrb[0].mxu0 %v4774
    %v4919 = vpop.f32.mrb[0].mxu0
    %v4920 = vadd.f32 0.0, %v4919
    %v4921 = vpop.f32.mrb[0].mxu0
    %v4922 = vadd.f32 0.0, %v4921
    %4923 = vdwg.mxu0
    %v4924 = vadd.f32 %v4778, %v4849
    %v4925 = vadd.f32 %v4779, %v4851
    %v4926 = vadd.f32 %v4780, %v4920
    %v4927 = vadd.f32 %v4781, %v4922
    %v4928 = vxor.u32 %v4924, 2147483648
    %v4929 = vxor.u32 %v4925, 2147483648
    %v4930 = vxor.u32 %v4926, 2147483648
    %v4931 = vmul.f32 %v4928, 1.442695
    %v4932 = vpow.pop %v4931
    %v4933 = vmul.f32 %v4929, 1.442695
    %v4934 = vpow.pop %v4933
    %v4935 = vmul.f32 %v4930, 1.442695
    %v4936 = vpow.pop %v4935
    %v4937 = vadd.f32 %v4932, 1.0
    %v4938 = vadd.f32 %v4934, 1.0
    %v4939 = vadd.f32 %v4936, 1.0
    %v4940 = vrcp.pop %v4937
    %v4941 = vmul.f32 1.0, %v4940
    %v4942 = vrcp.pop %v4938
    %v4943 = vmul.f32 1.0, %v4942
    %v4944 = vrcp.pop %v4939
    %v4945 = vmul.f32 1.0, %v4944
    %v4946 = vtanh.pop %v4927
    %v4947 = vmul.f32 %v4943, %v4772
    %v4948 = vmul.f32 %v4941, %v4946
    %v4949 = vadd.f32 %v4947, %v4948
    %v4950 = vtanh.pop %v4949
    %v4951 = vmul.f32 %v4945, %v4950
    %s4952 = smul.u32 22, 4
    %s4953 = smul.addr %s4952, 8
    %s4954 = scalar_lea.vmem [#allocation2], %s4953
    %v4955 = vld [vmem:[%s4954] sm:$0xff]
    %v4956 = vld [vmem:[%s4954 + $0x8] sm:$0xff]
    %v4957 = vld [vmem:[%s4954 + $0x10] sm:$0xff]
    %v4958 = vld [vmem:[%s4954 + $0x18] sm:$0xff]
    %4959 = vmatprep.subr.mxu0 %v995
    %4960 = vmatpush1.msra.mxu0 %v994
    %4961 = vmatprep.subr.mxu0 %v999
    %4962 = vmatpush1.msra.mxu0 %v998
    %4963 = vmatprep.subr.mxu0 %v1003
    %4964 = vmatpush1.msra.mxu0 %v1002
    %4965 = vmatprep.subr.mxu0 %v1007
    %4966 = vmatpush1.msra.mxu0 %v1006
    %4967 = vmatprep.subr.mxu0 %v1011
    %4968 = vmatpush1.msra.mxu0 %v1010
    %4969 = vmatprep.subr.mxu0 %v1015
    %4970 = vmatpush1.msra.mxu0 %v1014
    %4971 = vmatprep.subr.mxu0 %v1019
    %4972 = vmatpush1.msra.mxu0 %v1018
    %4973 = vmatprep.subr.mxu0 %v1023
    %4974 = vmatpush1.msra.mxu0 %v1022
    %4975 = vmatprep.subr.mxu0 %v1027
    %4976 = vmatpush1.msra.mxu0 %v1026
    %4977 = vmatprep.subr.mxu0 %v1031
    %4978 = vmatpush1.msra.mxu0 %v1030
    %4979 = vmatprep.subr.mxu0 %v1035
    %4980 = vmatpush1.msra.mxu0 %v1034
    %4981 = vmatprep.subr.mxu0 %v1039
    %4982 = vmatpush1.msra.mxu0 %v1038
    %4983 = vmatprep.subr.mxu0 %v1043
    %4984 = vmatpush1.msra.mxu0 %v1042
    %4985 = vmatprep.subr.mxu0 %v1047
    %4986 = vmatpush1.msra.mxu0 %v1046
    %4987 = vmatprep.subr.mxu0 %v1051
    %4988 = vmatpush1.msra.mxu0 %v1050
    %4989 = vmatprep.subr.mxu0 %v1055
    %4990 = vmatpush1.msra.mxu0 %v1054
    %4991 = vmatprep.subr.mxu0 0.0
    %4992 = vmatpush1.msra.mxu0 0.0
    %4993 = vmatprep.subr.mxu0 0.0
    %4994 = vmatpush1.msra.mxu0 0.0
    %4995 = vmatprep.subr.mxu0 0.0
    %4996 = vmatpush1.msra.mxu0 0.0
    %4997 = vmatprep.subr.mxu0 0.0
    %4998 = vmatpush1.msra.mxu0 0.0
    %4999 = vmatprep.subr.mxu0 0.0
    %5000 = vmatpush1.msra.mxu0 0.0
    %5001 = vmatprep.subr.mxu0 0.0
    %5002 = vmatpush1.msra.mxu0 0.0
    %5003 = vmatprep.subr.mxu0 0.0
    %5004 = vmatpush1.msra.mxu0 0.0
    %5005 = vmatprep.subr.mxu0 0.0
    %5006 = vmatpush1.msra.mxu0 0.0
    %5007 = vmatprep.subr.mxu0 0.0
    %5008 = vmatpush1.msra.mxu0 0.0
    %5009 = vmatprep.subr.mxu0 0.0
    %5010 = vmatpush1.msra.mxu0 0.0
    %5011 = vmatprep.subr.mxu0 0.0
    %5012 = vmatpush1.msra.mxu0 0.0
    %5013 = vmatprep.subr.mxu0 0.0
    %5014 = vmatpush1.msra.mxu0 0.0
    %5015 = vmatprep.subr.mxu0 0.0
    %5016 = vmatpush1.msra.mxu0 0.0
    %5017 = vmatprep.subr.mxu0 0.0
    %5018 = vmatpush1.msra.mxu0 0.0
    %5019 = vmatprep.subr.mxu0 0.0
    %5020 = vmatpush1.msra.mxu0 0.0
    %5021 = vmatprep.subr.mxu0 0.0
    %5022 = vmatpush1.msra.mxu0 0.0
    %5023 = vmatprep.mubr.f32.mxu0 0.0
    %5024 = vmatmul.mubr.f32.gmra.mrb[0].mxu0 %v4951
    %v5025 = vpop.f32.mrb[0].mxu0
    %v5026 = vadd.f32 0.0, %v5025
    %v5027 = vpop.f32.mrb[0].mxu0
    %v5028 = vadd.f32 0.0, %v5027
    %5029 = vdwg.mxu0
    %5030 = vmatprep.subr.mxu0 %v997
    %5031 = vmatpush1.msra.mxu0 %v996
    %5032 = vmatprep.subr.mxu0 %v1001
    %5033 = vmatpush1.msra.mxu0 %v1000
    %5034 = vmatprep.subr.mxu0 %v1005
    %5035 = vmatpush1.msra.mxu0 %v1004
    %5036 = vmatprep.subr.mxu0 %v1009
    %5037 = vmatpush1.msra.mxu0 %v1008
    %5038 = vmatprep.subr.mxu0 %v1013
    %5039 = vmatpush1.msra.mxu0 %v1012
    %5040 = vmatprep.subr.mxu0 %v1017
    %5041 = vmatpush1.msra.mxu0 %v1016
    %5042 = vmatprep.subr.mxu0 %v1021
    %5043 = vmatpush1.msra.mxu0 %v1020
    %5044 = vmatprep.subr.mxu0 %v1025
    %5045 = vmatpush1.msra.mxu0 %v1024
    %5046 = vmatprep.subr.mxu0 %v1029
    %5047 = vmatpush1.msra.mxu0 %v1028
    %5048 = vmatprep.subr.mxu0 %v1033
    %5049 = vmatpush1.msra.mxu0 %v1032
    %5050 = vmatprep.subr.mxu0 %v1037
    %5051 = vmatpush1.msra.mxu0 %v1036
    %5052 = vmatprep.subr.mxu0 %v1041
    %5053 = vmatpush1.msra.mxu0 %v1040
    %5054 = vmatprep.subr.mxu0 %v1045
    %5055 = vmatpush1.msra.mxu0 %v1044
    %5056 = vmatprep.subr.mxu0 %v1049
    %5057 = vmatpush1.msra.mxu0 %v1048
    %5058 = vmatprep.subr.mxu0 %v1053
    %5059 = vmatpush1.msra.mxu0 %v1052
    %5060 = vmatprep.subr.mxu0 %v1057
    %5061 = vmatpush1.msra.mxu0 %v1056
    %5062 = vmatprep.subr.mxu0 0.0
    %5063 = vmatpush1.msra.mxu0 0.0
    %5064 = vmatprep.subr.mxu0 0.0
    %5065 = vmatpush1.msra.mxu0 0.0
    %5066 = vmatprep.subr.mxu0 0.0
    %5067 = vmatpush1.msra.mxu0 0.0
    %5068 = vmatprep.subr.mxu0 0.0
    %5069 = vmatpush1.msra.mxu0 0.0
    %5070 = vmatprep.subr.mxu0 0.0
    %5071 = vmatpush1.msra.mxu0 0.0
    %5072 = vmatprep.subr.mxu0 0.0
    %5073 = vmatpush1.msra.mxu0 0.0
    %5074 = vmatprep.subr.mxu0 0.0
    %5075 = vmatpush1.msra.mxu0 0.0
    %5076 = vmatprep.subr.mxu0 0.0
    %5077 = vmatpush1.msra.mxu0 0.0
    %5078 = vmatprep.subr.mxu0 0.0
    %5079 = vmatpush1.msra.mxu0 0.0
    %5080 = vmatprep.subr.mxu0 0.0
    %5081 = vmatpush1.msra.mxu0 0.0
    %5082 = vmatprep.subr.mxu0 0.0
    %5083 = vmatpush1.msra.mxu0 0.0
    %5084 = vmatprep.subr.mxu0 0.0
    %5085 = vmatpush1.msra.mxu0 0.0
    %5086 = vmatprep.subr.mxu0 0.0
    %5087 = vmatpush1.msra.mxu0 0.0
    %5088 = vmatprep.subr.mxu0 0.0
    %5089 = vmatpush1.msra.mxu0 0.0
    %5090 = vmatprep.subr.mxu0 0.0
    %5091 = vmatpush1.msra.mxu0 0.0
    %5092 = vmatprep.subr.mxu0 0.0
    %5093 = vmatpush1.msra.mxu0 0.0
    %5094 = vmatprep.mubr.f32.mxu0 0.0
    %5095 = vmatmul.mubr.f32.gmra.mrb[0].mxu0 %v4951
    %v5096 = vpop.f32.mrb[0].mxu0
    %v5097 = vadd.f32 0.0, %v5096
    %v5098 = vpop.f32.mrb[0].mxu0
    %v5099 = vadd.f32 0.0, %v5098
    %5100 = vdwg.mxu0
    %v5101 = vadd.f32 %v4955, %v5026
    %v5102 = vadd.f32 %v4956, %v5028
    %v5103 = vadd.f32 %v4957, %v5097
    %v5104 = vadd.f32 %v4958, %v5099
    %v5105 = vxor.u32 %v5101, 2147483648
    %v5106 = vxor.u32 %v5102, 2147483648
    %v5107 = vxor.u32 %v5103, 2147483648
    %v5108 = vmul.f32 %v5105, 1.442695
    %v5109 = vpow.pop %v5108
    %v5110 = vmul.f32 %v5106, 1.442695
    %v5111 = vpow.pop %v5110
    %v5112 = vmul.f32 %v5107, 1.442695
    %v5113 = vpow.pop %v5112
    %v5114 = vadd.f32 %v5109, 1.0
    %v5115 = vadd.f32 %v5111, 1.0
    %v5116 = vadd.f32 %v5113, 1.0
    %v5117 = vrcp.pop %v5114
    %v5118 = vmul.f32 1.0, %v5117
    %v5119 = vrcp.pop %v5115
    %v5120 = vmul.f32 1.0, %v5119
    %v5121 = vrcp.pop %v5116
    %v5122 = vmul.f32 1.0, %v5121
    %v5123 = vtanh.pop %v5104
    %v5124 = vmul.f32 %v5120, %v4949
    %v5125 = vmul.f32 %v5118, %v5123
    %v5126 = vadd.f32 %v5124, %v5125
    %v5127 = vtanh.pop %v5126
    %v5128 = vmul.f32 %v5122, %v5127
    %s5129 = smul.u32 23, 4
    %s5130 = smul.addr %s5129, 8
    %s5131 = scalar_lea.vmem [#allocation2], %s5130
    %v5132 = vld [vmem:[%s5131] sm:$0xff]
    %v5133 = vld [vmem:[%s5131 + $0x8] sm:$0xff]
    %v5134 = vld [vmem:[%s5131 + $0x10] sm:$0xff]
    %v5135 = vld [vmem:[%s5131 + $0x18] sm:$0xff]
    %5136 = vmatprep.subr.mxu0 %v995
    %5137 = vmatpush1.msra.mxu0 %v994
    %5138 = vmatprep.subr.mxu0 %v999
    %5139 = vmatpush1.msra.mxu0 %v998
    %5140 = vmatprep.subr.mxu0 %v1003
    %5141 = vmatpush1.msra.mxu0 %v1002
    %5142 = vmatprep.subr.mxu0 %v1007
    %5143 = vmatpush1.msra.mxu0 %v1006
    %5144 = vmatprep.subr.mxu0 %v1011
    %5145 = vmatpush1.msra.mxu0 %v1010
    %5146 = vmatprep.subr.mxu0 %v1015
    %5147 = vmatpush1.msra.mxu0 %v1014
    %5148 = vmatprep.subr.mxu0 %v1019
    %5149 = vmatpush1.msra.mxu0 %v1018
    %5150 = vmatprep.subr.mxu0 %v1023
    %5151 = vmatpush1.msra.mxu0 %v1022
    %5152 = vmatprep.subr.mxu0 %v1027
    %5153 = vmatpush1.msra.mxu0 %v1026
    %5154 = vmatprep.subr.mxu0 %v1031
    %5155 = vmatpush1.msra.mxu0 %v1030
    %5156 = vmatprep.subr.mxu0 %v1035
    %5157 = vmatpush1.msra.mxu0 %v1034
    %5158 = vmatprep.subr.mxu0 %v1039
    %5159 = vmatpush1.msra.mxu0 %v1038
    %5160 = vmatprep.subr.mxu0 %v1043
    %5161 = vmatpush1.msra.mxu0 %v1042
    %5162 = vmatprep.subr.mxu0 %v1047
    %5163 = vmatpush1.msra.mxu0 %v1046
    %5164 = vmatprep.subr.mxu0 %v1051
    %5165 = vmatpush1.msra.mxu0 %v1050
    %5166 = vmatprep.subr.mxu0 %v1055
    %5167 = vmatpush1.msra.mxu0 %v1054
    %5168 = vmatprep.subr.mxu0 0.0
    %5169 = vmatpush1.msra.mxu0 0.0
    %5170 = vmatprep.subr.mxu0 0.0
    %5171 = vmatpush1.msra.mxu0 0.0
    %5172 = vmatprep.subr.mxu0 0.0
    %5173 = vmatpush1.msra.mxu0 0.0
    %5174 = vmatprep.subr.mxu0 0.0
    %5175 = vmatpush1.msra.mxu0 0.0
    %5176 = vmatprep.subr.mxu0 0.0
    %5177 = vmatpush1.msra.mxu0 0.0
    %5178 = vmatprep.subr.mxu0 0.0
    %5179 = vmatpush1.msra.mxu0 0.0
    %5180 = vmatprep.subr.mxu0 0.0
    %5181 = vmatpush1.msra.mxu0 0.0
    %5182 = vmatprep.subr.mxu0 0.0
    %5183 = vmatpush1.msra.mxu0 0.0
    %5184 = vmatprep.subr.mxu0 0.0
    %5185 = vmatpush1.msra.mxu0 0.0
    %5186 = vmatprep.subr.mxu0 0.0
    %5187 = vmatpush1.msra.mxu0 0.0
    %5188 = vmatprep.subr.mxu0 0.0
    %5189 = vmatpush1.msra.mxu0 0.0
    %5190 = vmatprep.subr.mxu0 0.0
    %5191 = vmatpush1.msra.mxu0 0.0
    %5192 = vmatprep.subr.mxu0 0.0
    %5193 = vmatpush1.msra.mxu0 0.0
    %5194 = vmatprep.subr.mxu0 0.0
    %5195 = vmatpush1.msra.mxu0 0.0
    %5196 = vmatprep.subr.mxu0 0.0
    %5197 = vmatpush1.msra.mxu0 0.0
    %5198 = vmatprep.subr.mxu0 0.0
    %5199 = vmatpush1.msra.mxu0 0.0
    %5200 = vmatprep.mubr.f32.mxu0 0.0
    %5201 = vmatmul.mubr.f32.gmra.mrb[0].mxu0 %v5128
    %v5202 = vpop.f32.mrb[0].mxu0
    %v5203 = vadd.f32 0.0, %v5202
    %v5204 = vpop.f32.mrb[0].mxu0
    %v5205 = vadd.f32 0.0, %v5204
    %5206 = vdwg.mxu0
    %5207 = vmatprep.subr.mxu0 %v997
    %5208 = vmatpush1.msra.mxu0 %v996
    %5209 = vmatprep.subr.mxu0 %v1001
    %5210 = vmatpush1.msra.mxu0 %v1000
    %5211 = vmatprep.subr.mxu0 %v1005
    %5212 = vmatpush1.msra.mxu0 %v1004
    %5213 = vmatprep.subr.mxu0 %v1009
    %5214 = vmatpush1.msra.mxu0 %v1008
    %5215 = vmatprep.subr.mxu0 %v1013
    %5216 = vmatpush1.msra.mxu0 %v1012
    %5217 = vmatprep.subr.mxu0 %v1017
    %5218 = vmatpush1.msra.mxu0 %v1016
    %5219 = vmatprep.subr.mxu0 %v1021
    %5220 = vmatpush1.msra.mxu0 %v1020
    %5221 = vmatprep.subr.mxu0 %v1025
    %5222 = vmatpush1.msra.mxu0 %v1024
    %5223 = vmatprep.subr.mxu0 %v1029
    %5224 = vmatpush1.msra.mxu0 %v1028
    %5225 = vmatprep.subr.mxu0 %v1033
    %5226 = vmatpush1.msra.mxu0 %v1032
    %5227 = vmatprep.subr.mxu0 %v1037
    %5228 = vmatpush1.msra.mxu0 %v1036
    %5229 = vmatprep.subr.mxu0 %v1041
    %5230 = vmatpush1.msra.mxu0 %v1040
    %5231 = vmatprep.subr.mxu0 %v1045
    %5232 = vmatpush1.msra.mxu0 %v1044
    %5233 = vmatprep.subr.mxu0 %v1049
    %5234 = vmatpush1.msra.mxu0 %v1048
    %5235 = vmatprep.subr.mxu0 %v1053
    %5236 = vmatpush1.msra.mxu0 %v1052
    %5237 = vmatprep.subr.mxu0 %v1057
    %5238 = vmatpush1.msra.mxu0 %v1056
    %5239 = vmatprep.subr.mxu0 0.0
    %5240 = vmatpush1.msra.mxu0 0.0
    %5241 = vmatprep.subr.mxu0 0.0
    %5242 = vmatpush1.msra.mxu0 0.0
    %5243 = vmatprep.subr.mxu0 0.0
    %5244 = vmatpush1.msra.mxu0 0.0
    %5245 = vmatprep.subr.mxu0 0.0
    %5246 = vmatpush1.msra.mxu0 0.0
    %5247 = vmatprep.subr.mxu0 0.0
    %5248 = vmatpush1.msra.mxu0 0.0
    %5249 = vmatprep.subr.mxu0 0.0
    %5250 = vmatpush1.msra.mxu0 0.0
    %5251 = vmatprep.subr.mxu0 0.0
    %5252 = vmatpush1.msra.mxu0 0.0
    %5253 = vmatprep.subr.mxu0 0.0
    %5254 = vmatpush1.msra.mxu0 0.0
    %5255 = vmatprep.subr.mxu0 0.0
    %5256 = vmatpush1.msra.mxu0 0.0
    %5257 = vmatprep.subr.mxu0 0.0
    %5258 = vmatpush1.msra.mxu0 0.0
    %5259 = vmatprep.subr.mxu0 0.0
    %5260 = vmatpush1.msra.mxu0 0.0
    %5261 = vmatprep.subr.mxu0 0.0
    %5262 = vmatpush1.msra.mxu0 0.0
    %5263 = vmatprep.subr.mxu0 0.0
    %5264 = vmatpush1.msra.mxu0 0.0
    %5265 = vmatprep.subr.mxu0 0.0
    %5266 = vmatpush1.msra.mxu0 0.0
    %5267 = vmatprep.subr.mxu0 0.0
    %5268 = vmatpush1.msra.mxu0 0.0
    %5269 = vmatprep.subr.mxu0 0.0
    %5270 = vmatpush1.msra.mxu0 0.0
    %5271 = vmatprep.mubr.f32.mxu0 0.0
    %5272 = vmatmul.mubr.f32.gmra.mrb[0].mxu0 %v5128
    %v5273 = vpop.f32.mrb[0].mxu0
    %v5274 = vadd.f32 0.0, %v5273
    %v5275 = vpop.f32.mrb[0].mxu0
    %v5276 = vadd.f32 0.0, %v5275
    %5277 = vdwg.mxu0
    %v5278 = vadd.f32 %v5132, %v5203
    %v5279 = vadd.f32 %v5133, %v5205
    %v5280 = vadd.f32 %v5134, %v5274
    %v5281 = vadd.f32 %v5135, %v5276
    %v5282 = vxor.u32 %v5278, 2147483648
    %v5283 = vxor.u32 %v5279, 2147483648
    %v5284 = vxor.u32 %v5280, 2147483648
    %v5285 = vmul.f32 %v5282, 1.442695
    %v5286 = vpow.pop %v5285
    %v5287 = vmul.f32 %v5283, 1.442695
    %v5288 = vpow.pop %v5287
    %v5289 = vmul.f32 %v5284, 1.442695
    %v5290 = vpow.pop %v5289
    %v5291 = vadd.f32 %v5286, 1.0
    %v5292 = vadd.f32 %v5288, 1.0
    %v5293 = vadd.f32 %v5290, 1.0
    %v5294 = vrcp.pop %v5291
    %v5295 = vmul.f32 1.0, %v5294
    %v5296 = vrcp.pop %v5292
    %v5297 = vmul.f32 1.0, %v5296
    %v5298 = vrcp.pop %v5293
    %v5299 = vmul.f32 1.0, %v5298
    %v5300 = vtanh.pop %v5281
    %v5301 = vmul.f32 %v5297, %v5126
    %v5302 = vmul.f32 %v5295, %v5300
    %v5303 = vadd.f32 %v5301, %v5302
    %v5304 = vtanh.pop %v5303
    %v5305 = vmul.f32 %v5299, %v5304
    %s5306 = smul.u32 24, 4
    %s5307 = smul.addr %s5306, 8
    %s5308 = scalar_lea.vmem [#allocation2], %s5307
    %v5309 = vld [vmem:[%s5308] sm:$0xff]
    %v5310 = vld [vmem:[%s5308 + $0x8] sm:$0xff]
    %v5311 = vld [vmem:[%s5308 + $0x10] sm:$0xff]
    %v5312 = vld [vmem:[%s5308 + $0x18] sm:$0xff]
    %5313 = vmatprep.subr.mxu0 %v995
    %5314 = vmatpush1.msra.mxu0 %v994
    %5315 = vmatprep.subr.mxu0 %v999
    %5316 = vmatpush1.msra.mxu0 %v998
    %5317 = vmatprep.subr.mxu0 %v1003
    %5318 = vmatpush1.msra.mxu0 %v1002
    %5319 = vmatprep.subr.mxu0 %v1007
    %5320 = vmatpush1.msra.mxu0 %v1006
    %5321 = vmatprep.subr.mxu0 %v1011
    %5322 = vmatpush1.msra.mxu0 %v1010
    %5323 = vmatprep.subr.mxu0 %v1015
    %5324 = vmatpush1.msra.mxu0 %v1014
    %5325 = vmatprep.subr.mxu0 %v1019
    %5326 = vmatpush1.msra.mxu0 %v1018
    %5327 = vmatprep.subr.mxu0 %v1023
    %5328 = vmatpush1.msra.mxu0 %v1022
    %5329 = vmatprep.subr.mxu0 %v1027
    %5330 = vmatpush1.msra.mxu0 %v1026
    %5331 = vmatprep.subr.mxu0 %v1031
    %5332 = vmatpush1.msra.mxu0 %v1030
    %5333 = vmatprep.subr.mxu0 %v1035
    %5334 = vmatpush1.msra.mxu0 %v1034
    %5335 = vmatprep.subr.mxu0 %v1039
    %5336 = vmatpush1.msra.mxu0 %v1038
    %5337 = vmatprep.subr.mxu0 %v1043
    %5338 = vmatpush1.msra.mxu0 %v1042
    %5339 = vmatprep.subr.mxu0 %v1047
    %5340 = vmatpush1.msra.mxu0 %v1046
    %5341 = vmatprep.subr.mxu0 %v1051
    %5342 = vmatpush1.msra.mxu0 %v1050
    %5343 = vmatprep.subr.mxu0 %v1055
    %5344 = vmatpush1.msra.mxu0 %v1054
    %5345 = vmatprep.subr.mxu0 0.0
    %5346 = vmatpush1.msra.mxu0 0.0
    %5347 = vmatprep.subr.mxu0 0.0
    %5348 = vmatpush1.msra.mxu0 0.0
    %5349 = vmatprep.subr.mxu0 0.0
    %5350 = vmatpush1.msra.mxu0 0.0
    %5351 = vmatprep.subr.mxu0 0.0
    %5352 = vmatpush1.msra.mxu0 0.0
    %5353 = vmatprep.subr.mxu0 0.0
    %5354 = vmatpush1.msra.mxu0 0.0
    %5355 = vmatprep.subr.mxu0 0.0
    %5356 = vmatpush1.msra.mxu0 0.0
    %5357 = vmatprep.subr.mxu0 0.0
    %5358 = vmatpush1.msra.mxu0 0.0
    %5359 = vmatprep.subr.mxu0 0.0
    %5360 = vmatpush1.msra.mxu0 0.0
    %5361 = vmatprep.subr.mxu0 0.0
    %5362 = vmatpush1.msra.mxu0 0.0
    %5363 = vmatprep.subr.mxu0 0.0
    %5364 = vmatpush1.msra.mxu0 0.0
    %5365 = vmatprep.subr.mxu0 0.0
    %5366 = vmatpush1.msra.mxu0 0.0
    %5367 = vmatprep.subr.mxu0 0.0
    %5368 = vmatpush1.msra.mxu0 0.0
    %5369 = vmatprep.subr.mxu0 0.0
    %5370 = vmatpush1.msra.mxu0 0.0
    %5371 = vmatprep.subr.mxu0 0.0
    %5372 = vmatpush1.msra.mxu0 0.0
    %5373 = vmatprep.subr.mxu0 0.0
    %5374 = vmatpush1.msra.mxu0 0.0
    %5375 = vmatprep.subr.mxu0 0.0
    %5376 = vmatpush1.msra.mxu0 0.0
    %5377 = vmatprep.mubr.f32.mxu0 0.0
    %5378 = vmatmul.mubr.f32.gmra.mrb[0].mxu0 %v5305
    %v5379 = vpop.f32.mrb[0].mxu0
    %v5380 = vadd.f32 0.0, %v5379
    %v5381 = vpop.f32.mrb[0].mxu0
    %v5382 = vadd.f32 0.0, %v5381
    %5383 = vdwg.mxu0
    %5384 = vmatprep.subr.mxu0 %v997
    %5385 = vmatpush1.msra.mxu0 %v996
    %5386 = vmatprep.subr.mxu0 %v1001
    %5387 = vmatpush1.msra.mxu0 %v1000
    %5388 = vmatprep.subr.mxu0 %v1005
    %5389 = vmatpush1.msra.mxu0 %v1004
    %5390 = vmatprep.subr.mxu0 %v1009
    %5391 = vmatpush1.msra.mxu0 %v1008
    %5392 = vmatprep.subr.mxu0 %v1013
    %5393 = vmatpush1.msra.mxu0 %v1012
    %5394 = vmatprep.subr.mxu0 %v1017
    %5395 = vmatpush1.msra.mxu0 %v1016
    %5396 = vmatprep.subr.mxu0 %v1021
    %5397 = vmatpush1.msra.mxu0 %v1020
    %5398 = vmatprep.subr.mxu0 %v1025
    %5399 = vmatpush1.msra.mxu0 %v1024
    %5400 = vmatprep.subr.mxu0 %v1029
    %5401 = vmatpush1.msra.mxu0 %v1028
    %5402 = vmatprep.subr.mxu0 %v1033
    %5403 = vmatpush1.msra.mxu0 %v1032
    %5404 = vmatprep.subr.mxu0 %v1037
    %5405 = vmatpush1.msra.mxu0 %v1036
    %5406 = vmatprep.subr.mxu0 %v1041
    %5407 = vmatpush1.msra.mxu0 %v1040
    %5408 = vmatprep.subr.mxu0 %v1045
    %5409 = vmatpush1.msra.mxu0 %v1044
    %5410 = vmatprep.subr.mxu0 %v1049
    %5411 = vmatpush1.msra.mxu0 %v1048
    %5412 = vmatprep.subr.mxu0 %v1053
    %5413 = vmatpush1.msra.mxu0 %v1052
    %5414 = vmatprep.subr.mxu0 %v1057
    %5415 = vmatpush1.msra.mxu0 %v1056
    %5416 = vmatprep.subr.mxu0 0.0
    %5417 = vmatpush1.msra.mxu0 0.0
    %5418 = vmatprep.subr.mxu0 0.0
    %5419 = vmatpush1.msra.mxu0 0.0
    %5420 = vmatprep.subr.mxu0 0.0
    %5421 = vmatpush1.msra.mxu0 0.0
    %5422 = vmatprep.subr.mxu0 0.0
    %5423 = vmatpush1.msra.mxu0 0.0
    %5424 = vmatprep.subr.mxu0 0.0
    %5425 = vmatpush1.msra.mxu0 0.0
    %5426 = vmatprep.subr.mxu0 0.0
    %5427 = vmatpush1.msra.mxu0 0.0
    %5428 = vmatprep.subr.mxu0 0.0
    %5429 = vmatpush1.msra.mxu0 0.0
    %5430 = vmatprep.subr.mxu0 0.0
    %5431 = vmatpush1.msra.mxu0 0.0
    %5432 = vmatprep.subr.mxu0 0.0
    %5433 = vmatpush1.msra.mxu0 0.0
    %5434 = vmatprep.subr.mxu0 0.0
    %5435 = vmatpush1.msra.mxu0 0.0
    %5436 = vmatprep.subr.mxu0 0.0
    %5437 = vmatpush1.msra.mxu0 0.0
    %5438 = vmatprep.subr.mxu0 0.0
    %5439 = vmatpush1.msra.mxu0 0.0
    %5440 = vmatprep.subr.mxu0 0.0
    %5441 = vmatpush1.msra.mxu0 0.0
    %5442 = vmatprep.subr.mxu0 0.0
    %5443 = vmatpush1.msra.mxu0 0.0
    %5444 = vmatprep.subr.mxu0 0.0
    %5445 = vmatpush1.msra.mxu0 0.0
    %5446 = vmatprep.subr.mxu0 0.0
    %5447 = vmatpush1.msra.mxu0 0.0
    %5448 = vmatprep.mubr.f32.mxu0 0.0
    %5449 = vmatmul.mubr.f32.gmra.mrb[0].mxu0 %v5305
    %v5450 = vpop.f32.mrb[0].mxu0
    %v5451 = vadd.f32 0.0, %v5450
    %v5452 = vpop.f32.mrb[0].mxu0
    %v5453 = vadd.f32 0.0, %v5452
    %5454 = vdwg.mxu0
    %v5455 = vadd.f32 %v5309, %v5380
    %v5456 = vadd.f32 %v5310, %v5382
    %v5457 = vadd.f32 %v5311, %v5451
    %v5458 = vadd.f32 %v5312, %v5453
    %v5459 = vxor.u32 %v5455, 2147483648
    %v5460 = vxor.u32 %v5456, 2147483648
    %v5461 = vxor.u32 %v5457, 2147483648
    %v5462 = vmul.f32 %v5459, 1.442695
    %v5463 = vpow.pop %v5462
    %v5464 = vmul.f32 %v5460, 1.442695
    %v5465 = vpow.pop %v5464
    %v5466 = vmul.f32 %v5461, 1.442695
    %v5467 = vpow.pop %v5466
    %v5468 = vadd.f32 %v5463, 1.0
    %v5469 = vadd.f32 %v5465, 1.0
    %v5470 = vadd.f32 %v5467, 1.0
    %v5471 = vrcp.pop %v5468
    %v5472 = vmul.f32 1.0, %v5471
    %v5473 = vrcp.pop %v5469
    %v5474 = vmul.f32 1.0, %v5473
    %v5475 = vrcp.pop %v5470
    %v5476 = vmul.f32 1.0, %v5475
    %v5477 = vtanh.pop %v5458
    %v5478 = vmul.f32 %v5474, %v5303
    %v5479 = vmul.f32 %v5472, %v5477
    %v5480 = vadd.f32 %v5478, %v5479
    %v5481 = vtanh.pop %v5480
    %v5482 = vmul.f32 %v5476, %v5481
    %s5483 = smul.u32 25, 4
    %s5484 = smul.addr %s5483, 8
    %s5485 = scalar_lea.vmem [#allocation2], %s5484
    %v5486 = vld [vmem:[%s5485] sm:$0xff]
    %v5487 = vld [vmem:[%s5485 + $0x8] sm:$0xff]
    %v5488 = vld [vmem:[%s5485 + $0x10] sm:$0xff]
    %v5489 = vld [vmem:[%s5485 + $0x18] sm:$0xff]
    %5490 = vmatprep.subr.mxu0 %v995
    %5491 = vmatpush1.msra.mxu0 %v994
    %5492 = vmatprep.subr.mxu0 %v999
    %5493 = vmatpush1.msra.mxu0 %v998
    %5494 = vmatprep.subr.mxu0 %v1003
    %5495 = vmatpush1.msra.mxu0 %v1002
    %5496 = vmatprep.subr.mxu0 %v1007
    %5497 = vmatpush1.msra.mxu0 %v1006
    %5498 = vmatprep.subr.mxu0 %v1011
    %5499 = vmatpush1.msra.mxu0 %v1010
    %5500 = vmatprep.subr.mxu0 %v1015
    %5501 = vmatpush1.msra.mxu0 %v1014
    %5502 = vmatprep.subr.mxu0 %v1019
    %5503 = vmatpush1.msra.mxu0 %v1018
    %5504 = vmatprep.subr.mxu0 %v1023
    %5505 = vmatpush1.msra.mxu0 %v1022
    %5506 = vmatprep.subr.mxu0 %v1027
    %5507 = vmatpush1.msra.mxu0 %v1026
    %5508 = vmatprep.subr.mxu0 %v1031
    %5509 = vmatpush1.msra.mxu0 %v1030
    %5510 = vmatprep.subr.mxu0 %v1035
    %5511 = vmatpush1.msra.mxu0 %v1034
    %5512 = vmatprep.subr.mxu0 %v1039
    %5513 = vmatpush1.msra.mxu0 %v1038
    %5514 = vmatprep.subr.mxu0 %v1043
    %5515 = vmatpush1.msra.mxu0 %v1042
    %5516 = vmatprep.subr.mxu0 %v1047
    %5517 = vmatpush1.msra.mxu0 %v1046
    %5518 = vmatprep.subr.mxu0 %v1051
    %5519 = vmatpush1.msra.mxu0 %v1050
    %5520 = vmatprep.subr.mxu0 %v1055
    %5521 = vmatpush1.msra.mxu0 %v1054
    %5522 = vmatprep.subr.mxu0 0.0
    %5523 = vmatpush1.msra.mxu0 0.0
    %5524 = vmatprep.subr.mxu0 0.0
    %5525 = vmatpush1.msra.mxu0 0.0
    %5526 = vmatprep.subr.mxu0 0.0
    %5527 = vmatpush1.msra.mxu0 0.0
    %5528 = vmatprep.subr.mxu0 0.0
    %5529 = vmatpush1.msra.mxu0 0.0
    %5530 = vmatprep.subr.mxu0 0.0
    %5531 = vmatpush1.msra.mxu0 0.0
    %5532 = vmatprep.subr.mxu0 0.0
    %5533 = vmatpush1.msra.mxu0 0.0
    %5534 = vmatprep.subr.mxu0 0.0
    %5535 = vmatpush1.msra.mxu0 0.0
    %5536 = vmatprep.subr.mxu0 0.0
    %5537 = vmatpush1.msra.mxu0 0.0
    %5538 = vmatprep.subr.mxu0 0.0
    %5539 = vmatpush1.msra.mxu0 0.0
    %5540 = vmatprep.subr.mxu0 0.0
    %5541 = vmatpush1.msra.mxu0 0.0
    %5542 = vmatprep.subr.mxu0 0.0
    %5543 = vmatpush1.msra.mxu0 0.0
    %5544 = vmatprep.subr.mxu0 0.0
    %5545 = vmatpush1.msra.mxu0 0.0
    %5546 = vmatprep.subr.mxu0 0.0
    %5547 = vmatpush1.msra.mxu0 0.0
    %5548 = vmatprep.subr.mxu0 0.0
    %5549 = vmatpush1.msra.mxu0 0.0
    %5550 = vmatprep.subr.mxu0 0.0
    %5551 = vmatpush1.msra.mxu0 0.0
    %5552 = vmatprep.subr.mxu0 0.0
    %5553 = vmatpush1.msra.mxu0 0.0
    %5554 = vmatprep.mubr.f32.mxu0 0.0
    %5555 = vmatmul.mubr.f32.gmra.mrb[0].mxu0 %v5482
    %v5556 = vpop.f32.mrb[0].mxu0
    %v5557 = vadd.f32 0.0, %v5556
    %v5558 = vpop.f32.mrb[0].mxu0
    %v5559 = vadd.f32 0.0, %v5558
    %5560 = vdwg.mxu0
    %5561 = vmatprep.subr.mxu0 %v997
    %5562 = vmatpush1.msra.mxu0 %v996
    %5563 = vmatprep.subr.mxu0 %v1001
    %5564 = vmatpush1.msra.mxu0 %v1000
    %5565 = vmatprep.subr.mxu0 %v1005
    %5566 = vmatpush1.msra.mxu0 %v1004
    %5567 = vmatprep.subr.mxu0 %v1009
    %5568 = vmatpush1.msra.mxu0 %v1008
    %5569 = vmatprep.subr.mxu0 %v1013
    %5570 = vmatpush1.msra.mxu0 %v1012
    %5571 = vmatprep.subr.mxu0 %v1017
    %5572 = vmatpush1.msra.mxu0 %v1016
    %5573 = vmatprep.subr.mxu0 %v1021
    %5574 = vmatpush1.msra.mxu0 %v1020
    %5575 = vmatprep.subr.mxu0 %v1025
    %5576 = vmatpush1.msra.mxu0 %v1024
    %5577 = vmatprep.subr.mxu0 %v1029
    %5578 = vmatpush1.msra.mxu0 %v1028
    %5579 = vmatprep.subr.mxu0 %v1033
    %5580 = vmatpush1.msra.mxu0 %v1032
    %5581 = vmatprep.subr.mxu0 %v1037
    %5582 = vmatpush1.msra.mxu0 %v1036
    %5583 = vmatprep.subr.mxu0 %v1041
    %5584 = vmatpush1.msra.mxu0 %v1040
    %5585 = vmatprep.subr.mxu0 %v1045
    %5586 = vmatpush1.msra.mxu0 %v1044
    %5587 = vmatprep.subr.mxu0 %v1049
    %5588 = vmatpush1.msra.mxu0 %v1048
    %5589 = vmatprep.subr.mxu0 %v1053
    %5590 = vmatpush1.msra.mxu0 %v1052
    %5591 = vmatprep.subr.mxu0 %v1057
    %5592 = vmatpush1.msra.mxu0 %v1056
    %5593 = vmatprep.subr.mxu0 0.0
    %5594 = vmatpush1.msra.mxu0 0.0
    %5595 = vmatprep.subr.mxu0 0.0
    %5596 = vmatpush1.msra.mxu0 0.0
    %5597 = vmatprep.subr.mxu0 0.0
    %5598 = vmatpush1.msra.mxu0 0.0
    %5599 = vmatprep.subr.mxu0 0.0
    %5600 = vmatpush1.msra.mxu0 0.0
    %5601 = vmatprep.subr.mxu0 0.0
    %5602 = vmatpush1.msra.mxu0 0.0
    %5603 = vmatprep.subr.mxu0 0.0
    %5604 = vmatpush1.msra.mxu0 0.0
    %5605 = vmatprep.subr.mxu0 0.0
    %5606 = vmatpush1.msra.mxu0 0.0
    %5607 = vmatprep.subr.mxu0 0.0
    %5608 = vmatpush1.msra.mxu0 0.0
    %5609 = vmatprep.subr.mxu0 0.0
    %5610 = vmatpush1.msra.mxu0 0.0
    %5611 = vmatprep.subr.mxu0 0.0
    %5612 = vmatpush1.msra.mxu0 0.0
    %5613 = vmatprep.subr.mxu0 0.0
    %5614 = vmatpush1.msra.mxu0 0.0
    %5615 = vmatprep.subr.mxu0 0.0
    %5616 = vmatpush1.msra.mxu0 0.0
    %5617 = vmatprep.subr.mxu0 0.0
    %5618 = vmatpush1.msra.mxu0 0.0
    %5619 = vmatprep.subr.mxu0 0.0
    %5620 = vmatpush1.msra.mxu0 0.0
    %5621 = vmatprep.subr.mxu0 0.0
    %5622 = vmatpush1.msra.mxu0 0.0
    %5623 = vmatprep.subr.mxu0 0.0
    %5624 = vmatpush1.msra.mxu0 0.0
    %5625 = vmatprep.mubr.f32.mxu0 0.0
    %5626 = vmatmul.mubr.f32.gmra.mrb[0].mxu0 %v5482
    %v5627 = vpop.f32.mrb[0].mxu0
    %v5628 = vadd.f32 0.0, %v5627
    %v5629 = vpop.f32.mrb[0].mxu0
    %v5630 = vadd.f32 0.0, %v5629
    %5631 = vdwg.mxu0
    %v5632 = vadd.f32 %v5486, %v5557
    %v5633 = vadd.f32 %v5487, %v5559
    %v5634 = vadd.f32 %v5488, %v5628
    %v5635 = vadd.f32 %v5489, %v5630
    %v5636 = vxor.u32 %v5632, 2147483648
    %v5637 = vxor.u32 %v5633, 2147483648
    %v5638 = vxor.u32 %v5634, 2147483648
    %v5639 = vmul.f32 %v5636, 1.442695
    %v5640 = vpow.pop %v5639
    %v5641 = vmul.f32 %v5637, 1.442695
    %v5642 = vpow.pop %v5641
    %v5643 = vmul.f32 %v5638, 1.442695
    %v5644 = vpow.pop %v5643
    %v5645 = vadd.f32 %v5640, 1.0
    %v5646 = vadd.f32 %v5642, 1.0
    %v5647 = vadd.f32 %v5644, 1.0
    %v5648 = vrcp.pop %v5645
    %v5649 = vmul.f32 1.0, %v5648
    %v5650 = vrcp.pop %v5646
    %v5651 = vmul.f32 1.0, %v5650
    %v5652 = vrcp.pop %v5647
    %v5653 = vmul.f32 1.0, %v5652
    %v5654 = vtanh.pop %v5635
    %v5655 = vmul.f32 %v5651, %v5480
    %v5656 = vmul.f32 %v5649, %v5654
    %v5657 = vadd.f32 %v5655, %v5656
    %v5658 = vtanh.pop %v5657
    %v5659 = vmul.f32 %v5653, %v5658
    %s5660 = smul.u32 26, 4
    %s5661 = smul.addr %s5660, 8
    %s5662 = scalar_lea.vmem [#allocation2], %s5661
    %v5663 = vld [vmem:[%s5662] sm:$0xff]
    %v5664 = vld [vmem:[%s5662 + $0x8] sm:$0xff]
    %v5665 = vld [vmem:[%s5662 + $0x10] sm:$0xff]
    %v5666 = vld [vmem:[%s5662 + $0x18] sm:$0xff]
    %5667 = vmatprep.subr.mxu0 %v995
    %5668 = vmatpush1.msra.mxu0 %v994
    %5669 = vmatprep.subr.mxu0 %v999
    %5670 = vmatpush1.msra.mxu0 %v998
    %5671 = vmatprep.subr.mxu0 %v1003
    %5672 = vmatpush1.msra.mxu0 %v1002
    %5673 = vmatprep.subr.mxu0 %v1007
    %5674 = vmatpush1.msra.mxu0 %v1006
    %5675 = vmatprep.subr.mxu0 %v1011
    %5676 = vmatpush1.msra.mxu0 %v1010
    %5677 = vmatprep.subr.mxu0 %v1015
    %5678 = vmatpush1.msra.mxu0 %v1014
    %5679 = vmatprep.subr.mxu0 %v1019
    %5680 = vmatpush1.msra.mxu0 %v1018
    %5681 = vmatprep.subr.mxu0 %v1023
    %5682 = vmatpush1.msra.mxu0 %v1022
    %5683 = vmatprep.subr.mxu0 %v1027
    %5684 = vmatpush1.msra.mxu0 %v1026
    %5685 = vmatprep.subr.mxu0 %v1031
    %5686 = vmatpush1.msra.mxu0 %v1030
    %5687 = vmatprep.subr.mxu0 %v1035
    %5688 = vmatpush1.msra.mxu0 %v1034
    %5689 = vmatprep.subr.mxu0 %v1039
    %5690 = vmatpush1.msra.mxu0 %v1038
    %5691 = vmatprep.subr.mxu0 %v1043
    %5692 = vmatpush1.msra.mxu0 %v1042
    %5693 = vmatprep.subr.mxu0 %v1047
    %5694 = vmatpush1.msra.mxu0 %v1046
    %5695 = vmatprep.subr.mxu0 %v1051
    %5696 = vmatpush1.msra.mxu0 %v1050
    %5697 = vmatprep.subr.mxu0 %v1055
    %5698 = vmatpush1.msra.mxu0 %v1054
    %5699 = vmatprep.subr.mxu0 0.0
    %5700 = vmatpush1.msra.mxu0 0.0
    %5701 = vmatprep.subr.mxu0 0.0
    %5702 = vmatpush1.msra.mxu0 0.0
    %5703 = vmatprep.subr.mxu0 0.0
    %5704 = vmatpush1.msra.mxu0 0.0
    %5705 = vmatprep.subr.mxu0 0.0
    %5706 = vmatpush1.msra.mxu0 0.0
    %5707 = vmatprep.subr.mxu0 0.0
    %5708 = vmatpush1.msra.mxu0 0.0
    %5709 = vmatprep.subr.mxu0 0.0
    %5710 = vmatpush1.msra.mxu0 0.0
    %5711 = vmatprep.subr.mxu0 0.0
    %5712 = vmatpush1.msra.mxu0 0.0
    %5713 = vmatprep.subr.mxu0 0.0
    %5714 = vmatpush1.msra.mxu0 0.0
    %5715 = vmatprep.subr.mxu0 0.0
    %5716 = vmatpush1.msra.mxu0 0.0
    %5717 = vmatprep.subr.mxu0 0.0
    %5718 = vmatpush1.msra.mxu0 0.0
    %5719 = vmatprep.subr.mxu0 0.0
    %5720 = vmatpush1.msra.mxu0 0.0
    %5721 = vmatprep.subr.mxu0 0.0
    %5722 = vmatpush1.msra.mxu0 0.0
    %5723 = vmatprep.subr.mxu0 0.0
    %5724 = vmatpush1.msra.mxu0 0.0
    %5725 = vmatprep.subr.mxu0 0.0
    %5726 = vmatpush1.msra.mxu0 0.0
    %5727 = vmatprep.subr.mxu0 0.0
    %5728 = vmatpush1.msra.mxu0 0.0
    %5729 = vmatprep.subr.mxu0 0.0
    %5730 = vmatpush1.msra.mxu0 0.0
    %5731 = vmatprep.mubr.f32.mxu0 0.0
    %5732 = vmatmul.mubr.f32.gmra.mrb[0].mxu0 %v5659
    %v5733 = vpop.f32.mrb[0].mxu0
    %v5734 = vadd.f32 0.0, %v5733
    %v5735 = vpop.f32.mrb[0].mxu0
    %v5736 = vadd.f32 0.0, %v5735
    %5737 = vdwg.mxu0
    %5738 = vmatprep.subr.mxu0 %v997
    %5739 = vmatpush1.msra.mxu0 %v996
    %5740 = vmatprep.subr.mxu0 %v1001
    %5741 = vmatpush1.msra.mxu0 %v1000
    %5742 = vmatprep.subr.mxu0 %v1005
    %5743 = vmatpush1.msra.mxu0 %v1004
    %5744 = vmatprep.subr.mxu0 %v1009
    %5745 = vmatpush1.msra.mxu0 %v1008
    %5746 = vmatprep.subr.mxu0 %v1013
    %5747 = vmatpush1.msra.mxu0 %v1012
    %5748 = vmatprep.subr.mxu0 %v1017
    %5749 = vmatpush1.msra.mxu0 %v1016
    %5750 = vmatprep.subr.mxu0 %v1021
    %5751 = vmatpush1.msra.mxu0 %v1020
    %5752 = vmatprep.subr.mxu0 %v1025
    %5753 = vmatpush1.msra.mxu0 %v1024
    %5754 = vmatprep.subr.mxu0 %v1029
    %5755 = vmatpush1.msra.mxu0 %v1028
    %5756 = vmatprep.subr.mxu0 %v1033
    %5757 = vmatpush1.msra.mxu0 %v1032
    %5758 = vmatprep.subr.mxu0 %v1037
    %5759 = vmatpush1.msra.mxu0 %v1036
    %5760 = vmatprep.subr.mxu0 %v1041
    %5761 = vmatpush1.msra.mxu0 %v1040
    %5762 = vmatprep.subr.mxu0 %v1045
    %5763 = vmatpush1.msra.mxu0 %v1044
    %5764 = vmatprep.subr.mxu0 %v1049
    %5765 = vmatpush1.msra.mxu0 %v1048
    %5766 = vmatprep.subr.mxu0 %v1053
    %5767 = vmatpush1.msra.mxu0 %v1052
    %5768 = vmatprep.subr.mxu0 %v1057
    %5769 = vmatpush1.msra.mxu0 %v1056
    %5770 = vmatprep.subr.mxu0 0.0
    %5771 = vmatpush1.msra.mxu0 0.0
    %5772 = vmatprep.subr.mxu0 0.0
    %5773 = vmatpush1.msra.mxu0 0.0
    %5774 = vmatprep.subr.mxu0 0.0
    %5775 = vmatpush1.msra.mxu0 0.0
    %5776 = vmatprep.subr.mxu0 0.0
    %5777 = vmatpush1.msra.mxu0 0.0
    %5778 = vmatprep.subr.mxu0 0.0
    %5779 = vmatpush1.msra.mxu0 0.0
    %5780 = vmatprep.subr.mxu0 0.0
    %5781 = vmatpush1.msra.mxu0 0.0
    %5782 = vmatprep.subr.mxu0 0.0
    %5783 = vmatpush1.msra.mxu0 0.0
    %5784 = vmatprep.subr.mxu0 0.0
    %5785 = vmatpush1.msra.mxu0 0.0
    %5786 = vmatprep.subr.mxu0 0.0
    %5787 = vmatpush1.msra.mxu0 0.0
    %5788 = vmatprep.subr.mxu0 0.0
    %5789 = vmatpush1.msra.mxu0 0.0
    %5790 = vmatprep.subr.mxu0 0.0
    %5791 = vmatpush1.msra.mxu0 0.0
    %5792 = vmatprep.subr.mxu0 0.0
    %5793 = vmatpush1.msra.mxu0 0.0
    %5794 = vmatprep.subr.mxu0 0.0
    %5795 = vmatpush1.msra.mxu0 0.0
    %5796 = vmatprep.subr.mxu0 0.0
    %5797 = vmatpush1.msra.mxu0 0.0
    %5798 = vmatprep.subr.mxu0 0.0
    %5799 = vmatpush1.msra.mxu0 0.0
    %5800 = vmatprep.subr.mxu0 0.0
    %5801 = vmatpush1.msra.mxu0 0.0
    %5802 = vmatprep.mubr.f32.mxu0 0.0
    %5803 = vmatmul.mubr.f32.gmra.mrb[0].mxu0 %v5659
    %v5804 = vpop.f32.mrb[0].mxu0
    %v5805 = vadd.f32 0.0, %v5804
    %v5806 = vpop.f32.mrb[0].mxu0
    %v5807 = vadd.f32 0.0, %v5806
    %5808 = vdwg.mxu0
    %v5809 = vadd.f32 %v5663, %v5734
    %v5810 = vadd.f32 %v5664, %v5736
    %v5811 = vadd.f32 %v5665, %v5805
    %v5812 = vadd.f32 %v5666, %v5807
    %v5813 = vxor.u32 %v5809, 2147483648
    %v5814 = vxor.u32 %v5810, 2147483648
    %v5815 = vxor.u32 %v5811, 2147483648
    %v5816 = vmul.f32 %v5813, 1.442695
    %v5817 = vpow.pop %v5816
    %v5818 = vmul.f32 %v5814, 1.442695
    %v5819 = vpow.pop %v5818
    %v5820 = vmul.f32 %v5815, 1.442695
    %v5821 = vpow.pop %v5820
    %v5822 = vadd.f32 %v5817, 1.0
    %v5823 = vadd.f32 %v5819, 1.0
    %v5824 = vadd.f32 %v5821, 1.0
    %v5825 = vrcp.pop %v5822
    %v5826 = vmul.f32 1.0, %v5825
    %v5827 = vrcp.pop %v5823
    %v5828 = vmul.f32 1.0, %v5827
    %v5829 = vrcp.pop %v5824
    %v5830 = vmul.f32 1.0, %v5829
    %v5831 = vtanh.pop %v5812
    %v5832 = vmul.f32 %v5828, %v5657
    %v5833 = vmul.f32 %v5826, %v5831
    %v5834 = vadd.f32 %v5832, %v5833
    %v5835 = vtanh.pop %v5834
    %v5836 = vmul.f32 %v5830, %v5835
    %s5837 = smul.u32 27, 4
    %s5838 = smul.addr %s5837, 8
    %s5839 = scalar_lea.vmem [#allocation2], %s5838
    %v5840 = vld [vmem:[%s5839] sm:$0xff]
    %v5841 = vld [vmem:[%s5839 + $0x8] sm:$0xff]
    %v5842 = vld [vmem:[%s5839 + $0x10] sm:$0xff]
    %v5843 = vld [vmem:[%s5839 + $0x18] sm:$0xff]
    %5844 = vmatprep.subr.mxu0 %v995
    %5845 = vmatpush1.msra.mxu0 %v994
    %5846 = vmatprep.subr.mxu0 %v999
    %5847 = vmatpush1.msra.mxu0 %v998
    %5848 = vmatprep.subr.mxu0 %v1003
    %5849 = vmatpush1.msra.mxu0 %v1002
    %5850 = vmatprep.subr.mxu0 %v1007
    %5851 = vmatpush1.msra.mxu0 %v1006
    %5852 = vmatprep.subr.mxu0 %v1011
    %5853 = vmatpush1.msra.mxu0 %v1010
    %5854 = vmatprep.subr.mxu0 %v1015
    %5855 = vmatpush1.msra.mxu0 %v1014
    %5856 = vmatprep.subr.mxu0 %v1019
    %5857 = vmatpush1.msra.mxu0 %v1018
    %5858 = vmatprep.subr.mxu0 %v1023
    %5859 = vmatpush1.msra.mxu0 %v1022
    %5860 = vmatprep.subr.mxu0 %v1027
    %5861 = vmatpush1.msra.mxu0 %v1026
    %5862 = vmatprep.subr.mxu0 %v1031
    %5863 = vmatpush1.msra.mxu0 %v1030
    %5864 = vmatprep.subr.mxu0 %v1035
    %5865 = vmatpush1.msra.mxu0 %v1034
    %5866 = vmatprep.subr.mxu0 %v1039
    %5867 = vmatpush1.msra.mxu0 %v1038
    %5868 = vmatprep.subr.mxu0 %v1043
    %5869 = vmatpush1.msra.mxu0 %v1042
    %5870 = vmatprep.subr.mxu0 %v1047
    %5871 = vmatpush1.msra.mxu0 %v1046
    %5872 = vmatprep.subr.mxu0 %v1051
    %5873 = vmatpush1.msra.mxu0 %v1050
    %5874 = vmatprep.subr.mxu0 %v1055
    %5875 = vmatpush1.msra.mxu0 %v1054
    %5876 = vmatprep.subr.mxu0 0.0
    %5877 = vmatpush1.msra.mxu0 0.0
    %5878 = vmatprep.subr.mxu0 0.0
    %5879 = vmatpush1.msra.mxu0 0.0
    %5880 = vmatprep.subr.mxu0 0.0
    %5881 = vmatpush1.msra.mxu0 0.0
    %5882 = vmatprep.subr.mxu0 0.0
    %5883 = vmatpush1.msra.mxu0 0.0
    %5884 = vmatprep.subr.mxu0 0.0
    %5885 = vmatpush1.msra.mxu0 0.0
    %5886 = vmatprep.subr.mxu0 0.0
    %5887 = vmatpush1.msra.mxu0 0.0
    %5888 = vmatprep.subr.mxu0 0.0
    %5889 = vmatpush1.msra.mxu0 0.0
    %5890 = vmatprep.subr.mxu0 0.0
    %5891 = vmatpush1.msra.mxu0 0.0
    %5892 = vmatprep.subr.mxu0 0.0
    %5893 = vmatpush1.msra.mxu0 0.0
    %5894 = vmatprep.subr.mxu0 0.0
    %5895 = vmatpush1.msra.mxu0 0.0
    %5896 = vmatprep.subr.mxu0 0.0
    %5897 = vmatpush1.msra.mxu0 0.0
    %5898 = vmatprep.subr.mxu0 0.0
    %5899 = vmatpush1.msra.mxu0 0.0
    %5900 = vmatprep.subr.mxu0 0.0
    %5901 = vmatpush1.msra.mxu0 0.0
    %5902 = vmatprep.subr.mxu0 0.0
    %5903 = vmatpush1.msra.mxu0 0.0
    %5904 = vmatprep.subr.mxu0 0.0
    %5905 = vmatpush1.msra.mxu0 0.0
    %5906 = vmatprep.subr.mxu0 0.0
    %5907 = vmatpush1.msra.mxu0 0.0
    %5908 = vmatprep.mubr.f32.mxu0 0.0
    %5909 = vmatmul.mubr.f32.gmra.mrb[0].mxu0 %v5836
    %v5910 = vpop.f32.mrb[0].mxu0
    %v5911 = vadd.f32 0.0, %v5910
    %v5912 = vpop.f32.mrb[0].mxu0
    %v5913 = vadd.f32 0.0, %v5912
    %5914 = vdwg.mxu0
    %5915 = vmatprep.subr.mxu0 %v997
    %5916 = vmatpush1.msra.mxu0 %v996
    %5917 = vmatprep.subr.mxu0 %v1001
    %5918 = vmatpush1.msra.mxu0 %v1000
    %5919 = vmatprep.subr.mxu0 %v1005
    %5920 = vmatpush1.msra.mxu0 %v1004
    %5921 = vmatprep.subr.mxu0 %v1009
    %5922 = vmatpush1.msra.mxu0 %v1008
    %5923 = vmatprep.subr.mxu0 %v1013
    %5924 = vmatpush1.msra.mxu0 %v1012
    %5925 = vmatprep.subr.mxu0 %v1017
    %5926 = vmatpush1.msra.mxu0 %v1016
    %5927 = vmatprep.subr.mxu0 %v1021
    %5928 = vmatpush1.msra.mxu0 %v1020
    %5929 = vmatprep.subr.mxu0 %v1025
    %5930 = vmatpush1.msra.mxu0 %v1024
    %5931 = vmatprep.subr.mxu0 %v1029
    %5932 = vmatpush1.msra.mxu0 %v1028
    %5933 = vmatprep.subr.mxu0 %v1033
    %5934 = vmatpush1.msra.mxu0 %v1032
    %5935 = vmatprep.subr.mxu0 %v1037
    %5936 = vmatpush1.msra.mxu0 %v1036
    %5937 = vmatprep.subr.mxu0 %v1041
    %5938 = vmatpush1.msra.mxu0 %v1040
    %5939 = vmatprep.subr.mxu0 %v1045
    %5940 = vmatpush1.msra.mxu0 %v1044
    %5941 = vmatprep.subr.mxu0 %v1049
    %5942 = vmatpush1.msra.mxu0 %v1048
    %5943 = vmatprep.subr.mxu0 %v1053
    %5944 = vmatpush1.msra.mxu0 %v1052
    %5945 = vmatprep.subr.mxu0 %v1057
    %5946 = vmatpush1.msra.mxu0 %v1056
    %5947 = vmatprep.subr.mxu0 0.0
    %5948 = vmatpush1.msra.mxu0 0.0
    %5949 = vmatprep.subr.mxu0 0.0
    %5950 = vmatpush1.msra.mxu0 0.0
    %5951 = vmatprep.subr.mxu0 0.0
    %5952 = vmatpush1.msra.mxu0 0.0
    %5953 = vmatprep.subr.mxu0 0.0
    %5954 = vmatpush1.msra.mxu0 0.0
    %5955 = vmatprep.subr.mxu0 0.0
    %5956 = vmatpush1.msra.mxu0 0.0
    %5957 = vmatprep.subr.mxu0 0.0
    %5958 = vmatpush1.msra.mxu0 0.0
    %5959 = vmatprep.subr.mxu0 0.0
    %5960 = vmatpush1.msra.mxu0 0.0
    %5961 = vmatprep.subr.mxu0 0.0
    %5962 = vmatpush1.msra.mxu0 0.0
    %5963 = vmatprep.subr.mxu0 0.0
    %5964 = vmatpush1.msra.mxu0 0.0
    %5965 = vmatprep.subr.mxu0 0.0
    %5966 = vmatpush1.msra.mxu0 0.0
    %5967 = vmatprep.subr.mxu0 0.0
    %5968 = vmatpush1.msra.mxu0 0.0
    %5969 = vmatprep.subr.mxu0 0.0
    %5970 = vmatpush1.msra.mxu0 0.0
    %5971 = vmatprep.subr.mxu0 0.0
    %5972 = vmatpush1.msra.mxu0 0.0
    %5973 = vmatprep.subr.mxu0 0.0
    %5974 = vmatpush1.msra.mxu0 0.0
    %5975 = vmatprep.subr.mxu0 0.0
    %5976 = vmatpush1.msra.mxu0 0.0
    %5977 = vmatprep.subr.mxu0 0.0
    %5978 = vmatpush1.msra.mxu0 0.0
    %5979 = vmatprep.mubr.f32.mxu0 0.0
    %5980 = vmatmul.mubr.f32.gmra.mrb[0].mxu0 %v5836
    %v5981 = vpop.f32.mrb[0].mxu0
    %v5982 = vadd.f32 0.0, %v5981
    %v5983 = vpop.f32.mrb[0].mxu0
    %v5984 = vadd.f32 0.0, %v5983
    %5985 = vdwg.mxu0
    %v5986 = vadd.f32 %v5840, %v5911
    %v5987 = vadd.f32 %v5841, %v5913
    %v5988 = vadd.f32 %v5842, %v5982
    %v5989 = vadd.f32 %v5843, %v5984
    %v5990 = vxor.u32 %v5986, 2147483648
    %v5991 = vxor.u32 %v5987, 2147483648
    %v5992 = vxor.u32 %v5988, 2147483648
    %v5993 = vmul.f32 %v5990, 1.442695
    %v5994 = vpow.pop %v5993
    %v5995 = vmul.f32 %v5991, 1.442695
    %v5996 = vpow.pop %v5995
    %v5997 = vmul.f32 %v5992, 1.442695
    %v5998 = vpow.pop %v5997
    %v5999 = vadd.f32 %v5994, 1.0
    %v6000 = vadd.f32 %v5996, 1.0
    %v6001 = vadd.f32 %v5998, 1.0
    %v6002 = vrcp.pop %v5999
    %v6003 = vmul.f32 1.0, %v6002
    %v6004 = vrcp.pop %v6000
    %v6005 = vmul.f32 1.0, %v6004
    %v6006 = vrcp.pop %v6001
    %v6007 = vmul.f32 1.0, %v6006
    %v6008 = vtanh.pop %v5989
    %v6009 = vmul.f32 %v6005, %v5834
    %v6010 = vmul.f32 %v6003, %v6008
    %v6011 = vadd.f32 %v6009, %v6010
    %v6012 = vtanh.pop %v6011
    %v6013 = vmul.f32 %v6007, %v6012
    %s6014 = smul.u32 28, 4
    %s6015 = smul.addr %s6014, 8
    %s6016 = scalar_lea.vmem [#allocation2], %s6015
    %v6017 = vld [vmem:[%s6016] sm:$0xff]
    %v6018 = vld [vmem:[%s6016 + $0x8] sm:$0xff]
    %v6019 = vld [vmem:[%s6016 + $0x10] sm:$0xff]
    %v6020 = vld [vmem:[%s6016 + $0x18] sm:$0xff]
    %6021 = vmatprep.subr.mxu0 %v995
    %6022 = vmatpush1.msra.mxu0 %v994
    %6023 = vmatprep.subr.mxu0 %v999
    %6024 = vmatpush1.msra.mxu0 %v998
    %6025 = vmatprep.subr.mxu0 %v1003
    %6026 = vmatpush1.msra.mxu0 %v1002
    %6027 = vmatprep.subr.mxu0 %v1007
    %6028 = vmatpush1.msra.mxu0 %v1006
    %6029 = vmatprep.subr.mxu0 %v1011
    %6030 = vmatpush1.msra.mxu0 %v1010
    %6031 = vmatprep.subr.mxu0 %v1015
    %6032 = vmatpush1.msra.mxu0 %v1014
    %6033 = vmatprep.subr.mxu0 %v1019
    %6034 = vmatpush1.msra.mxu0 %v1018
    %6035 = vmatprep.subr.mxu0 %v1023
    %6036 = vmatpush1.msra.mxu0 %v1022
    %6037 = vmatprep.subr.mxu0 %v1027
    %6038 = vmatpush1.msra.mxu0 %v1026
    %6039 = vmatprep.subr.mxu0 %v1031
    %6040 = vmatpush1.msra.mxu0 %v1030
    %6041 = vmatprep.subr.mxu0 %v1035
    %6042 = vmatpush1.msra.mxu0 %v1034
    %6043 = vmatprep.subr.mxu0 %v1039
    %6044 = vmatpush1.msra.mxu0 %v1038
    %6045 = vmatprep.subr.mxu0 %v1043
    %6046 = vmatpush1.msra.mxu0 %v1042
    %6047 = vmatprep.subr.mxu0 %v1047
    %6048 = vmatpush1.msra.mxu0 %v1046
    %6049 = vmatprep.subr.mxu0 %v1051
    %6050 = vmatpush1.msra.mxu0 %v1050
    %6051 = vmatprep.subr.mxu0 %v1055
    %6052 = vmatpush1.msra.mxu0 %v1054
    %6053 = vmatprep.subr.mxu0 0.0
    %6054 = vmatpush1.msra.mxu0 0.0
    %6055 = vmatprep.subr.mxu0 0.0
    %6056 = vmatpush1.msra.mxu0 0.0
    %6057 = vmatprep.subr.mxu0 0.0
    %6058 = vmatpush1.msra.mxu0 0.0
    %6059 = vmatprep.subr.mxu0 0.0
    %6060 = vmatpush1.msra.mxu0 0.0
    %6061 = vmatprep.subr.mxu0 0.0
    %6062 = vmatpush1.msra.mxu0 0.0
    %6063 = vmatprep.subr.mxu0 0.0
    %6064 = vmatpush1.msra.mxu0 0.0
    %6065 = vmatprep.subr.mxu0 0.0
    %6066 = vmatpush1.msra.mxu0 0.0
    %6067 = vmatprep.subr.mxu0 0.0
    %6068 = vmatpush1.msra.mxu0 0.0
    %6069 = vmatprep.subr.mxu0 0.0
    %6070 = vmatpush1.msra.mxu0 0.0
    %6071 = vmatprep.subr.mxu0 0.0
    %6072 = vmatpush1.msra.mxu0 0.0
    %6073 = vmatprep.subr.mxu0 0.0
    %6074 = vmatpush1.msra.mxu0 0.0
    %6075 = vmatprep.subr.mxu0 0.0
    %6076 = vmatpush1.msra.mxu0 0.0
    %6077 = vmatprep.subr.mxu0 0.0
    %6078 = vmatpush1.msra.mxu0 0.0
    %6079 = vmatprep.subr.mxu0 0.0
    %6080 = vmatpush1.msra.mxu0 0.0
    %6081 = vmatprep.subr.mxu0 0.0
    %6082 = vmatpush1.msra.mxu0 0.0
    %6083 = vmatprep.subr.mxu0 0.0
    %6084 = vmatpush1.msra.mxu0 0.0
    %6085 = vmatprep.mubr.f32.mxu0 0.0
    %6086 = vmatmul.mubr.f32.gmra.mrb[0].mxu0 %v6013
    %v6087 = vpop.f32.mrb[0].mxu0
    %v6088 = vadd.f32 0.0, %v6087
    %v6089 = vpop.f32.mrb[0].mxu0
    %v6090 = vadd.f32 0.0, %v6089
    %6091 = vdwg.mxu0
    %6092 = vmatprep.subr.mxu0 %v997
    %6093 = vmatpush1.msra.mxu0 %v996
    %6094 = vmatprep.subr.mxu0 %v1001
    %6095 = vmatpush1.msra.mxu0 %v1000
    %6096 = vmatprep.subr.mxu0 %v1005
    %6097 = vmatpush1.msra.mxu0 %v1004
    %6098 = vmatprep.subr.mxu0 %v1009
    %6099 = vmatpush1.msra.mxu0 %v1008
    %6100 = vmatprep.subr.mxu0 %v1013
    %6101 = vmatpush1.msra.mxu0 %v1012
    %6102 = vmatprep.subr.mxu0 %v1017
    %6103 = vmatpush1.msra.mxu0 %v1016
    %6104 = vmatprep.subr.mxu0 %v1021
    %6105 = vmatpush1.msra.mxu0 %v1020
    %6106 = vmatprep.subr.mxu0 %v1025
    %6107 = vmatpush1.msra.mxu0 %v1024
    %6108 = vmatprep.subr.mxu0 %v1029
    %6109 = vmatpush1.msra.mxu0 %v1028
    %6110 = vmatprep.subr.mxu0 %v1033
    %6111 = vmatpush1.msra.mxu0 %v1032
    %6112 = vmatprep.subr.mxu0 %v1037
    %6113 = vmatpush1.msra.mxu0 %v1036
    %6114 = vmatprep.subr.mxu0 %v1041
    %6115 = vmatpush1.msra.mxu0 %v1040
    %6116 = vmatprep.subr.mxu0 %v1045
    %6117 = vmatpush1.msra.mxu0 %v1044
    %6118 = vmatprep.subr.mxu0 %v1049
    %6119 = vmatpush1.msra.mxu0 %v1048
    %6120 = vmatprep.subr.mxu0 %v1053
    %6121 = vmatpush1.msra.mxu0 %v1052
    %6122 = vmatprep.subr.mxu0 %v1057
    %6123 = vmatpush1.msra.mxu0 %v1056
    %6124 = vmatprep.subr.mxu0 0.0
    %6125 = vmatpush1.msra.mxu0 0.0
    %6126 = vmatprep.subr.mxu0 0.0
    %6127 = vmatpush1.msra.mxu0 0.0
    %6128 = vmatprep.subr.mxu0 0.0
    %6129 = vmatpush1.msra.mxu0 0.0
    %6130 = vmatprep.subr.mxu0 0.0
    %6131 = vmatpush1.msra.mxu0 0.0
    %6132 = vmatprep.subr.mxu0 0.0
    %6133 = vmatpush1.msra.mxu0 0.0
    %6134 = vmatprep.subr.mxu0 0.0
    %6135 = vmatpush1.msra.mxu0 0.0
    %6136 = vmatprep.subr.mxu0 0.0
    %6137 = vmatpush1.msra.mxu0 0.0
    %6138 = vmatprep.subr.mxu0 0.0
    %6139 = vmatpush1.msra.mxu0 0.0
    %6140 = vmatprep.subr.mxu0 0.0
    %6141 = vmatpush1.msra.mxu0 0.0
    %6142 = vmatprep.subr.mxu0 0.0
    %6143 = vmatpush1.msra.mxu0 0.0
    %6144 = vmatprep.subr.mxu0 0.0
    %6145 = vmatpush1.msra.mxu0 0.0
    %6146 = vmatprep.subr.mxu0 0.0
    %6147 = vmatpush1.msra.mxu0 0.0
    %6148 = vmatprep.subr.mxu0 0.0
    %6149 = vmatpush1.msra.mxu0 0.0
    %6150 = vmatprep.subr.mxu0 0.0
    %6151 = vmatpush1.msra.mxu0 0.0
    %6152 = vmatprep.subr.mxu0 0.0
    %6153 = vmatpush1.msra.mxu0 0.0
    %6154 = vmatprep.subr.mxu0 0.0
    %6155 = vmatpush1.msra.mxu0 0.0
    %6156 = vmatprep.mubr.f32.mxu0 0.0
    %6157 = vmatmul.mubr.f32.gmra.mrb[0].mxu0 %v6013
    %v6158 = vpop.f32.mrb[0].mxu0
    %v6159 = vadd.f32 0.0, %v6158
    %v6160 = vpop.f32.mrb[0].mxu0
    %v6161 = vadd.f32 0.0, %v6160
    %6162 = vdwg.mxu0
    %v6163 = vadd.f32 %v6017, %v6088
    %v6164 = vadd.f32 %v6018, %v6090
    %v6165 = vadd.f32 %v6019, %v6159
    %v6166 = vadd.f32 %v6020, %v6161
    %v6167 = vxor.u32 %v6163, 2147483648
    %v6168 = vxor.u32 %v6164, 2147483648
    %v6169 = vxor.u32 %v6165, 2147483648
    %v6170 = vmul.f32 %v6167, 1.442695
    %v6171 = vpow.pop %v6170
    %v6172 = vmul.f32 %v6168, 1.442695
    %v6173 = vpow.pop %v6172
    %v6174 = vmul.f32 %v6169, 1.442695
    %v6175 = vpow.pop %v6174
    %v6176 = vadd.f32 %v6171, 1.0
    %v6177 = vadd.f32 %v6173, 1.0
    %v6178 = vadd.f32 %v6175, 1.0
    %v6179 = vrcp.pop %v6176
    %v6180 = vmul.f32 1.0, %v6179
    %v6181 = vrcp.pop %v6177
    %v6182 = vmul.f32 1.0, %v6181
    %v6183 = vrcp.pop %v6178
    %v6184 = vmul.f32 1.0, %v6183
    %v6185 = vtanh.pop %v6166
    %v6186 = vmul.f32 %v6182, %v6011
    %v6187 = vmul.f32 %v6180, %v6185
    %v6188 = vadd.f32 %v6186, %v6187
    %v6189 = vtanh.pop %v6188
    %v6190 = vmul.f32 %v6184, %v6189
    %s6191 = smul.u32 29, 4
    %s6192 = smul.addr %s6191, 8
    %s6193 = scalar_lea.vmem [#allocation2], %s6192
    %v6194 = vld [vmem:[%s6193] sm:$0xff]
    %v6195 = vld [vmem:[%s6193 + $0x8] sm:$0xff]
    %v6196 = vld [vmem:[%s6193 + $0x10] sm:$0xff]
    %v6197 = vld [vmem:[%s6193 + $0x18] sm:$0xff]
    %6198 = vmatprep.subr.mxu0 %v995
    %6199 = vmatpush1.msra.mxu0 %v994
    %6200 = vmatprep.subr.mxu0 %v999
    %6201 = vmatpush1.msra.mxu0 %v998
    %6202 = vmatprep.subr.mxu0 %v1003
    %6203 = vmatpush1.msra.mxu0 %v1002
    %6204 = vmatprep.subr.mxu0 %v1007
    %6205 = vmatpush1.msra.mxu0 %v1006
    %6206 = vmatprep.subr.mxu0 %v1011
    %6207 = vmatpush1.msra.mxu0 %v1010
    %6208 = vmatprep.subr.mxu0 %v1015
    %6209 = vmatpush1.msra.mxu0 %v1014
    %6210 = vmatprep.subr.mxu0 %v1019
    %6211 = vmatpush1.msra.mxu0 %v1018
    %6212 = vmatprep.subr.mxu0 %v1023
    %6213 = vmatpush1.msra.mxu0 %v1022
    %6214 = vmatprep.subr.mxu0 %v1027
    %6215 = vmatpush1.msra.mxu0 %v1026
    %6216 = vmatprep.subr.mxu0 %v1031
    %6217 = vmatpush1.msra.mxu0 %v1030
    %6218 = vmatprep.subr.mxu0 %v1035
    %6219 = vmatpush1.msra.mxu0 %v1034
    %6220 = vmatprep.subr.mxu0 %v1039
    %6221 = vmatpush1.msra.mxu0 %v1038
    %6222 = vmatprep.subr.mxu0 %v1043
    %6223 = vmatpush1.msra.mxu0 %v1042
    %6224 = vmatprep.subr.mxu0 %v1047
    %6225 = vmatpush1.msra.mxu0 %v1046
    %6226 = vmatprep.subr.mxu0 %v1051
    %6227 = vmatpush1.msra.mxu0 %v1050
    %6228 = vmatprep.subr.mxu0 %v1055
    %6229 = vmatpush1.msra.mxu0 %v1054
    %6230 = vmatprep.subr.mxu0 0.0
    %6231 = vmatpush1.msra.mxu0 0.0
    %6232 = vmatprep.subr.mxu0 0.0
    %6233 = vmatpush1.msra.mxu0 0.0
    %6234 = vmatprep.subr.mxu0 0.0
    %6235 = vmatpush1.msra.mxu0 0.0
    %6236 = vmatprep.subr.mxu0 0.0
    %6237 = vmatpush1.msra.mxu0 0.0
    %6238 = vmatprep.subr.mxu0 0.0
    %6239 = vmatpush1.msra.mxu0 0.0
    %6240 = vmatprep.subr.mxu0 0.0
    %6241 = vmatpush1.msra.mxu0 0.0
    %6242 = vmatprep.subr.mxu0 0.0
    %6243 = vmatpush1.msra.mxu0 0.0
    %6244 = vmatprep.subr.mxu0 0.0
    %6245 = vmatpush1.msra.mxu0 0.0
    %6246 = vmatprep.subr.mxu0 0.0
    %6247 = vmatpush1.msra.mxu0 0.0
    %6248 = vmatprep.subr.mxu0 0.0
    %6249 = vmatpush1.msra.mxu0 0.0
    %6250 = vmatprep.subr.mxu0 0.0
    %6251 = vmatpush1.msra.mxu0 0.0
    %6252 = vmatprep.subr.mxu0 0.0
    %6253 = vmatpush1.msra.mxu0 0.0
    %6254 = vmatprep.subr.mxu0 0.0
    %6255 = vmatpush1.msra.mxu0 0.0
    %6256 = vmatprep.subr.mxu0 0.0
    %6257 = vmatpush1.msra.mxu0 0.0
    %6258 = vmatprep.subr.mxu0 0.0
    %6259 = vmatpush1.msra.mxu0 0.0
    %6260 = vmatprep.subr.mxu0 0.0
    %6261 = vmatpush1.msra.mxu0 0.0
    %6262 = vmatprep.mubr.f32.mxu0 0.0
    %6263 = vmatmul.mubr.f32.gmra.mrb[0].mxu0 %v6190
    %v6264 = vpop.f32.mrb[0].mxu0
    %v6265 = vadd.f32 0.0, %v6264
    %v6266 = vpop.f32.mrb[0].mxu0
    %v6267 = vadd.f32 0.0, %v6266
    %6268 = vdwg.mxu0
    %6269 = vmatprep.subr.mxu0 %v997
    %6270 = vmatpush1.msra.mxu0 %v996
    %6271 = vmatprep.subr.mxu0 %v1001
    %6272 = vmatpush1.msra.mxu0 %v1000
    %6273 = vmatprep.subr.mxu0 %v1005
    %6274 = vmatpush1.msra.mxu0 %v1004
    %6275 = vmatprep.subr.mxu0 %v1009
    %6276 = vmatpush1.msra.mxu0 %v1008
    %6277 = vmatprep.subr.mxu0 %v1013
    %6278 = vmatpush1.msra.mxu0 %v1012
    %6279 = vmatprep.subr.mxu0 %v1017
    %6280 = vmatpush1.msra.mxu0 %v1016
    %6281 = vmatprep.subr.mxu0 %v1021
    %6282 = vmatpush1.msra.mxu0 %v1020
    %6283 = vmatprep.subr.mxu0 %v1025
    %6284 = vmatpush1.msra.mxu0 %v1024
    %6285 = vmatprep.subr.mxu0 %v1029
    %6286 = vmatpush1.msra.mxu0 %v1028
    %6287 = vmatprep.subr.mxu0 %v1033
    %6288 = vmatpush1.msra.mxu0 %v1032
    %6289 = vmatprep.subr.mxu0 %v1037
    %6290 = vmatpush1.msra.mxu0 %v1036
    %6291 = vmatprep.subr.mxu0 %v1041
    %6292 = vmatpush1.msra.mxu0 %v1040
    %6293 = vmatprep.subr.mxu0 %v1045
    %6294 = vmatpush1.msra.mxu0 %v1044
    %6295 = vmatprep.subr.mxu0 %v1049
    %6296 = vmatpush1.msra.mxu0 %v1048
    %6297 = vmatprep.subr.mxu0 %v1053
    %6298 = vmatpush1.msra.mxu0 %v1052
    %6299 = vmatprep.subr.mxu0 %v1057
    %6300 = vmatpush1.msra.mxu0 %v1056
    %6301 = vmatprep.subr.mxu0 0.0
    %6302 = vmatpush1.msra.mxu0 0.0
    %6303 = vmatprep.subr.mxu0 0.0
    %6304 = vmatpush1.msra.mxu0 0.0
    %6305 = vmatprep.subr.mxu0 0.0
    %6306 = vmatpush1.msra.mxu0 0.0
    %6307 = vmatprep.subr.mxu0 0.0
    %6308 = vmatpush1.msra.mxu0 0.0
    %6309 = vmatprep.subr.mxu0 0.0
    %6310 = vmatpush1.msra.mxu0 0.0
    %6311 = vmatprep.subr.mxu0 0.0
    %6312 = vmatpush1.msra.mxu0 0.0
    %6313 = vmatprep.subr.mxu0 0.0
    %6314 = vmatpush1.msra.mxu0 0.0
    %6315 = vmatprep.subr.mxu0 0.0
    %6316 = vmatpush1.msra.mxu0 0.0
    %6317 = vmatprep.subr.mxu0 0.0
    %6318 = vmatpush1.msra.mxu0 0.0
    %6319 = vmatprep.subr.mxu0 0.0
    %6320 = vmatpush1.msra.mxu0 0.0
    %6321 = vmatprep.subr.mxu0 0.0
    %6322 = vmatpush1.msra.mxu0 0.0
    %6323 = vmatprep.subr.mxu0 0.0
    %6324 = vmatpush1.msra.mxu0 0.0
    %6325 = vmatprep.subr.mxu0 0.0
    %6326 = vmatpush1.msra.mxu0 0.0
    %6327 = vmatprep.subr.mxu0 0.0
    %6328 = vmatpush1.msra.mxu0 0.0
    %6329 = vmatprep.subr.mxu0 0.0
    %6330 = vmatpush1.msra.mxu0 0.0
    %6331 = vmatprep.subr.mxu0 0.0
    %6332 = vmatpush1.msra.mxu0 0.0
    %6333 = vmatprep.mubr.f32.mxu0 0.0
    %6334 = vmatmul.mubr.f32.gmra.mrb[0].mxu0 %v6190
    %v6335 = vpop.f32.mrb[0].mxu0
    %v6336 = vadd.f32 0.0, %v6335
    %v6337 = vpop.f32.mrb[0].mxu0
    %v6338 = vadd.f32 0.0, %v6337
    %6339 = vdwg.mxu0
    %v6340 = vadd.f32 %v6194, %v6265
    %v6341 = vadd.f32 %v6195, %v6267
    %v6342 = vadd.f32 %v6196, %v6336
    %v6343 = vadd.f32 %v6197, %v6338
    %v6344 = vxor.u32 %v6340, 2147483648
    %v6345 = vxor.u32 %v6341, 2147483648
    %v6346 = vxor.u32 %v6342, 2147483648
    %v6347 = vmul.f32 %v6344, 1.442695
    %v6348 = vpow.pop %v6347
    %v6349 = vmul.f32 %v6345, 1.442695
    %v6350 = vpow.pop %v6349
    %v6351 = vmul.f32 %v6346, 1.442695
    %v6352 = vpow.pop %v6351
    %v6353 = vadd.f32 %v6348, 1.0
    %v6354 = vadd.f32 %v6350, 1.0
    %v6355 = vadd.f32 %v6352, 1.0
    %v6356 = vrcp.pop %v6353
    %v6357 = vmul.f32 1.0, %v6356
    %v6358 = vrcp.pop %v6354
    %v6359 = vmul.f32 1.0, %v6358
    %v6360 = vrcp.pop %v6355
    %v6361 = vmul.f32 1.0, %v6360
    %v6362 = vtanh.pop %v6343
    %v6363 = vmul.f32 %v6359, %v6188
    %v6364 = vmul.f32 %v6357, %v6362
    %v6365 = vadd.f32 %v6363, %v6364
    %v6366 = vtanh.pop %v6365
    %v6367 = vmul.f32 %v6361, %v6366
    %s6368 = smul.u32 30, 4
    %s6369 = smul.addr %s6368, 8
    %s6370 = scalar_lea.vmem [#allocation2], %s6369
    %v6371 = vld [vmem:[%s6370] sm:$0xff]
    %v6372 = vld [vmem:[%s6370 + $0x8] sm:$0xff]
    %v6373 = vld [vmem:[%s6370 + $0x10] sm:$0xff]
    %v6374 = vld [vmem:[%s6370 + $0x18] sm:$0xff]
    %6375 = vmatprep.subr.mxu0 %v995
    %6376 = vmatpush1.msra.mxu0 %v994
    %6377 = vmatprep.subr.mxu0 %v999
    %6378 = vmatpush1.msra.mxu0 %v998
    %6379 = vmatprep.subr.mxu0 %v1003
    %6380 = vmatpush1.msra.mxu0 %v1002
    %6381 = vmatprep.subr.mxu0 %v1007
    %6382 = vmatpush1.msra.mxu0 %v1006
    %6383 = vmatprep.subr.mxu0 %v1011
    %6384 = vmatpush1.msra.mxu0 %v1010
    %6385 = vmatprep.subr.mxu0 %v1015
    %6386 = vmatpush1.msra.mxu0 %v1014
    %6387 = vmatprep.subr.mxu0 %v1019
    %6388 = vmatpush1.msra.mxu0 %v1018
    %6389 = vmatprep.subr.mxu0 %v1023
    %6390 = vmatpush1.msra.mxu0 %v1022
    %6391 = vmatprep.subr.mxu0 %v1027
    %6392 = vmatpush1.msra.mxu0 %v1026
    %6393 = vmatprep.subr.mxu0 %v1031
    %6394 = vmatpush1.msra.mxu0 %v1030
    %6395 = vmatprep.subr.mxu0 %v1035
    %6396 = vmatpush1.msra.mxu0 %v1034
    %6397 = vmatprep.subr.mxu0 %v1039
    %6398 = vmatpush1.msra.mxu0 %v1038
    %6399 = vmatprep.subr.mxu0 %v1043
    %6400 = vmatpush1.msra.mxu0 %v1042
    %6401 = vmatprep.subr.mxu0 %v1047
    %6402 = vmatpush1.msra.mxu0 %v1046
    %6403 = vmatprep.subr.mxu0 %v1051
    %6404 = vmatpush1.msra.mxu0 %v1050
    %6405 = vmatprep.subr.mxu0 %v1055
    %6406 = vmatpush1.msra.mxu0 %v1054
    %6407 = vmatprep.subr.mxu0 0.0
    %6408 = vmatpush1.msra.mxu0 0.0
    %6409 = vmatprep.subr.mxu0 0.0
    %6410 = vmatpush1.msra.mxu0 0.0
    %6411 = vmatprep.subr.mxu0 0.0
    %6412 = vmatpush1.msra.mxu0 0.0
    %6413 = vmatprep.subr.mxu0 0.0
    %6414 = vmatpush1.msra.mxu0 0.0
    %6415 = vmatprep.subr.mxu0 0.0
    %6416 = vmatpush1.msra.mxu0 0.0
    %6417 = vmatprep.subr.mxu0 0.0
    %6418 = vmatpush1.msra.mxu0 0.0
    %6419 = vmatprep.subr.mxu0 0.0
    %6420 = vmatpush1.msra.mxu0 0.0
    %6421 = vmatprep.subr.mxu0 0.0
    %6422 = vmatpush1.msra.mxu0 0.0
    %6423 = vmatprep.subr.mxu0 0.0
    %6424 = vmatpush1.msra.mxu0 0.0
    %6425 = vmatprep.subr.mxu0 0.0
    %6426 = vmatpush1.msra.mxu0 0.0
    %6427 = vmatprep.subr.mxu0 0.0
    %6428 = vmatpush1.msra.mxu0 0.0
    %6429 = vmatprep.subr.mxu0 0.0
    %6430 = vmatpush1.msra.mxu0 0.0
    %6431 = vmatprep.subr.mxu0 0.0
    %6432 = vmatpush1.msra.mxu0 0.0
    %6433 = vmatprep.subr.mxu0 0.0
    %6434 = vmatpush1.msra.mxu0 0.0
    %6435 = vmatprep.subr.mxu0 0.0
    %6436 = vmatpush1.msra.mxu0 0.0
    %6437 = vmatprep.subr.mxu0 0.0
    %6438 = vmatpush1.msra.mxu0 0.0
    %6439 = vmatprep.mubr.f32.mxu0 0.0
    %6440 = vmatmul.mubr.f32.gmra.mrb[0].mxu0 %v6367
    %v6441 = vpop.f32.mrb[0].mxu0
    %v6442 = vadd.f32 0.0, %v6441
    %v6443 = vpop.f32.mrb[0].mxu0
    %v6444 = vadd.f32 0.0, %v6443
    %6445 = vdwg.mxu0
    %6446 = vmatprep.subr.mxu0 %v997
    %6447 = vmatpush1.msra.mxu0 %v996
    %6448 = vmatprep.subr.mxu0 %v1001
    %6449 = vmatpush1.msra.mxu0 %v1000
    %6450 = vmatprep.subr.mxu0 %v1005
    %6451 = vmatpush1.msra.mxu0 %v1004
    %6452 = vmatprep.subr.mxu0 %v1009
    %6453 = vmatpush1.msra.mxu0 %v1008
    %6454 = vmatprep.subr.mxu0 %v1013
    %6455 = vmatpush1.msra.mxu0 %v1012
    %6456 = vmatprep.subr.mxu0 %v1017
    %6457 = vmatpush1.msra.mxu0 %v1016
    %6458 = vmatprep.subr.mxu0 %v1021
    %6459 = vmatpush1.msra.mxu0 %v1020
    %6460 = vmatprep.subr.mxu0 %v1025
    %6461 = vmatpush1.msra.mxu0 %v1024
    %6462 = vmatprep.subr.mxu0 %v1029
    %6463 = vmatpush1.msra.mxu0 %v1028
    %6464 = vmatprep.subr.mxu0 %v1033
    %6465 = vmatpush1.msra.mxu0 %v1032
    %6466 = vmatprep.subr.mxu0 %v1037
    %6467 = vmatpush1.msra.mxu0 %v1036
    %6468 = vmatprep.subr.mxu0 %v1041
    %6469 = vmatpush1.msra.mxu0 %v1040
    %6470 = vmatprep.subr.mxu0 %v1045
    %6471 = vmatpush1.msra.mxu0 %v1044
    %6472 = vmatprep.subr.mxu0 %v1049
    %6473 = vmatpush1.msra.mxu0 %v1048
    %6474 = vmatprep.subr.mxu0 %v1053
    %6475 = vmatpush1.msra.mxu0 %v1052
    %6476 = vmatprep.subr.mxu0 %v1057
    %6477 = vmatpush1.msra.mxu0 %v1056
    %6478 = vmatprep.subr.mxu0 0.0
    %6479 = vmatpush1.msra.mxu0 0.0
    %6480 = vmatprep.subr.mxu0 0.0
    %6481 = vmatpush1.msra.mxu0 0.0
    %6482 = vmatprep.subr.mxu0 0.0
    %6483 = vmatpush1.msra.mxu0 0.0
    %6484 = vmatprep.subr.mxu0 0.0
    %6485 = vmatpush1.msra.mxu0 0.0
    %6486 = vmatprep.subr.mxu0 0.0
    %6487 = vmatpush1.msra.mxu0 0.0
    %6488 = vmatprep.subr.mxu0 0.0
    %6489 = vmatpush1.msra.mxu0 0.0
    %6490 = vmatprep.subr.mxu0 0.0
    %6491 = vmatpush1.msra.mxu0 0.0
    %6492 = vmatprep.subr.mxu0 0.0
    %6493 = vmatpush1.msra.mxu0 0.0
    %6494 = vmatprep.subr.mxu0 0.0
    %6495 = vmatpush1.msra.mxu0 0.0
    %6496 = vmatprep.subr.mxu0 0.0
    %6497 = vmatpush1.msra.mxu0 0.0
    %6498 = vmatprep.subr.mxu0 0.0
    %6499 = vmatpush1.msra.mxu0 0.0
    %6500 = vmatprep.subr.mxu0 0.0
    %6501 = vmatpush1.msra.mxu0 0.0
    %6502 = vmatprep.subr.mxu0 0.0
    %6503 = vmatpush1.msra.mxu0 0.0
    %6504 = vmatprep.subr.mxu0 0.0
    %6505 = vmatpush1.msra.mxu0 0.0
    %6506 = vmatprep.subr.mxu0 0.0
    %6507 = vmatpush1.msra.mxu0 0.0
    %6508 = vmatprep.subr.mxu0 0.0
    %6509 = vmatpush1.msra.mxu0 0.0
    %6510 = vmatprep.mubr.f32.mxu0 0.0
    %6511 = vmatmul.mubr.f32.gmra.mrb[0].mxu0 %v6367
    %v6512 = vpop.f32.mrb[0].mxu0
    %v6513 = vadd.f32 0.0, %v6512
    %v6514 = vpop.f32.mrb[0].mxu0
    %v6515 = vadd.f32 0.0, %v6514
    %6516 = vdwg.mxu0
    %v6517 = vadd.f32 %v6371, %v6442
    %v6518 = vadd.f32 %v6372, %v6444
    %v6519 = vadd.f32 %v6373, %v6513
    %v6520 = vadd.f32 %v6374, %v6515
    %v6521 = vxor.u32 %v6517, 2147483648
    %v6522 = vxor.u32 %v6518, 2147483648
    %v6523 = vxor.u32 %v6519, 2147483648
    %v6524 = vmul.f32 %v6521, 1.442695
    %v6525 = vpow.pop %v6524
    %v6526 = vmul.f32 %v6522, 1.442695
    %v6527 = vpow.pop %v6526
    %v6528 = vmul.f32 %v6523, 1.442695
    %v6529 = vpow.pop %v6528
    %v6530 = vadd.f32 %v6525, 1.0
    %v6531 = vadd.f32 %v6527, 1.0
    %v6532 = vadd.f32 %v6529, 1.0
    %v6533 = vrcp.pop %v6530
    %v6534 = vmul.f32 1.0, %v6533
    %v6535 = vrcp.pop %v6531
    %v6536 = vmul.f32 1.0, %v6535
    %v6537 = vrcp.pop %v6532
    %v6538 = vmul.f32 1.0, %v6537
    %v6539 = vtanh.pop %v6520
    %v6540 = vmul.f32 %v6536, %v6365
    %v6541 = vmul.f32 %v6534, %v6539
    %v6542 = vadd.f32 %v6540, %v6541
    %v6543 = vtanh.pop %v6542
    %v6544 = vmul.f32 %v6538, %v6543
    %s6545 = smul.u32 31, 4
    %s6546 = smul.addr %s6545, 8
    %s6547 = scalar_lea.vmem [#allocation2], %s6546
    %v6548 = vld [vmem:[%s6547] sm:$0xff]
    %v6549 = vld [vmem:[%s6547 + $0x8] sm:$0xff]
    %v6550 = vld [vmem:[%s6547 + $0x10] sm:$0xff]
    %v6551 = vld [vmem:[%s6547 + $0x18] sm:$0xff]
    %6552 = vmatprep.subr.mxu0 %v995
    %6553 = vmatpush1.msra.mxu0 %v994
    %6554 = vmatprep.subr.mxu0 %v999
    %6555 = vmatpush1.msra.mxu0 %v998
    %6556 = vmatprep.subr.mxu0 %v1003
    %6557 = vmatpush1.msra.mxu0 %v1002
    %6558 = vmatprep.subr.mxu0 %v1007
    %6559 = vmatpush1.msra.mxu0 %v1006
    %6560 = vmatprep.subr.mxu0 %v1011
    %6561 = vmatpush1.msra.mxu0 %v1010
    %6562 = vmatprep.subr.mxu0 %v1015
    %6563 = vmatpush1.msra.mxu0 %v1014
    %6564 = vmatprep.subr.mxu0 %v1019
    %6565 = vmatpush1.msra.mxu0 %v1018
    %6566 = vmatprep.subr.mxu0 %v1023
    %6567 = vmatpush1.msra.mxu0 %v1022
    %6568 = vmatprep.subr.mxu0 %v1027
    %6569 = vmatpush1.msra.mxu0 %v1026
    %6570 = vmatprep.subr.mxu0 %v1031
    %6571 = vmatpush1.msra.mxu0 %v1030
    %6572 = vmatprep.subr.mxu0 %v1035
    %6573 = vmatpush1.msra.mxu0 %v1034
    %6574 = vmatprep.subr.mxu0 %v1039
    %6575 = vmatpush1.msra.mxu0 %v1038
    %6576 = vmatprep.subr.mxu0 %v1043
    %6577 = vmatpush1.msra.mxu0 %v1042
    %6578 = vmatprep.subr.mxu0 %v1047
    %6579 = vmatpush1.msra.mxu0 %v1046
    %6580 = vmatprep.subr.mxu0 %v1051
    %6581 = vmatpush1.msra.mxu0 %v1050
    %6582 = vmatprep.subr.mxu0 %v1055
    %6583 = vmatpush1.msra.mxu0 %v1054
    %6584 = vmatprep.subr.mxu0 0.0
    %6585 = vmatpush1.msra.mxu0 0.0
    %6586 = vmatprep.subr.mxu0 0.0
    %6587 = vmatpush1.msra.mxu0 0.0
    %6588 = vmatprep.subr.mxu0 0.0
    %6589 = vmatpush1.msra.mxu0 0.0
    %6590 = vmatprep.subr.mxu0 0.0
    %6591 = vmatpush1.msra.mxu0 0.0
    %6592 = vmatprep.subr.mxu0 0.0
    %6593 = vmatpush1.msra.mxu0 0.0
    %6594 = vmatprep.subr.mxu0 0.0
    %6595 = vmatpush1.msra.mxu0 0.0
    %6596 = vmatprep.subr.mxu0 0.0
    %6597 = vmatpush1.msra.mxu0 0.0
    %6598 = vmatprep.subr.mxu0 0.0
    %6599 = vmatpush1.msra.mxu0 0.0
    %6600 = vmatprep.subr.mxu0 0.0
    %6601 = vmatpush1.msra.mxu0 0.0
    %6602 = vmatprep.subr.mxu0 0.0
    %6603 = vmatpush1.msra.mxu0 0.0
    %6604 = vmatprep.subr.mxu0 0.0
    %6605 = vmatpush1.msra.mxu0 0.0
    %6606 = vmatprep.subr.mxu0 0.0
    %6607 = vmatpush1.msra.mxu0 0.0
    %6608 = vmatprep.subr.mxu0 0.0
    %6609 = vmatpush1.msra.mxu0 0.0
    %6610 = vmatprep.subr.mxu0 0.0
    %6611 = vmatpush1.msra.mxu0 0.0
    %6612 = vmatprep.subr.mxu0 0.0
    %6613 = vmatpush1.msra.mxu0 0.0
    %6614 = vmatprep.subr.mxu0 0.0
    %6615 = vmatpush1.msra.mxu0 0.0
    %6616 = vmatprep.mubr.f32.mxu0 0.0
    %6617 = vmatmul.mubr.f32.gmra.mrb[0].mxu0 %v6544
    %v6618 = vpop.f32.mrb[0].mxu0
    %v6619 = vadd.f32 0.0, %v6618
    %v6620 = vpop.f32.mrb[0].mxu0
    %v6621 = vadd.f32 0.0, %v6620
    %6622 = vdwg.mxu0
    %6623 = vmatprep.subr.mxu0 %v997
    %6624 = vmatpush1.msra.mxu0 %v996
    %6625 = vmatprep.subr.mxu0 %v1001
    %6626 = vmatpush1.msra.mxu0 %v1000
    %6627 = vmatprep.subr.mxu0 %v1005
    %6628 = vmatpush1.msra.mxu0 %v1004
    %6629 = vmatprep.subr.mxu0 %v1009
    %6630 = vmatpush1.msra.mxu0 %v1008
    %6631 = vmatprep.subr.mxu0 %v1013
    %6632 = vmatpush1.msra.mxu0 %v1012
    %6633 = vmatprep.subr.mxu0 %v1017
    %6634 = vmatpush1.msra.mxu0 %v1016
    %6635 = vmatprep.subr.mxu0 %v1021
    %6636 = vmatpush1.msra.mxu0 %v1020
    %6637 = vmatprep.subr.mxu0 %v1025
    %6638 = vmatpush1.msra.mxu0 %v1024
    %6639 = vmatprep.subr.mxu0 %v1029
    %6640 = vmatpush1.msra.mxu0 %v1028
    %6641 = vmatprep.subr.mxu0 %v1033
    %6642 = vmatpush1.msra.mxu0 %v1032
    %6643 = vmatprep.subr.mxu0 %v1037
    %6644 = vmatpush1.msra.mxu0 %v1036
    %6645 = vmatprep.subr.mxu0 %v1041
    %6646 = vmatpush1.msra.mxu0 %v1040
    %6647 = vmatprep.subr.mxu0 %v1045
    %6648 = vmatpush1.msra.mxu0 %v1044
    %6649 = vmatprep.subr.mxu0 %v1049
    %6650 = vmatpush1.msra.mxu0 %v1048
    %6651 = vmatprep.subr.mxu0 %v1053
    %6652 = vmatpush1.msra.mxu0 %v1052
    %6653 = vmatprep.subr.mxu0 %v1057
    %6654 = vmatpush1.msra.mxu0 %v1056
    %6655 = vmatprep.subr.mxu0 0.0
    %6656 = vmatpush1.msra.mxu0 0.0
    %6657 = vmatprep.subr.mxu0 0.0
    %6658 = vmatpush1.msra.mxu0 0.0
    %6659 = vmatprep.subr.mxu0 0.0
    %6660 = vmatpush1.msra.mxu0 0.0
    %6661 = vmatprep.subr.mxu0 0.0
    %6662 = vmatpush1.msra.mxu0 0.0
    %6663 = vmatprep.subr.mxu0 0.0
    %6664 = vmatpush1.msra.mxu0 0.0
    %6665 = vmatprep.subr.mxu0 0.0
    %6666 = vmatpush1.msra.mxu0 0.0
    %6667 = vmatprep.subr.mxu0 0.0
    %6668 = vmatpush1.msra.mxu0 0.0
    %6669 = vmatprep.subr.mxu0 0.0
    %6670 = vmatpush1.msra.mxu0 0.0
    %6671 = vmatprep.subr.mxu0 0.0
    %6672 = vmatpush1.msra.mxu0 0.0
    %6673 = vmatprep.subr.mxu0 0.0
    %6674 = vmatpush1.msra.mxu0 0.0
    %6675 = vmatprep.subr.mxu0 0.0
    %6676 = vmatpush1.msra.mxu0 0.0
    %6677 = vmatprep.subr.mxu0 0.0
    %6678 = vmatpush1.msra.mxu0 0.0
    %6679 = vmatprep.subr.mxu0 0.0
    %6680 = vmatpush1.msra.mxu0 0.0
    %6681 = vmatprep.subr.mxu0 0.0
    %6682 = vmatpush1.msra.mxu0 0.0
    %6683 = vmatprep.subr.mxu0 0.0
    %6684 = vmatpush1.msra.mxu0 0.0
    %6685 = vmatprep.subr.mxu0 0.0
    %6686 = vmatpush1.msra.mxu0 0.0
    %6687 = vmatprep.mubr.f32.mxu0 0.0
    %6688 = vmatmul.mubr.f32.gmra.mrb[0].mxu0 %v6544
    %v6689 = vpop.f32.mrb[0].mxu0
    %v6690 = vadd.f32 0.0, %v6689
    %v6691 = vpop.f32.mrb[0].mxu0
    %v6692 = vadd.f32 0.0, %v6691
    %6693 = vdwg.mxu0
    %v6694 = vadd.f32 %v6548, %v6619
    %v6695 = vadd.f32 %v6549, %v6621
    %v6696 = vadd.f32 %v6550, %v6690
    %v6697 = vadd.f32 %v6551, %v6692
    %v6698 = vxor.u32 %v6694, 2147483648
    %v6699 = vxor.u32 %v6695, 2147483648
    %v6700 = vxor.u32 %v6696, 2147483648
    %v6701 = vmul.f32 %v6698, 1.442695
    %v6702 = vpow.pop %v6701
    %v6703 = vmul.f32 %v6699, 1.442695
    %v6704 = vpow.pop %v6703
    %v6705 = vmul.f32 %v6700, 1.442695
    %v6706 = vpow.pop %v6705
    %v6707 = vadd.f32 %v6702, 1.0
    %v6708 = vadd.f32 %v6704, 1.0
    %v6709 = vadd.f32 %v6706, 1.0
    %v6710 = vrcp.pop %v6707
    %v6711 = vmul.f32 1.0, %v6710
    %v6712 = vrcp.pop %v6708
    %v6713 = vmul.f32 1.0, %v6712
    %v6714 = vrcp.pop %v6709
    %v6715 = vmul.f32 1.0, %v6714
    %v6716 = vtanh.pop %v6697
    %v6717 = vmul.f32 %v6713, %v6542
    %v6718 = vmul.f32 %v6711, %v6716
    %v6719 = vadd.f32 %v6717, %v6718
    %v6720 = vtanh.pop %v6719
    %v6721 = vmul.f32 %v6715, %v6720
    %s6722 = smul.u32 32, 4
    %s6723 = smul.addr %s6722, 8
    %s6724 = scalar_lea.vmem [#allocation2], %s6723
    %v6725 = vld [vmem:[%s6724] sm:$0xff]
    %v6726 = vld [vmem:[%s6724 + $0x8] sm:$0xff]
    %v6727 = vld [vmem:[%s6724 + $0x10] sm:$0xff]
    %v6728 = vld [vmem:[%s6724 + $0x18] sm:$0xff]
    %6729 = vmatprep.subr.mxu0 %v995
    %6730 = vmatpush1.msra.mxu0 %v994
    %6731 = vmatprep.subr.mxu0 %v999
    %6732 = vmatpush1.msra.mxu0 %v998
    %6733 = vmatprep.subr.mxu0 %v1003
    %6734 = vmatpush1.msra.mxu0 %v1002
    %6735 = vmatprep.subr.mxu0 %v1007
    %6736 = vmatpush1.msra.mxu0 %v1006
    %6737 = vmatprep.subr.mxu0 %v1011
    %6738 = vmatpush1.msra.mxu0 %v1010
    %6739 = vmatprep.subr.mxu0 %v1015
    %6740 = vmatpush1.msra.mxu0 %v1014
    %6741 = vmatprep.subr.mxu0 %v1019
    %6742 = vmatpush1.msra.mxu0 %v1018
    %6743 = vmatprep.subr.mxu0 %v1023
    %6744 = vmatpush1.msra.mxu0 %v1022
    %6745 = vmatprep.subr.mxu0 %v1027
    %6746 = vmatpush1.msra.mxu0 %v1026
    %6747 = vmatprep.subr.mxu0 %v1031
    %6748 = vmatpush1.msra.mxu0 %v1030
    %6749 = vmatprep.subr.mxu0 %v1035
    %6750 = vmatpush1.msra.mxu0 %v1034
    %6751 = vmatprep.subr.mxu0 %v1039
    %6752 = vmatpush1.msra.mxu0 %v1038
    %6753 = vmatprep.subr.mxu0 %v1043
    %6754 = vmatpush1.msra.mxu0 %v1042
    %6755 = vmatprep.subr.mxu0 %v1047
    %6756 = vmatpush1.msra.mxu0 %v1046
    %6757 = vmatprep.subr.mxu0 %v1051
    %6758 = vmatpush1.msra.mxu0 %v1050
    %6759 = vmatprep.subr.mxu0 %v1055
    %6760 = vmatpush1.msra.mxu0 %v1054
    %6761 = vmatprep.subr.mxu0 0.0
    %6762 = vmatpush1.msra.mxu0 0.0
    %6763 = vmatprep.subr.mxu0 0.0
    %6764 = vmatpush1.msra.mxu0 0.0
    %6765 = vmatprep.subr.mxu0 0.0
    %6766 = vmatpush1.msra.mxu0 0.0
    %6767 = vmatprep.subr.mxu0 0.0
    %6768 = vmatpush1.msra.mxu0 0.0
    %6769 = vmatprep.subr.mxu0 0.0
    %6770 = vmatpush1.msra.mxu0 0.0
    %6771 = vmatprep.subr.mxu0 0.0
    %6772 = vmatpush1.msra.mxu0 0.0
    %6773 = vmatprep.subr.mxu0 0.0
    %6774 = vmatpush1.msra.mxu0 0.0
    %6775 = vmatprep.subr.mxu0 0.0
    %6776 = vmatpush1.msra.mxu0 0.0
    %6777 = vmatprep.subr.mxu0 0.0
    %6778 = vmatpush1.msra.mxu0 0.0
    %6779 = vmatprep.subr.mxu0 0.0
    %6780 = vmatpush1.msra.mxu0 0.0
    %6781 = vmatprep.subr.mxu0 0.0
    %6782 = vmatpush1.msra.mxu0 0.0
    %6783 = vmatprep.subr.mxu0 0.0
    %6784 = vmatpush1.msra.mxu0 0.0
    %6785 = vmatprep.subr.mxu0 0.0
    %6786 = vmatpush1.msra.mxu0 0.0
    %6787 = vmatprep.subr.mxu0 0.0
    %6788 = vmatpush1.msra.mxu0 0.0
    %6789 = vmatprep.subr.mxu0 0.0
    %6790 = vmatpush1.msra.mxu0 0.0
    %6791 = vmatprep.subr.mxu0 0.0
    %6792 = vmatpush1.msra.mxu0 0.0
    %6793 = vmatprep.mubr.f32.mxu0 0.0
    %6794 = vmatmul.mubr.f32.gmra.mrb[0].mxu0 %v6721
    %v6795 = vpop.f32.mrb[0].mxu0
    %v6796 = vadd.f32 0.0, %v6795
    %v6797 = vpop.f32.mrb[0].mxu0
    %v6798 = vadd.f32 0.0, %v6797
    %6799 = vdwg.mxu0
    %6800 = vmatprep.subr.mxu0 %v997
    %6801 = vmatpush1.msra.mxu0 %v996
    %6802 = vmatprep.subr.mxu0 %v1001
    %6803 = vmatpush1.msra.mxu0 %v1000
    %6804 = vmatprep.subr.mxu0 %v1005
    %6805 = vmatpush1.msra.mxu0 %v1004
    %6806 = vmatprep.subr.mxu0 %v1009
    %6807 = vmatpush1.msra.mxu0 %v1008
    %6808 = vmatprep.subr.mxu0 %v1013
    %6809 = vmatpush1.msra.mxu0 %v1012
    %6810 = vmatprep.subr.mxu0 %v1017
    %6811 = vmatpush1.msra.mxu0 %v1016
    %6812 = vmatprep.subr.mxu0 %v1021
    %6813 = vmatpush1.msra.mxu0 %v1020
    %6814 = vmatprep.subr.mxu0 %v1025
    %6815 = vmatpush1.msra.mxu0 %v1024
    %6816 = vmatprep.subr.mxu0 %v1029
    %6817 = vmatpush1.msra.mxu0 %v1028
    %6818 = vmatprep.subr.mxu0 %v1033
    %6819 = vmatpush1.msra.mxu0 %v1032
    %6820 = vmatprep.subr.mxu0 %v1037
    %6821 = vmatpush1.msra.mxu0 %v1036
    %6822 = vmatprep.subr.mxu0 %v1041
    %6823 = vmatpush1.msra.mxu0 %v1040
    %6824 = vmatprep.subr.mxu0 %v1045
    %6825 = vmatpush1.msra.mxu0 %v1044
    %6826 = vmatprep.subr.mxu0 %v1049
    %6827 = vmatpush1.msra.mxu0 %v1048
    %6828 = vmatprep.subr.mxu0 %v1053
    %6829 = vmatpush1.msra.mxu0 %v1052
    %6830 = vmatprep.subr.mxu0 %v1057
    %6831 = vmatpush1.msra.mxu0 %v1056
    %6832 = vmatprep.subr.mxu0 0.0
    %6833 = vmatpush1.msra.mxu0 0.0
    %6834 = vmatprep.subr.mxu0 0.0
    %6835 = vmatpush1.msra.mxu0 0.0
    %6836 = vmatprep.subr.mxu0 0.0
    %6837 = vmatpush1.msra.mxu0 0.0
    %6838 = vmatprep.subr.mxu0 0.0
    %6839 = vmatpush1.msra.mxu0 0.0
    %6840 = vmatprep.subr.mxu0 0.0
    %6841 = vmatpush1.msra.mxu0 0.0
    %6842 = vmatprep.subr.mxu0 0.0
    %6843 = vmatpush1.msra.mxu0 0.0
    %6844 = vmatprep.subr.mxu0 0.0
    %6845 = vmatpush1.msra.mxu0 0.0
    %6846 = vmatprep.subr.mxu0 0.0
    %6847 = vmatpush1.msra.mxu0 0.0
    %6848 = vmatprep.subr.mxu0 0.0
    %6849 = vmatpush1.msra.mxu0 0.0
    %6850 = vmatprep.subr.mxu0 0.0
    %6851 = vmatpush1.msra.mxu0 0.0
    %6852 = vmatprep.subr.mxu0 0.0
    %6853 = vmatpush1.msra.mxu0 0.0
    %6854 = vmatprep.subr.mxu0 0.0
    %6855 = vmatpush1.msra.mxu0 0.0
    %6856 = vmatprep.subr.mxu0 0.0
    %6857 = vmatpush1.msra.mxu0 0.0
    %6858 = vmatprep.subr.mxu0 0.0
    %6859 = vmatpush1.msra.mxu0 0.0
    %6860 = vmatprep.subr.mxu0 0.0
    %6861 = vmatpush1.msra.mxu0 0.0
    %6862 = vmatprep.subr.mxu0 0.0
    %6863 = vmatpush1.msra.mxu0 0.0
    %6864 = vmatprep.mubr.f32.mxu0 0.0
    %6865 = vmatmul.mubr.f32.gmra.mrb[0].mxu0 %v6721
    %v6866 = vpop.f32.mrb[0].mxu0
    %v6867 = vadd.f32 0.0, %v6866
    %v6868 = vpop.f32.mrb[0].mxu0
    %v6869 = vadd.f32 0.0, %v6868
    %6870 = vdwg.mxu0
    %v6871 = vadd.f32 %v6725, %v6796
    %v6872 = vadd.f32 %v6726, %v6798
    %v6873 = vadd.f32 %v6727, %v6867
    %v6874 = vadd.f32 %v6728, %v6869
    %v6875 = vxor.u32 %v6871, 2147483648
    %v6876 = vxor.u32 %v6872, 2147483648
    %v6877 = vxor.u32 %v6873, 2147483648
    %v6878 = vmul.f32 %v6875, 1.442695
    %v6879 = vpow.pop %v6878
    %v6880 = vmul.f32 %v6876, 1.442695
    %v6881 = vpow.pop %v6880
    %v6882 = vmul.f32 %v6877, 1.442695
    %v6883 = vpow.pop %v6882
    %v6884 = vadd.f32 %v6879, 1.0
    %v6885 = vadd.f32 %v6881, 1.0
    %v6886 = vadd.f32 %v6883, 1.0
    %v6887 = vrcp.pop %v6884
    %v6888 = vmul.f32 1.0, %v6887
    %v6889 = vrcp.pop %v6885
    %v6890 = vmul.f32 1.0, %v6889
    %v6891 = vrcp.pop %v6886
    %v6892 = vmul.f32 1.0, %v6891
    %v6893 = vtanh.pop %v6874
    %v6894 = vmul.f32 %v6890, %v6719
    %v6895 = vmul.f32 %v6888, %v6893
    %v6896 = vadd.f32 %v6894, %v6895
    %v6897 = vtanh.pop %v6896
    %v6898 = vmul.f32 %v6892, %v6897
    %s6899 = smul.u32 33, 4
    %s6900 = smul.addr %s6899, 8
    %s6901 = scalar_lea.vmem [#allocation2], %s6900
    %v6902 = vld [vmem:[%s6901] sm:$0xff]
    %v6903 = vld [vmem:[%s6901 + $0x8] sm:$0xff]
    %v6904 = vld [vmem:[%s6901 + $0x10] sm:$0xff]
    %v6905 = vld [vmem:[%s6901 + $0x18] sm:$0xff]
    %6906 = vmatprep.subr.mxu0 %v995
    %6907 = vmatpush1.msra.mxu0 %v994
    %6908 = vmatprep.subr.mxu0 %v999
    %6909 = vmatpush1.msra.mxu0 %v998
    %6910 = vmatprep.subr.mxu0 %v1003
    %6911 = vmatpush1.msra.mxu0 %v1002
    %6912 = vmatprep.subr.mxu0 %v1007
    %6913 = vmatpush1.msra.mxu0 %v1006
    %6914 = vmatprep.subr.mxu0 %v1011
    %6915 = vmatpush1.msra.mxu0 %v1010
    %6916 = vmatprep.subr.mxu0 %v1015
    %6917 = vmatpush1.msra.mxu0 %v1014
    %6918 = vmatprep.subr.mxu0 %v1019
    %6919 = vmatpush1.msra.mxu0 %v1018
    %6920 = vmatprep.subr.mxu0 %v1023
    %6921 = vmatpush1.msra.mxu0 %v1022
    %6922 = vmatprep.subr.mxu0 %v1027
    %6923 = vmatpush1.msra.mxu0 %v1026
    %6924 = vmatprep.subr.mxu0 %v1031
    %6925 = vmatpush1.msra.mxu0 %v1030
    %6926 = vmatprep.subr.mxu0 %v1035
    %6927 = vmatpush1.msra.mxu0 %v1034
    %6928 = vmatprep.subr.mxu0 %v1039
    %6929 = vmatpush1.msra.mxu0 %v1038
    %6930 = vmatprep.subr.mxu0 %v1043
    %6931 = vmatpush1.msra.mxu0 %v1042
    %6932 = vmatprep.subr.mxu0 %v1047
    %6933 = vmatpush1.msra.mxu0 %v1046
    %6934 = vmatprep.subr.mxu0 %v1051
    %6935 = vmatpush1.msra.mxu0 %v1050
    %6936 = vmatprep.subr.mxu0 %v1055
    %6937 = vmatpush1.msra.mxu0 %v1054
    %6938 = vmatprep.subr.mxu0 0.0
    %6939 = vmatpush1.msra.mxu0 0.0
    %6940 = vmatprep.subr.mxu0 0.0
    %6941 = vmatpush1.msra.mxu0 0.0
    %6942 = vmatprep.subr.mxu0 0.0
    %6943 = vmatpush1.msra.mxu0 0.0
    %6944 = vmatprep.subr.mxu0 0.0
    %6945 = vmatpush1.msra.mxu0 0.0
    %6946 = vmatprep.subr.mxu0 0.0
    %6947 = vmatpush1.msra.mxu0 0.0
    %6948 = vmatprep.subr.mxu0 0.0
    %6949 = vmatpush1.msra.mxu0 0.0
    %6950 = vmatprep.subr.mxu0 0.0
    %6951 = vmatpush1.msra.mxu0 0.0
    %6952 = vmatprep.subr.mxu0 0.0
    %6953 = vmatpush1.msra.mxu0 0.0
    %6954 = vmatprep.subr.mxu0 0.0
    %6955 = vmatpush1.msra.mxu0 0.0
    %6956 = vmatprep.subr.mxu0 0.0
    %6957 = vmatpush1.msra.mxu0 0.0
    %6958 = vmatprep.subr.mxu0 0.0
    %6959 = vmatpush1.msra.mxu0 0.0
    %6960 = vmatprep.subr.mxu0 0.0
    %6961 = vmatpush1.msra.mxu0 0.0
    %6962 = vmatprep.subr.mxu0 0.0
    %6963 = vmatpush1.msra.mxu0 0.0
    %6964 = vmatprep.subr.mxu0 0.0
    %6965 = vmatpush1.msra.mxu0 0.0
    %6966 = vmatprep.subr.mxu0 0.0
    %6967 = vmatpush1.msra.mxu0 0.0
    %6968 = vmatprep.subr.mxu0 0.0
    %6969 = vmatpush1.msra.mxu0 0.0
    %6970 = vmatprep.mubr.f32.mxu0 0.0
    %6971 = vmatmul.mubr.f32.gmra.mrb[0].mxu0 %v6898
    %v6972 = vpop.f32.mrb[0].mxu0
    %v6973 = vadd.f32 0.0, %v6972
    %v6974 = vpop.f32.mrb[0].mxu0
    %v6975 = vadd.f32 0.0, %v6974
    %6976 = vdwg.mxu0
    %6977 = vmatprep.subr.mxu0 %v997
    %6978 = vmatpush1.msra.mxu0 %v996
    %6979 = vmatprep.subr.mxu0 %v1001
    %6980 = vmatpush1.msra.mxu0 %v1000
    %6981 = vmatprep.subr.mxu0 %v1005
    %6982 = vmatpush1.msra.mxu0 %v1004
    %6983 = vmatprep.subr.mxu0 %v1009
    %6984 = vmatpush1.msra.mxu0 %v1008
    %6985 = vmatprep.subr.mxu0 %v1013
    %6986 = vmatpush1.msra.mxu0 %v1012
    %6987 = vmatprep.subr.mxu0 %v1017
    %6988 = vmatpush1.msra.mxu0 %v1016
    %6989 = vmatprep.subr.mxu0 %v1021
    %6990 = vmatpush1.msra.mxu0 %v1020
    %6991 = vmatprep.subr.mxu0 %v1025
    %6992 = vmatpush1.msra.mxu0 %v1024
    %6993 = vmatprep.subr.mxu0 %v1029
    %6994 = vmatpush1.msra.mxu0 %v1028
    %6995 = vmatprep.subr.mxu0 %v1033
    %6996 = vmatpush1.msra.mxu0 %v1032
    %6997 = vmatprep.subr.mxu0 %v1037
    %6998 = vmatpush1.msra.mxu0 %v1036
    %6999 = vmatprep.subr.mxu0 %v1041
    %7000 = vmatpush1.msra.mxu0 %v1040
    %7001 = vmatprep.subr.mxu0 %v1045
    %7002 = vmatpush1.msra.mxu0 %v1044
    %7003 = vmatprep.subr.mxu0 %v1049
    %7004 = vmatpush1.msra.mxu0 %v1048
    %7005 = vmatprep.subr.mxu0 %v1053
    %7006 = vmatpush1.msra.mxu0 %v1052
    %7007 = vmatprep.subr.mxu0 %v1057
    %7008 = vmatpush1.msra.mxu0 %v1056
    %7009 = vmatprep.subr.mxu0 0.0
    %7010 = vmatpush1.msra.mxu0 0.0
    %7011 = vmatprep.subr.mxu0 0.0
    %7012 = vmatpush1.msra.mxu0 0.0
    %7013 = vmatprep.subr.mxu0 0.0
    %7014 = vmatpush1.msra.mxu0 0.0
    %7015 = vmatprep.subr.mxu0 0.0
    %7016 = vmatpush1.msra.mxu0 0.0
    %7017 = vmatprep.subr.mxu0 0.0
    %7018 = vmatpush1.msra.mxu0 0.0
    %7019 = vmatprep.subr.mxu0 0.0
    %7020 = vmatpush1.msra.mxu0 0.0
    %7021 = vmatprep.subr.mxu0 0.0
    %7022 = vmatpush1.msra.mxu0 0.0
    %7023 = vmatprep.subr.mxu0 0.0
    %7024 = vmatpush1.msra.mxu0 0.0
    %7025 = vmatprep.subr.mxu0 0.0
    %7026 = vmatpush1.msra.mxu0 0.0
    %7027 = vmatprep.subr.mxu0 0.0
    %7028 = vmatpush1.msra.mxu0 0.0
    %7029 = vmatprep.subr.mxu0 0.0
    %7030 = vmatpush1.msra.mxu0 0.0
    %7031 = vmatprep.subr.mxu0 0.0
    %7032 = vmatpush1.msra.mxu0 0.0
    %7033 = vmatprep.subr.mxu0 0.0
    %7034 = vmatpush1.msra.mxu0 0.0
    %7035 = vmatprep.subr.mxu0 0.0
    %7036 = vmatpush1.msra.mxu0 0.0
    %7037 = vmatprep.subr.mxu0 0.0
    %7038 = vmatpush1.msra.mxu0 0.0
    %7039 = vmatprep.subr.mxu0 0.0
    %7040 = vmatpush1.msra.mxu0 0.0
    %7041 = vmatprep.mubr.f32.mxu0 0.0
    %7042 = vmatmul.mubr.f32.gmra.mrb[0].mxu0 %v6898
    %v7043 = vpop.f32.mrb[0].mxu0
    %v7044 = vadd.f32 0.0, %v7043
    %v7045 = vpop.f32.mrb[0].mxu0
    %v7046 = vadd.f32 0.0, %v7045
    %7047 = vdwg.mxu0
    %v7048 = vadd.f32 %v6902, %v6973
    %v7049 = vadd.f32 %v6903, %v6975
    %v7050 = vadd.f32 %v6904, %v7044
    %v7051 = vadd.f32 %v6905, %v7046
    %v7052 = vxor.u32 %v7048, 2147483648
    %v7053 = vxor.u32 %v7049, 2147483648
    %v7054 = vxor.u32 %v7050, 2147483648
    %v7055 = vmul.f32 %v7052, 1.442695
    %v7056 = vpow.pop %v7055
    %v7057 = vmul.f32 %v7053, 1.442695
    %v7058 = vpow.pop %v7057
    %v7059 = vmul.f32 %v7054, 1.442695
    %v7060 = vpow.pop %v7059
    %v7061 = vadd.f32 %v7056, 1.0
    %v7062 = vadd.f32 %v7058, 1.0
    %v7063 = vadd.f32 %v7060, 1.0
    %v7064 = vrcp.pop %v7061
    %v7065 = vmul.f32 1.0, %v7064
    %v7066 = vrcp.pop %v7062
    %v7067 = vmul.f32 1.0, %v7066
    %v7068 = vrcp.pop %v7063
    %v7069 = vmul.f32 1.0, %v7068
    %v7070 = vtanh.pop %v7051
    %v7071 = vmul.f32 %v7067, %v6896
    %v7072 = vmul.f32 %v7065, %v7070
    %v7073 = vadd.f32 %v7071, %v7072
    %v7074 = vtanh.pop %v7073
    %v7075 = vmul.f32 %v7069, %v7074
    %s7076 = smul.u32 34, 4
    %s7077 = smul.addr %s7076, 8
    %s7078 = scalar_lea.vmem [#allocation2], %s7077
    %v7079 = vld [vmem:[%s7078] sm:$0xff]
    %v7080 = vld [vmem:[%s7078 + $0x8] sm:$0xff]
    %v7081 = vld [vmem:[%s7078 + $0x10] sm:$0xff]
    %v7082 = vld [vmem:[%s7078 + $0x18] sm:$0xff]
    %7083 = vmatprep.subr.mxu0 %v995
    %7084 = vmatpush1.msra.mxu0 %v994
    %7085 = vmatprep.subr.mxu0 %v999
    %7086 = vmatpush1.msra.mxu0 %v998
    %7087 = vmatprep.subr.mxu0 %v1003
    %7088 = vmatpush1.msra.mxu0 %v1002
    %7089 = vmatprep.subr.mxu0 %v1007
    %7090 = vmatpush1.msra.mxu0 %v1006
    %7091 = vmatprep.subr.mxu0 %v1011
    %7092 = vmatpush1.msra.mxu0 %v1010
    %7093 = vmatprep.subr.mxu0 %v1015
    %7094 = vmatpush1.msra.mxu0 %v1014
    %7095 = vmatprep.subr.mxu0 %v1019
    %7096 = vmatpush1.msra.mxu0 %v1018
    %7097 = vmatprep.subr.mxu0 %v1023
    %7098 = vmatpush1.msra.mxu0 %v1022
    %7099 = vmatprep.subr.mxu0 %v1027
    %7100 = vmatpush1.msra.mxu0 %v1026
    %7101 = vmatprep.subr.mxu0 %v1031
    %7102 = vmatpush1.msra.mxu0 %v1030
    %7103 = vmatprep.subr.mxu0 %v1035
    %7104 = vmatpush1.msra.mxu0 %v1034
    %7105 = vmatprep.subr.mxu0 %v1039
    %7106 = vmatpush1.msra.mxu0 %v1038
    %7107 = vmatprep.subr.mxu0 %v1043
    %7108 = vmatpush1.msra.mxu0 %v1042
    %7109 = vmatprep.subr.mxu0 %v1047
    %7110 = vmatpush1.msra.mxu0 %v1046
    %7111 = vmatprep.subr.mxu0 %v1051
    %7112 = vmatpush1.msra.mxu0 %v1050
    %7113 = vmatprep.subr.mxu0 %v1055
    %7114 = vmatpush1.msra.mxu0 %v1054
    %7115 = vmatprep.subr.mxu0 0.0
    %7116 = vmatpush1.msra.mxu0 0.0
    %7117 = vmatprep.subr.mxu0 0.0
    %7118 = vmatpush1.msra.mxu0 0.0
    %7119 = vmatprep.subr.mxu0 0.0
    %7120 = vmatpush1.msra.mxu0 0.0
    %7121 = vmatprep.subr.mxu0 0.0
    %7122 = vmatpush1.msra.mxu0 0.0
    %7123 = vmatprep.subr.mxu0 0.0
    %7124 = vmatpush1.msra.mxu0 0.0
    %7125 = vmatprep.subr.mxu0 0.0
    %7126 = vmatpush1.msra.mxu0 0.0
    %7127 = vmatprep.subr.mxu0 0.0
    %7128 = vmatpush1.msra.mxu0 0.0
    %7129 = vmatprep.subr.mxu0 0.0
    %7130 = vmatpush1.msra.mxu0 0.0
    %7131 = vmatprep.subr.mxu0 0.0
    %7132 = vmatpush1.msra.mxu0 0.0
    %7133 = vmatprep.subr.mxu0 0.0
    %7134 = vmatpush1.msra.mxu0 0.0
    %7135 = vmatprep.subr.mxu0 0.0
    %7136 = vmatpush1.msra.mxu0 0.0
    %7137 = vmatprep.subr.mxu0 0.0
    %7138 = vmatpush1.msra.mxu0 0.0
    %7139 = vmatprep.subr.mxu0 0.0
    %7140 = vmatpush1.msra.mxu0 0.0
    %7141 = vmatprep.subr.mxu0 0.0
    %7142 = vmatpush1.msra.mxu0 0.0
    %7143 = vmatprep.subr.mxu0 0.0
    %7144 = vmatpush1.msra.mxu0 0.0
    %7145 = vmatprep.subr.mxu0 0.0
    %7146 = vmatpush1.msra.mxu0 0.0
    %7147 = vmatprep.mubr.f32.mxu0 0.0
    %7148 = vmatmul.mubr.f32.gmra.mrb[0].mxu0 %v7075
    %v7149 = vpop.f32.mrb[0].mxu0
    %v7150 = vadd.f32 0.0, %v7149
    %v7151 = vpop.f32.mrb[0].mxu0
    %v7152 = vadd.f32 0.0, %v7151
    %7153 = vdwg.mxu0
    %7154 = vmatprep.subr.mxu0 %v997
    %7155 = vmatpush1.msra.mxu0 %v996
    %7156 = vmatprep.subr.mxu0 %v1001
    %7157 = vmatpush1.msra.mxu0 %v1000
    %7158 = vmatprep.subr.mxu0 %v1005
    %7159 = vmatpush1.msra.mxu0 %v1004
    %7160 = vmatprep.subr.mxu0 %v1009
    %7161 = vmatpush1.msra.mxu0 %v1008
    %7162 = vmatprep.subr.mxu0 %v1013
    %7163 = vmatpush1.msra.mxu0 %v1012
    %7164 = vmatprep.subr.mxu0 %v1017
    %7165 = vmatpush1.msra.mxu0 %v1016
    %7166 = vmatprep.subr.mxu0 %v1021
    %7167 = vmatpush1.msra.mxu0 %v1020
    %7168 = vmatprep.subr.mxu0 %v1025
    %7169 = vmatpush1.msra.mxu0 %v1024
    %7170 = vmatprep.subr.mxu0 %v1029
    %7171 = vmatpush1.msra.mxu0 %v1028
    %7172 = vmatprep.subr.mxu0 %v1033
    %7173 = vmatpush1.msra.mxu0 %v1032
    %7174 = vmatprep.subr.mxu0 %v1037
    %7175 = vmatpush1.msra.mxu0 %v1036
    %7176 = vmatprep.subr.mxu0 %v1041
    %7177 = vmatpush1.msra.mxu0 %v1040
    %7178 = vmatprep.subr.mxu0 %v1045
    %7179 = vmatpush1.msra.mxu0 %v1044
    %7180 = vmatprep.subr.mxu0 %v1049
    %7181 = vmatpush1.msra.mxu0 %v1048
    %7182 = vmatprep.subr.mxu0 %v1053
    %7183 = vmatpush1.msra.mxu0 %v1052
    %7184 = vmatprep.subr.mxu0 %v1057
    %7185 = vmatpush1.msra.mxu0 %v1056
    %7186 = vmatprep.subr.mxu0 0.0
    %7187 = vmatpush1.msra.mxu0 0.0
    %7188 = vmatprep.subr.mxu0 0.0
    %7189 = vmatpush1.msra.mxu0 0.0
    %7190 = vmatprep.subr.mxu0 0.0
    %7191 = vmatpush1.msra.mxu0 0.0
    %7192 = vmatprep.subr.mxu0 0.0
    %7193 = vmatpush1.msra.mxu0 0.0
    %7194 = vmatprep.subr.mxu0 0.0
    %7195 = vmatpush1.msra.mxu0 0.0
    %7196 = vmatprep.subr.mxu0 0.0
    %7197 = vmatpush1.msra.mxu0 0.0
    %7198 = vmatprep.subr.mxu0 0.0
    %7199 = vmatpush1.msra.mxu0 0.0
    %7200 = vmatprep.subr.mxu0 0.0
    %7201 = vmatpush1.msra.mxu0 0.0
    %7202 = vmatprep.subr.mxu0 0.0
    %7203 = vmatpush1.msra.mxu0 0.0
    %7204 = vmatprep.subr.mxu0 0.0
    %7205 = vmatpush1.msra.mxu0 0.0
    %7206 = vmatprep.subr.mxu0 0.0
    %7207 = vmatpush1.msra.mxu0 0.0
    %7208 = vmatprep.subr.mxu0 0.0
    %7209 = vmatpush1.msra.mxu0 0.0
    %7210 = vmatprep.subr.mxu0 0.0
    %7211 = vmatpush1.msra.mxu0 0.0
    %7212 = vmatprep.subr.mxu0 0.0
    %7213 = vmatpush1.msra.mxu0 0.0
    %7214 = vmatprep.subr.mxu0 0.0
    %7215 = vmatpush1.msra.mxu0 0.0
    %7216 = vmatprep.subr.mxu0 0.0
    %7217 = vmatpush1.msra.mxu0 0.0
    %7218 = vmatprep.mubr.f32.mxu0 0.0
    %7219 = vmatmul.mubr.f32.gmra.mrb[0].mxu0 %v7075
    %v7220 = vpop.f32.mrb[0].mxu0
    %v7221 = vadd.f32 0.0, %v7220
    %v7222 = vpop.f32.mrb[0].mxu0
    %v7223 = vadd.f32 0.0, %v7222
    %7224 = vdwg.mxu0
    %v7225 = vadd.f32 %v7079, %v7150
    %v7226 = vadd.f32 %v7080, %v7152
    %v7227 = vadd.f32 %v7081, %v7221
    %v7228 = vadd.f32 %v7082, %v7223
    %v7229 = vxor.u32 %v7225, 2147483648
    %v7230 = vxor.u32 %v7226, 2147483648
    %v7231 = vxor.u32 %v7227, 2147483648
    %v7232 = vmul.f32 %v7229, 1.442695
    %v7233 = vpow.pop %v7232
    %v7234 = vmul.f32 %v7230, 1.442695
    %v7235 = vpow.pop %v7234
    %v7236 = vmul.f32 %v7231, 1.442695
    %v7237 = vpow.pop %v7236
    %v7238 = vadd.f32 %v7233, 1.0
    %v7239 = vadd.f32 %v7235, 1.0
    %v7240 = vadd.f32 %v7237, 1.0
    %v7241 = vrcp.pop %v7238
    %v7242 = vmul.f32 1.0, %v7241
    %v7243 = vrcp.pop %v7239
    %v7244 = vmul.f32 1.0, %v7243
    %v7245 = vrcp.pop %v7240
    %v7246 = vmul.f32 1.0, %v7245
    %v7247 = vtanh.pop %v7228
    %v7248 = vmul.f32 %v7244, %v7073
    %v7249 = vmul.f32 %v7242, %v7247
    %v7250 = vadd.f32 %v7248, %v7249
    %v7251 = vtanh.pop %v7250
    %v7252 = vmul.f32 %v7246, %v7251
    %s7253 = smul.u32 35, 4
    %s7254 = smul.addr %s7253, 8
    %s7255 = scalar_lea.vmem [#allocation2], %s7254
    %v7256 = vld [vmem:[%s7255] sm:$0xff]
    %v7257 = vld [vmem:[%s7255 + $0x8] sm:$0xff]
    %v7258 = vld [vmem:[%s7255 + $0x10] sm:$0xff]
    %v7259 = vld [vmem:[%s7255 + $0x18] sm:$0xff]
    %7260 = vmatprep.subr.mxu0 %v995
    %7261 = vmatpush1.msra.mxu0 %v994
    %7262 = vmatprep.subr.mxu0 %v999
    %7263 = vmatpush1.msra.mxu0 %v998
    %7264 = vmatprep.subr.mxu0 %v1003
    %7265 = vmatpush1.msra.mxu0 %v1002
    %7266 = vmatprep.subr.mxu0 %v1007
    %7267 = vmatpush1.msra.mxu0 %v1006
    %7268 = vmatprep.subr.mxu0 %v1011
    %7269 = vmatpush1.msra.mxu0 %v1010
    %7270 = vmatprep.subr.mxu0 %v1015
    %7271 = vmatpush1.msra.mxu0 %v1014
    %7272 = vmatprep.subr.mxu0 %v1019
    %7273 = vmatpush1.msra.mxu0 %v1018
    %7274 = vmatprep.subr.mxu0 %v1023
    %7275 = vmatpush1.msra.mxu0 %v1022
    %7276 = vmatprep.subr.mxu0 %v1027
    %7277 = vmatpush1.msra.mxu0 %v1026
    %7278 = vmatprep.subr.mxu0 %v1031
    %7279 = vmatpush1.msra.mxu0 %v1030
    %7280 = vmatprep.subr.mxu0 %v1035
    %7281 = vmatpush1.msra.mxu0 %v1034
    %7282 = vmatprep.subr.mxu0 %v1039
    %7283 = vmatpush1.msra.mxu0 %v1038
    %7284 = vmatprep.subr.mxu0 %v1043
    %7285 = vmatpush1.msra.mxu0 %v1042
    %7286 = vmatprep.subr.mxu0 %v1047
    %7287 = vmatpush1.msra.mxu0 %v1046
    %7288 = vmatprep.subr.mxu0 %v1051
    %7289 = vmatpush1.msra.mxu0 %v1050
    %7290 = vmatprep.subr.mxu0 %v1055
    %7291 = vmatpush1.msra.mxu0 %v1054
    %7292 = vmatprep.subr.mxu0 0.0
    %7293 = vmatpush1.msra.mxu0 0.0
    %7294 = vmatprep.subr.mxu0 0.0
    %7295 = vmatpush1.msra.mxu0 0.0
    %7296 = vmatprep.subr.mxu0 0.0
    %7297 = vmatpush1.msra.mxu0 0.0
    %7298 = vmatprep.subr.mxu0 0.0
    %7299 = vmatpush1.msra.mxu0 0.0
    %7300 = vmatprep.subr.mxu0 0.0
    %7301 = vmatpush1.msra.mxu0 0.0
    %7302 = vmatprep.subr.mxu0 0.0
    %7303 = vmatpush1.msra.mxu0 0.0
    %7304 = vmatprep.subr.mxu0 0.0
    %7305 = vmatpush1.msra.mxu0 0.0
    %7306 = vmatprep.subr.mxu0 0.0
    %7307 = vmatpush1.msra.mxu0 0.0
    %7308 = vmatprep.subr.mxu0 0.0
    %7309 = vmatpush1.msra.mxu0 0.0
    %7310 = vmatprep.subr.mxu0 0.0
    %7311 = vmatpush1.msra.mxu0 0.0
    %7312 = vmatprep.subr.mxu0 0.0
    %7313 = vmatpush1.msra.mxu0 0.0
    %7314 = vmatprep.subr.mxu0 0.0
    %7315 = vmatpush1.msra.mxu0 0.0
    %7316 = vmatprep.subr.mxu0 0.0
    %7317 = vmatpush1.msra.mxu0 0.0
    %7318 = vmatprep.subr.mxu0 0.0
    %7319 = vmatpush1.msra.mxu0 0.0
    %7320 = vmatprep.subr.mxu0 0.0
    %7321 = vmatpush1.msra.mxu0 0.0
    %7322 = vmatprep.subr.mxu0 0.0
    %7323 = vmatpush1.msra.mxu0 0.0
    %7324 = vmatprep.mubr.f32.mxu0 0.0
    %7325 = vmatmul.mubr.f32.gmra.mrb[0].mxu0 %v7252
    %v7326 = vpop.f32.mrb[0].mxu0
    %v7327 = vadd.f32 0.0, %v7326
    %v7328 = vpop.f32.mrb[0].mxu0
    %v7329 = vadd.f32 0.0, %v7328
    %7330 = vdwg.mxu0
    %7331 = vmatprep.subr.mxu0 %v997
    %7332 = vmatpush1.msra.mxu0 %v996
    %7333 = vmatprep.subr.mxu0 %v1001
    %7334 = vmatpush1.msra.mxu0 %v1000
    %7335 = vmatprep.subr.mxu0 %v1005
    %7336 = vmatpush1.msra.mxu0 %v1004
    %7337 = vmatprep.subr.mxu0 %v1009
    %7338 = vmatpush1.msra.mxu0 %v1008
    %7339 = vmatprep.subr.mxu0 %v1013
    %7340 = vmatpush1.msra.mxu0 %v1012
    %7341 = vmatprep.subr.mxu0 %v1017
    %7342 = vmatpush1.msra.mxu0 %v1016
    %7343 = vmatprep.subr.mxu0 %v1021
    %7344 = vmatpush1.msra.mxu0 %v1020
    %7345 = vmatprep.subr.mxu0 %v1025
    %7346 = vmatpush1.msra.mxu0 %v1024
    %7347 = vmatprep.subr.mxu0 %v1029
    %7348 = vmatpush1.msra.mxu0 %v1028
    %7349 = vmatprep.subr.mxu0 %v1033
    %7350 = vmatpush1.msra.mxu0 %v1032
    %7351 = vmatprep.subr.mxu0 %v1037
    %7352 = vmatpush1.msra.mxu0 %v1036
    %7353 = vmatprep.subr.mxu0 %v1041
    %7354 = vmatpush1.msra.mxu0 %v1040
    %7355 = vmatprep.subr.mxu0 %v1045
    %7356 = vmatpush1.msra.mxu0 %v1044
    %7357 = vmatprep.subr.mxu0 %v1049
    %7358 = vmatpush1.msra.mxu0 %v1048
    %7359 = vmatprep.subr.mxu0 %v1053
    %7360 = vmatpush1.msra.mxu0 %v1052
    %7361 = vmatprep.subr.mxu0 %v1057
    %7362 = vmatpush1.msra.mxu0 %v1056
    %7363 = vmatprep.subr.mxu0 0.0
    %7364 = vmatpush1.msra.mxu0 0.0
    %7365 = vmatprep.subr.mxu0 0.0
    %7366 = vmatpush1.msra.mxu0 0.0
    %7367 = vmatprep.subr.mxu0 0.0
    %7368 = vmatpush1.msra.mxu0 0.0
    %7369 = vmatprep.subr.mxu0 0.0
    %7370 = vmatpush1.msra.mxu0 0.0
    %7371 = vmatprep.subr.mxu0 0.0
    %7372 = vmatpush1.msra.mxu0 0.0
    %7373 = vmatprep.subr.mxu0 0.0
    %7374 = vmatpush1.msra.mxu0 0.0
    %7375 = vmatprep.subr.mxu0 0.0
    %7376 = vmatpush1.msra.mxu0 0.0
    %7377 = vmatprep.subr.mxu0 0.0
    %7378 = vmatpush1.msra.mxu0 0.0
    %7379 = vmatprep.subr.mxu0 0.0
    %7380 = vmatpush1.msra.mxu0 0.0
    %7381 = vmatprep.subr.mxu0 0.0
    %7382 = vmatpush1.msra.mxu0 0.0
    %7383 = vmatprep.subr.mxu0 0.0
    %7384 = vmatpush1.msra.mxu0 0.0
    %7385 = vmatprep.subr.mxu0 0.0
    %7386 = vmatpush1.msra.mxu0 0.0
    %7387 = vmatprep.subr.mxu0 0.0
    %7388 = vmatpush1.msra.mxu0 0.0
    %7389 = vmatprep.subr.mxu0 0.0
    %7390 = vmatpush1.msra.mxu0 0.0
    %7391 = vmatprep.subr.mxu0 0.0
    %7392 = vmatpush1.msra.mxu0 0.0
    %7393 = vmatprep.subr.mxu0 0.0
    %7394 = vmatpush1.msra.mxu0 0.0
    %7395 = vmatprep.mubr.f32.mxu0 0.0
    %7396 = vmatmul.mubr.f32.gmra.mrb[0].mxu0 %v7252
    %v7397 = vpop.f32.mrb[0].mxu0
    %v7398 = vadd.f32 0.0, %v7397
    %v7399 = vpop.f32.mrb[0].mxu0
    %v7400 = vadd.f32 0.0, %v7399
    %7401 = vdwg.mxu0
    %v7402 = vadd.f32 %v7256, %v7327
    %v7403 = vadd.f32 %v7257, %v7329
    %v7404 = vadd.f32 %v7258, %v7398
    %v7405 = vadd.f32 %v7259, %v7400
    %v7406 = vxor.u32 %v7402, 2147483648
    %v7407 = vxor.u32 %v7403, 2147483648
    %v7408 = vxor.u32 %v7404, 2147483648
    %v7409 = vmul.f32 %v7406, 1.442695
    %v7410 = vpow.pop %v7409
    %v7411 = vmul.f32 %v7407, 1.442695
    %v7412 = vpow.pop %v7411
    %v7413 = vmul.f32 %v7408, 1.442695
    %v7414 = vpow.pop %v7413
    %v7415 = vadd.f32 %v7410, 1.0
    %v7416 = vadd.f32 %v7412, 1.0
    %v7417 = vadd.f32 %v7414, 1.0
    %v7418 = vrcp.pop %v7415
    %v7419 = vmul.f32 1.0, %v7418
    %v7420 = vrcp.pop %v7416
    %v7421 = vmul.f32 1.0, %v7420
    %v7422 = vrcp.pop %v7417
    %v7423 = vmul.f32 1.0, %v7422
    %v7424 = vtanh.pop %v7405
    %v7425 = vmul.f32 %v7421, %v7250
    %v7426 = vmul.f32 %v7419, %v7424
    %v7427 = vadd.f32 %v7425, %v7426
    %v7428 = vtanh.pop %v7427
    %v7429 = vmul.f32 %v7423, %v7428
    %s7430 = smul.u32 36, 4
    %s7431 = smul.addr %s7430, 8
    %s7432 = scalar_lea.vmem [#allocation2], %s7431
    %v7433 = vld [vmem:[%s7432] sm:$0xff]
    %v7434 = vld [vmem:[%s7432 + $0x8] sm:$0xff]
    %v7435 = vld [vmem:[%s7432 + $0x10] sm:$0xff]
    %v7436 = vld [vmem:[%s7432 + $0x18] sm:$0xff]
    %7437 = vmatprep.subr.mxu0 %v995
    %7438 = vmatpush1.msra.mxu0 %v994
    %7439 = vmatprep.subr.mxu0 %v999
    %7440 = vmatpush1.msra.mxu0 %v998
    %7441 = vmatprep.subr.mxu0 %v1003
    %7442 = vmatpush1.msra.mxu0 %v1002
    %7443 = vmatprep.subr.mxu0 %v1007
    %7444 = vmatpush1.msra.mxu0 %v1006
    %7445 = vmatprep.subr.mxu0 %v1011
    %7446 = vmatpush1.msra.mxu0 %v1010
    %7447 = vmatprep.subr.mxu0 %v1015
    %7448 = vmatpush1.msra.mxu0 %v1014
    %7449 = vmatprep.subr.mxu0 %v1019
    %7450 = vmatpush1.msra.mxu0 %v1018
    %7451 = vmatprep.subr.mxu0 %v1023
    %7452 = vmatpush1.msra.mxu0 %v1022
    %7453 = vmatprep.subr.mxu0 %v1027
    %7454 = vmatpush1.msra.mxu0 %v1026
    %7455 = vmatprep.subr.mxu0 %v1031
    %7456 = vmatpush1.msra.mxu0 %v1030
    %7457 = vmatprep.subr.mxu0 %v1035
    %7458 = vmatpush1.msra.mxu0 %v1034
    %7459 = vmatprep.subr.mxu0 %v1039
    %7460 = vmatpush1.msra.mxu0 %v1038
    %7461 = vmatprep.subr.mxu0 %v1043
    %7462 = vmatpush1.msra.mxu0 %v1042
    %7463 = vmatprep.subr.mxu0 %v1047
    %7464 = vmatpush1.msra.mxu0 %v1046
    %7465 = vmatprep.subr.mxu0 %v1051
    %7466 = vmatpush1.msra.mxu0 %v1050
    %7467 = vmatprep.subr.mxu0 %v1055
    %7468 = vmatpush1.msra.mxu0 %v1054
    %7469 = vmatprep.subr.mxu0 0.0
    %7470 = vmatpush1.msra.mxu0 0.0
    %7471 = vmatprep.subr.mxu0 0.0
    %7472 = vmatpush1.msra.mxu0 0.0
    %7473 = vmatprep.subr.mxu0 0.0
    %7474 = vmatpush1.msra.mxu0 0.0
    %7475 = vmatprep.subr.mxu0 0.0
    %7476 = vmatpush1.msra.mxu0 0.0
    %7477 = vmatprep.subr.mxu0 0.0
    %7478 = vmatpush1.msra.mxu0 0.0
    %7479 = vmatprep.subr.mxu0 0.0
    %7480 = vmatpush1.msra.mxu0 0.0
    %7481 = vmatprep.subr.mxu0 0.0
    %7482 = vmatpush1.msra.mxu0 0.0
    %7483 = vmatprep.subr.mxu0 0.0
    %7484 = vmatpush1.msra.mxu0 0.0
    %7485 = vmatprep.subr.mxu0 0.0
    %7486 = vmatpush1.msra.mxu0 0.0
    %7487 = vmatprep.subr.mxu0 0.0
    %7488 = vmatpush1.msra.mxu0 0.0
    %7489 = vmatprep.subr.mxu0 0.0
    %7490 = vmatpush1.msra.mxu0 0.0
    %7491 = vmatprep.subr.mxu0 0.0
    %7492 = vmatpush1.msra.mxu0 0.0
    %7493 = vmatprep.subr.mxu0 0.0
    %7494 = vmatpush1.msra.mxu0 0.0
    %7495 = vmatprep.subr.mxu0 0.0
    %7496 = vmatpush1.msra.mxu0 0.0
    %7497 = vmatprep.subr.mxu0 0.0
    %7498 = vmatpush1.msra.mxu0 0.0
    %7499 = vmatprep.subr.mxu0 0.0
    %7500 = vmatpush1.msra.mxu0 0.0
    %7501 = vmatprep.mubr.f32.mxu0 0.0
    %7502 = vmatmul.mubr.f32.gmra.mrb[0].mxu0 %v7429
    %v7503 = vpop.f32.mrb[0].mxu0
    %v7504 = vadd.f32 0.0, %v7503
    %v7505 = vpop.f32.mrb[0].mxu0
    %v7506 = vadd.f32 0.0, %v7505
    %7507 = vdwg.mxu0
    %7508 = vmatprep.subr.mxu0 %v997
    %7509 = vmatpush1.msra.mxu0 %v996
    %7510 = vmatprep.subr.mxu0 %v1001
    %7511 = vmatpush1.msra.mxu0 %v1000
    %7512 = vmatprep.subr.mxu0 %v1005
    %7513 = vmatpush1.msra.mxu0 %v1004
    %7514 = vmatprep.subr.mxu0 %v1009
    %7515 = vmatpush1.msra.mxu0 %v1008
    %7516 = vmatprep.subr.mxu0 %v1013
    %7517 = vmatpush1.msra.mxu0 %v1012
    %7518 = vmatprep.subr.mxu0 %v1017
    %7519 = vmatpush1.msra.mxu0 %v1016
    %7520 = vmatprep.subr.mxu0 %v1021
    %7521 = vmatpush1.msra.mxu0 %v1020
    %7522 = vmatprep.subr.mxu0 %v1025
    %7523 = vmatpush1.msra.mxu0 %v1024
    %7524 = vmatprep.subr.mxu0 %v1029
    %7525 = vmatpush1.msra.mxu0 %v1028
    %7526 = vmatprep.subr.mxu0 %v1033
    %7527 = vmatpush1.msra.mxu0 %v1032
    %7528 = vmatprep.subr.mxu0 %v1037
    %7529 = vmatpush1.msra.mxu0 %v1036
    %7530 = vmatprep.subr.mxu0 %v1041
    %7531 = vmatpush1.msra.mxu0 %v1040
    %7532 = vmatprep.subr.mxu0 %v1045
    %7533 = vmatpush1.msra.mxu0 %v1044
    %7534 = vmatprep.subr.mxu0 %v1049
    %7535 = vmatpush1.msra.mxu0 %v1048
    %7536 = vmatprep.subr.mxu0 %v1053
    %7537 = vmatpush1.msra.mxu0 %v1052
    %7538 = vmatprep.subr.mxu0 %v1057
    %7539 = vmatpush1.msra.mxu0 %v1056
    %7540 = vmatprep.subr.mxu0 0.0
    %7541 = vmatpush1.msra.mxu0 0.0
    %7542 = vmatprep.subr.mxu0 0.0
    %7543 = vmatpush1.msra.mxu0 0.0
    %7544 = vmatprep.subr.mxu0 0.0
    %7545 = vmatpush1.msra.mxu0 0.0
    %7546 = vmatprep.subr.mxu0 0.0
    %7547 = vmatpush1.msra.mxu0 0.0
    %7548 = vmatprep.subr.mxu0 0.0
    %7549 = vmatpush1.msra.mxu0 0.0
    %7550 = vmatprep.subr.mxu0 0.0
    %7551 = vmatpush1.msra.mxu0 0.0
    %7552 = vmatprep.subr.mxu0 0.0
    %7553 = vmatpush1.msra.mxu0 0.0
    %7554 = vmatprep.subr.mxu0 0.0
    %7555 = vmatpush1.msra.mxu0 0.0
    %7556 = vmatprep.subr.mxu0 0.0
    %7557 = vmatpush1.msra.mxu0 0.0
    %7558 = vmatprep.subr.mxu0 0.0
    %7559 = vmatpush1.msra.mxu0 0.0
    %7560 = vmatprep.subr.mxu0 0.0
    %7561 = vmatpush1.msra.mxu0 0.0
    %7562 = vmatprep.subr.mxu0 0.0
    %7563 = vmatpush1.msra.mxu0 0.0
    %7564 = vmatprep.subr.mxu0 0.0
    %7565 = vmatpush1.msra.mxu0 0.0
    %7566 = vmatprep.subr.mxu0 0.0
    %7567 = vmatpush1.msra.mxu0 0.0
    %7568 = vmatprep.subr.mxu0 0.0
    %7569 = vmatpush1.msra.mxu0 0.0
    %7570 = vmatprep.subr.mxu0 0.0
    %7571 = vmatpush1.msra.mxu0 0.0
    %7572 = vmatprep.mubr.f32.mxu0 0.0
    %7573 = vmatmul.mubr.f32.gmra.mrb[0].mxu0 %v7429
    %v7574 = vpop.f32.mrb[0].mxu0
    %v7575 = vadd.f32 0.0, %v7574
    %v7576 = vpop.f32.mrb[0].mxu0
    %v7577 = vadd.f32 0.0, %v7576
    %7578 = vdwg.mxu0
    %v7579 = vadd.f32 %v7433, %v7504
    %v7580 = vadd.f32 %v7434, %v7506
    %v7581 = vadd.f32 %v7435, %v7575
    %v7582 = vadd.f32 %v7436, %v7577
    %v7583 = vxor.u32 %v7579, 2147483648
    %v7584 = vxor.u32 %v7580, 2147483648
    %v7585 = vxor.u32 %v7581, 2147483648
    %v7586 = vmul.f32 %v7583, 1.442695
    %v7587 = vpow.pop %v7586
    %v7588 = vmul.f32 %v7584, 1.442695
    %v7589 = vpow.pop %v7588
    %v7590 = vmul.f32 %v7585, 1.442695
    %v7591 = vpow.pop %v7590
    %v7592 = vadd.f32 %v7587, 1.0
    %v7593 = vadd.f32 %v7589, 1.0
    %v7594 = vadd.f32 %v7591, 1.0
    %v7595 = vrcp.pop %v7592
    %v7596 = vmul.f32 1.0, %v7595
    %v7597 = vrcp.pop %v7593
    %v7598 = vmul.f32 1.0, %v7597
    %v7599 = vrcp.pop %v7594
    %v7600 = vmul.f32 1.0, %v7599
    %v7601 = vtanh.pop %v7582
    %v7602 = vmul.f32 %v7598, %v7427
    %v7603 = vmul.f32 %v7596, %v7601
    %v7604 = vadd.f32 %v7602, %v7603
    %v7605 = vtanh.pop %v7604
    %v7606 = vmul.f32 %v7600, %v7605
    %s7607 = smul.u32 37, 4
    %s7608 = smul.addr %s7607, 8
    %s7609 = scalar_lea.vmem [#allocation2], %s7608
    %v7610 = vld [vmem:[%s7609] sm:$0xff]
    %v7611 = vld [vmem:[%s7609 + $0x8] sm:$0xff]
    %v7612 = vld [vmem:[%s7609 + $0x10] sm:$0xff]
    %v7613 = vld [vmem:[%s7609 + $0x18] sm:$0xff]
    %7614 = vmatprep.subr.mxu0 %v995
    %7615 = vmatpush1.msra.mxu0 %v994
    %7616 = vmatprep.subr.mxu0 %v999
    %7617 = vmatpush1.msra.mxu0 %v998
    %7618 = vmatprep.subr.mxu0 %v1003
    %7619 = vmatpush1.msra.mxu0 %v1002
    %7620 = vmatprep.subr.mxu0 %v1007
    %7621 = vmatpush1.msra.mxu0 %v1006
    %7622 = vmatprep.subr.mxu0 %v1011
    %7623 = vmatpush1.msra.mxu0 %v1010
    %7624 = vmatprep.subr.mxu0 %v1015
    %7625 = vmatpush1.msra.mxu0 %v1014
    %7626 = vmatprep.subr.mxu0 %v1019
    %7627 = vmatpush1.msra.mxu0 %v1018
    %7628 = vmatprep.subr.mxu0 %v1023
    %7629 = vmatpush1.msra.mxu0 %v1022
    %7630 = vmatprep.subr.mxu0 %v1027
    %7631 = vmatpush1.msra.mxu0 %v1026
    %7632 = vmatprep.subr.mxu0 %v1031
    %7633 = vmatpush1.msra.mxu0 %v1030
    %7634 = vmatprep.subr.mxu0 %v1035
    %7635 = vmatpush1.msra.mxu0 %v1034
    %7636 = vmatprep.subr.mxu0 %v1039
    %7637 = vmatpush1.msra.mxu0 %v1038
    %7638 = vmatprep.subr.mxu0 %v1043
    %7639 = vmatpush1.msra.mxu0 %v1042
    %7640 = vmatprep.subr.mxu0 %v1047
    %7641 = vmatpush1.msra.mxu0 %v1046
    %7642 = vmatprep.subr.mxu0 %v1051
    %7643 = vmatpush1.msra.mxu0 %v1050
    %7644 = vmatprep.subr.mxu0 %v1055
    %7645 = vmatpush1.msra.mxu0 %v1054
    %7646 = vmatprep.subr.mxu0 0.0
    %7647 = vmatpush1.msra.mxu0 0.0
    %7648 = vmatprep.subr.mxu0 0.0
    %7649 = vmatpush1.msra.mxu0 0.0
    %7650 = vmatprep.subr.mxu0 0.0
    %7651 = vmatpush1.msra.mxu0 0.0
    %7652 = vmatprep.subr.mxu0 0.0
    %7653 = vmatpush1.msra.mxu0 0.0
    %7654 = vmatprep.subr.mxu0 0.0
    %7655 = vmatpush1.msra.mxu0 0.0
    %7656 = vmatprep.subr.mxu0 0.0
    %7657 = vmatpush1.msra.mxu0 0.0
    %7658 = vmatprep.subr.mxu0 0.0
    %7659 = vmatpush1.msra.mxu0 0.0
    %7660 = vmatprep.subr.mxu0 0.0
    %7661 = vmatpush1.msra.mxu0 0.0
    %7662 = vmatprep.subr.mxu0 0.0
    %7663 = vmatpush1.msra.mxu0 0.0
    %7664 = vmatprep.subr.mxu0 0.0
    %7665 = vmatpush1.msra.mxu0 0.0
    %7666 = vmatprep.subr.mxu0 0.0
    %7667 = vmatpush1.msra.mxu0 0.0
    %7668 = vmatprep.subr.mxu0 0.0
    %7669 = vmatpush1.msra.mxu0 0.0
    %7670 = vmatprep.subr.mxu0 0.0
    %7671 = vmatpush1.msra.mxu0 0.0
    %7672 = vmatprep.subr.mxu0 0.0
    %7673 = vmatpush1.msra.mxu0 0.0
    %7674 = vmatprep.subr.mxu0 0.0
    %7675 = vmatpush1.msra.mxu0 0.0
    %7676 = vmatprep.subr.mxu0 0.0
    %7677 = vmatpush1.msra.mxu0 0.0
    %7678 = vmatprep.mubr.f32.mxu0 0.0
    %7679 = vmatmul.mubr.f32.gmra.mrb[0].mxu0 %v7606
    %v7680 = vpop.f32.mrb[0].mxu0
    %v7681 = vadd.f32 0.0, %v7680
    %v7682 = vpop.f32.mrb[0].mxu0
    %v7683 = vadd.f32 0.0, %v7682
    %7684 = vdwg.mxu0
    %7685 = vmatprep.subr.mxu0 %v997
    %7686 = vmatpush1.msra.mxu0 %v996
    %7687 = vmatprep.subr.mxu0 %v1001
    %7688 = vmatpush1.msra.mxu0 %v1000
    %7689 = vmatprep.subr.mxu0 %v1005
    %7690 = vmatpush1.msra.mxu0 %v1004
    %7691 = vmatprep.subr.mxu0 %v1009
    %7692 = vmatpush1.msra.mxu0 %v1008
    %7693 = vmatprep.subr.mxu0 %v1013
    %7694 = vmatpush1.msra.mxu0 %v1012
    %7695 = vmatprep.subr.mxu0 %v1017
    %7696 = vmatpush1.msra.mxu0 %v1016
    %7697 = vmatprep.subr.mxu0 %v1021
    %7698 = vmatpush1.msra.mxu0 %v1020
    %7699 = vmatprep.subr.mxu0 %v1025
    %7700 = vmatpush1.msra.mxu0 %v1024
    %7701 = vmatprep.subr.mxu0 %v1029
    %7702 = vmatpush1.msra.mxu0 %v1028
    %7703 = vmatprep.subr.mxu0 %v1033
    %7704 = vmatpush1.msra.mxu0 %v1032
    %7705 = vmatprep.subr.mxu0 %v1037
    %7706 = vmatpush1.msra.mxu0 %v1036
    %7707 = vmatprep.subr.mxu0 %v1041
    %7708 = vmatpush1.msra.mxu0 %v1040
    %7709 = vmatprep.subr.mxu0 %v1045
    %7710 = vmatpush1.msra.mxu0 %v1044
    %7711 = vmatprep.subr.mxu0 %v1049
    %7712 = vmatpush1.msra.mxu0 %v1048
    %7713 = vmatprep.subr.mxu0 %v1053
    %7714 = vmatpush1.msra.mxu0 %v1052
    %7715 = vmatprep.subr.mxu0 %v1057
    %7716 = vmatpush1.msra.mxu0 %v1056
    %7717 = vmatprep.subr.mxu0 0.0
    %7718 = vmatpush1.msra.mxu0 0.0
    %7719 = vmatprep.subr.mxu0 0.0
    %7720 = vmatpush1.msra.mxu0 0.0
    %7721 = vmatprep.subr.mxu0 0.0
    %7722 = vmatpush1.msra.mxu0 0.0
    %7723 = vmatprep.subr.mxu0 0.0
    %7724 = vmatpush1.msra.mxu0 0.0
    %7725 = vmatprep.subr.mxu0 0.0
    %7726 = vmatpush1.msra.mxu0 0.0
    %7727 = vmatprep.subr.mxu0 0.0
    %7728 = vmatpush1.msra.mxu0 0.0
    %7729 = vmatprep.subr.mxu0 0.0
    %7730 = vmatpush1.msra.mxu0 0.0
    %7731 = vmatprep.subr.mxu0 0.0
    %7732 = vmatpush1.msra.mxu0 0.0
    %7733 = vmatprep.subr.mxu0 0.0
    %7734 = vmatpush1.msra.mxu0 0.0
    %7735 = vmatprep.subr.mxu0 0.0
    %7736 = vmatpush1.msra.mxu0 0.0
    %7737 = vmatprep.subr.mxu0 0.0
    %7738 = vmatpush1.msra.mxu0 0.0
    %7739 = vmatprep.subr.mxu0 0.0
    %7740 = vmatpush1.msra.mxu0 0.0
    %7741 = vmatprep.subr.mxu0 0.0
    %7742 = vmatpush1.msra.mxu0 0.0
    %7743 = vmatprep.subr.mxu0 0.0
    %7744 = vmatpush1.msra.mxu0 0.0
    %7745 = vmatprep.subr.mxu0 0.0
    %7746 = vmatpush1.msra.mxu0 0.0
    %7747 = vmatprep.subr.mxu0 0.0
    %7748 = vmatpush1.msra.mxu0 0.0
    %7749 = vmatprep.mubr.f32.mxu0 0.0
    %7750 = vmatmul.mubr.f32.gmra.mrb[0].mxu0 %v7606
    %v7751 = vpop.f32.mrb[0].mxu0
    %v7752 = vadd.f32 0.0, %v7751
    %v7753 = vpop.f32.mrb[0].mxu0
    %v7754 = vadd.f32 0.0, %v7753
    %7755 = vdwg.mxu0
    %v7756 = vadd.f32 %v7610, %v7681
    %v7757 = vadd.f32 %v7611, %v7683
    %v7758 = vadd.f32 %v7612, %v7752
    %v7759 = vadd.f32 %v7613, %v7754
    %v7760 = vxor.u32 %v7756, 2147483648
    %v7761 = vxor.u32 %v7757, 2147483648
    %v7762 = vxor.u32 %v7758, 2147483648
    %v7763 = vmul.f32 %v7760, 1.442695
    %v7764 = vpow.pop %v7763
    %v7765 = vmul.f32 %v7761, 1.442695
    %v7766 = vpow.pop %v7765
    %v7767 = vmul.f32 %v7762, 1.442695
    %v7768 = vpow.pop %v7767
    %v7769 = vadd.f32 %v7764, 1.0
    %v7770 = vadd.f32 %v7766, 1.0
    %v7771 = vadd.f32 %v7768, 1.0
    %v7772 = vrcp.pop %v7769
    %v7773 = vmul.f32 1.0, %v7772
    %v7774 = vrcp.pop %v7770
    %v7775 = vmul.f32 1.0, %v7774
    %v7776 = vrcp.pop %v7771
    %v7777 = vmul.f32 1.0, %v7776
    %v7778 = vtanh.pop %v7759
    %v7779 = vmul.f32 %v7775, %v7604
    %v7780 = vmul.f32 %v7773, %v7778
    %v7781 = vadd.f32 %v7779, %v7780
    %v7782 = vtanh.pop %v7781
    %v7783 = vmul.f32 %v7777, %v7782
    %s7784 = smul.u32 38, 4
    %s7785 = smul.addr %s7784, 8
    %s7786 = scalar_lea.vmem [#allocation2], %s7785
    %v7787 = vld [vmem:[%s7786] sm:$0xff]
    %v7788 = vld [vmem:[%s7786 + $0x8] sm:$0xff]
    %v7789 = vld [vmem:[%s7786 + $0x10] sm:$0xff]
    %v7790 = vld [vmem:[%s7786 + $0x18] sm:$0xff]
    %7791 = vmatprep.subr.mxu0 %v995
    %7792 = vmatpush1.msra.mxu0 %v994
    %7793 = vmatprep.subr.mxu0 %v999
    %7794 = vmatpush1.msra.mxu0 %v998
    %7795 = vmatprep.subr.mxu0 %v1003
    %7796 = vmatpush1.msra.mxu0 %v1002
    %7797 = vmatprep.subr.mxu0 %v1007
    %7798 = vmatpush1.msra.mxu0 %v1006
    %7799 = vmatprep.subr.mxu0 %v1011
    %7800 = vmatpush1.msra.mxu0 %v1010
    %7801 = vmatprep.subr.mxu0 %v1015
    %7802 = vmatpush1.msra.mxu0 %v1014
    %7803 = vmatprep.subr.mxu0 %v1019
    %7804 = vmatpush1.msra.mxu0 %v1018
    %7805 = vmatprep.subr.mxu0 %v1023
    %7806 = vmatpush1.msra.mxu0 %v1022
    %7807 = vmatprep.subr.mxu0 %v1027
    %7808 = vmatpush1.msra.mxu0 %v1026
    %7809 = vmatprep.subr.mxu0 %v1031
    %7810 = vmatpush1.msra.mxu0 %v1030
    %7811 = vmatprep.subr.mxu0 %v1035
    %7812 = vmatpush1.msra.mxu0 %v1034
    %7813 = vmatprep.subr.mxu0 %v1039
    %7814 = vmatpush1.msra.mxu0 %v1038
    %7815 = vmatprep.subr.mxu0 %v1043
    %7816 = vmatpush1.msra.mxu0 %v1042
    %7817 = vmatprep.subr.mxu0 %v1047
    %7818 = vmatpush1.msra.mxu0 %v1046
    %7819 = vmatprep.subr.mxu0 %v1051
    %7820 = vmatpush1.msra.mxu0 %v1050
    %7821 = vmatprep.subr.mxu0 %v1055
    %7822 = vmatpush1.msra.mxu0 %v1054
    %7823 = vmatprep.subr.mxu0 0.0
    %7824 = vmatpush1.msra.mxu0 0.0
    %7825 = vmatprep.subr.mxu0 0.0
    %7826 = vmatpush1.msra.mxu0 0.0
    %7827 = vmatprep.subr.mxu0 0.0
    %7828 = vmatpush1.msra.mxu0 0.0
    %7829 = vmatprep.subr.mxu0 0.0
    %7830 = vmatpush1.msra.mxu0 0.0
    %7831 = vmatprep.subr.mxu0 0.0
    %7832 = vmatpush1.msra.mxu0 0.0
    %7833 = vmatprep.subr.mxu0 0.0
    %7834 = vmatpush1.msra.mxu0 0.0
    %7835 = vmatprep.subr.mxu0 0.0
    %7836 = vmatpush1.msra.mxu0 0.0
    %7837 = vmatprep.subr.mxu0 0.0
    %7838 = vmatpush1.msra.mxu0 0.0
    %7839 = vmatprep.subr.mxu0 0.0
    %7840 = vmatpush1.msra.mxu0 0.0
    %7841 = vmatprep.subr.mxu0 0.0
    %7842 = vmatpush1.msra.mxu0 0.0
    %7843 = vmatprep.subr.mxu0 0.0
    %7844 = vmatpush1.msra.mxu0 0.0
    %7845 = vmatprep.subr.mxu0 0.0
    %7846 = vmatpush1.msra.mxu0 0.0
    %7847 = vmatprep.subr.mxu0 0.0
    %7848 = vmatpush1.msra.mxu0 0.0
    %7849 = vmatprep.subr.mxu0 0.0
    %7850 = vmatpush1.msra.mxu0 0.0
    %7851 = vmatprep.subr.mxu0 0.0
    %7852 = vmatpush1.msra.mxu0 0.0
    %7853 = vmatprep.subr.mxu0 0.0
    %7854 = vmatpush1.msra.mxu0 0.0
    %7855 = vmatprep.mubr.f32.mxu0 0.0
    %7856 = vmatmul.mubr.f32.gmra.mrb[0].mxu0 %v7783
    %v7857 = vpop.f32.mrb[0].mxu0
    %v7858 = vadd.f32 0.0, %v7857
    %v7859 = vpop.f32.mrb[0].mxu0
    %v7860 = vadd.f32 0.0, %v7859
    %7861 = vdwg.mxu0
    %7862 = vmatprep.subr.mxu0 %v997
    %7863 = vmatpush1.msra.mxu0 %v996
    %7864 = vmatprep.subr.mxu0 %v1001
    %7865 = vmatpush1.msra.mxu0 %v1000
    %7866 = vmatprep.subr.mxu0 %v1005
    %7867 = vmatpush1.msra.mxu0 %v1004
    %7868 = vmatprep.subr.mxu0 %v1009
    %7869 = vmatpush1.msra.mxu0 %v1008
    %7870 = vmatprep.subr.mxu0 %v1013
    %7871 = vmatpush1.msra.mxu0 %v1012
    %7872 = vmatprep.subr.mxu0 %v1017
    %7873 = vmatpush1.msra.mxu0 %v1016
    %7874 = vmatprep.subr.mxu0 %v1021
    %7875 = vmatpush1.msra.mxu0 %v1020
    %7876 = vmatprep.subr.mxu0 %v1025
    %7877 = vmatpush1.msra.mxu0 %v1024
    %7878 = vmatprep.subr.mxu0 %v1029
    %7879 = vmatpush1.msra.mxu0 %v1028
    %7880 = vmatprep.subr.mxu0 %v1033
    %7881 = vmatpush1.msra.mxu0 %v1032
    %7882 = vmatprep.subr.mxu0 %v1037
    %7883 = vmatpush1.msra.mxu0 %v1036
    %7884 = vmatprep.subr.mxu0 %v1041
    %7885 = vmatpush1.msra.mxu0 %v1040
    %7886 = vmatprep.subr.mxu0 %v1045
    %7887 = vmatpush1.msra.mxu0 %v1044
    %7888 = vmatprep.subr.mxu0 %v1049
    %7889 = vmatpush1.msra.mxu0 %v1048
    %7890 = vmatprep.subr.mxu0 %v1053
    %7891 = vmatpush1.msra.mxu0 %v1052
    %7892 = vmatprep.subr.mxu0 %v1057
    %7893 = vmatpush1.msra.mxu0 %v1056
    %7894 = vmatprep.subr.mxu0 0.0
    %7895 = vmatpush1.msra.mxu0 0.0
    %7896 = vmatprep.subr.mxu0 0.0
    %7897 = vmatpush1.msra.mxu0 0.0
    %7898 = vmatprep.subr.mxu0 0.0
    %7899 = vmatpush1.msra.mxu0 0.0
    %7900 = vmatprep.subr.mxu0 0.0
    %7901 = vmatpush1.msra.mxu0 0.0
    %7902 = vmatprep.subr.mxu0 0.0
    %7903 = vmatpush1.msra.mxu0 0.0
    %7904 = vmatprep.subr.mxu0 0.0
    %7905 = vmatpush1.msra.mxu0 0.0
    %7906 = vmatprep.subr.mxu0 0.0
    %7907 = vmatpush1.msra.mxu0 0.0
    %7908 = vmatprep.subr.mxu0 0.0
    %7909 = vmatpush1.msra.mxu0 0.0
    %7910 = vmatprep.subr.mxu0 0.0
    %7911 = vmatpush1.msra.mxu0 0.0
    %7912 = vmatprep.subr.mxu0 0.0
    %7913 = vmatpush1.msra.mxu0 0.0
    %7914 = vmatprep.subr.mxu0 0.0
    %7915 = vmatpush1.msra.mxu0 0.0
    %7916 = vmatprep.subr.mxu0 0.0
    %7917 = vmatpush1.msra.mxu0 0.0
    %7918 = vmatprep.subr.mxu0 0.0
    %7919 = vmatpush1.msra.mxu0 0.0
    %7920 = vmatprep.subr.mxu0 0.0
    %7921 = vmatpush1.msra.mxu0 0.0
    %7922 = vmatprep.subr.mxu0 0.0
    %7923 = vmatpush1.msra.mxu0 0.0
    %7924 = vmatprep.subr.mxu0 0.0
    %7925 = vmatpush1.msra.mxu0 0.0
    %7926 = vmatprep.mubr.f32.mxu0 0.0
    %7927 = vmatmul.mubr.f32.gmra.mrb[0].mxu0 %v7783
    %v7928 = vpop.f32.mrb[0].mxu0
    %v7929 = vadd.f32 0.0, %v7928
    %v7930 = vpop.f32.mrb[0].mxu0
    %v7931 = vadd.f32 0.0, %v7930
    %7932 = vdwg.mxu0
    %v7933 = vadd.f32 %v7787, %v7858
    %v7934 = vadd.f32 %v7788, %v7860
    %v7935 = vadd.f32 %v7789, %v7929
    %v7936 = vadd.f32 %v7790, %v7931
    %v7937 = vxor.u32 %v7933, 2147483648
    %v7938 = vxor.u32 %v7934, 2147483648
    %v7939 = vxor.u32 %v7935, 2147483648
    %v7940 = vmul.f32 %v7937, 1.442695
    %v7941 = vpow.pop %v7940
    %v7942 = vmul.f32 %v7938, 1.442695
    %v7943 = vpow.pop %v7942
    %v7944 = vmul.f32 %v7939, 1.442695
    %v7945 = vpow.pop %v7944
    %v7946 = vadd.f32 %v7941, 1.0
    %v7947 = vadd.f32 %v7943, 1.0
    %v7948 = vadd.f32 %v7945, 1.0
    %v7949 = vrcp.pop %v7946
    %v7950 = vmul.f32 1.0, %v7949
    %v7951 = vrcp.pop %v7947
    %v7952 = vmul.f32 1.0, %v7951
    %v7953 = vrcp.pop %v7948
    %v7954 = vmul.f32 1.0, %v7953
    %v7955 = vtanh.pop %v7936
    %v7956 = vmul.f32 %v7952, %v7781
    %v7957 = vmul.f32 %v7950, %v7955
    %v7958 = vadd.f32 %v7956, %v7957
    %v7959 = vtanh.pop %v7958
    %v7960 = vmul.f32 %v7954, %v7959
    %s7961 = smul.u32 39, 4
    %s7962 = smul.addr %s7961, 8
    %s7963 = scalar_lea.vmem [#allocation2], %s7962
    %v7964 = vld [vmem:[%s7963] sm:$0xff]
    %v7965 = vld [vmem:[%s7963 + $0x8] sm:$0xff]
    %v7966 = vld [vmem:[%s7963 + $0x10] sm:$0xff]
    %v7967 = vld [vmem:[%s7963 + $0x18] sm:$0xff]
    %7968 = vmatprep.subr.mxu0 %v995
    %7969 = vmatpush1.msra.mxu0 %v994
    %7970 = vmatprep.subr.mxu0 %v999
    %7971 = vmatpush1.msra.mxu0 %v998
    %7972 = vmatprep.subr.mxu0 %v1003
    %7973 = vmatpush1.msra.mxu0 %v1002
    %7974 = vmatprep.subr.mxu0 %v1007
    %7975 = vmatpush1.msra.mxu0 %v1006
    %7976 = vmatprep.subr.mxu0 %v1011
    %7977 = vmatpush1.msra.mxu0 %v1010
    %7978 = vmatprep.subr.mxu0 %v1015
    %7979 = vmatpush1.msra.mxu0 %v1014
    %7980 = vmatprep.subr.mxu0 %v1019
    %7981 = vmatpush1.msra.mxu0 %v1018
    %7982 = vmatprep.subr.mxu0 %v1023
    %7983 = vmatpush1.msra.mxu0 %v1022
    %7984 = vmatprep.subr.mxu0 %v1027
    %7985 = vmatpush1.msra.mxu0 %v1026
    %7986 = vmatprep.subr.mxu0 %v1031
    %7987 = vmatpush1.msra.mxu0 %v1030
    %7988 = vmatprep.subr.mxu0 %v1035
    %7989 = vmatpush1.msra.mxu0 %v1034
    %7990 = vmatprep.subr.mxu0 %v1039
    %7991 = vmatpush1.msra.mxu0 %v1038
    %7992 = vmatprep.subr.mxu0 %v1043
    %7993 = vmatpush1.msra.mxu0 %v1042
    %7994 = vmatprep.subr.mxu0 %v1047
    %7995 = vmatpush1.msra.mxu0 %v1046
    %7996 = vmatprep.subr.mxu0 %v1051
    %7997 = vmatpush1.msra.mxu0 %v1050
    %7998 = vmatprep.subr.mxu0 %v1055
    %7999 = vmatpush1.msra.mxu0 %v1054
    %8000 = vmatprep.subr.mxu0 0.0
    %8001 = vmatpush1.msra.mxu0 0.0
    %8002 = vmatprep.subr.mxu0 0.0
    %8003 = vmatpush1.msra.mxu0 0.0
    %8004 = vmatprep.subr.mxu0 0.0
    %8005 = vmatpush1.msra.mxu0 0.0
    %8006 = vmatprep.subr.mxu0 0.0
    %8007 = vmatpush1.msra.mxu0 0.0
    %8008 = vmatprep.subr.mxu0 0.0
    %8009 = vmatpush1.msra.mxu0 0.0
    %8010 = vmatprep.subr.mxu0 0.0
    %8011 = vmatpush1.msra.mxu0 0.0
    %8012 = vmatprep.subr.mxu0 0.0
    %8013 = vmatpush1.msra.mxu0 0.0
    %8014 = vmatprep.subr.mxu0 0.0
    %8015 = vmatpush1.msra.mxu0 0.0
    %8016 = vmatprep.subr.mxu0 0.0
    %8017 = vmatpush1.msra.mxu0 0.0
    %8018 = vmatprep.subr.mxu0 0.0
    %8019 = vmatpush1.msra.mxu0 0.0
    %8020 = vmatprep.subr.mxu0 0.0
    %8021 = vmatpush1.msra.mxu0 0.0
    %8022 = vmatprep.subr.mxu0 0.0
    %8023 = vmatpush1.msra.mxu0 0.0
    %8024 = vmatprep.subr.mxu0 0.0
    %8025 = vmatpush1.msra.mxu0 0.0
    %8026 = vmatprep.subr.mxu0 0.0
    %8027 = vmatpush1.msra.mxu0 0.0
    %8028 = vmatprep.subr.mxu0 0.0
    %8029 = vmatpush1.msra.mxu0 0.0
    %8030 = vmatprep.subr.mxu0 0.0
    %8031 = vmatpush1.msra.mxu0 0.0
    %8032 = vmatprep.mubr.f32.mxu0 0.0
    %8033 = vmatmul.mubr.f32.gmra.mrb[0].mxu0 %v7960
    %v8034 = vpop.f32.mrb[0].mxu0
    %v8035 = vadd.f32 0.0, %v8034
    %v8036 = vpop.f32.mrb[0].mxu0
    %v8037 = vadd.f32 0.0, %v8036
    %8038 = vdwg.mxu0
    %8039 = vmatprep.subr.mxu0 %v997
    %8040 = vmatpush1.msra.mxu0 %v996
    %8041 = vmatprep.subr.mxu0 %v1001
    %8042 = vmatpush1.msra.mxu0 %v1000
    %8043 = vmatprep.subr.mxu0 %v1005
    %8044 = vmatpush1.msra.mxu0 %v1004
    %8045 = vmatprep.subr.mxu0 %v1009
    %8046 = vmatpush1.msra.mxu0 %v1008
    %8047 = vmatprep.subr.mxu0 %v1013
    %8048 = vmatpush1.msra.mxu0 %v1012
    %8049 = vmatprep.subr.mxu0 %v1017
    %8050 = vmatpush1.msra.mxu0 %v1016
    %8051 = vmatprep.subr.mxu0 %v1021
    %8052 = vmatpush1.msra.mxu0 %v1020
    %8053 = vmatprep.subr.mxu0 %v1025
    %8054 = vmatpush1.msra.mxu0 %v1024
    %8055 = vmatprep.subr.mxu0 %v1029
    %8056 = vmatpush1.msra.mxu0 %v1028
    %8057 = vmatprep.subr.mxu0 %v1033
    %8058 = vmatpush1.msra.mxu0 %v1032
    %8059 = vmatprep.subr.mxu0 %v1037
    %8060 = vmatpush1.msra.mxu0 %v1036
    %8061 = vmatprep.subr.mxu0 %v1041
    %8062 = vmatpush1.msra.mxu0 %v1040
    %8063 = vmatprep.subr.mxu0 %v1045
    %8064 = vmatpush1.msra.mxu0 %v1044
    %8065 = vmatprep.subr.mxu0 %v1049
    %8066 = vmatpush1.msra.mxu0 %v1048
    %8067 = vmatprep.subr.mxu0 %v1053
    %8068 = vmatpush1.msra.mxu0 %v1052
    %8069 = vmatprep.subr.mxu0 %v1057
    %8070 = vmatpush1.msra.mxu0 %v1056
    %8071 = vmatprep.subr.mxu0 0.0
    %8072 = vmatpush1.msra.mxu0 0.0
    %8073 = vmatprep.subr.mxu0 0.0
    %8074 = vmatpush1.msra.mxu0 0.0
    %8075 = vmatprep.subr.mxu0 0.0
    %8076 = vmatpush1.msra.mxu0 0.0
    %8077 = vmatprep.subr.mxu0 0.0
    %8078 = vmatpush1.msra.mxu0 0.0
    %8079 = vmatprep.subr.mxu0 0.0
    %8080 = vmatpush1.msra.mxu0 0.0
    %8081 = vmatprep.subr.mxu0 0.0
    %8082 = vmatpush1.msra.mxu0 0.0
    %8083 = vmatprep.subr.mxu0 0.0
    %8084 = vmatpush1.msra.mxu0 0.0
    %8085 = vmatprep.subr.mxu0 0.0
    %8086 = vmatpush1.msra.mxu0 0.0
    %8087 = vmatprep.subr.mxu0 0.0
    %8088 = vmatpush1.msra.mxu0 0.0
    %8089 = vmatprep.subr.mxu0 0.0
    %8090 = vmatpush1.msra.mxu0 0.0
    %8091 = vmatprep.subr.mxu0 0.0
    %8092 = vmatpush1.msra.mxu0 0.0
    %8093 = vmatprep.subr.mxu0 0.0
    %8094 = vmatpush1.msra.mxu0 0.0
    %8095 = vmatprep.subr.mxu0 0.0
    %8096 = vmatpush1.msra.mxu0 0.0
    %8097 = vmatprep.subr.mxu0 0.0
    %8098 = vmatpush1.msra.mxu0 0.0
    %8099 = vmatprep.subr.mxu0 0.0
    %8100 = vmatpush1.msra.mxu0 0.0
    %8101 = vmatprep.subr.mxu0 0.0
    %8102 = vmatpush1.msra.mxu0 0.0
    %8103 = vmatprep.mubr.f32.mxu0 0.0
    %8104 = vmatmul.mubr.f32.gmra.mrb[0].mxu0 %v7960
    %v8105 = vpop.f32.mrb[0].mxu0
    %v8106 = vadd.f32 0.0, %v8105
    %v8107 = vpop.f32.mrb[0].mxu0
    %v8108 = vadd.f32 0.0, %v8107
    %8109 = vdwg.mxu0
    %v8110 = vadd.f32 %v7964, %v8035
    %v8111 = vadd.f32 %v7965, %v8037
    %v8112 = vadd.f32 %v7966, %v8106
    %v8113 = vadd.f32 %v7967, %v8108
    %v8114 = vxor.u32 %v8110, 2147483648
    %v8115 = vxor.u32 %v8111, 2147483648
    %v8116 = vxor.u32 %v8112, 2147483648
    %v8117 = vmul.f32 %v8114, 1.442695
    %v8118 = vpow.pop %v8117
    %v8119 = vmul.f32 %v8115, 1.442695
    %v8120 = vpow.pop %v8119
    %v8121 = vmul.f32 %v8116, 1.442695
    %v8122 = vpow.pop %v8121
    %v8123 = vadd.f32 %v8118, 1.0
    %v8124 = vadd.f32 %v8120, 1.0
    %v8125 = vadd.f32 %v8122, 1.0
    %v8126 = vrcp.pop %v8123
    %v8127 = vmul.f32 1.0, %v8126
    %v8128 = vrcp.pop %v8124
    %v8129 = vmul.f32 1.0, %v8128
    %v8130 = vrcp.pop %v8125
    %v8131 = vmul.f32 1.0, %v8130
    %v8132 = vtanh.pop %v8113
    %v8133 = vmul.f32 %v8129, %v7958
    %v8134 = vmul.f32 %v8127, %v8132
    %v8135 = vadd.f32 %v8133, %v8134
    %v8136 = vtanh.pop %v8135
    %v8137 = vmul.f32 %v8131, %v8136
    %v8138 = vld [vmem:[%s4] sm:$0xff]
    %v8139 = vld [vmem:[%s4 + $0x8] sm:$0xff]
    %v8140 = vld [vmem:[%s4 + $0x10] sm:$0xff]
    %v8141 = vld [vmem:[%s4 + $0x18] sm:$0xff]
    %v8142 = vld [vmem:[%s4 + $0x20] sm:$0xff]
    %v8143 = vld [vmem:[%s4 + $0x28] sm:$0xff]
    %v8144 = vld [vmem:[%s4 + $0x30] sm:$0xff]
    %v8145 = vld [vmem:[%s4 + $0x38] sm:$0xff]
    %v8146 = vld [vmem:[%s4 + $0x40] sm:$0xff]
    %v8147 = vld [vmem:[%s4 + $0x48] sm:$0xff]
    %v8148 = vld [vmem:[%s4 + $0x50] sm:$0xff]
    %v8149 = vld [vmem:[%s4 + $0x58] sm:$0xff]
    %v8150 = vld [vmem:[%s4 + $0x60] sm:$0xff]
    %v8151 = vld [vmem:[%s4 + $0x68] sm:$0xff]
    %v8152 = vld [vmem:[%s4 + $0x70] sm:$0xff]
    %v8153 = vld [vmem:[%s4 + $0x78] sm:$0xff]
    %v8154 = vld [vmem:[%s5] sm:$0x1]
    %v8156 = vlaneseq
    %v8157 = vshrl.u32 %v8156, 7
    %v8158 = vsub.s32 0, %v8157
    %v8159 = vrot.slane %v8154, %v8158
    %8161 = vmatprep.subr.mxu0 0.0
    %8162 = vmatpush1.msra.mxu0 %v8138
    %8163 = vmatprep.subr.mxu0 0.0
    %8164 = vmatpush1.msra.mxu0 %v8139
    %8165 = vmatprep.subr.mxu0 0.0
    %8166 = vmatpush1.msra.mxu0 %v8140
    %8167 = vmatprep.subr.mxu0 0.0
    %8168 = vmatpush1.msra.mxu0 %v8141
    %8169 = vmatprep.subr.mxu0 0.0
    %8170 = vmatpush1.msra.mxu0 %v8142
    %8171 = vmatprep.subr.mxu0 0.0
    %8172 = vmatpush1.msra.mxu0 %v8143
    %8173 = vmatprep.subr.mxu0 0.0
    %8174 = vmatpush1.msra.mxu0 %v8144
    %8175 = vmatprep.subr.mxu0 0.0
    %8176 = vmatpush1.msra.mxu0 %v8145
    %8177 = vmatprep.subr.mxu0 0.0
    %8178 = vmatpush1.msra.mxu0 %v8146
    %8179 = vmatprep.subr.mxu0 0.0
    %8180 = vmatpush1.msra.mxu0 %v8147
    %8181 = vmatprep.subr.mxu0 0.0
    %8182 = vmatpush1.msra.mxu0 %v8148
    %8183 = vmatprep.subr.mxu0 0.0
    %8184 = vmatpush1.msra.mxu0 %v8149
    %8185 = vmatprep.subr.mxu0 0.0
    %8186 = vmatpush1.msra.mxu0 %v8150
    %8187 = vmatprep.subr.mxu0 0.0
    %8188 = vmatpush1.msra.mxu0 %v8151
    %8189 = vmatprep.subr.mxu0 0.0
    %8190 = vmatpush1.msra.mxu0 %v8152
    %8191 = vmatprep.subr.mxu0 0.0
    %8192 = vmatpush1.msra.mxu0 %v8153
    %8193 = vmatprep.subr.mxu0 0.0
    %8194 = vmatpush1.msra.mxu0 0.0
    %8195 = vmatprep.subr.mxu0 0.0
    %8196 = vmatpush1.msra.mxu0 0.0
    %8197 = vmatprep.subr.mxu0 0.0
    %8198 = vmatpush1.msra.mxu0 0.0
    %8199 = vmatprep.subr.mxu0 0.0
    %8200 = vmatpush1.msra.mxu0 0.0
    %8201 = vmatprep.subr.mxu0 0.0
    %8202 = vmatpush1.msra.mxu0 0.0
    %8203 = vmatprep.subr.mxu0 0.0
    %8204 = vmatpush1.msra.mxu0 0.0
    %8205 = vmatprep.subr.mxu0 0.0
    %8206 = vmatpush1.msra.mxu0 0.0
    %8207 = vmatprep.subr.mxu0 0.0
    %8208 = vmatpush1.msra.mxu0 0.0
    %8209 = vmatprep.subr.mxu0 0.0
    %8210 = vmatpush1.msra.mxu0 0.0
    %8211 = vmatprep.subr.mxu0 0.0
    %8212 = vmatpush1.msra.mxu0 0.0
    %8213 = vmatprep.subr.mxu0 0.0
    %8214 = vmatpush1.msra.mxu0 0.0
    %8215 = vmatprep.subr.mxu0 0.0
    %8216 = vmatpush1.msra.mxu0 0.0
    %8217 = vmatprep.subr.mxu0 0.0
    %8218 = vmatpush1.msra.mxu0 0.0
    %8219 = vmatprep.subr.mxu0 0.0
    %8220 = vmatpush1.msra.mxu0 0.0
    %8221 = vmatprep.subr.mxu0 0.0
    %8222 = vmatpush1.msra.mxu0 0.0
    %8223 = vmatprep.subr.mxu0 0.0
    %8224 = vmatpush1.msra.mxu0 0.0
    %8225 = vmatprep.mubr.f32.mxu0 0.0
    %8226 = vmatmul.mubr.f32.gmra.mrb[0].mxu0 %v8137
    %v8227 = vpop.f32.mrb[0].mxu0
    %v8228 = vadd.f32 %v8159, %v8227
    %v8229 = vpop.f32.mrb[0].mxu0
    %8230 = vdwg.mxu0
    %vm8231 = vcmask 31744
    %8232 = vst.msk [vmem:[%s6] sm:$0xff] %vm8231, %v8228
    // Predicated region
    $region30: #{tpu_custom_call.1} parent=1 // pred_check
      _
    $region31: #{tpu_custom_call.1} parent=1 // pred_check_branch
      %8234 = sbr.rel (0) target = $region33
    $region32: #{tpu_custom_call.1} parent=1 // pred_region
      _
    $region33: #{tpu_custom_call.1} parent=1 // pred_fallthru
      _
    // Predicated region
    $region34: #{tpu_custom_call.1} parent=1 // pred_check
      _
    $region35: #{tpu_custom_call.1} parent=1 // pred_check_branch
      %8236 = sbr.rel (0) target = $region37
    $region36: #{tpu_custom_call.1} parent=1 // pred_region
      _
    $region37: #{tpu_custom_call.1} parent=1 // pred_fallthru
      _
    %8237 = vsyncpa [#allocation4], 1

</llo_original>
